<compile_context>
chip_gen: v7x
topology: tpu7x:2x2x1
jax: 0.10.0
libtpu: 0.0.40
codegen_flags: <defaults>
</compile_context>

<pallas_src>
import jax
import jax.numpy as jnp
from jax import lax
from jax.experimental import pallas as pl
from jax.experimental.pallas import tpu as pltpu

IN_DIM = 3072
OUT_DIM = 768
EPS = 1e-12


def bert_output_kernel(x_ref, w_ref, b_ref, res_ref, gamma_ref, beta_ref, o_ref):
    # Cast the activation tile to bf16 in-kernel (cheap VPU work hidden under
    # the memory-bound pipeline); MXU matmul with f32 accumulation.
    x = x_ref[...].astype(jnp.bfloat16)
    y = jnp.dot(x, w_ref[...], preferred_element_type=jnp.float32)

    # bias + residual (f32 epilogue; residual may arrive as bf16 or f32)
    y = y + b_ref[...].astype(jnp.float32) + res_ref[...].astype(jnp.float32)
    # TODO(synk): dropout omitted (module eval/inference semantics -> identity)

    # LayerNorm (TF style, eps inside the sqrt). Centered two-pass variance
    # matches the PyTorch reference exactly; rsqrt runs on the EUP.
    u = jnp.mean(y, axis=-1, keepdims=True)
    d = y - u
    var = jnp.mean(d * d, axis=-1, keepdims=True)
    inv = lax.rsqrt(var + EPS)
    out = (gamma_ref[...].astype(jnp.float32) * (d * inv)
           + beta_ref[...].astype(jnp.float32))
    o_ref[...] = out.astype(o_ref.dtype)


def bert_output(hidden_states, input_tensor, w_t, bias, gamma, beta,
                *, tm=512, out_dtype=None):
    """hidden_states: [M, 3072] (f32 or bf16), input_tensor: [M, 768],
    w_t: [3072, 768] (pre-converted to bf16 once by the caller)."""
    M, K = hidden_states.shape
    N = w_t.shape[1]
    if out_dtype is None:
        out_dtype = hidden_states.dtype

    # The weight should be converted to bf16 ONCE and cached by the caller;
    # this guard is a no-op in that case.
    if w_t.dtype != jnp.bfloat16:
        w_t = w_t.astype(jnp.bfloat16)

    # Row tile selection: biggest tile that divides M, capped at 512 (v7x
    # VMEM headroom). For typical BERT sizes (M = batch*seq >= 1024) this
    # still yields >= 2 grid steps so the "parallel" axis feeds both
    # TensorCores on v7x.
    if tm > M or M % tm != 0:
        for cand in (512, 384, 256, 128, 64, 32, 16, 8):
            if cand <= M and M % cand == 0:
                tm = cand
                break
        else:
            tm = M

    grid = (M // tm,)
    return pl.pallas_call(
        bert_output_kernel,
        out_shape=jax.ShapeDtypeStruct((M, N), out_dtype),
        grid_spec=pltpu.PrefetchScalarGridSpec(
            num_scalar_prefetch=0,
            grid=grid,
            in_specs=[
                # x row tile, full K, original dtype (cast in-kernel)
                pl.BlockSpec((tm, K), lambda i: (i, 0)),
                # resident bf16 weight, constant block -> single buffer
                pl.BlockSpec((K, N), lambda i: (0, 0),
                             pipeline_mode=pl.Buffered(1)),
                pl.BlockSpec((1, N), lambda i: (0, 0)),    # bias
                pl.BlockSpec((tm, N), lambda i: (i, 0)),   # residual row tile
                pl.BlockSpec((1, N), lambda i: (0, 0)),    # layernorm gamma
                pl.BlockSpec((1, N), lambda i: (0, 0)),    # layernorm beta
            ],
            out_specs=pl.BlockSpec((tm, N), lambda i: (i, 0)),
        ),
        compiler_params=pltpu.CompilerParams(
            dimension_semantics=("parallel",),
            vmem_limit_bytes=48 * 1024 * 1024,
        ),
    )(hidden_states, w_t, bias, input_tensor, gamma, beta)


def bert_output_ref(hidden_states, input_tensor, w_t, bias, gamma, beta):
    y = hidden_states.astype(jnp.float32) @ w_t.astype(jnp.float32) + bias
    y = y + input_tensor.astype(jnp.float32)
    u = jnp.mean(y, axis=-1, keepdims=True)
    s = jnp.mean((y - u) ** 2, axis=-1, keepdims=True)
    yn = (y - u) / jnp.sqrt(s + EPS)
    return gamma * yn + beta


if __name__ == "__main__":
    key = jax.random.PRNGKey(0)
    k1, k2, k3, k4 = jax.random.split(key, 4)

    batch, seq = 2, 8
    M = batch * seq

    # deterministic synthetic parameters
    # (shapes from nn.Linear(3072, 768) + BertLayerNorm(768))
    w = jax.random.normal(k1, (OUT_DIM, IN_DIM), jnp.float32) * 0.02  # torch (out, in)
    w_t = w.T                                                          # [3072, 768]
    w_t_bf16 = w_t.astype(jnp.bfloat16)   # one-time hoisted conversion (cache in real use)
    bias = jax.random.normal(k2, (1, OUT_DIM), jnp.float32) * 0.02
    gamma = jnp.ones((1, OUT_DIM), jnp.float32)
    beta = jnp.zeros((1, OUT_DIM), jnp.float32)

    hidden_states = jax.random.normal(k3, (M, IN_DIM), jnp.float32)
    input_tensor = jax.random.normal(k4, (M, OUT_DIM), jnp.float32)

    out = bert_output(hidden_states, input_tensor, w_t_bf16, bias, gamma, beta)
    out = jax.block_until_ready(out)

    # Reference computed from the same bf16-rounded matmul operands (f32 math),
    # so the comparison isolates kernel numerics from the intentional bf16 cast.
    ref = bert_output_ref(
        hidden_states.astype(jnp.bfloat16).astype(jnp.float32),
        input_tensor,
        w_t_bf16.astype(jnp.float32),
        bias, gamma, beta)

    assert out.shape == (M, OUT_DIM)
    assert jnp.allclose(out, ref, atol=1e-2, rtol=1e-2), "mismatch vs reference"

    print("KERNEL_OK")
</pallas_src>

<mosaic_0001>
module attributes {stable_mosaic.version = 11 : i64} {
  func.func @bert_output_kernel(%arg0: i32, %arg1: memref<16x3072xf32, #tpu.memory_space<vmem>>, %arg2: memref<3072x768xbf16, #tpu.memory_space<vmem>>, %arg3: memref<1x768xf32, #tpu.memory_space<vmem>>, %arg4: memref<16x768xf32, #tpu.memory_space<vmem>>, %arg5: memref<1x768xf32, #tpu.memory_space<vmem>>, %arg6: memref<1x768xf32, #tpu.memory_space<vmem>>, %arg7: memref<16x768xf32, #tpu.memory_space<vmem>>) attributes {dimension_semantics = [#tpu.dimension_semantics<parallel>], iteration_bounds = array<i64: 1>, scalar_prefetch = 0 : i64, scratch_operands = 0 : i64, tpu.core_type = #tpu.core_type<tc>, window_params = [{transform_indices = @transform_0, window_bounds = array<i64: 16, 3072>}, {pipeline_mode = #tpu.pipeline_mode<synchronous>, transform_indices = @transform_1, window_bounds = array<i64: 3072, 768>}, {pipeline_mode = #tpu.pipeline_mode<synchronous>, transform_indices = @transform_2, window_bounds = array<i64: 1, 768>}, {transform_indices = @transform_3, window_bounds = array<i64: 16, 768>}, {pipeline_mode = #tpu.pipeline_mode<synchronous>, transform_indices = @transform_4, window_bounds = array<i64: 1, 768>}, {pipeline_mode = #tpu.pipeline_mode<synchronous>, transform_indices = @transform_5, window_bounds = array<i64: 1, 768>}, {transform_indices = @transform_6, window_bounds = array<i64: 16, 768>}]} {
    %c0 = arith.constant 0 : index
    %c0_0 = arith.constant 0 : index
    %0 = vector.load %arg1[%c0, %c0_0] : memref<16x3072xf32, #tpu.memory_space<vmem>>, vector<16x3072xf32>
    %1 = arith.truncf %0 : vector<16x3072xf32> to vector<16x3072xbf16>
    %c0_1 = arith.constant 0 : index
    %c0_2 = arith.constant 0 : index
    %2 = vector.load %arg2[%c0_1, %c0_2] : memref<3072x768xbf16, #tpu.memory_space<vmem>>, vector<3072x768xbf16>
    %cst = arith.constant dense<0.000000e+00> : vector<16x768xf32>
    %3 = tpu.matmul %1, %2, %cst {dimension_numbers = #tpu.dot_dimension_numbers<[1], [0], [0], [1], [0, 0, 1, 1], [], []>} : vector<16x3072xbf16>, vector<3072x768xbf16>, vector<16x768xf32> -> vector<16x768xf32>
    %c0_3 = arith.constant 0 : index
    %c0_4 = arith.constant 0 : index
    %4 = vector.load %arg3[%c0_3, %c0_4] : memref<1x768xf32, #tpu.memory_space<vmem>>, vector<1x768xf32>
    %5 = vector.broadcast %4 : vector<1x768xf32> to vector<16x768xf32>
    %6 = arith.addf %3, %5 : vector<16x768xf32>
    %c0_5 = arith.constant 0 : index
    %c0_6 = arith.constant 0 : index
    %7 = vector.load %arg4[%c0_5, %c0_6] : memref<16x768xf32, #tpu.memory_space<vmem>>, vector<16x768xf32>
    %8 = arith.addf %6, %7 : vector<16x768xf32>
    %cst_7 = arith.constant dense<0.000000e+00> : vector<16xf32>
    %9 = vector.multi_reduction <add>, %8, %cst_7 [1] : vector<16x768xf32> to vector<16xf32>
    %10 = vector.shape_cast %9 : vector<16xf32> to vector<16x1xf32>
    %cst_8 = arith.constant 7.680000e+02 : f32
    %11 = vector.broadcast %cst_8 : f32 to vector<16x1xf32>
    %12 = arith.divf %10, %11 : vector<16x1xf32>
    %13 = vector.broadcast %12 : vector<16x1xf32> to vector<16x768xf32>
    %14 = arith.subf %8, %13 : vector<16x768xf32>
    %15 = arith.mulf %14, %14 : vector<16x768xf32>
    %cst_9 = arith.constant dense<0.000000e+00> : vector<16xf32>
    %16 = vector.multi_reduction <add>, %15, %cst_9 [1] : vector<16x768xf32> to vector<16xf32>
    %17 = vector.shape_cast %16 : vector<16xf32> to vector<16x1xf32>
    %cst_10 = arith.constant 7.680000e+02 : f32
    %18 = vector.broadcast %cst_10 : f32 to vector<16x1xf32>
    %19 = arith.divf %17, %18 : vector<16x1xf32>
    %cst_11 = arith.constant 9.99999996E-13 : f32
    %20 = vector.broadcast %cst_11 : f32 to vector<16x1xf32>
    %21 = arith.addf %19, %20 : vector<16x1xf32>
    %22 = math.rsqrt %21 : vector<16x1xf32>
    %c0_12 = arith.constant 0 : index
    %c0_13 = arith.constant 0 : index
    %23 = vector.load %arg5[%c0_12, %c0_13] : memref<1x768xf32, #tpu.memory_space<vmem>>, vector<1x768xf32>
    %24 = vector.broadcast %22 : vector<16x1xf32> to vector<16x768xf32>
    %25 = arith.mulf %14, %24 : vector<16x768xf32>
    %26 = vector.broadcast %23 : vector<1x768xf32> to vector<16x768xf32>
    %27 = arith.mulf %26, %25 : vector<16x768xf32>
    %c0_14 = arith.constant 0 : index
    %c0_15 = arith.constant 0 : index
    %28 = vector.load %arg6[%c0_14, %c0_15] : memref<1x768xf32, #tpu.memory_space<vmem>>, vector<1x768xf32>
    %29 = vector.broadcast %28 : vector<1x768xf32> to vector<16x768xf32>
    %30 = arith.addf %27, %29 : vector<16x768xf32>
    %c0_16 = arith.constant 0 : index
    %c0_17 = arith.constant 0 : index
    %31 = vector.load %arg7[%c0_16, %c0_17] : memref<16x768xf32, #tpu.memory_space<vmem>>, vector<16x768xf32>
    tpu.vector_store %arg7[%c0_16, %c0_17], %30 {strides = array<i32>} : memref<16x768xf32, #tpu.memory_space<vmem>>, vector<16x768xf32>,
    return
  }
  func.func @transform_0(%arg0: i32) -> (i32, i32) {
    %c0_i32 = arith.constant 0 : i32
    %c0_i32_0 = arith.constant 0 : i32
    return %arg0, %c0_i32 : i32, i32
  }
  func.func @transform_1(%arg0: i32) -> (i32, i32) {
    %c0_i32 = arith.constant 0 : i32
    %c0_i32_0 = arith.constant 0 : i32
    %c0_i32_1 = arith.constant 0 : i32
    return %c0_i32, %c0_i32_0 : i32, i32
  }
  func.func @transform_2(%arg0: i32) -> (i32, i32) {
    %c0_i32 = arith.constant 0 : i32
    %c0_i32_0 = arith.constant 0 : i32
    %c0_i32_1 = arith.constant 0 : i32
    return %c0_i32, %c0_i32_0 : i32, i32
  }
  func.func @transform_3(%arg0: i32) -> (i32, i32) {
    %c0_i32 = arith.constant 0 : i32
    %c0_i32_0 = arith.constant 0 : i32
    return %arg0, %c0_i32 : i32, i32
  }
  func.func @transform_4(%arg0: i32) -> (i32, i32) {
    %c0_i32 = arith.constant 0 : i32
    %c0_i32_0 = arith.constant 0 : i32
    %c0_i32_1 = arith.constant 0 : i32
    return %c0_i32, %c0_i32_0 : i32, i32
  }
  func.func @transform_5(%arg0: i32) -> (i32, i32) {
    %c0_i32 = arith.constant 0 : i32
    %c0_i32_0 = arith.constant 0 : i32
    %c0_i32_1 = arith.constant 0 : i32
    return %c0_i32, %c0_i32_0 : i32, i32
  }
  func.func @transform_6(%arg0: i32) -> (i32, i32) {
    %c0_i32 = arith.constant 0 : i32
    %c0_i32_0 = arith.constant 0 : i32
    return %arg0, %c0_i32 : i32, i32
  }
}

</mosaic_0001>

<llo_original>
// kernel: tpu_custom_call.1
$region0: #{tpu_custom_call.1}
  #allocation0 [shape = 'u32[]', space=smem, size = 0x4, offset = 0x4, fixed_abs, tag = 'smem constant byte address 0x4 - core index']
  #allocation1 [shape = 'u32[144,128]{1,0:T(1,128)}', space=vmem, size = 0x12000, scoped, tag = 'internal scratch']
  %s0 = inlined_call_operand.hbm [shape: f32[16,3072], index: 0, kind: input, shape index: {}]
  %s1 = inlined_call_operand.hbm [shape: bf16[3072,768], index: 1, kind: input, shape index: {}]
  %s2 = inlined_call_operand.hbm [shape: f32[1,768], index: 2, kind: input, shape index: {}]
  %s3 = inlined_call_operand.hbm [shape: f32[16,768], index: 3, kind: input, shape index: {}]
  %s4 = inlined_call_operand.hbm [shape: f32[1,768], index: 4, kind: input, shape index: {}]
  %s5 = inlined_call_operand.hbm [shape: f32[1,768], index: 5, kind: input, shape index: {}]
  %s6 = inlined_call_operand.hbm [shape: f32[16,768], index: 6, kind: output, shape index: {}]
  %s7 = sld [smem:[#allocation0]]
  $region58: #{tpu_custom_call.1} parent=0
    _
  %s9 = ssub.s32 1, %s7
  %s10 = scalar_select 0, %s9, %s7
  $region1: #{tpu_custom_call.1} parent=0
    #allocation2 [shape = 'u8[196608]{0}', space=vmem, size = 0x30000, scoped, tag = 'input window, operand 0, single buffered']
    #allocation3 [shape = 's32[1]{0}', space=sflag, size = 0x4, scoped, tag = 'scoped memory for tpu_custom_call.1']
    #allocation4 [shape = 's32[1]{0}', space=sflag, size = 0x4, scoped, tag = 'scoped memory for tpu_custom_call.1']
    #allocation5 [shape = 'u8[4718592]{0}', space=vmem, size = 0x480000, scoped, tag = 'input window, operand 1, single buffered']
    #allocation6 [shape = 's32[1]{0}', space=sflag, size = 0x4, scoped, tag = 'scoped memory for tpu_custom_call.1']
    #allocation7 [shape = 'u8[3072]{0}', space=vmem, size = 0xc00, scoped, tag = 'input window, operand 2, single buffered']
    #allocation8 [shape = 'u8[49152]{0}', space=vmem, size = 0xc000, scoped, tag = 'input window, operand 3, single buffered']
    #allocation9 [shape = 's32[1]{0}', space=sflag, size = 0x4, scoped, tag = 'scoped memory for tpu_custom_call.1']
    #allocation10 [shape = 'u8[3072]{0}', space=vmem, size = 0xc00, scoped, tag = 'input window, operand 4, single buffered']
    #allocation11 [shape = 'u8[3072]{0}', space=vmem, size = 0xc00, scoped, tag = 'input window, operand 5, single buffered']
    #allocation12 [shape = 's32[1]{0}', space=sflag, size = 0x4, scoped, tag = 'scoped memory for tpu_custom_call.1']
    #allocation13 [shape = 'u8[49152]{0}', space=vmem, size = 0xc000, scoped, tag = 'output window, operand 0, single buffered']
    %11 = vsyncpa [#allocation3], 0
    %12 = vsyncpa [#allocation6], 0
    %13 = vsyncpa [#allocation9], 0
    %14 = vsyncpa [#allocation12], 0
    %15 = vsyncpa [#allocation4], 0
    // Predicated region
    $region2: #{tpu_custom_call.1} parent=1 // pred_check
      _
    $region3: #{tpu_custom_call.1} parent=1 // pred_check_branch
      %17 = sbr.rel (0) target = $region5
    $region4: #{tpu_custom_call.1} parent=1 // pred_region
      %s19 = ssub.s32 6144, 6144
      %20 = vsyncadd [#allocation3], %s19
      %s21 = sshll.u32 [#allocation2], 4
      %s22 = int_to_ptr.vmem [resolvable:$true] %s21
      %27 = dma.hbm_to_vmem [thread:$0]  %s0, 6144, %s22, [#allocation3], 3072, 3072, 192
    $region5: #{tpu_custom_call.1} parent=1 // pred_fallthru
      _
    // Predicated region
    $region6: #{tpu_custom_call.1} parent=1 // pred_check
      _
    $region7: #{tpu_custom_call.1} parent=1 // pred_check_branch
      %29 = sbr.rel (0) target = $region9
    $region8: #{tpu_custom_call.1} parent=1 // pred_region
      %s31 = ssub.s32 147456, 147456
      %32 = vsyncadd [#allocation6], %s31
      %s33 = sshll.u32 [#allocation5], 4
      %s34 = int_to_ptr.vmem [resolvable:$true] %s33
      %39 = dma.hbm_to_vmem [thread:$0]  %s1, 147456, %s34, [#allocation6], 384, 384, 24
    $region9: #{tpu_custom_call.1} parent=1 // pred_fallthru
      _
    // Predicated region
    $region10: #{tpu_custom_call.1} parent=1 // pred_check
      _
    $region11: #{tpu_custom_call.1} parent=1 // pred_check_branch
      %41 = sbr.rel (0) target = $region13
    $region12: #{tpu_custom_call.1} parent=1 // pred_region
      %s43 = ssub.s32 96, 96
      %44 = vsyncadd [#allocation6], %s43
      %s46 = sshll.u32 [#allocation7], 4
      %s47 = int_to_ptr.vmem [resolvable:$true] %s46
      %49 = dma.hbm_to_vmem [thread:$0]  %s2, 96, %s47, [#allocation6]
    $region13: #{tpu_custom_call.1} parent=1 // pred_fallthru
      _
    // Predicated region
    $region14: #{tpu_custom_call.1} parent=1 // pred_check
      _
    $region15: #{tpu_custom_call.1} parent=1 // pred_check_branch
      %51 = sbr.rel (0) target = $region17
    $region16: #{tpu_custom_call.1} parent=1 // pred_region
      %s53 = ssub.s32 1536, 1536
      %54 = vsyncadd [#allocation9], %s53
      %s55 = sshll.u32 [#allocation8], 4
      %s56 = int_to_ptr.vmem [resolvable:$true] %s55
      %61 = dma.hbm_to_vmem [thread:$0]  %s3, 1536, %s56, [#allocation9], 768, 768, 48
    $region17: #{tpu_custom_call.1} parent=1 // pred_fallthru
      _
    // Predicated region
    $region18: #{tpu_custom_call.1} parent=1 // pred_check
      _
    $region19: #{tpu_custom_call.1} parent=1 // pred_check_branch
      %63 = sbr.rel (0) target = $region21
    $region20: #{tpu_custom_call.1} parent=1 // pred_region
      %s65 = ssub.s32 96, 96
      %66 = vsyncadd [#allocation9], %s65
      %s68 = sshll.u32 [#allocation10], 4
      %s69 = int_to_ptr.vmem [resolvable:$true] %s68
      %71 = dma.hbm_to_vmem [thread:$0]  %s4, 96, %s69, [#allocation9]
    $region21: #{tpu_custom_call.1} parent=1 // pred_fallthru
      _
    // Predicated region
    $region22: #{tpu_custom_call.1} parent=1 // pred_check
      _
    $region23: #{tpu_custom_call.1} parent=1 // pred_check_branch
      %73 = sbr.rel (0) target = $region25
    $region24: #{tpu_custom_call.1} parent=1 // pred_region
      %s75 = ssub.s32 96, 96
      %76 = vsyncadd [#allocation12], %s75
      %s78 = sshll.u32 [#allocation11], 4
      %s79 = int_to_ptr.vmem [resolvable:$true] %s78
      %81 = dma.hbm_to_vmem [thread:$0]  %s5, 96, %s79, [#allocation12]
    $region25: #{tpu_custom_call.1} parent=1 // pred_fallthru
      _
    // Predicated region
    $region26: #{tpu_custom_call.1} parent=1 // pred_check
      _
    $region27: #{tpu_custom_call.1} parent=1 // pred_check_branch
      %83 = sbr.rel (0) target = $region29
    $region28: #{tpu_custom_call.1} parent=1 // pred_region
      %84 = dma.done [#allocation3], 6144
    $region29: #{tpu_custom_call.1} parent=1 // pred_fallthru
      _
    // Predicated region
    $region30: #{tpu_custom_call.1} parent=1 // pred_check
      _
    $region31: #{tpu_custom_call.1} parent=1 // pred_check_branch
      %86 = sbr.rel (0) target = $region33
    $region32: #{tpu_custom_call.1} parent=1 // pred_region
      %87 = dma.done [#allocation6], 147456
    $region33: #{tpu_custom_call.1} parent=1 // pred_fallthru
      _
    // Predicated region
    $region34: #{tpu_custom_call.1} parent=1 // pred_check
      _
    $region35: #{tpu_custom_call.1} parent=1 // pred_check_branch
      %89 = sbr.rel (0) target = $region37
    $region36: #{tpu_custom_call.1} parent=1 // pred_region
      %90 = dma.done [#allocation6], 96
    $region37: #{tpu_custom_call.1} parent=1 // pred_fallthru
      _
    // Predicated region
    $region38: #{tpu_custom_call.1} parent=1 // pred_check
      _
    $region39: #{tpu_custom_call.1} parent=1 // pred_check_branch
      %92 = sbr.rel (0) target = $region41
    $region40: #{tpu_custom_call.1} parent=1 // pred_region
      %93 = dma.done [#allocation9], 1536
    $region41: #{tpu_custom_call.1} parent=1 // pred_fallthru
      _
    // Predicated region
    $region42: #{tpu_custom_call.1} parent=1 // pred_check
      _
    $region43: #{tpu_custom_call.1} parent=1 // pred_check_branch
      %95 = sbr.rel (0) target = $region45
    $region44: #{tpu_custom_call.1} parent=1 // pred_region
      %96 = dma.done [#allocation9], 96
    $region45: #{tpu_custom_call.1} parent=1 // pred_fallthru
      _
    // Predicated region
    $region46: #{tpu_custom_call.1} parent=1 // pred_check
      _
    $region47: #{tpu_custom_call.1} parent=1 // pred_check_branch
      %98 = sbr.rel (0) target = $region49
    $region48: #{tpu_custom_call.1} parent=1 // pred_region
      %99 = dma.done [#allocation12], 96
    $region49: #{tpu_custom_call.1} parent=1 // pred_fallthru
      _
    %v100 = vld [vmem:[#allocation2] sm:$0xff]
    %v101 = vld [vmem:[#allocation2 + $0x8] sm:$0xff]
    %v102 = vld [vmem:[#allocation2 + $0x10] sm:$0xff]
    %v103 = vld [vmem:[#allocation2 + $0x18] sm:$0xff]
    %v104 = vld [vmem:[#allocation2 + $0x20] sm:$0xff]
    %v105 = vld [vmem:[#allocation2 + $0x28] sm:$0xff]
    %v106 = vld [vmem:[#allocation2 + $0x30] sm:$0xff]
    %v107 = vld [vmem:[#allocation2 + $0x38] sm:$0xff]
    %v108 = vld [vmem:[#allocation2 + $0x40] sm:$0xff]
    %v109 = vld [vmem:[#allocation2 + $0x48] sm:$0xff]
    %v110 = vld [vmem:[#allocation2 + $0x50] sm:$0xff]
    %v111 = vld [vmem:[#allocation2 + $0x58] sm:$0xff]
    %v112 = vld [vmem:[#allocation2 + $0x60] sm:$0xff]
    %v113 = vld [vmem:[#allocation2 + $0x68] sm:$0xff]
    %v114 = vld [vmem:[#allocation2 + $0x70] sm:$0xff]
    %v115 = vld [vmem:[#allocation2 + $0x78] sm:$0xff]
    %v116 = vld [vmem:[#allocation2 + $0x80] sm:$0xff]
    %v117 = vld [vmem:[#allocation2 + $0x88] sm:$0xff]
    %v118 = vld [vmem:[#allocation2 + $0x90] sm:$0xff]
    %v119 = vld [vmem:[#allocation2 + $0x98] sm:$0xff]
    %v120 = vld [vmem:[#allocation2 + $0xa0] sm:$0xff]
    %v121 = vld [vmem:[#allocation2 + $0xa8] sm:$0xff]
    %v122 = vld [vmem:[#allocation2 + $0xb0] sm:$0xff]
    %v123 = vld [vmem:[#allocation2 + $0xb8] sm:$0xff]
    %v124 = vld [vmem:[#allocation2 + $0xc0] sm:$0xff]
    %v125 = vld [vmem:[#allocation2 + $0xc8] sm:$0xff]
    %v126 = vld [vmem:[#allocation2 + $0xd0] sm:$0xff]
    %v127 = vld [vmem:[#allocation2 + $0xd8] sm:$0xff]
    %v128 = vld [vmem:[#allocation2 + $0xe0] sm:$0xff]
    %v129 = vld [vmem:[#allocation2 + $0xe8] sm:$0xff]
    %v130 = vld [vmem:[#allocation2 + $0xf0] sm:$0xff]
    %v131 = vld [vmem:[#allocation2 + $0xf8] sm:$0xff]
    %v132 = vld [vmem:[#allocation2 + $0x100] sm:$0xff]
    %v133 = vld [vmem:[#allocation2 + $0x108] sm:$0xff]
    %v134 = vld [vmem:[#allocation2 + $0x110] sm:$0xff]
    %v135 = vld [vmem:[#allocation2 + $0x118] sm:$0xff]
    %v136 = vld [vmem:[#allocation2 + $0x120] sm:$0xff]
    %v137 = vld [vmem:[#allocation2 + $0x128] sm:$0xff]
    %v138 = vld [vmem:[#allocation2 + $0x130] sm:$0xff]
    %v139 = vld [vmem:[#allocation2 + $0x138] sm:$0xff]
    %v140 = vld [vmem:[#allocation2 + $0x140] sm:$0xff]
    %v141 = vld [vmem:[#allocation2 + $0x148] sm:$0xff]
    %v142 = vld [vmem:[#allocation2 + $0x150] sm:$0xff]
    %v143 = vld [vmem:[#allocation2 + $0x158] sm:$0xff]
    %v144 = vld [vmem:[#allocation2 + $0x160] sm:$0xff]
    %v145 = vld [vmem:[#allocation2 + $0x168] sm:$0xff]
    %v146 = vld [vmem:[#allocation2 + $0x170] sm:$0xff]
    %v147 = vld [vmem:[#allocation2 + $0x178] sm:$0xff]
    %v148 = vpack.c.bf16 %v124, %v100
    %v149 = vpack.c.bf16 %v125, %v101
    %v150 = vpack.c.bf16 %v126, %v102
    %v151 = vpack.c.bf16 %v127, %v103
    %v152 = vpack.c.bf16 %v128, %v104
    %v153 = vpack.c.bf16 %v129, %v105
    %v154 = vpack.c.bf16 %v130, %v106
    %v155 = vpack.c.bf16 %v131, %v107
    %v156 = vpack.c.bf16 %v132, %v108
    %v157 = vpack.c.bf16 %v133, %v109
    %v158 = vpack.c.bf16 %v134, %v110
    %v159 = vpack.c.bf16 %v135, %v111
    %v160 = vpack.c.bf16 %v136, %v112
    %v161 = vpack.c.bf16 %v137, %v113
    %v162 = vpack.c.bf16 %v138, %v114
    %v163 = vpack.c.bf16 %v139, %v115
    %v164 = vpack.c.bf16 %v140, %v116
    %v165 = vpack.c.bf16 %v141, %v117
    %v166 = vpack.c.bf16 %v142, %v118
    %v167 = vpack.c.bf16 %v143, %v119
    %v168 = vpack.c.bf16 %v144, %v120
    %v169 = vpack.c.bf16 %v145, %v121
    %v170 = vpack.c.bf16 %v146, %v122
    %v171 = vpack.c.bf16 %v147, %v123
    %v172 = vld [vmem:[#allocation5] sm:$0xff]
    %v173 = vld [vmem:[#allocation5 + $0x8] sm:$0xff]
    %v174 = vld [vmem:[#allocation5 + $0x10] sm:$0xff]
    %v175 = vld [vmem:[#allocation5 + $0x18] sm:$0xff]
    %v176 = vld [vmem:[#allocation5 + $0x20] sm:$0xff]
    %v177 = vld [vmem:[#allocation5 + $0x28] sm:$0xff]
    %v178 = vld [vmem:[#allocation5 + $0x30] sm:$0xff]
    %v179 = vld [vmem:[#allocation5 + $0x38] sm:$0xff]
    %v180 = vld [vmem:[#allocation5 + $0x40] sm:$0xff]
    %v181 = vld [vmem:[#allocation5 + $0x48] sm:$0xff]
    %v182 = vld [vmem:[#allocation5 + $0x50] sm:$0xff]
    %v183 = vld [vmem:[#allocation5 + $0x58] sm:$0xff]
    %v184 = vld [vmem:[#allocation5 + $0x60] sm:$0xff]
    %v185 = vld [vmem:[#allocation5 + $0x68] sm:$0xff]
    %v186 = vld [vmem:[#allocation5 + $0x70] sm:$0xff]
    %v187 = vld [vmem:[#allocation5 + $0x78] sm:$0xff]
    %v188 = vld [vmem:[#allocation5 + $0x80] sm:$0xff]
    %v189 = vld [vmem:[#allocation5 + $0x88] sm:$0xff]
    %v190 = vld [vmem:[#allocation5 + $0x90] sm:$0xff]
    %v191 = vld [vmem:[#allocation5 + $0x98] sm:$0xff]
    %v192 = vld [vmem:[#allocation5 + $0xa0] sm:$0xff]
    %v193 = vld [vmem:[#allocation5 + $0xa8] sm:$0xff]
    %v194 = vld [vmem:[#allocation5 + $0xb0] sm:$0xff]
    %v195 = vld [vmem:[#allocation5 + $0xb8] sm:$0xff]
    %v196 = vld [vmem:[#allocation5 + $0xc0] sm:$0xff]
    %v197 = vld [vmem:[#allocation5 + $0xc8] sm:$0xff]
    %v198 = vld [vmem:[#allocation5 + $0xd0] sm:$0xff]
    %v199 = vld [vmem:[#allocation5 + $0xd8] sm:$0xff]
    %v200 = vld [vmem:[#allocation5 + $0xe0] sm:$0xff]
    %v201 = vld [vmem:[#allocation5 + $0xe8] sm:$0xff]
    %v202 = vld [vmem:[#allocation5 + $0xf0] sm:$0xff]
    %v203 = vld [vmem:[#allocation5 + $0xf8] sm:$0xff]
    %v204 = vld [vmem:[#allocation5 + $0x100] sm:$0xff]
    %v205 = vld [vmem:[#allocation5 + $0x108] sm:$0xff]
    %v206 = vld [vmem:[#allocation5 + $0x110] sm:$0xff]
    %v207 = vld [vmem:[#allocation5 + $0x118] sm:$0xff]
    %v208 = vld [vmem:[#allocation5 + $0x120] sm:$0xff]
    %v209 = vld [vmem:[#allocation5 + $0x128] sm:$0xff]
    %v210 = vld [vmem:[#allocation5 + $0x130] sm:$0xff]
    %v211 = vld [vmem:[#allocation5 + $0x138] sm:$0xff]
    %v212 = vld [vmem:[#allocation5 + $0x140] sm:$0xff]
    %v213 = vld [vmem:[#allocation5 + $0x148] sm:$0xff]
    %v214 = vld [vmem:[#allocation5 + $0x150] sm:$0xff]
    %v215 = vld [vmem:[#allocation5 + $0x158] sm:$0xff]
    %v216 = vld [vmem:[#allocation5 + $0x160] sm:$0xff]
    %v217 = vld [vmem:[#allocation5 + $0x168] sm:$0xff]
    %v218 = vld [vmem:[#allocation5 + $0x170] sm:$0xff]
    %v219 = vld [vmem:[#allocation5 + $0x178] sm:$0xff]
    %v220 = vld [vmem:[#allocation5 + $0x180] sm:$0xff]
    %v221 = vld [vmem:[#allocation5 + $0x188] sm:$0xff]
    %v222 = vld [vmem:[#allocation5 + $0x190] sm:$0xff]
    %v223 = vld [vmem:[#allocation5 + $0x198] sm:$0xff]
    %v224 = vld [vmem:[#allocation5 + $0x1a0] sm:$0xff]
    %v225 = vld [vmem:[#allocation5 + $0x1a8] sm:$0xff]
    %v226 = vld [vmem:[#allocation5 + $0x1b0] sm:$0xff]
    %v227 = vld [vmem:[#allocation5 + $0x1b8] sm:$0xff]
    %v228 = vld [vmem:[#allocation5 + $0x1c0] sm:$0xff]
    %v229 = vld [vmem:[#allocation5 + $0x1c8] sm:$0xff]
    %v230 = vld [vmem:[#allocation5 + $0x1d0] sm:$0xff]
    %v231 = vld [vmem:[#allocation5 + $0x1d8] sm:$0xff]
    %v232 = vld [vmem:[#allocation5 + $0x1e0] sm:$0xff]
    %v233 = vld [vmem:[#allocation5 + $0x1e8] sm:$0xff]
    %v234 = vld [vmem:[#allocation5 + $0x1f0] sm:$0xff]
    %v235 = vld [vmem:[#allocation5 + $0x1f8] sm:$0xff]
    %v236 = vld [vmem:[#allocation5 + $0x200] sm:$0xff]
    %v237 = vld [vmem:[#allocation5 + $0x208] sm:$0xff]
    %v238 = vld [vmem:[#allocation5 + $0x210] sm:$0xff]
    %v239 = vld [vmem:[#allocation5 + $0x218] sm:$0xff]
    %v240 = vld [vmem:[#allocation5 + $0x220] sm:$0xff]
    %v241 = vld [vmem:[#allocation5 + $0x228] sm:$0xff]
    %v242 = vld [vmem:[#allocation5 + $0x230] sm:$0xff]
    %v243 = vld [vmem:[#allocation5 + $0x238] sm:$0xff]
    %v244 = vld [vmem:[#allocation5 + $0x240] sm:$0xff]
    %v245 = vld [vmem:[#allocation5 + $0x248] sm:$0xff]
    %v246 = vld [vmem:[#allocation5 + $0x250] sm:$0xff]
    %v247 = vld [vmem:[#allocation5 + $0x258] sm:$0xff]
    %v248 = vld [vmem:[#allocation5 + $0x260] sm:$0xff]
    %v249 = vld [vmem:[#allocation5 + $0x268] sm:$0xff]
    %v250 = vld [vmem:[#allocation5 + $0x270] sm:$0xff]
    %v251 = vld [vmem:[#allocation5 + $0x278] sm:$0xff]
    %v252 = vld [vmem:[#allocation5 + $0x280] sm:$0xff]
    %v253 = vld [vmem:[#allocation5 + $0x288] sm:$0xff]
    %v254 = vld [vmem:[#allocation5 + $0x290] sm:$0xff]
    %v255 = vld [vmem:[#allocation5 + $0x298] sm:$0xff]
    %v256 = vld [vmem:[#allocation5 + $0x2a0] sm:$0xff]
    %v257 = vld [vmem:[#allocation5 + $0x2a8] sm:$0xff]
    %v258 = vld [vmem:[#allocation5 + $0x2b0] sm:$0xff]
    %v259 = vld [vmem:[#allocation5 + $0x2b8] sm:$0xff]
    %v260 = vld [vmem:[#allocation5 + $0x2c0] sm:$0xff]
    %v261 = vld [vmem:[#allocation5 + $0x2c8] sm:$0xff]
    %v262 = vld [vmem:[#allocation5 + $0x2d0] sm:$0xff]
    %v263 = vld [vmem:[#allocation5 + $0x2d8] sm:$0xff]
    %v264 = vld [vmem:[#allocation5 + $0x2e0] sm:$0xff]
    %v265 = vld [vmem:[#allocation5 + $0x2e8] sm:$0xff]
    %v266 = vld [vmem:[#allocation5 + $0x2f0] sm:$0xff]
    %v267 = vld [vmem:[#allocation5 + $0x2f8] sm:$0xff]
    %v268 = vld [vmem:[#allocation5 + $0x300] sm:$0xff]
    %v269 = vld [vmem:[#allocation5 + $0x308] sm:$0xff]
    %v270 = vld [vmem:[#allocation5 + $0x310] sm:$0xff]
    %v271 = vld [vmem:[#allocation5 + $0x318] sm:$0xff]
    %v272 = vld [vmem:[#allocation5 + $0x320] sm:$0xff]
    %v273 = vld [vmem:[#allocation5 + $0x328] sm:$0xff]
    %v274 = vld [vmem:[#allocation5 + $0x330] sm:$0xff]
    %v275 = vld [vmem:[#allocation5 + $0x338] sm:$0xff]
    %v276 = vld [vmem:[#allocation5 + $0x340] sm:$0xff]
    %v277 = vld [vmem:[#allocation5 + $0x348] sm:$0xff]
    %v278 = vld [vmem:[#allocation5 + $0x350] sm:$0xff]
    %v279 = vld [vmem:[#allocation5 + $0x358] sm:$0xff]
    %v280 = vld [vmem:[#allocation5 + $0x360] sm:$0xff]
    %v281 = vld [vmem:[#allocation5 + $0x368] sm:$0xff]
    %v282 = vld [vmem:[#allocation5 + $0x370] sm:$0xff]
    %v283 = vld [vmem:[#allocation5 + $0x378] sm:$0xff]
    %v284 = vld [vmem:[#allocation5 + $0x380] sm:$0xff]
    %v285 = vld [vmem:[#allocation5 + $0x388] sm:$0xff]
    %v286 = vld [vmem:[#allocation5 + $0x390] sm:$0xff]
    %v287 = vld [vmem:[#allocation5 + $0x398] sm:$0xff]
    %v288 = vld [vmem:[#allocation5 + $0x3a0] sm:$0xff]
    %v289 = vld [vmem:[#allocation5 + $0x3a8] sm:$0xff]
    %v290 = vld [vmem:[#allocation5 + $0x3b0] sm:$0xff]
    %v291 = vld [vmem:[#allocation5 + $0x3b8] sm:$0xff]
    %v292 = vld [vmem:[#allocation5 + $0x3c0] sm:$0xff]
    %v293 = vld [vmem:[#allocation5 + $0x3c8] sm:$0xff]
    %v294 = vld [vmem:[#allocation5 + $0x3d0] sm:$0xff]
    %v295 = vld [vmem:[#allocation5 + $0x3d8] sm:$0xff]
    %v296 = vld [vmem:[#allocation5 + $0x3e0] sm:$0xff]
    %v297 = vld [vmem:[#allocation5 + $0x3e8] sm:$0xff]
    %v298 = vld [vmem:[#allocation5 + $0x3f0] sm:$0xff]
    %v299 = vld [vmem:[#allocation5 + $0x3f8] sm:$0xff]
    %v300 = vld [vmem:[#allocation5 + $0x400] sm:$0xff]
    %v301 = vld [vmem:[#allocation5 + $0x408] sm:$0xff]
    %v302 = vld [vmem:[#allocation5 + $0x410] sm:$0xff]
    %v303 = vld [vmem:[#allocation5 + $0x418] sm:$0xff]
    %v304 = vld [vmem:[#allocation5 + $0x420] sm:$0xff]
    %v305 = vld [vmem:[#allocation5 + $0x428] sm:$0xff]
    %v306 = vld [vmem:[#allocation5 + $0x430] sm:$0xff]
    %v307 = vld [vmem:[#allocation5 + $0x438] sm:$0xff]
    %v308 = vld [vmem:[#allocation5 + $0x440] sm:$0xff]
    %v309 = vld [vmem:[#allocation5 + $0x448] sm:$0xff]
    %v310 = vld [vmem:[#allocation5 + $0x450] sm:$0xff]
    %v311 = vld [vmem:[#allocation5 + $0x458] sm:$0xff]
    %v312 = vld [vmem:[#allocation5 + $0x460] sm:$0xff]
    %v313 = vld [vmem:[#allocation5 + $0x468] sm:$0xff]
    %v314 = vld [vmem:[#allocation5 + $0x470] sm:$0xff]
    %v315 = vld [vmem:[#allocation5 + $0x478] sm:$0xff]
    %v316 = vld [vmem:[#allocation5 + $0x480] sm:$0xff]
    %v317 = vld [vmem:[#allocation5 + $0x488] sm:$0xff]
    %v318 = vld [vmem:[#allocation5 + $0x490] sm:$0xff]
    %v319 = vld [vmem:[#allocation5 + $0x498] sm:$0xff]
    %v320 = vld [vmem:[#allocation5 + $0x4a0] sm:$0xff]
    %v321 = vld [vmem:[#allocation5 + $0x4a8] sm:$0xff]
    %v322 = vld [vmem:[#allocation5 + $0x4b0] sm:$0xff]
    %v323 = vld [vmem:[#allocation5 + $0x4b8] sm:$0xff]
    %v324 = vld [vmem:[#allocation5 + $0x4c0] sm:$0xff]
    %v325 = vld [vmem:[#allocation5 + $0x4c8] sm:$0xff]
    %v326 = vld [vmem:[#allocation5 + $0x4d0] sm:$0xff]
    %v327 = vld [vmem:[#allocation5 + $0x4d8] sm:$0xff]
    %v328 = vld [vmem:[#allocation5 + $0x4e0] sm:$0xff]
    %v329 = vld [vmem:[#allocation5 + $0x4e8] sm:$0xff]
    %v330 = vld [vmem:[#allocation5 + $0x4f0] sm:$0xff]
    %v331 = vld [vmem:[#allocation5 + $0x4f8] sm:$0xff]
    %v332 = vld [vmem:[#allocation5 + $0x500] sm:$0xff]
    %v333 = vld [vmem:[#allocation5 + $0x508] sm:$0xff]
    %v334 = vld [vmem:[#allocation5 + $0x510] sm:$0xff]
    %v335 = vld [vmem:[#allocation5 + $0x518] sm:$0xff]
    %v336 = vld [vmem:[#allocation5 + $0x520] sm:$0xff]
    %v337 = vld [vmem:[#allocation5 + $0x528] sm:$0xff]
    %v338 = vld [vmem:[#allocation5 + $0x530] sm:$0xff]
    %v339 = vld [vmem:[#allocation5 + $0x538] sm:$0xff]
    %v340 = vld [vmem:[#allocation5 + $0x540] sm:$0xff]
    %v341 = vld [vmem:[#allocation5 + $0x548] sm:$0xff]
    %v342 = vld [vmem:[#allocation5 + $0x550] sm:$0xff]
    %v343 = vld [vmem:[#allocation5 + $0x558] sm:$0xff]
    %v344 = vld [vmem:[#allocation5 + $0x560] sm:$0xff]
    %v345 = vld [vmem:[#allocation5 + $0x568] sm:$0xff]
    %v346 = vld [vmem:[#allocation5 + $0x570] sm:$0xff]
    %v347 = vld [vmem:[#allocation5 + $0x578] sm:$0xff]
    %v348 = vld [vmem:[#allocation5 + $0x580] sm:$0xff]
    %v349 = vld [vmem:[#allocation5 + $0x588] sm:$0xff]
    %v350 = vld [vmem:[#allocation5 + $0x590] sm:$0xff]
    %v351 = vld [vmem:[#allocation5 + $0x598] sm:$0xff]
    %v352 = vld [vmem:[#allocation5 + $0x5a0] sm:$0xff]
    %v353 = vld [vmem:[#allocation5 + $0x5a8] sm:$0xff]
    %v354 = vld [vmem:[#allocation5 + $0x5b0] sm:$0xff]
    %v355 = vld [vmem:[#allocation5 + $0x5b8] sm:$0xff]
    %v356 = vld [vmem:[#allocation5 + $0x5c0] sm:$0xff]
    %v357 = vld [vmem:[#allocation5 + $0x5c8] sm:$0xff]
    %v358 = vld [vmem:[#allocation5 + $0x5d0] sm:$0xff]
    %v359 = vld [vmem:[#allocation5 + $0x5d8] sm:$0xff]
    %v360 = vld [vmem:[#allocation5 + $0x5e0] sm:$0xff]
    %v361 = vld [vmem:[#allocation5 + $0x5e8] sm:$0xff]
    %v362 = vld [vmem:[#allocation5 + $0x5f0] sm:$0xff]
    %v363 = vld [vmem:[#allocation5 + $0x5f8] sm:$0xff]
    %v364 = vld [vmem:[#allocation5 + $0x600] sm:$0xff]
    %v365 = vld [vmem:[#allocation5 + $0x608] sm:$0xff]
    %v366 = vld [vmem:[#allocation5 + $0x610] sm:$0xff]
    %v367 = vld [vmem:[#allocation5 + $0x618] sm:$0xff]
    %v368 = vld [vmem:[#allocation5 + $0x620] sm:$0xff]
    %v369 = vld [vmem:[#allocation5 + $0x628] sm:$0xff]
    %v370 = vld [vmem:[#allocation5 + $0x630] sm:$0xff]
    %v371 = vld [vmem:[#allocation5 + $0x638] sm:$0xff]
    %v372 = vld [vmem:[#allocation5 + $0x640] sm:$0xff]
    %v373 = vld [vmem:[#allocation5 + $0x648] sm:$0xff]
    %v374 = vld [vmem:[#allocation5 + $0x650] sm:$0xff]
    %v375 = vld [vmem:[#allocation5 + $0x658] sm:$0xff]
    %v376 = vld [vmem:[#allocation5 + $0x660] sm:$0xff]
    %v377 = vld [vmem:[#allocation5 + $0x668] sm:$0xff]
    %v378 = vld [vmem:[#allocation5 + $0x670] sm:$0xff]
    %v379 = vld [vmem:[#allocation5 + $0x678] sm:$0xff]
    %v380 = vld [vmem:[#allocation5 + $0x680] sm:$0xff]
    %v381 = vld [vmem:[#allocation5 + $0x688] sm:$0xff]
    %v382 = vld [vmem:[#allocation5 + $0x690] sm:$0xff]
    %v383 = vld [vmem:[#allocation5 + $0x698] sm:$0xff]
    %v384 = vld [vmem:[#allocation5 + $0x6a0] sm:$0xff]
    %v385 = vld [vmem:[#allocation5 + $0x6a8] sm:$0xff]
    %v386 = vld [vmem:[#allocation5 + $0x6b0] sm:$0xff]
    %v387 = vld [vmem:[#allocation5 + $0x6b8] sm:$0xff]
    %v388 = vld [vmem:[#allocation5 + $0x6c0] sm:$0xff]
    %v389 = vld [vmem:[#allocation5 + $0x6c8] sm:$0xff]
    %v390 = vld [vmem:[#allocation5 + $0x6d0] sm:$0xff]
    %v391 = vld [vmem:[#allocation5 + $0x6d8] sm:$0xff]
    %v392 = vld [vmem:[#allocation5 + $0x6e0] sm:$0xff]
    %v393 = vld [vmem:[#allocation5 + $0x6e8] sm:$0xff]
    %v394 = vld [vmem:[#allocation5 + $0x6f0] sm:$0xff]
    %v395 = vld [vmem:[#allocation5 + $0x6f8] sm:$0xff]
    %v396 = vld [vmem:[#allocation5 + $0x700] sm:$0xff]
    %v397 = vld [vmem:[#allocation5 + $0x708] sm:$0xff]
    %v398 = vld [vmem:[#allocation5 + $0x710] sm:$0xff]
    %v399 = vld [vmem:[#allocation5 + $0x718] sm:$0xff]
    %v400 = vld [vmem:[#allocation5 + $0x720] sm:$0xff]
    %v401 = vld [vmem:[#allocation5 + $0x728] sm:$0xff]
    %v402 = vld [vmem:[#allocation5 + $0x730] sm:$0xff]
    %v403 = vld [vmem:[#allocation5 + $0x738] sm:$0xff]
    %v404 = vld [vmem:[#allocation5 + $0x740] sm:$0xff]
    %v405 = vld [vmem:[#allocation5 + $0x748] sm:$0xff]
    %v406 = vld [vmem:[#allocation5 + $0x750] sm:$0xff]
    %v407 = vld [vmem:[#allocation5 + $0x758] sm:$0xff]
    %v408 = vld [vmem:[#allocation5 + $0x760] sm:$0xff]
    %v409 = vld [vmem:[#allocation5 + $0x768] sm:$0xff]
    %v410 = vld [vmem:[#allocation5 + $0x770] sm:$0xff]
    %v411 = vld [vmem:[#allocation5 + $0x778] sm:$0xff]
    %v412 = vld [vmem:[#allocation5 + $0x780] sm:$0xff]
    %v413 = vld [vmem:[#allocation5 + $0x788] sm:$0xff]
    %v414 = vld [vmem:[#allocation5 + $0x790] sm:$0xff]
    %v415 = vld [vmem:[#allocation5 + $0x798] sm:$0xff]
    %v416 = vld [vmem:[#allocation5 + $0x7a0] sm:$0xff]
    %v417 = vld [vmem:[#allocation5 + $0x7a8] sm:$0xff]
    %v418 = vld [vmem:[#allocation5 + $0x7b0] sm:$0xff]
    %v419 = vld [vmem:[#allocation5 + $0x7b8] sm:$0xff]
    %v420 = vld [vmem:[#allocation5 + $0x7c0] sm:$0xff]
    %v421 = vld [vmem:[#allocation5 + $0x7c8] sm:$0xff]
    %v422 = vld [vmem:[#allocation5 + $0x7d0] sm:$0xff]
    %v423 = vld [vmem:[#allocation5 + $0x7d8] sm:$0xff]
    %v424 = vld [vmem:[#allocation5 + $0x7e0] sm:$0xff]
    %v425 = vld [vmem:[#allocation5 + $0x7e8] sm:$0xff]
    %v426 = vld [vmem:[#allocation5 + $0x7f0] sm:$0xff]
    %v427 = vld [vmem:[#allocation5 + $0x7f8] sm:$0xff]
    %v428 = vld [vmem:[#allocation5 + $0x800] sm:$0xff]
    %v429 = vld [vmem:[#allocation5 + $0x808] sm:$0xff]
    %v430 = vld [vmem:[#allocation5 + $0x810] sm:$0xff]
    %v431 = vld [vmem:[#allocation5 + $0x818] sm:$0xff]
    %v432 = vld [vmem:[#allocation5 + $0x820] sm:$0xff]
    %v433 = vld [vmem:[#allocation5 + $0x828] sm:$0xff]
    %v434 = vld [vmem:[#allocation5 + $0x830] sm:$0xff]
    %v435 = vld [vmem:[#allocation5 + $0x838] sm:$0xff]
    %v436 = vld [vmem:[#allocation5 + $0x840] sm:$0xff]
    %v437 = vld [vmem:[#allocation5 + $0x848] sm:$0xff]
    %v438 = vld [vmem:[#allocation5 + $0x850] sm:$0xff]
    %v439 = vld [vmem:[#allocation5 + $0x858] sm:$0xff]
    %v440 = vld [vmem:[#allocation5 + $0x860] sm:$0xff]
    %v441 = vld [vmem:[#allocation5 + $0x868] sm:$0xff]
    %v442 = vld [vmem:[#allocation5 + $0x870] sm:$0xff]
    %v443 = vld [vmem:[#allocation5 + $0x878] sm:$0xff]
    %v444 = vld [vmem:[#allocation5 + $0x880] sm:$0xff]
    %v445 = vld [vmem:[#allocation5 + $0x888] sm:$0xff]
    %v446 = vld [vmem:[#allocation5 + $0x890] sm:$0xff]
    %v447 = vld [vmem:[#allocation5 + $0x898] sm:$0xff]
    %v448 = vld [vmem:[#allocation5 + $0x8a0] sm:$0xff]
    %v449 = vld [vmem:[#allocation5 + $0x8a8] sm:$0xff]
    %v450 = vld [vmem:[#allocation5 + $0x8b0] sm:$0xff]
    %v451 = vld [vmem:[#allocation5 + $0x8b8] sm:$0xff]
    %v452 = vld [vmem:[#allocation5 + $0x8c0] sm:$0xff]
    %v453 = vld [vmem:[#allocation5 + $0x8c8] sm:$0xff]
    %v454 = vld [vmem:[#allocation5 + $0x8d0] sm:$0xff]
    %v455 = vld [vmem:[#allocation5 + $0x8d8] sm:$0xff]
    %v456 = vld [vmem:[#allocation5 + $0x8e0] sm:$0xff]
    %v457 = vld [vmem:[#allocation5 + $0x8e8] sm:$0xff]
    %v458 = vld [vmem:[#allocation5 + $0x8f0] sm:$0xff]
    %v459 = vld [vmem:[#allocation5 + $0x8f8] sm:$0xff]
    %v460 = vld [vmem:[#allocation5 + $0x900] sm:$0xff]
    %v461 = vld [vmem:[#allocation5 + $0x908] sm:$0xff]
    %v462 = vld [vmem:[#allocation5 + $0x910] sm:$0xff]
    %v463 = vld [vmem:[#allocation5 + $0x918] sm:$0xff]
    %v464 = vld [vmem:[#allocation5 + $0x920] sm:$0xff]
    %v465 = vld [vmem:[#allocation5 + $0x928] sm:$0xff]
    %v466 = vld [vmem:[#allocation5 + $0x930] sm:$0xff]
    %v467 = vld [vmem:[#allocation5 + $0x938] sm:$0xff]
    %v468 = vld [vmem:[#allocation5 + $0x940] sm:$0xff]
    %v469 = vld [vmem:[#allocation5 + $0x948] sm:$0xff]
    %v470 = vld [vmem:[#allocation5 + $0x950] sm:$0xff]
    %v471 = vld [vmem:[#allocation5 + $0x958] sm:$0xff]
    %v472 = vld [vmem:[#allocation5 + $0x960] sm:$0xff]
    %v473 = vld [vmem:[#allocation5 + $0x968] sm:$0xff]
    %v474 = vld [vmem:[#allocation5 + $0x970] sm:$0xff]
    %v475 = vld [vmem:[#allocation5 + $0x978] sm:$0xff]
    %v476 = vld [vmem:[#allocation5 + $0x980] sm:$0xff]
    %v477 = vld [vmem:[#allocation5 + $0x988] sm:$0xff]
    %v478 = vld [vmem:[#allocation5 + $0x990] sm:$0xff]
    %v479 = vld [vmem:[#allocation5 + $0x998] sm:$0xff]
    %v480 = vld [vmem:[#allocation5 + $0x9a0] sm:$0xff]
    %v481 = vld [vmem:[#allocation5 + $0x9a8] sm:$0xff]
    %v482 = vld [vmem:[#allocation5 + $0x9b0] sm:$0xff]
    %v483 = vld [vmem:[#allocation5 + $0x9b8] sm:$0xff]
    %v484 = vld [vmem:[#allocation5 + $0x9c0] sm:$0xff]
    %v485 = vld [vmem:[#allocation5 + $0x9c8] sm:$0xff]
    %v486 = vld [vmem:[#allocation5 + $0x9d0] sm:$0xff]
    %v487 = vld [vmem:[#allocation5 + $0x9d8] sm:$0xff]
    %v488 = vld [vmem:[#allocation5 + $0x9e0] sm:$0xff]
    %v489 = vld [vmem:[#allocation5 + $0x9e8] sm:$0xff]
    %v490 = vld [vmem:[#allocation5 + $0x9f0] sm:$0xff]
    %v491 = vld [vmem:[#allocation5 + $0x9f8] sm:$0xff]
    %v492 = vld [vmem:[#allocation5 + $0xa00] sm:$0xff]
    %v493 = vld [vmem:[#allocation5 + $0xa08] sm:$0xff]
    %v494 = vld [vmem:[#allocation5 + $0xa10] sm:$0xff]
    %v495 = vld [vmem:[#allocation5 + $0xa18] sm:$0xff]
    %v496 = vld [vmem:[#allocation5 + $0xa20] sm:$0xff]
    %v497 = vld [vmem:[#allocation5 + $0xa28] sm:$0xff]
    %v498 = vld [vmem:[#allocation5 + $0xa30] sm:$0xff]
    %v499 = vld [vmem:[#allocation5 + $0xa38] sm:$0xff]
    %v500 = vld [vmem:[#allocation5 + $0xa40] sm:$0xff]
    %v501 = vld [vmem:[#allocation5 + $0xa48] sm:$0xff]
    %v502 = vld [vmem:[#allocation5 + $0xa50] sm:$0xff]
    %v503 = vld [vmem:[#allocation5 + $0xa58] sm:$0xff]
    %v504 = vld [vmem:[#allocation5 + $0xa60] sm:$0xff]
    %v505 = vld [vmem:[#allocation5 + $0xa68] sm:$0xff]
    %v506 = vld [vmem:[#allocation5 + $0xa70] sm:$0xff]
    %v507 = vld [vmem:[#allocation5 + $0xa78] sm:$0xff]
    %v508 = vld [vmem:[#allocation5 + $0xa80] sm:$0xff]
    %v509 = vld [vmem:[#allocation5 + $0xa88] sm:$0xff]
    %v510 = vld [vmem:[#allocation5 + $0xa90] sm:$0xff]
    %v511 = vld [vmem:[#allocation5 + $0xa98] sm:$0xff]
    %v512 = vld [vmem:[#allocation5 + $0xaa0] sm:$0xff]
    %v513 = vld [vmem:[#allocation5 + $0xaa8] sm:$0xff]
    %v514 = vld [vmem:[#allocation5 + $0xab0] sm:$0xff]
    %v515 = vld [vmem:[#allocation5 + $0xab8] sm:$0xff]
    %v516 = vld [vmem:[#allocation5 + $0xac0] sm:$0xff]
    %v517 = vld [vmem:[#allocation5 + $0xac8] sm:$0xff]
    %v518 = vld [vmem:[#allocation5 + $0xad0] sm:$0xff]
    %v519 = vld [vmem:[#allocation5 + $0xad8] sm:$0xff]
    %v520 = vld [vmem:[#allocation5 + $0xae0] sm:$0xff]
    %v521 = vld [vmem:[#allocation5 + $0xae8] sm:$0xff]
    %v522 = vld [vmem:[#allocation5 + $0xaf0] sm:$0xff]
    %v523 = vld [vmem:[#allocation5 + $0xaf8] sm:$0xff]
    %v524 = vld [vmem:[#allocation5 + $0xb00] sm:$0xff]
    %v525 = vld [vmem:[#allocation5 + $0xb08] sm:$0xff]
    %v526 = vld [vmem:[#allocation5 + $0xb10] sm:$0xff]
    %v527 = vld [vmem:[#allocation5 + $0xb18] sm:$0xff]
    %v528 = vld [vmem:[#allocation5 + $0xb20] sm:$0xff]
    %v529 = vld [vmem:[#allocation5 + $0xb28] sm:$0xff]
    %v530 = vld [vmem:[#allocation5 + $0xb30] sm:$0xff]
    %v531 = vld [vmem:[#allocation5 + $0xb38] sm:$0xff]
    %v532 = vld [vmem:[#allocation5 + $0xb40] sm:$0xff]
    %v533 = vld [vmem:[#allocation5 + $0xb48] sm:$0xff]
    %v534 = vld [vmem:[#allocation5 + $0xb50] sm:$0xff]
    %v535 = vld [vmem:[#allocation5 + $0xb58] sm:$0xff]
    %v536 = vld [vmem:[#allocation5 + $0xb60] sm:$0xff]
    %v537 = vld [vmem:[#allocation5 + $0xb68] sm:$0xff]
    %v538 = vld [vmem:[#allocation5 + $0xb70] sm:$0xff]
    %v539 = vld [vmem:[#allocation5 + $0xb78] sm:$0xff]
    %v540 = vld [vmem:[#allocation5 + $0xb80] sm:$0xff]
    %v541 = vld [vmem:[#allocation5 + $0xb88] sm:$0xff]
    %v542 = vld [vmem:[#allocation5 + $0xb90] sm:$0xff]
    %v543 = vld [vmem:[#allocation5 + $0xb98] sm:$0xff]
    %v544 = vld [vmem:[#allocation5 + $0xba0] sm:$0xff]
    %v545 = vld [vmem:[#allocation5 + $0xba8] sm:$0xff]
    %v546 = vld [vmem:[#allocation5 + $0xbb0] sm:$0xff]
    %v547 = vld [vmem:[#allocation5 + $0xbb8] sm:$0xff]
    %v548 = vld [vmem:[#allocation5 + $0xbc0] sm:$0xff]
    %v549 = vld [vmem:[#allocation5 + $0xbc8] sm:$0xff]
    %v550 = vld [vmem:[#allocation5 + $0xbd0] sm:$0xff]
    %v551 = vld [vmem:[#allocation5 + $0xbd8] sm:$0xff]
    %v552 = vld [vmem:[#allocation5 + $0xbe0] sm:$0xff]
    %v553 = vld [vmem:[#allocation5 + $0xbe8] sm:$0xff]
    %v554 = vld [vmem:[#allocation5 + $0xbf0] sm:$0xff]
    %v555 = vld [vmem:[#allocation5 + $0xbf8] sm:$0xff]
    %v556 = vld [vmem:[#allocation5 + $0xc00] sm:$0xff]
    %v557 = vld [vmem:[#allocation5 + $0xc08] sm:$0xff]
    %v558 = vld [vmem:[#allocation5 + $0xc10] sm:$0xff]
    %v559 = vld [vmem:[#allocation5 + $0xc18] sm:$0xff]
    %v560 = vld [vmem:[#allocation5 + $0xc20] sm:$0xff]
    %v561 = vld [vmem:[#allocation5 + $0xc28] sm:$0xff]
    %v562 = vld [vmem:[#allocation5 + $0xc30] sm:$0xff]
    %v563 = vld [vmem:[#allocation5 + $0xc38] sm:$0xff]
    %v564 = vld [vmem:[#allocation5 + $0xc40] sm:$0xff]
    %v565 = vld [vmem:[#allocation5 + $0xc48] sm:$0xff]
    %v566 = vld [vmem:[#allocation5 + $0xc50] sm:$0xff]
    %v567 = vld [vmem:[#allocation5 + $0xc58] sm:$0xff]
    %v568 = vld [vmem:[#allocation5 + $0xc60] sm:$0xff]
    %v569 = vld [vmem:[#allocation5 + $0xc68] sm:$0xff]
    %v570 = vld [vmem:[#allocation5 + $0xc70] sm:$0xff]
    %v571 = vld [vmem:[#allocation5 + $0xc78] sm:$0xff]
    %v572 = vld [vmem:[#allocation5 + $0xc80] sm:$0xff]
    %v573 = vld [vmem:[#allocation5 + $0xc88] sm:$0xff]
    %v574 = vld [vmem:[#allocation5 + $0xc90] sm:$0xff]
    %v575 = vld [vmem:[#allocation5 + $0xc98] sm:$0xff]
    %v576 = vld [vmem:[#allocation5 + $0xca0] sm:$0xff]
    %v577 = vld [vmem:[#allocation5 + $0xca8] sm:$0xff]
    %v578 = vld [vmem:[#allocation5 + $0xcb0] sm:$0xff]
    %v579 = vld [vmem:[#allocation5 + $0xcb8] sm:$0xff]
    %v580 = vld [vmem:[#allocation5 + $0xcc0] sm:$0xff]
    %v581 = vld [vmem:[#allocation5 + $0xcc8] sm:$0xff]
    %v582 = vld [vmem:[#allocation5 + $0xcd0] sm:$0xff]
    %v583 = vld [vmem:[#allocation5 + $0xcd8] sm:$0xff]
    %v584 = vld [vmem:[#allocation5 + $0xce0] sm:$0xff]
    %v585 = vld [vmem:[#allocation5 + $0xce8] sm:$0xff]
    %v586 = vld [vmem:[#allocation5 + $0xcf0] sm:$0xff]
    %v587 = vld [vmem:[#allocation5 + $0xcf8] sm:$0xff]
    %v588 = vld [vmem:[#allocation5 + $0xd00] sm:$0xff]
    %v589 = vld [vmem:[#allocation5 + $0xd08] sm:$0xff]
    %v590 = vld [vmem:[#allocation5 + $0xd10] sm:$0xff]
    %v591 = vld [vmem:[#allocation5 + $0xd18] sm:$0xff]
    %v592 = vld [vmem:[#allocation5 + $0xd20] sm:$0xff]
    %v593 = vld [vmem:[#allocation5 + $0xd28] sm:$0xff]
    %v594 = vld [vmem:[#allocation5 + $0xd30] sm:$0xff]
    %v595 = vld [vmem:[#allocation5 + $0xd38] sm:$0xff]
    %v596 = vld [vmem:[#allocation5 + $0xd40] sm:$0xff]
    %v597 = vld [vmem:[#allocation5 + $0xd48] sm:$0xff]
    %v598 = vld [vmem:[#allocation5 + $0xd50] sm:$0xff]
    %v599 = vld [vmem:[#allocation5 + $0xd58] sm:$0xff]
    %v600 = vld [vmem:[#allocation5 + $0xd60] sm:$0xff]
    %v601 = vld [vmem:[#allocation5 + $0xd68] sm:$0xff]
    %v602 = vld [vmem:[#allocation5 + $0xd70] sm:$0xff]
    %v603 = vld [vmem:[#allocation5 + $0xd78] sm:$0xff]
    %v604 = vld [vmem:[#allocation5 + $0xd80] sm:$0xff]
    %v605 = vld [vmem:[#allocation5 + $0xd88] sm:$0xff]
    %v606 = vld [vmem:[#allocation5 + $0xd90] sm:$0xff]
    %v607 = vld [vmem:[#allocation5 + $0xd98] sm:$0xff]
    %v608 = vld [vmem:[#allocation5 + $0xda0] sm:$0xff]
    %v609 = vld [vmem:[#allocation5 + $0xda8] sm:$0xff]
    %v610 = vld [vmem:[#allocation5 + $0xdb0] sm:$0xff]
    %v611 = vld [vmem:[#allocation5 + $0xdb8] sm:$0xff]
    %v612 = vld [vmem:[#allocation5 + $0xdc0] sm:$0xff]
    %v613 = vld [vmem:[#allocation5 + $0xdc8] sm:$0xff]
    %v614 = vld [vmem:[#allocation5 + $0xdd0] sm:$0xff]
    %v615 = vld [vmem:[#allocation5 + $0xdd8] sm:$0xff]
    %v616 = vld [vmem:[#allocation5 + $0xde0] sm:$0xff]
    %v617 = vld [vmem:[#allocation5 + $0xde8] sm:$0xff]
    %v618 = vld [vmem:[#allocation5 + $0xdf0] sm:$0xff]
    %v619 = vld [vmem:[#allocation5 + $0xdf8] sm:$0xff]
    %v620 = vld [vmem:[#allocation5 + $0xe00] sm:$0xff]
    %v621 = vld [vmem:[#allocation5 + $0xe08] sm:$0xff]
    %v622 = vld [vmem:[#allocation5 + $0xe10] sm:$0xff]
    %v623 = vld [vmem:[#allocation5 + $0xe18] sm:$0xff]
    %v624 = vld [vmem:[#allocation5 + $0xe20] sm:$0xff]
    %v625 = vld [vmem:[#allocation5 + $0xe28] sm:$0xff]
    %v626 = vld [vmem:[#allocation5 + $0xe30] sm:$0xff]
    %v627 = vld [vmem:[#allocation5 + $0xe38] sm:$0xff]
    %v628 = vld [vmem:[#allocation5 + $0xe40] sm:$0xff]
    %v629 = vld [vmem:[#allocation5 + $0xe48] sm:$0xff]
    %v630 = vld [vmem:[#allocation5 + $0xe50] sm:$0xff]
    %v631 = vld [vmem:[#allocation5 + $0xe58] sm:$0xff]
    %v632 = vld [vmem:[#allocation5 + $0xe60] sm:$0xff]
    %v633 = vld [vmem:[#allocation5 + $0xe68] sm:$0xff]
    %v634 = vld [vmem:[#allocation5 + $0xe70] sm:$0xff]
    %v635 = vld [vmem:[#allocation5 + $0xe78] sm:$0xff]
    %v636 = vld [vmem:[#allocation5 + $0xe80] sm:$0xff]
    %v637 = vld [vmem:[#allocation5 + $0xe88] sm:$0xff]
    %v638 = vld [vmem:[#allocation5 + $0xe90] sm:$0xff]
    %v639 = vld [vmem:[#allocation5 + $0xe98] sm:$0xff]
    %v640 = vld [vmem:[#allocation5 + $0xea0] sm:$0xff]
    %v641 = vld [vmem:[#allocation5 + $0xea8] sm:$0xff]
    %v642 = vld [vmem:[#allocation5 + $0xeb0] sm:$0xff]
    %v643 = vld [vmem:[#allocation5 + $0xeb8] sm:$0xff]
    %v644 = vld [vmem:[#allocation5 + $0xec0] sm:$0xff]
    %v645 = vld [vmem:[#allocation5 + $0xec8] sm:$0xff]
    %v646 = vld [vmem:[#allocation5 + $0xed0] sm:$0xff]
    %v647 = vld [vmem:[#allocation5 + $0xed8] sm:$0xff]
    %v648 = vld [vmem:[#allocation5 + $0xee0] sm:$0xff]
    %v649 = vld [vmem:[#allocation5 + $0xee8] sm:$0xff]
    %v650 = vld [vmem:[#allocation5 + $0xef0] sm:$0xff]
    %v651 = vld [vmem:[#allocation5 + $0xef8] sm:$0xff]
    %v652 = vld [vmem:[#allocation5 + $0xf00] sm:$0xff]
    %v653 = vld [vmem:[#allocation5 + $0xf08] sm:$0xff]
    %v654 = vld [vmem:[#allocation5 + $0xf10] sm:$0xff]
    %v655 = vld [vmem:[#allocation5 + $0xf18] sm:$0xff]
    %v656 = vld [vmem:[#allocation5 + $0xf20] sm:$0xff]
    %v657 = vld [vmem:[#allocation5 + $0xf28] sm:$0xff]
    %v658 = vld [vmem:[#allocation5 + $0xf30] sm:$0xff]
    %v659 = vld [vmem:[#allocation5 + $0xf38] sm:$0xff]
    %v660 = vld [vmem:[#allocation5 + $0xf40] sm:$0xff]
    %v661 = vld [vmem:[#allocation5 + $0xf48] sm:$0xff]
    %v662 = vld [vmem:[#allocation5 + $0xf50] sm:$0xff]
    %v663 = vld [vmem:[#allocation5 + $0xf58] sm:$0xff]
    %v664 = vld [vmem:[#allocation5 + $0xf60] sm:$0xff]
    %v665 = vld [vmem:[#allocation5 + $0xf68] sm:$0xff]
    %v666 = vld [vmem:[#allocation5 + $0xf70] sm:$0xff]
    %v667 = vld [vmem:[#allocation5 + $0xf78] sm:$0xff]
    %v668 = vld [vmem:[#allocation5 + $0xf80] sm:$0xff]
    %v669 = vld [vmem:[#allocation5 + $0xf88] sm:$0xff]
    %v670 = vld [vmem:[#allocation5 + $0xf90] sm:$0xff]
    %v671 = vld [vmem:[#allocation5 + $0xf98] sm:$0xff]
    %v672 = vld [vmem:[#allocation5 + $0xfa0] sm:$0xff]
    %v673 = vld [vmem:[#allocation5 + $0xfa8] sm:$0xff]
    %v674 = vld [vmem:[#allocation5 + $0xfb0] sm:$0xff]
    %v675 = vld [vmem:[#allocation5 + $0xfb8] sm:$0xff]
    %v676 = vld [vmem:[#allocation5 + $0xfc0] sm:$0xff]
    %v677 = vld [vmem:[#allocation5 + $0xfc8] sm:$0xff]
    %v678 = vld [vmem:[#allocation5 + $0xfd0] sm:$0xff]
    %v679 = vld [vmem:[#allocation5 + $0xfd8] sm:$0xff]
    %v680 = vld [vmem:[#allocation5 + $0xfe0] sm:$0xff]
    %v681 = vld [vmem:[#allocation5 + $0xfe8] sm:$0xff]
    %v682 = vld [vmem:[#allocation5 + $0xff0] sm:$0xff]
    %v683 = vld [vmem:[#allocation5 + $0xff8] sm:$0xff]
    %v684 = vld [vmem:[#allocation5 + $0x1000] sm:$0xff]
    %v685 = vld [vmem:[#allocation5 + $0x1008] sm:$0xff]
    %v686 = vld [vmem:[#allocation5 + $0x1010] sm:$0xff]
    %v687 = vld [vmem:[#allocation5 + $0x1018] sm:$0xff]
    %v688 = vld [vmem:[#allocation5 + $0x1020] sm:$0xff]
    %v689 = vld [vmem:[#allocation5 + $0x1028] sm:$0xff]
    %v690 = vld [vmem:[#allocation5 + $0x1030] sm:$0xff]
    %v691 = vld [vmem:[#allocation5 + $0x1038] sm:$0xff]
    %v692 = vld [vmem:[#allocation5 + $0x1040] sm:$0xff]
    %v693 = vld [vmem:[#allocation5 + $0x1048] sm:$0xff]
    %v694 = vld [vmem:[#allocation5 + $0x1050] sm:$0xff]
    %v695 = vld [vmem:[#allocation5 + $0x1058] sm:$0xff]
    %v696 = vld [vmem:[#allocation5 + $0x1060] sm:$0xff]
    %v697 = vld [vmem:[#allocation5 + $0x1068] sm:$0xff]
    %v698 = vld [vmem:[#allocation5 + $0x1070] sm:$0xff]
    %v699 = vld [vmem:[#allocation5 + $0x1078] sm:$0xff]
    %v700 = vld [vmem:[#allocation5 + $0x1080] sm:$0xff]
    %v701 = vld [vmem:[#allocation5 + $0x1088] sm:$0xff]
    %v702 = vld [vmem:[#allocation5 + $0x1090] sm:$0xff]
    %v703 = vld [vmem:[#allocation5 + $0x1098] sm:$0xff]
    %v704 = vld [vmem:[#allocation5 + $0x10a0] sm:$0xff]
    %v705 = vld [vmem:[#allocation5 + $0x10a8] sm:$0xff]
    %v706 = vld [vmem:[#allocation5 + $0x10b0] sm:$0xff]
    %v707 = vld [vmem:[#allocation5 + $0x10b8] sm:$0xff]
    %v708 = vld [vmem:[#allocation5 + $0x10c0] sm:$0xff]
    %v709 = vld [vmem:[#allocation5 + $0x10c8] sm:$0xff]
    %v710 = vld [vmem:[#allocation5 + $0x10d0] sm:$0xff]
    %v711 = vld [vmem:[#allocation5 + $0x10d8] sm:$0xff]
    %v712 = vld [vmem:[#allocation5 + $0x10e0] sm:$0xff]
    %v713 = vld [vmem:[#allocation5 + $0x10e8] sm:$0xff]
    %v714 = vld [vmem:[#allocation5 + $0x10f0] sm:$0xff]
    %v715 = vld [vmem:[#allocation5 + $0x10f8] sm:$0xff]
    %v716 = vld [vmem:[#allocation5 + $0x1100] sm:$0xff]
    %v717 = vld [vmem:[#allocation5 + $0x1108] sm:$0xff]
    %v718 = vld [vmem:[#allocation5 + $0x1110] sm:$0xff]
    %v719 = vld [vmem:[#allocation5 + $0x1118] sm:$0xff]
    %v720 = vld [vmem:[#allocation5 + $0x1120] sm:$0xff]
    %v721 = vld [vmem:[#allocation5 + $0x1128] sm:$0xff]
    %v722 = vld [vmem:[#allocation5 + $0x1130] sm:$0xff]
    %v723 = vld [vmem:[#allocation5 + $0x1138] sm:$0xff]
    %v724 = vld [vmem:[#allocation5 + $0x1140] sm:$0xff]
    %v725 = vld [vmem:[#allocation5 + $0x1148] sm:$0xff]
    %v726 = vld [vmem:[#allocation5 + $0x1150] sm:$0xff]
    %v727 = vld [vmem:[#allocation5 + $0x1158] sm:$0xff]
    %v728 = vld [vmem:[#allocation5 + $0x1160] sm:$0xff]
    %v729 = vld [vmem:[#allocation5 + $0x1168] sm:$0xff]
    %v730 = vld [vmem:[#allocation5 + $0x1170] sm:$0xff]
    %v731 = vld [vmem:[#allocation5 + $0x1178] sm:$0xff]
    %v732 = vld [vmem:[#allocation5 + $0x1180] sm:$0xff]
    %v733 = vld [vmem:[#allocation5 + $0x1188] sm:$0xff]
    %v734 = vld [vmem:[#allocation5 + $0x1190] sm:$0xff]
    %v735 = vld [vmem:[#allocation5 + $0x1198] sm:$0xff]
    %v736 = vld [vmem:[#allocation5 + $0x11a0] sm:$0xff]
    %v737 = vld [vmem:[#allocation5 + $0x11a8] sm:$0xff]
    %v738 = vld [vmem:[#allocation5 + $0x11b0] sm:$0xff]
    %v739 = vld [vmem:[#allocation5 + $0x11b8] sm:$0xff]
    %v740 = vld [vmem:[#allocation5 + $0x11c0] sm:$0xff]
    %v741 = vld [vmem:[#allocation5 + $0x11c8] sm:$0xff]
    %v742 = vld [vmem:[#allocation5 + $0x11d0] sm:$0xff]
    %v743 = vld [vmem:[#allocation5 + $0x11d8] sm:$0xff]
    %v744 = vld [vmem:[#allocation5 + $0x11e0] sm:$0xff]
    %v745 = vld [vmem:[#allocation5 + $0x11e8] sm:$0xff]
    %v746 = vld [vmem:[#allocation5 + $0x11f0] sm:$0xff]
    %v747 = vld [vmem:[#allocation5 + $0x11f8] sm:$0xff]
    %v748 = vld [vmem:[#allocation5 + $0x1200] sm:$0xff]
    %v749 = vld [vmem:[#allocation5 + $0x1208] sm:$0xff]
    %v750 = vld [vmem:[#allocation5 + $0x1210] sm:$0xff]
    %v751 = vld [vmem:[#allocation5 + $0x1218] sm:$0xff]
    %v752 = vld [vmem:[#allocation5 + $0x1220] sm:$0xff]
    %v753 = vld [vmem:[#allocation5 + $0x1228] sm:$0xff]
    %v754 = vld [vmem:[#allocation5 + $0x1230] sm:$0xff]
    %v755 = vld [vmem:[#allocation5 + $0x1238] sm:$0xff]
    %v756 = vld [vmem:[#allocation5 + $0x1240] sm:$0xff]
    %v757 = vld [vmem:[#allocation5 + $0x1248] sm:$0xff]
    %v758 = vld [vmem:[#allocation5 + $0x1250] sm:$0xff]
    %v759 = vld [vmem:[#allocation5 + $0x1258] sm:$0xff]
    %v760 = vld [vmem:[#allocation5 + $0x1260] sm:$0xff]
    %v761 = vld [vmem:[#allocation5 + $0x1268] sm:$0xff]
    %v762 = vld [vmem:[#allocation5 + $0x1270] sm:$0xff]
    %v763 = vld [vmem:[#allocation5 + $0x1278] sm:$0xff]
    %v764 = vld [vmem:[#allocation5 + $0x1280] sm:$0xff]
    %v765 = vld [vmem:[#allocation5 + $0x1288] sm:$0xff]
    %v766 = vld [vmem:[#allocation5 + $0x1290] sm:$0xff]
    %v767 = vld [vmem:[#allocation5 + $0x1298] sm:$0xff]
    %v768 = vld [vmem:[#allocation5 + $0x12a0] sm:$0xff]
    %v769 = vld [vmem:[#allocation5 + $0x12a8] sm:$0xff]
    %v770 = vld [vmem:[#allocation5 + $0x12b0] sm:$0xff]
    %v771 = vld [vmem:[#allocation5 + $0x12b8] sm:$0xff]
    %v772 = vld [vmem:[#allocation5 + $0x12c0] sm:$0xff]
    %v773 = vld [vmem:[#allocation5 + $0x12c8] sm:$0xff]
    %v774 = vld [vmem:[#allocation5 + $0x12d0] sm:$0xff]
    %v775 = vld [vmem:[#allocation5 + $0x12d8] sm:$0xff]
    %v776 = vld [vmem:[#allocation5 + $0x12e0] sm:$0xff]
    %v777 = vld [vmem:[#allocation5 + $0x12e8] sm:$0xff]
    %v778 = vld [vmem:[#allocation5 + $0x12f0] sm:$0xff]
    %v779 = vld [vmem:[#allocation5 + $0x12f8] sm:$0xff]
    %v780 = vld [vmem:[#allocation5 + $0x1300] sm:$0xff]
    %v781 = vld [vmem:[#allocation5 + $0x1308] sm:$0xff]
    %v782 = vld [vmem:[#allocation5 + $0x1310] sm:$0xff]
    %v783 = vld [vmem:[#allocation5 + $0x1318] sm:$0xff]
    %v784 = vld [vmem:[#allocation5 + $0x1320] sm:$0xff]
    %v785 = vld [vmem:[#allocation5 + $0x1328] sm:$0xff]
    %v786 = vld [vmem:[#allocation5 + $0x1330] sm:$0xff]
    %v787 = vld [vmem:[#allocation5 + $0x1338] sm:$0xff]
    %v788 = vld [vmem:[#allocation5 + $0x1340] sm:$0xff]
    %v789 = vld [vmem:[#allocation5 + $0x1348] sm:$0xff]
    %v790 = vld [vmem:[#allocation5 + $0x1350] sm:$0xff]
    %v791 = vld [vmem:[#allocation5 + $0x1358] sm:$0xff]
    %v792 = vld [vmem:[#allocation5 + $0x1360] sm:$0xff]
    %v793 = vld [vmem:[#allocation5 + $0x1368] sm:$0xff]
    %v794 = vld [vmem:[#allocation5 + $0x1370] sm:$0xff]
    %v795 = vld [vmem:[#allocation5 + $0x1378] sm:$0xff]
    %v796 = vld [vmem:[#allocation5 + $0x1380] sm:$0xff]
    %v797 = vld [vmem:[#allocation5 + $0x1388] sm:$0xff]
    %v798 = vld [vmem:[#allocation5 + $0x1390] sm:$0xff]
    %v799 = vld [vmem:[#allocation5 + $0x1398] sm:$0xff]
    %v800 = vld [vmem:[#allocation5 + $0x13a0] sm:$0xff]
    %v801 = vld [vmem:[#allocation5 + $0x13a8] sm:$0xff]
    %v802 = vld [vmem:[#allocation5 + $0x13b0] sm:$0xff]
    %v803 = vld [vmem:[#allocation5 + $0x13b8] sm:$0xff]
    %v804 = vld [vmem:[#allocation5 + $0x13c0] sm:$0xff]
    %v805 = vld [vmem:[#allocation5 + $0x13c8] sm:$0xff]
    %v806 = vld [vmem:[#allocation5 + $0x13d0] sm:$0xff]
    %v807 = vld [vmem:[#allocation5 + $0x13d8] sm:$0xff]
    %v808 = vld [vmem:[#allocation5 + $0x13e0] sm:$0xff]
    %v809 = vld [vmem:[#allocation5 + $0x13e8] sm:$0xff]
    %v810 = vld [vmem:[#allocation5 + $0x13f0] sm:$0xff]
    %v811 = vld [vmem:[#allocation5 + $0x13f8] sm:$0xff]
    %v812 = vld [vmem:[#allocation5 + $0x1400] sm:$0xff]
    %v813 = vld [vmem:[#allocation5 + $0x1408] sm:$0xff]
    %v814 = vld [vmem:[#allocation5 + $0x1410] sm:$0xff]
    %v815 = vld [vmem:[#allocation5 + $0x1418] sm:$0xff]
    %v816 = vld [vmem:[#allocation5 + $0x1420] sm:$0xff]
    %v817 = vld [vmem:[#allocation5 + $0x1428] sm:$0xff]
    %v818 = vld [vmem:[#allocation5 + $0x1430] sm:$0xff]
    %v819 = vld [vmem:[#allocation5 + $0x1438] sm:$0xff]
    %v820 = vld [vmem:[#allocation5 + $0x1440] sm:$0xff]
    %v821 = vld [vmem:[#allocation5 + $0x1448] sm:$0xff]
    %v822 = vld [vmem:[#allocation5 + $0x1450] sm:$0xff]
    %v823 = vld [vmem:[#allocation5 + $0x1458] sm:$0xff]
    %v824 = vld [vmem:[#allocation5 + $0x1460] sm:$0xff]
    %v825 = vld [vmem:[#allocation5 + $0x1468] sm:$0xff]
    %v826 = vld [vmem:[#allocation5 + $0x1470] sm:$0xff]
    %v827 = vld [vmem:[#allocation5 + $0x1478] sm:$0xff]
    %v828 = vld [vmem:[#allocation5 + $0x1480] sm:$0xff]
    %v829 = vld [vmem:[#allocation5 + $0x1488] sm:$0xff]
    %v830 = vld [vmem:[#allocation5 + $0x1490] sm:$0xff]
    %v831 = vld [vmem:[#allocation5 + $0x1498] sm:$0xff]
    %v832 = vld [vmem:[#allocation5 + $0x14a0] sm:$0xff]
    %v833 = vld [vmem:[#allocation5 + $0x14a8] sm:$0xff]
    %v834 = vld [vmem:[#allocation5 + $0x14b0] sm:$0xff]
    %v835 = vld [vmem:[#allocation5 + $0x14b8] sm:$0xff]
    %v836 = vld [vmem:[#allocation5 + $0x14c0] sm:$0xff]
    %v837 = vld [vmem:[#allocation5 + $0x14c8] sm:$0xff]
    %v838 = vld [vmem:[#allocation5 + $0x14d0] sm:$0xff]
    %v839 = vld [vmem:[#allocation5 + $0x14d8] sm:$0xff]
    %v840 = vld [vmem:[#allocation5 + $0x14e0] sm:$0xff]
    %v841 = vld [vmem:[#allocation5 + $0x14e8] sm:$0xff]
    %v842 = vld [vmem:[#allocation5 + $0x14f0] sm:$0xff]
    %v843 = vld [vmem:[#allocation5 + $0x14f8] sm:$0xff]
    %v844 = vld [vmem:[#allocation5 + $0x1500] sm:$0xff]
    %v845 = vld [vmem:[#allocation5 + $0x1508] sm:$0xff]
    %v846 = vld [vmem:[#allocation5 + $0x1510] sm:$0xff]
    %v847 = vld [vmem:[#allocation5 + $0x1518] sm:$0xff]
    %v848 = vld [vmem:[#allocation5 + $0x1520] sm:$0xff]
    %v849 = vld [vmem:[#allocation5 + $0x1528] sm:$0xff]
    %v850 = vld [vmem:[#allocation5 + $0x1530] sm:$0xff]
    %v851 = vld [vmem:[#allocation5 + $0x1538] sm:$0xff]
    %v852 = vld [vmem:[#allocation5 + $0x1540] sm:$0xff]
    %v853 = vld [vmem:[#allocation5 + $0x1548] sm:$0xff]
    %v854 = vld [vmem:[#allocation5 + $0x1550] sm:$0xff]
    %v855 = vld [vmem:[#allocation5 + $0x1558] sm:$0xff]
    %v856 = vld [vmem:[#allocation5 + $0x1560] sm:$0xff]
    %v857 = vld [vmem:[#allocation5 + $0x1568] sm:$0xff]
    %v858 = vld [vmem:[#allocation5 + $0x1570] sm:$0xff]
    %v859 = vld [vmem:[#allocation5 + $0x1578] sm:$0xff]
    %v860 = vld [vmem:[#allocation5 + $0x1580] sm:$0xff]
    %v861 = vld [vmem:[#allocation5 + $0x1588] sm:$0xff]
    %v862 = vld [vmem:[#allocation5 + $0x1590] sm:$0xff]
    %v863 = vld [vmem:[#allocation5 + $0x1598] sm:$0xff]
    %v864 = vld [vmem:[#allocation5 + $0x15a0] sm:$0xff]
    %v865 = vld [vmem:[#allocation5 + $0x15a8] sm:$0xff]
    %v866 = vld [vmem:[#allocation5 + $0x15b0] sm:$0xff]
    %v867 = vld [vmem:[#allocation5 + $0x15b8] sm:$0xff]
    %v868 = vld [vmem:[#allocation5 + $0x15c0] sm:$0xff]
    %v869 = vld [vmem:[#allocation5 + $0x15c8] sm:$0xff]
    %v870 = vld [vmem:[#allocation5 + $0x15d0] sm:$0xff]
    %v871 = vld [vmem:[#allocation5 + $0x15d8] sm:$0xff]
    %v872 = vld [vmem:[#allocation5 + $0x15e0] sm:$0xff]
    %v873 = vld [vmem:[#allocation5 + $0x15e8] sm:$0xff]
    %v874 = vld [vmem:[#allocation5 + $0x15f0] sm:$0xff]
    %v875 = vld [vmem:[#allocation5 + $0x15f8] sm:$0xff]
    %v876 = vld [vmem:[#allocation5 + $0x1600] sm:$0xff]
    %v877 = vld [vmem:[#allocation5 + $0x1608] sm:$0xff]
    %v878 = vld [vmem:[#allocation5 + $0x1610] sm:$0xff]
    %v879 = vld [vmem:[#allocation5 + $0x1618] sm:$0xff]
    %v880 = vld [vmem:[#allocation5 + $0x1620] sm:$0xff]
    %v881 = vld [vmem:[#allocation5 + $0x1628] sm:$0xff]
    %v882 = vld [vmem:[#allocation5 + $0x1630] sm:$0xff]
    %v883 = vld [vmem:[#allocation5 + $0x1638] sm:$0xff]
    %v884 = vld [vmem:[#allocation5 + $0x1640] sm:$0xff]
    %v885 = vld [vmem:[#allocation5 + $0x1648] sm:$0xff]
    %v886 = vld [vmem:[#allocation5 + $0x1650] sm:$0xff]
    %v887 = vld [vmem:[#allocation5 + $0x1658] sm:$0xff]
    %v888 = vld [vmem:[#allocation5 + $0x1660] sm:$0xff]
    %v889 = vld [vmem:[#allocation5 + $0x1668] sm:$0xff]
    %v890 = vld [vmem:[#allocation5 + $0x1670] sm:$0xff]
    %v891 = vld [vmem:[#allocation5 + $0x1678] sm:$0xff]
    %v892 = vld [vmem:[#allocation5 + $0x1680] sm:$0xff]
    %v893 = vld [vmem:[#allocation5 + $0x1688] sm:$0xff]
    %v894 = vld [vmem:[#allocation5 + $0x1690] sm:$0xff]
    %v895 = vld [vmem:[#allocation5 + $0x1698] sm:$0xff]
    %v896 = vld [vmem:[#allocation5 + $0x16a0] sm:$0xff]
    %v897 = vld [vmem:[#allocation5 + $0x16a8] sm:$0xff]
    %v898 = vld [vmem:[#allocation5 + $0x16b0] sm:$0xff]
    %v899 = vld [vmem:[#allocation5 + $0x16b8] sm:$0xff]
    %v900 = vld [vmem:[#allocation5 + $0x16c0] sm:$0xff]
    %v901 = vld [vmem:[#allocation5 + $0x16c8] sm:$0xff]
    %v902 = vld [vmem:[#allocation5 + $0x16d0] sm:$0xff]
    %v903 = vld [vmem:[#allocation5 + $0x16d8] sm:$0xff]
    %v904 = vld [vmem:[#allocation5 + $0x16e0] sm:$0xff]
    %v905 = vld [vmem:[#allocation5 + $0x16e8] sm:$0xff]
    %v906 = vld [vmem:[#allocation5 + $0x16f0] sm:$0xff]
    %v907 = vld [vmem:[#allocation5 + $0x16f8] sm:$0xff]
    %v908 = vld [vmem:[#allocation5 + $0x1700] sm:$0xff]
    %v909 = vld [vmem:[#allocation5 + $0x1708] sm:$0xff]
    %v910 = vld [vmem:[#allocation5 + $0x1710] sm:$0xff]
    %v911 = vld [vmem:[#allocation5 + $0x1718] sm:$0xff]
    %v912 = vld [vmem:[#allocation5 + $0x1720] sm:$0xff]
    %v913 = vld [vmem:[#allocation5 + $0x1728] sm:$0xff]
    %v914 = vld [vmem:[#allocation5 + $0x1730] sm:$0xff]
    %v915 = vld [vmem:[#allocation5 + $0x1738] sm:$0xff]
    %v916 = vld [vmem:[#allocation5 + $0x1740] sm:$0xff]
    %v917 = vld [vmem:[#allocation5 + $0x1748] sm:$0xff]
    %v918 = vld [vmem:[#allocation5 + $0x1750] sm:$0xff]
    %v919 = vld [vmem:[#allocation5 + $0x1758] sm:$0xff]
    %v920 = vld [vmem:[#allocation5 + $0x1760] sm:$0xff]
    %v921 = vld [vmem:[#allocation5 + $0x1768] sm:$0xff]
    %v922 = vld [vmem:[#allocation5 + $0x1770] sm:$0xff]
    %v923 = vld [vmem:[#allocation5 + $0x1778] sm:$0xff]
    %v924 = vld [vmem:[#allocation5 + $0x1780] sm:$0xff]
    %v925 = vld [vmem:[#allocation5 + $0x1788] sm:$0xff]
    %v926 = vld [vmem:[#allocation5 + $0x1790] sm:$0xff]
    %v927 = vld [vmem:[#allocation5 + $0x1798] sm:$0xff]
    %v928 = vld [vmem:[#allocation5 + $0x17a0] sm:$0xff]
    %v929 = vld [vmem:[#allocation5 + $0x17a8] sm:$0xff]
    %v930 = vld [vmem:[#allocation5 + $0x17b0] sm:$0xff]
    %v931 = vld [vmem:[#allocation5 + $0x17b8] sm:$0xff]
    %v932 = vld [vmem:[#allocation5 + $0x17c0] sm:$0xff]
    %v933 = vld [vmem:[#allocation5 + $0x17c8] sm:$0xff]
    %v934 = vld [vmem:[#allocation5 + $0x17d0] sm:$0xff]
    %v935 = vld [vmem:[#allocation5 + $0x17d8] sm:$0xff]
    %v936 = vld [vmem:[#allocation5 + $0x17e0] sm:$0xff]
    %v937 = vld [vmem:[#allocation5 + $0x17e8] sm:$0xff]
    %v938 = vld [vmem:[#allocation5 + $0x17f0] sm:$0xff]
    %v939 = vld [vmem:[#allocation5 + $0x17f8] sm:$0xff]
    %v940 = vld [vmem:[#allocation5 + $0x1800] sm:$0xff]
    %v941 = vld [vmem:[#allocation5 + $0x1808] sm:$0xff]
    %v942 = vld [vmem:[#allocation5 + $0x1810] sm:$0xff]
    %v943 = vld [vmem:[#allocation5 + $0x1818] sm:$0xff]
    %v944 = vld [vmem:[#allocation5 + $0x1820] sm:$0xff]
    %v945 = vld [vmem:[#allocation5 + $0x1828] sm:$0xff]
    %v946 = vld [vmem:[#allocation5 + $0x1830] sm:$0xff]
    %v947 = vld [vmem:[#allocation5 + $0x1838] sm:$0xff]
    %v948 = vld [vmem:[#allocation5 + $0x1840] sm:$0xff]
    %v949 = vld [vmem:[#allocation5 + $0x1848] sm:$0xff]
    %v950 = vld [vmem:[#allocation5 + $0x1850] sm:$0xff]
    %v951 = vld [vmem:[#allocation5 + $0x1858] sm:$0xff]
    %v952 = vld [vmem:[#allocation5 + $0x1860] sm:$0xff]
    %v953 = vld [vmem:[#allocation5 + $0x1868] sm:$0xff]
    %v954 = vld [vmem:[#allocation5 + $0x1870] sm:$0xff]
    %v955 = vld [vmem:[#allocation5 + $0x1878] sm:$0xff]
    %v956 = vld [vmem:[#allocation5 + $0x1880] sm:$0xff]
    %v957 = vld [vmem:[#allocation5 + $0x1888] sm:$0xff]
    %v958 = vld [vmem:[#allocation5 + $0x1890] sm:$0xff]
    %v959 = vld [vmem:[#allocation5 + $0x1898] sm:$0xff]
    %v960 = vld [vmem:[#allocation5 + $0x18a0] sm:$0xff]
    %v961 = vld [vmem:[#allocation5 + $0x18a8] sm:$0xff]
    %v962 = vld [vmem:[#allocation5 + $0x18b0] sm:$0xff]
    %v963 = vld [vmem:[#allocation5 + $0x18b8] sm:$0xff]
    %v964 = vld [vmem:[#allocation5 + $0x18c0] sm:$0xff]
    %v965 = vld [vmem:[#allocation5 + $0x18c8] sm:$0xff]
    %v966 = vld [vmem:[#allocation5 + $0x18d0] sm:$0xff]
    %v967 = vld [vmem:[#allocation5 + $0x18d8] sm:$0xff]
    %v968 = vld [vmem:[#allocation5 + $0x18e0] sm:$0xff]
    %v969 = vld [vmem:[#allocation5 + $0x18e8] sm:$0xff]
    %v970 = vld [vmem:[#allocation5 + $0x18f0] sm:$0xff]
    %v971 = vld [vmem:[#allocation5 + $0x18f8] sm:$0xff]
    %v972 = vld [vmem:[#allocation5 + $0x1900] sm:$0xff]
    %v973 = vld [vmem:[#allocation5 + $0x1908] sm:$0xff]
    %v974 = vld [vmem:[#allocation5 + $0x1910] sm:$0xff]
    %v975 = vld [vmem:[#allocation5 + $0x1918] sm:$0xff]
    %v976 = vld [vmem:[#allocation5 + $0x1920] sm:$0xff]
    %v977 = vld [vmem:[#allocation5 + $0x1928] sm:$0xff]
    %v978 = vld [vmem:[#allocation5 + $0x1930] sm:$0xff]
    %v979 = vld [vmem:[#allocation5 + $0x1938] sm:$0xff]
    %v980 = vld [vmem:[#allocation5 + $0x1940] sm:$0xff]
    %v981 = vld [vmem:[#allocation5 + $0x1948] sm:$0xff]
    %v982 = vld [vmem:[#allocation5 + $0x1950] sm:$0xff]
    %v983 = vld [vmem:[#allocation5 + $0x1958] sm:$0xff]
    %v984 = vld [vmem:[#allocation5 + $0x1960] sm:$0xff]
    %v985 = vld [vmem:[#allocation5 + $0x1968] sm:$0xff]
    %v986 = vld [vmem:[#allocation5 + $0x1970] sm:$0xff]
    %v987 = vld [vmem:[#allocation5 + $0x1978] sm:$0xff]
    %v988 = vld [vmem:[#allocation5 + $0x1980] sm:$0xff]
    %v989 = vld [vmem:[#allocation5 + $0x1988] sm:$0xff]
    %v990 = vld [vmem:[#allocation5 + $0x1990] sm:$0xff]
    %v991 = vld [vmem:[#allocation5 + $0x1998] sm:$0xff]
    %v992 = vld [vmem:[#allocation5 + $0x19a0] sm:$0xff]
    %v993 = vld [vmem:[#allocation5 + $0x19a8] sm:$0xff]
    %v994 = vld [vmem:[#allocation5 + $0x19b0] sm:$0xff]
    %v995 = vld [vmem:[#allocation5 + $0x19b8] sm:$0xff]
    %v996 = vld [vmem:[#allocation5 + $0x19c0] sm:$0xff]
    %v997 = vld [vmem:[#allocation5 + $0x19c8] sm:$0xff]
    %v998 = vld [vmem:[#allocation5 + $0x19d0] sm:$0xff]
    %v999 = vld [vmem:[#allocation5 + $0x19d8] sm:$0xff]
    %v1000 = vld [vmem:[#allocation5 + $0x19e0] sm:$0xff]
    %v1001 = vld [vmem:[#allocation5 + $0x19e8] sm:$0xff]
    %v1002 = vld [vmem:[#allocation5 + $0x19f0] sm:$0xff]
    %v1003 = vld [vmem:[#allocation5 + $0x19f8] sm:$0xff]
    %v1004 = vld [vmem:[#allocation5 + $0x1a00] sm:$0xff]
    %v1005 = vld [vmem:[#allocation5 + $0x1a08] sm:$0xff]
    %v1006 = vld [vmem:[#allocation5 + $0x1a10] sm:$0xff]
    %v1007 = vld [vmem:[#allocation5 + $0x1a18] sm:$0xff]
    %v1008 = vld [vmem:[#allocation5 + $0x1a20] sm:$0xff]
    %v1009 = vld [vmem:[#allocation5 + $0x1a28] sm:$0xff]
    %v1010 = vld [vmem:[#allocation5 + $0x1a30] sm:$0xff]
    %v1011 = vld [vmem:[#allocation5 + $0x1a38] sm:$0xff]
    %v1012 = vld [vmem:[#allocation5 + $0x1a40] sm:$0xff]
    %v1013 = vld [vmem:[#allocation5 + $0x1a48] sm:$0xff]
    %v1014 = vld [vmem:[#allocation5 + $0x1a50] sm:$0xff]
    %v1015 = vld [vmem:[#allocation5 + $0x1a58] sm:$0xff]
    %v1016 = vld [vmem:[#allocation5 + $0x1a60] sm:$0xff]
    %v1017 = vld [vmem:[#allocation5 + $0x1a68] sm:$0xff]
    %v1018 = vld [vmem:[#allocation5 + $0x1a70] sm:$0xff]
    %v1019 = vld [vmem:[#allocation5 + $0x1a78] sm:$0xff]
    %v1020 = vld [vmem:[#allocation5 + $0x1a80] sm:$0xff]
    %v1021 = vld [vmem:[#allocation5 + $0x1a88] sm:$0xff]
    %v1022 = vld [vmem:[#allocation5 + $0x1a90] sm:$0xff]
    %v1023 = vld [vmem:[#allocation5 + $0x1a98] sm:$0xff]
    %v1024 = vld [vmem:[#allocation5 + $0x1aa0] sm:$0xff]
    %v1025 = vld [vmem:[#allocation5 + $0x1aa8] sm:$0xff]
    %v1026 = vld [vmem:[#allocation5 + $0x1ab0] sm:$0xff]
    %v1027 = vld [vmem:[#allocation5 + $0x1ab8] sm:$0xff]
    %v1028 = vld [vmem:[#allocation5 + $0x1ac0] sm:$0xff]
    %v1029 = vld [vmem:[#allocation5 + $0x1ac8] sm:$0xff]
    %v1030 = vld [vmem:[#allocation5 + $0x1ad0] sm:$0xff]
    %v1031 = vld [vmem:[#allocation5 + $0x1ad8] sm:$0xff]
    %v1032 = vld [vmem:[#allocation5 + $0x1ae0] sm:$0xff]
    %v1033 = vld [vmem:[#allocation5 + $0x1ae8] sm:$0xff]
    %v1034 = vld [vmem:[#allocation5 + $0x1af0] sm:$0xff]
    %v1035 = vld [vmem:[#allocation5 + $0x1af8] sm:$0xff]
    %v1036 = vld [vmem:[#allocation5 + $0x1b00] sm:$0xff]
    %v1037 = vld [vmem:[#allocation5 + $0x1b08] sm:$0xff]
    %v1038 = vld [vmem:[#allocation5 + $0x1b10] sm:$0xff]
    %v1039 = vld [vmem:[#allocation5 + $0x1b18] sm:$0xff]
    %v1040 = vld [vmem:[#allocation5 + $0x1b20] sm:$0xff]
    %v1041 = vld [vmem:[#allocation5 + $0x1b28] sm:$0xff]
    %v1042 = vld [vmem:[#allocation5 + $0x1b30] sm:$0xff]
    %v1043 = vld [vmem:[#allocation5 + $0x1b38] sm:$0xff]
    %v1044 = vld [vmem:[#allocation5 + $0x1b40] sm:$0xff]
    %v1045 = vld [vmem:[#allocation5 + $0x1b48] sm:$0xff]
    %v1046 = vld [vmem:[#allocation5 + $0x1b50] sm:$0xff]
    %v1047 = vld [vmem:[#allocation5 + $0x1b58] sm:$0xff]
    %v1048 = vld [vmem:[#allocation5 + $0x1b60] sm:$0xff]
    %v1049 = vld [vmem:[#allocation5 + $0x1b68] sm:$0xff]
    %v1050 = vld [vmem:[#allocation5 + $0x1b70] sm:$0xff]
    %v1051 = vld [vmem:[#allocation5 + $0x1b78] sm:$0xff]
    %v1052 = vld [vmem:[#allocation5 + $0x1b80] sm:$0xff]
    %v1053 = vld [vmem:[#allocation5 + $0x1b88] sm:$0xff]
    %v1054 = vld [vmem:[#allocation5 + $0x1b90] sm:$0xff]
    %v1055 = vld [vmem:[#allocation5 + $0x1b98] sm:$0xff]
    %v1056 = vld [vmem:[#allocation5 + $0x1ba0] sm:$0xff]
    %v1057 = vld [vmem:[#allocation5 + $0x1ba8] sm:$0xff]
    %v1058 = vld [vmem:[#allocation5 + $0x1bb0] sm:$0xff]
    %v1059 = vld [vmem:[#allocation5 + $0x1bb8] sm:$0xff]
    %v1060 = vld [vmem:[#allocation5 + $0x1bc0] sm:$0xff]
    %v1061 = vld [vmem:[#allocation5 + $0x1bc8] sm:$0xff]
    %v1062 = vld [vmem:[#allocation5 + $0x1bd0] sm:$0xff]
    %v1063 = vld [vmem:[#allocation5 + $0x1bd8] sm:$0xff]
    %v1064 = vld [vmem:[#allocation5 + $0x1be0] sm:$0xff]
    %v1065 = vld [vmem:[#allocation5 + $0x1be8] sm:$0xff]
    %v1066 = vld [vmem:[#allocation5 + $0x1bf0] sm:$0xff]
    %v1067 = vld [vmem:[#allocation5 + $0x1bf8] sm:$0xff]
    %v1068 = vld [vmem:[#allocation5 + $0x1c00] sm:$0xff]
    %v1069 = vld [vmem:[#allocation5 + $0x1c08] sm:$0xff]
    %v1070 = vld [vmem:[#allocation5 + $0x1c10] sm:$0xff]
    %v1071 = vld [vmem:[#allocation5 + $0x1c18] sm:$0xff]
    %v1072 = vld [vmem:[#allocation5 + $0x1c20] sm:$0xff]
    %v1073 = vld [vmem:[#allocation5 + $0x1c28] sm:$0xff]
    %v1074 = vld [vmem:[#allocation5 + $0x1c30] sm:$0xff]
    %v1075 = vld [vmem:[#allocation5 + $0x1c38] sm:$0xff]
    %v1076 = vld [vmem:[#allocation5 + $0x1c40] sm:$0xff]
    %v1077 = vld [vmem:[#allocation5 + $0x1c48] sm:$0xff]
    %v1078 = vld [vmem:[#allocation5 + $0x1c50] sm:$0xff]
    %v1079 = vld [vmem:[#allocation5 + $0x1c58] sm:$0xff]
    %v1080 = vld [vmem:[#allocation5 + $0x1c60] sm:$0xff]
    %v1081 = vld [vmem:[#allocation5 + $0x1c68] sm:$0xff]
    %v1082 = vld [vmem:[#allocation5 + $0x1c70] sm:$0xff]
    %v1083 = vld [vmem:[#allocation5 + $0x1c78] sm:$0xff]
    %v1084 = vld [vmem:[#allocation5 + $0x1c80] sm:$0xff]
    %v1085 = vld [vmem:[#allocation5 + $0x1c88] sm:$0xff]
    %v1086 = vld [vmem:[#allocation5 + $0x1c90] sm:$0xff]
    %v1087 = vld [vmem:[#allocation5 + $0x1c98] sm:$0xff]
    %v1088 = vld [vmem:[#allocation5 + $0x1ca0] sm:$0xff]
    %v1089 = vld [vmem:[#allocation5 + $0x1ca8] sm:$0xff]
    %v1090 = vld [vmem:[#allocation5 + $0x1cb0] sm:$0xff]
    %v1091 = vld [vmem:[#allocation5 + $0x1cb8] sm:$0xff]
    %v1092 = vld [vmem:[#allocation5 + $0x1cc0] sm:$0xff]
    %v1093 = vld [vmem:[#allocation5 + $0x1cc8] sm:$0xff]
    %v1094 = vld [vmem:[#allocation5 + $0x1cd0] sm:$0xff]
    %v1095 = vld [vmem:[#allocation5 + $0x1cd8] sm:$0xff]
    %v1096 = vld [vmem:[#allocation5 + $0x1ce0] sm:$0xff]
    %v1097 = vld [vmem:[#allocation5 + $0x1ce8] sm:$0xff]
    %v1098 = vld [vmem:[#allocation5 + $0x1cf0] sm:$0xff]
    %v1099 = vld [vmem:[#allocation5 + $0x1cf8] sm:$0xff]
    %v1100 = vld [vmem:[#allocation5 + $0x1d00] sm:$0xff]
    %v1101 = vld [vmem:[#allocation5 + $0x1d08] sm:$0xff]
    %v1102 = vld [vmem:[#allocation5 + $0x1d10] sm:$0xff]
    %v1103 = vld [vmem:[#allocation5 + $0x1d18] sm:$0xff]
    %v1104 = vld [vmem:[#allocation5 + $0x1d20] sm:$0xff]
    %v1105 = vld [vmem:[#allocation5 + $0x1d28] sm:$0xff]
    %v1106 = vld [vmem:[#allocation5 + $0x1d30] sm:$0xff]
    %v1107 = vld [vmem:[#allocation5 + $0x1d38] sm:$0xff]
    %v1108 = vld [vmem:[#allocation5 + $0x1d40] sm:$0xff]
    %v1109 = vld [vmem:[#allocation5 + $0x1d48] sm:$0xff]
    %v1110 = vld [vmem:[#allocation5 + $0x1d50] sm:$0xff]
    %v1111 = vld [vmem:[#allocation5 + $0x1d58] sm:$0xff]
    %v1112 = vld [vmem:[#allocation5 + $0x1d60] sm:$0xff]
    %v1113 = vld [vmem:[#allocation5 + $0x1d68] sm:$0xff]
    %v1114 = vld [vmem:[#allocation5 + $0x1d70] sm:$0xff]
    %v1115 = vld [vmem:[#allocation5 + $0x1d78] sm:$0xff]
    %v1116 = vld [vmem:[#allocation5 + $0x1d80] sm:$0xff]
    %v1117 = vld [vmem:[#allocation5 + $0x1d88] sm:$0xff]
    %v1118 = vld [vmem:[#allocation5 + $0x1d90] sm:$0xff]
    %v1119 = vld [vmem:[#allocation5 + $0x1d98] sm:$0xff]
    %v1120 = vld [vmem:[#allocation5 + $0x1da0] sm:$0xff]
    %v1121 = vld [vmem:[#allocation5 + $0x1da8] sm:$0xff]
    %v1122 = vld [vmem:[#allocation5 + $0x1db0] sm:$0xff]
    %v1123 = vld [vmem:[#allocation5 + $0x1db8] sm:$0xff]
    %v1124 = vld [vmem:[#allocation5 + $0x1dc0] sm:$0xff]
    %v1125 = vld [vmem:[#allocation5 + $0x1dc8] sm:$0xff]
    %v1126 = vld [vmem:[#allocation5 + $0x1dd0] sm:$0xff]
    %v1127 = vld [vmem:[#allocation5 + $0x1dd8] sm:$0xff]
    %v1128 = vld [vmem:[#allocation5 + $0x1de0] sm:$0xff]
    %v1129 = vld [vmem:[#allocation5 + $0x1de8] sm:$0xff]
    %v1130 = vld [vmem:[#allocation5 + $0x1df0] sm:$0xff]
    %v1131 = vld [vmem:[#allocation5 + $0x1df8] sm:$0xff]
    %v1132 = vld [vmem:[#allocation5 + $0x1e00] sm:$0xff]
    %v1133 = vld [vmem:[#allocation5 + $0x1e08] sm:$0xff]
    %v1134 = vld [vmem:[#allocation5 + $0x1e10] sm:$0xff]
    %v1135 = vld [vmem:[#allocation5 + $0x1e18] sm:$0xff]
    %v1136 = vld [vmem:[#allocation5 + $0x1e20] sm:$0xff]
    %v1137 = vld [vmem:[#allocation5 + $0x1e28] sm:$0xff]
    %v1138 = vld [vmem:[#allocation5 + $0x1e30] sm:$0xff]
    %v1139 = vld [vmem:[#allocation5 + $0x1e38] sm:$0xff]
    %v1140 = vld [vmem:[#allocation5 + $0x1e40] sm:$0xff]
    %v1141 = vld [vmem:[#allocation5 + $0x1e48] sm:$0xff]
    %v1142 = vld [vmem:[#allocation5 + $0x1e50] sm:$0xff]
    %v1143 = vld [vmem:[#allocation5 + $0x1e58] sm:$0xff]
    %v1144 = vld [vmem:[#allocation5 + $0x1e60] sm:$0xff]
    %v1145 = vld [vmem:[#allocation5 + $0x1e68] sm:$0xff]
    %v1146 = vld [vmem:[#allocation5 + $0x1e70] sm:$0xff]
    %v1147 = vld [vmem:[#allocation5 + $0x1e78] sm:$0xff]
    %v1148 = vld [vmem:[#allocation5 + $0x1e80] sm:$0xff]
    %v1149 = vld [vmem:[#allocation5 + $0x1e88] sm:$0xff]
    %v1150 = vld [vmem:[#allocation5 + $0x1e90] sm:$0xff]
    %v1151 = vld [vmem:[#allocation5 + $0x1e98] sm:$0xff]
    %v1152 = vld [vmem:[#allocation5 + $0x1ea0] sm:$0xff]
    %v1153 = vld [vmem:[#allocation5 + $0x1ea8] sm:$0xff]
    %v1154 = vld [vmem:[#allocation5 + $0x1eb0] sm:$0xff]
    %v1155 = vld [vmem:[#allocation5 + $0x1eb8] sm:$0xff]
    %v1156 = vld [vmem:[#allocation5 + $0x1ec0] sm:$0xff]
    %v1157 = vld [vmem:[#allocation5 + $0x1ec8] sm:$0xff]
    %v1158 = vld [vmem:[#allocation5 + $0x1ed0] sm:$0xff]
    %v1159 = vld [vmem:[#allocation5 + $0x1ed8] sm:$0xff]
    %v1160 = vld [vmem:[#allocation5 + $0x1ee0] sm:$0xff]
    %v1161 = vld [vmem:[#allocation5 + $0x1ee8] sm:$0xff]
    %v1162 = vld [vmem:[#allocation5 + $0x1ef0] sm:$0xff]
    %v1163 = vld [vmem:[#allocation5 + $0x1ef8] sm:$0xff]
    %v1164 = vld [vmem:[#allocation5 + $0x1f00] sm:$0xff]
    %v1165 = vld [vmem:[#allocation5 + $0x1f08] sm:$0xff]
    %v1166 = vld [vmem:[#allocation5 + $0x1f10] sm:$0xff]
    %v1167 = vld [vmem:[#allocation5 + $0x1f18] sm:$0xff]
    %v1168 = vld [vmem:[#allocation5 + $0x1f20] sm:$0xff]
    %v1169 = vld [vmem:[#allocation5 + $0x1f28] sm:$0xff]
    %v1170 = vld [vmem:[#allocation5 + $0x1f30] sm:$0xff]
    %v1171 = vld [vmem:[#allocation5 + $0x1f38] sm:$0xff]
    %v1172 = vld [vmem:[#allocation5 + $0x1f40] sm:$0xff]
    %v1173 = vld [vmem:[#allocation5 + $0x1f48] sm:$0xff]
    %v1174 = vld [vmem:[#allocation5 + $0x1f50] sm:$0xff]
    %v1175 = vld [vmem:[#allocation5 + $0x1f58] sm:$0xff]
    %v1176 = vld [vmem:[#allocation5 + $0x1f60] sm:$0xff]
    %v1177 = vld [vmem:[#allocation5 + $0x1f68] sm:$0xff]
    %v1178 = vld [vmem:[#allocation5 + $0x1f70] sm:$0xff]
    %v1179 = vld [vmem:[#allocation5 + $0x1f78] sm:$0xff]
    %v1180 = vld [vmem:[#allocation5 + $0x1f80] sm:$0xff]
    %v1181 = vld [vmem:[#allocation5 + $0x1f88] sm:$0xff]
    %v1182 = vld [vmem:[#allocation5 + $0x1f90] sm:$0xff]
    %v1183 = vld [vmem:[#allocation5 + $0x1f98] sm:$0xff]
    %v1184 = vld [vmem:[#allocation5 + $0x1fa0] sm:$0xff]
    %v1185 = vld [vmem:[#allocation5 + $0x1fa8] sm:$0xff]
    %v1186 = vld [vmem:[#allocation5 + $0x1fb0] sm:$0xff]
    %v1187 = vld [vmem:[#allocation5 + $0x1fb8] sm:$0xff]
    %v1188 = vld [vmem:[#allocation5 + $0x1fc0] sm:$0xff]
    %v1189 = vld [vmem:[#allocation5 + $0x1fc8] sm:$0xff]
    %v1190 = vld [vmem:[#allocation5 + $0x1fd0] sm:$0xff]
    %v1191 = vld [vmem:[#allocation5 + $0x1fd8] sm:$0xff]
    %v1192 = vld [vmem:[#allocation5 + $0x1fe0] sm:$0xff]
    %v1193 = vld [vmem:[#allocation5 + $0x1fe8] sm:$0xff]
    %v1194 = vld [vmem:[#allocation5 + $0x1ff0] sm:$0xff]
    %v1195 = vld [vmem:[#allocation5 + $0x1ff8] sm:$0xff]
    %v1196 = vld [vmem:[#allocation5 + $0x2000] sm:$0xff]
    %v1197 = vld [vmem:[#allocation5 + $0x2008] sm:$0xff]
    %v1198 = vld [vmem:[#allocation5 + $0x2010] sm:$0xff]
    %v1199 = vld [vmem:[#allocation5 + $0x2018] sm:$0xff]
    %v1200 = vld [vmem:[#allocation5 + $0x2020] sm:$0xff]
    %v1201 = vld [vmem:[#allocation5 + $0x2028] sm:$0xff]
    %v1202 = vld [vmem:[#allocation5 + $0x2030] sm:$0xff]
    %v1203 = vld [vmem:[#allocation5 + $0x2038] sm:$0xff]
    %v1204 = vld [vmem:[#allocation5 + $0x2040] sm:$0xff]
    %v1205 = vld [vmem:[#allocation5 + $0x2048] sm:$0xff]
    %v1206 = vld [vmem:[#allocation5 + $0x2050] sm:$0xff]
    %v1207 = vld [vmem:[#allocation5 + $0x2058] sm:$0xff]
    %v1208 = vld [vmem:[#allocation5 + $0x2060] sm:$0xff]
    %v1209 = vld [vmem:[#allocation5 + $0x2068] sm:$0xff]
    %v1210 = vld [vmem:[#allocation5 + $0x2070] sm:$0xff]
    %v1211 = vld [vmem:[#allocation5 + $0x2078] sm:$0xff]
    %v1212 = vld [vmem:[#allocation5 + $0x2080] sm:$0xff]
    %v1213 = vld [vmem:[#allocation5 + $0x2088] sm:$0xff]
    %v1214 = vld [vmem:[#allocation5 + $0x2090] sm:$0xff]
    %v1215 = vld [vmem:[#allocation5 + $0x2098] sm:$0xff]
    %v1216 = vld [vmem:[#allocation5 + $0x20a0] sm:$0xff]
    %v1217 = vld [vmem:[#allocation5 + $0x20a8] sm:$0xff]
    %v1218 = vld [vmem:[#allocation5 + $0x20b0] sm:$0xff]
    %v1219 = vld [vmem:[#allocation5 + $0x20b8] sm:$0xff]
    %v1220 = vld [vmem:[#allocation5 + $0x20c0] sm:$0xff]
    %v1221 = vld [vmem:[#allocation5 + $0x20c8] sm:$0xff]
    %v1222 = vld [vmem:[#allocation5 + $0x20d0] sm:$0xff]
    %v1223 = vld [vmem:[#allocation5 + $0x20d8] sm:$0xff]
    %v1224 = vld [vmem:[#allocation5 + $0x20e0] sm:$0xff]
    %v1225 = vld [vmem:[#allocation5 + $0x20e8] sm:$0xff]
    %v1226 = vld [vmem:[#allocation5 + $0x20f0] sm:$0xff]
    %v1227 = vld [vmem:[#allocation5 + $0x20f8] sm:$0xff]
    %v1228 = vld [vmem:[#allocation5 + $0x2100] sm:$0xff]
    %v1229 = vld [vmem:[#allocation5 + $0x2108] sm:$0xff]
    %v1230 = vld [vmem:[#allocation5 + $0x2110] sm:$0xff]
    %v1231 = vld [vmem:[#allocation5 + $0x2118] sm:$0xff]
    %v1232 = vld [vmem:[#allocation5 + $0x2120] sm:$0xff]
    %v1233 = vld [vmem:[#allocation5 + $0x2128] sm:$0xff]
    %v1234 = vld [vmem:[#allocation5 + $0x2130] sm:$0xff]
    %v1235 = vld [vmem:[#allocation5 + $0x2138] sm:$0xff]
    %v1236 = vld [vmem:[#allocation5 + $0x2140] sm:$0xff]
    %v1237 = vld [vmem:[#allocation5 + $0x2148] sm:$0xff]
    %v1238 = vld [vmem:[#allocation5 + $0x2150] sm:$0xff]
    %v1239 = vld [vmem:[#allocation5 + $0x2158] sm:$0xff]
    %v1240 = vld [vmem:[#allocation5 + $0x2160] sm:$0xff]
    %v1241 = vld [vmem:[#allocation5 + $0x2168] sm:$0xff]
    %v1242 = vld [vmem:[#allocation5 + $0x2170] sm:$0xff]
    %v1243 = vld [vmem:[#allocation5 + $0x2178] sm:$0xff]
    %v1244 = vld [vmem:[#allocation5 + $0x2180] sm:$0xff]
    %v1245 = vld [vmem:[#allocation5 + $0x2188] sm:$0xff]
    %v1246 = vld [vmem:[#allocation5 + $0x2190] sm:$0xff]
    %v1247 = vld [vmem:[#allocation5 + $0x2198] sm:$0xff]
    %v1248 = vld [vmem:[#allocation5 + $0x21a0] sm:$0xff]
    %v1249 = vld [vmem:[#allocation5 + $0x21a8] sm:$0xff]
    %v1250 = vld [vmem:[#allocation5 + $0x21b0] sm:$0xff]
    %v1251 = vld [vmem:[#allocation5 + $0x21b8] sm:$0xff]
    %v1252 = vld [vmem:[#allocation5 + $0x21c0] sm:$0xff]
    %v1253 = vld [vmem:[#allocation5 + $0x21c8] sm:$0xff]
    %v1254 = vld [vmem:[#allocation5 + $0x21d0] sm:$0xff]
    %v1255 = vld [vmem:[#allocation5 + $0x21d8] sm:$0xff]
    %v1256 = vld [vmem:[#allocation5 + $0x21e0] sm:$0xff]
    %v1257 = vld [vmem:[#allocation5 + $0x21e8] sm:$0xff]
    %v1258 = vld [vmem:[#allocation5 + $0x21f0] sm:$0xff]
    %v1259 = vld [vmem:[#allocation5 + $0x21f8] sm:$0xff]
    %v1260 = vld [vmem:[#allocation5 + $0x2200] sm:$0xff]
    %v1261 = vld [vmem:[#allocation5 + $0x2208] sm:$0xff]
    %v1262 = vld [vmem:[#allocation5 + $0x2210] sm:$0xff]
    %v1263 = vld [vmem:[#allocation5 + $0x2218] sm:$0xff]
    %v1264 = vld [vmem:[#allocation5 + $0x2220] sm:$0xff]
    %v1265 = vld [vmem:[#allocation5 + $0x2228] sm:$0xff]
    %v1266 = vld [vmem:[#allocation5 + $0x2230] sm:$0xff]
    %v1267 = vld [vmem:[#allocation5 + $0x2238] sm:$0xff]
    %v1268 = vld [vmem:[#allocation5 + $0x2240] sm:$0xff]
    %v1269 = vld [vmem:[#allocation5 + $0x2248] sm:$0xff]
    %v1270 = vld [vmem:[#allocation5 + $0x2250] sm:$0xff]
    %v1271 = vld [vmem:[#allocation5 + $0x2258] sm:$0xff]
    %v1272 = vld [vmem:[#allocation5 + $0x2260] sm:$0xff]
    %v1273 = vld [vmem:[#allocation5 + $0x2268] sm:$0xff]
    %v1274 = vld [vmem:[#allocation5 + $0x2270] sm:$0xff]
    %v1275 = vld [vmem:[#allocation5 + $0x2278] sm:$0xff]
    %v1276 = vld [vmem:[#allocation5 + $0x2280] sm:$0xff]
    %v1277 = vld [vmem:[#allocation5 + $0x2288] sm:$0xff]
    %v1278 = vld [vmem:[#allocation5 + $0x2290] sm:$0xff]
    %v1279 = vld [vmem:[#allocation5 + $0x2298] sm:$0xff]
    %v1280 = vld [vmem:[#allocation5 + $0x22a0] sm:$0xff]
    %v1281 = vld [vmem:[#allocation5 + $0x22a8] sm:$0xff]
    %v1282 = vld [vmem:[#allocation5 + $0x22b0] sm:$0xff]
    %v1283 = vld [vmem:[#allocation5 + $0x22b8] sm:$0xff]
    %v1284 = vld [vmem:[#allocation5 + $0x22c0] sm:$0xff]
    %v1285 = vld [vmem:[#allocation5 + $0x22c8] sm:$0xff]
    %v1286 = vld [vmem:[#allocation5 + $0x22d0] sm:$0xff]
    %v1287 = vld [vmem:[#allocation5 + $0x22d8] sm:$0xff]
    %v1288 = vld [vmem:[#allocation5 + $0x22e0] sm:$0xff]
    %v1289 = vld [vmem:[#allocation5 + $0x22e8] sm:$0xff]
    %v1290 = vld [vmem:[#allocation5 + $0x22f0] sm:$0xff]
    %v1291 = vld [vmem:[#allocation5 + $0x22f8] sm:$0xff]
    %v1292 = vld [vmem:[#allocation5 + $0x2300] sm:$0xff]
    %v1293 = vld [vmem:[#allocation5 + $0x2308] sm:$0xff]
    %v1294 = vld [vmem:[#allocation5 + $0x2310] sm:$0xff]
    %v1295 = vld [vmem:[#allocation5 + $0x2318] sm:$0xff]
    %v1296 = vld [vmem:[#allocation5 + $0x2320] sm:$0xff]
    %v1297 = vld [vmem:[#allocation5 + $0x2328] sm:$0xff]
    %v1298 = vld [vmem:[#allocation5 + $0x2330] sm:$0xff]
    %v1299 = vld [vmem:[#allocation5 + $0x2338] sm:$0xff]
    %v1300 = vld [vmem:[#allocation5 + $0x2340] sm:$0xff]
    %v1301 = vld [vmem:[#allocation5 + $0x2348] sm:$0xff]
    %v1302 = vld [vmem:[#allocation5 + $0x2350] sm:$0xff]
    %v1303 = vld [vmem:[#allocation5 + $0x2358] sm:$0xff]
    %v1304 = vld [vmem:[#allocation5 + $0x2360] sm:$0xff]
    %v1305 = vld [vmem:[#allocation5 + $0x2368] sm:$0xff]
    %v1306 = vld [vmem:[#allocation5 + $0x2370] sm:$0xff]
    %v1307 = vld [vmem:[#allocation5 + $0x2378] sm:$0xff]
    %v1308 = vld [vmem:[#allocation5 + $0x2380] sm:$0xff]
    %v1309 = vld [vmem:[#allocation5 + $0x2388] sm:$0xff]
    %v1310 = vld [vmem:[#allocation5 + $0x2390] sm:$0xff]
    %v1311 = vld [vmem:[#allocation5 + $0x2398] sm:$0xff]
    %v1312 = vld [vmem:[#allocation5 + $0x23a0] sm:$0xff]
    %v1313 = vld [vmem:[#allocation5 + $0x23a8] sm:$0xff]
    %v1314 = vld [vmem:[#allocation5 + $0x23b0] sm:$0xff]
    %v1315 = vld [vmem:[#allocation5 + $0x23b8] sm:$0xff]
    %v1316 = vld [vmem:[#allocation5 + $0x23c0] sm:$0xff]
    %v1317 = vld [vmem:[#allocation5 + $0x23c8] sm:$0xff]
    %v1318 = vld [vmem:[#allocation5 + $0x23d0] sm:$0xff]
    %v1319 = vld [vmem:[#allocation5 + $0x23d8] sm:$0xff]
    %v1320 = vld [vmem:[#allocation5 + $0x23e0] sm:$0xff]
    %v1321 = vld [vmem:[#allocation5 + $0x23e8] sm:$0xff]
    %v1322 = vld [vmem:[#allocation5 + $0x23f0] sm:$0xff]
    %v1323 = vld [vmem:[#allocation5 + $0x23f8] sm:$0xff]
    %v1324 = vld [vmem:[#allocation7] sm:$0x3f]
    %v1326 = vlaneseq
    %v1327 = vshrl.u32 %v1326, 7
    %v1328 = vsub.s32 0, %v1327
    %v1329 = vrot.slane %v1324, %v1328
    %v1330 = vlaneseq
    %v1331 = vshrl.u32 %v1330, 7
    %v1332 = vsub.s32 1, %v1331
    %v1333 = vrot.slane %v1324, %v1332
    %v1334 = vlaneseq
    %v1335 = vshrl.u32 %v1334, 7
    %v1336 = vsub.s32 2, %v1335
    %v1337 = vrot.slane %v1324, %v1336
    %v1338 = vlaneseq
    %v1339 = vshrl.u32 %v1338, 7
    %v1340 = vsub.s32 3, %v1339
    %v1341 = vrot.slane %v1324, %v1340
    %v1342 = vlaneseq
    %v1343 = vshrl.u32 %v1342, 7
    %v1344 = vsub.s32 4, %v1343
    %v1345 = vrot.slane %v1324, %v1344
    %v1346 = vlaneseq
    %v1347 = vshrl.u32 %v1346, 7
    %v1348 = vsub.s32 5, %v1347
    %v1349 = vrot.slane %v1324, %v1348
    %v2508 = vunpack.c.l.b16 %v172
    %v2509 = vunpack.c.h.b16 %v172
    %v2510 = vunpack.c.l.b16 %v173
    %v2511 = vunpack.c.h.b16 %v173
    %v2512 = vunpack.c.l.b16 %v174
    %v2513 = vunpack.c.h.b16 %v174
    %v2514 = vunpack.c.l.b16 %v175
    %v2515 = vunpack.c.h.b16 %v175
    %v2516 = vunpack.c.l.b16 %v176
    %v2517 = vunpack.c.h.b16 %v176
    %v2518 = vunpack.c.l.b16 %v177
    %v2519 = vunpack.c.h.b16 %v177
    %v2520 = vunpack.c.l.b16 %v178
    %v2521 = vunpack.c.h.b16 %v178
    %v2522 = vunpack.c.l.b16 %v179
    %v2523 = vunpack.c.h.b16 %v179
    %v2524 = vunpack.c.l.b16 %v180
    %v2525 = vunpack.c.h.b16 %v180
    %v2526 = vunpack.c.l.b16 %v181
    %v2527 = vunpack.c.h.b16 %v181
    %v2528 = vunpack.c.l.b16 %v182
    %v2529 = vunpack.c.h.b16 %v182
    %v2530 = vunpack.c.l.b16 %v183
    %v2531 = vunpack.c.h.b16 %v183
    %v2532 = vunpack.c.l.b16 %v184
    %v2533 = vunpack.c.h.b16 %v184
    %v2534 = vunpack.c.l.b16 %v185
    %v2535 = vunpack.c.h.b16 %v185
    %v2536 = vunpack.c.l.b16 %v186
    %v2537 = vunpack.c.h.b16 %v186
    %v2538 = vunpack.c.l.b16 %v187
    %v2539 = vunpack.c.h.b16 %v187
    %v2540 = vunpack.c.l.b16 %v188
    %v2541 = vunpack.c.h.b16 %v188
    %v2542 = vunpack.c.l.b16 %v189
    %v2543 = vunpack.c.h.b16 %v189
    %v2544 = vunpack.c.l.b16 %v190
    %v2545 = vunpack.c.h.b16 %v190
    %v2546 = vunpack.c.l.b16 %v191
    %v2547 = vunpack.c.h.b16 %v191
    %v2548 = vunpack.c.l.b16 %v192
    %v2549 = vunpack.c.h.b16 %v192
    %v2550 = vunpack.c.l.b16 %v193
    %v2551 = vunpack.c.h.b16 %v193
    %v2552 = vunpack.c.l.b16 %v194
    %v2553 = vunpack.c.h.b16 %v194
    %v2554 = vunpack.c.l.b16 %v195
    %v2555 = vunpack.c.h.b16 %v195
    %v2556 = vunpack.c.l.b16 %v196
    %v2557 = vunpack.c.h.b16 %v196
    %v2558 = vunpack.c.l.b16 %v197
    %v2559 = vunpack.c.h.b16 %v197
    %v2560 = vunpack.c.l.b16 %v198
    %v2561 = vunpack.c.h.b16 %v198
    %v2562 = vunpack.c.l.b16 %v199
    %v2563 = vunpack.c.h.b16 %v199
    %v2564 = vunpack.c.l.b16 %v200
    %v2565 = vunpack.c.h.b16 %v200
    %v2566 = vunpack.c.l.b16 %v201
    %v2567 = vunpack.c.h.b16 %v201
    %v2568 = vunpack.c.l.b16 %v202
    %v2569 = vunpack.c.h.b16 %v202
    %v2570 = vunpack.c.l.b16 %v203
    %v2571 = vunpack.c.h.b16 %v203
    %v2572 = vunpack.c.l.b16 %v204
    %v2573 = vunpack.c.h.b16 %v204
    %v2574 = vunpack.c.l.b16 %v205
    %v2575 = vunpack.c.h.b16 %v205
    %v2576 = vunpack.c.l.b16 %v206
    %v2577 = vunpack.c.h.b16 %v206
    %v2578 = vunpack.c.l.b16 %v207
    %v2579 = vunpack.c.h.b16 %v207
    %v2580 = vunpack.c.l.b16 %v208
    %v2581 = vunpack.c.h.b16 %v208
    %v2582 = vunpack.c.l.b16 %v209
    %v2583 = vunpack.c.h.b16 %v209
    %v2584 = vunpack.c.l.b16 %v210
    %v2585 = vunpack.c.h.b16 %v210
    %v2586 = vunpack.c.l.b16 %v211
    %v2587 = vunpack.c.h.b16 %v211
    %v2588 = vunpack.c.l.b16 %v212
    %v2589 = vunpack.c.h.b16 %v212
    %v2590 = vunpack.c.l.b16 %v213
    %v2591 = vunpack.c.h.b16 %v213
    %v2592 = vunpack.c.l.b16 %v214
    %v2593 = vunpack.c.h.b16 %v214
    %v2594 = vunpack.c.l.b16 %v215
    %v2595 = vunpack.c.h.b16 %v215
    %v2596 = vunpack.c.l.b16 %v216
    %v2597 = vunpack.c.h.b16 %v216
    %v2598 = vunpack.c.l.b16 %v217
    %v2599 = vunpack.c.h.b16 %v217
    %v2600 = vunpack.c.l.b16 %v218
    %v2601 = vunpack.c.h.b16 %v218
    %v2602 = vunpack.c.l.b16 %v219
    %v2603 = vunpack.c.h.b16 %v219
    %v2604 = vunpack.c.l.b16 %v220
    %v2605 = vunpack.c.h.b16 %v220
    %v2606 = vunpack.c.l.b16 %v221
    %v2607 = vunpack.c.h.b16 %v221
    %v2608 = vunpack.c.l.b16 %v222
    %v2609 = vunpack.c.h.b16 %v222
    %v2610 = vunpack.c.l.b16 %v223
    %v2611 = vunpack.c.h.b16 %v223
    %v2612 = vunpack.c.l.b16 %v224
    %v2613 = vunpack.c.h.b16 %v224
    %v2614 = vunpack.c.l.b16 %v225
    %v2615 = vunpack.c.h.b16 %v225
    %v2616 = vunpack.c.l.b16 %v226
    %v2617 = vunpack.c.h.b16 %v226
    %v2618 = vunpack.c.l.b16 %v227
    %v2619 = vunpack.c.h.b16 %v227
    %v2620 = vunpack.c.l.b16 %v228
    %v2621 = vunpack.c.h.b16 %v228
    %v2622 = vunpack.c.l.b16 %v229
    %v2623 = vunpack.c.h.b16 %v229
    %v2624 = vunpack.c.l.b16 %v230
    %v2625 = vunpack.c.h.b16 %v230
    %v2626 = vunpack.c.l.b16 %v231
    %v2627 = vunpack.c.h.b16 %v231
    %v2628 = vunpack.c.l.b16 %v232
    %v2629 = vunpack.c.h.b16 %v232
    %v2630 = vunpack.c.l.b16 %v233
    %v2631 = vunpack.c.h.b16 %v233
    %v2632 = vunpack.c.l.b16 %v234
    %v2633 = vunpack.c.h.b16 %v234
    %v2634 = vunpack.c.l.b16 %v235
    %v2635 = vunpack.c.h.b16 %v235
    %v2636 = vunpack.c.l.b16 %v236
    %v2637 = vunpack.c.h.b16 %v236
    %v2638 = vunpack.c.l.b16 %v237
    %v2639 = vunpack.c.h.b16 %v237
    %v2640 = vunpack.c.l.b16 %v238
    %v2641 = vunpack.c.h.b16 %v238
    %v2642 = vunpack.c.l.b16 %v239
    %v2643 = vunpack.c.h.b16 %v239
    %v2644 = vunpack.c.l.b16 %v240
    %v2645 = vunpack.c.h.b16 %v240
    %v2646 = vunpack.c.l.b16 %v241
    %v2647 = vunpack.c.h.b16 %v241
    %v2648 = vunpack.c.l.b16 %v242
    %v2649 = vunpack.c.h.b16 %v242
    %v2650 = vunpack.c.l.b16 %v243
    %v2651 = vunpack.c.h.b16 %v243
    %v2652 = vunpack.c.l.b16 %v244
    %v2653 = vunpack.c.h.b16 %v244
    %v2654 = vunpack.c.l.b16 %v245
    %v2655 = vunpack.c.h.b16 %v245
    %v2656 = vunpack.c.l.b16 %v246
    %v2657 = vunpack.c.h.b16 %v246
    %v2658 = vunpack.c.l.b16 %v247
    %v2659 = vunpack.c.h.b16 %v247
    %v2660 = vunpack.c.l.b16 %v248
    %v2661 = vunpack.c.h.b16 %v248
    %v2662 = vunpack.c.l.b16 %v249
    %v2663 = vunpack.c.h.b16 %v249
    %v2664 = vunpack.c.l.b16 %v250
    %v2665 = vunpack.c.h.b16 %v250
    %v2666 = vunpack.c.l.b16 %v251
    %v2667 = vunpack.c.h.b16 %v251
    %v2668 = vunpack.c.l.b16 %v252
    %v2669 = vunpack.c.h.b16 %v252
    %v2670 = vunpack.c.l.b16 %v253
    %v2671 = vunpack.c.h.b16 %v253
    %v2672 = vunpack.c.l.b16 %v254
    %v2673 = vunpack.c.h.b16 %v254
    %v2674 = vunpack.c.l.b16 %v255
    %v2675 = vunpack.c.h.b16 %v255
    %v2676 = vunpack.c.l.b16 %v256
    %v2677 = vunpack.c.h.b16 %v256
    %v2678 = vunpack.c.l.b16 %v257
    %v2679 = vunpack.c.h.b16 %v257
    %v2680 = vunpack.c.l.b16 %v258
    %v2681 = vunpack.c.h.b16 %v258
    %v2682 = vunpack.c.l.b16 %v259
    %v2683 = vunpack.c.h.b16 %v259
    %v2684 = vunpack.c.l.b16 %v260
    %v2685 = vunpack.c.h.b16 %v260
    %v2686 = vunpack.c.l.b16 %v261
    %v2687 = vunpack.c.h.b16 %v261
    %v2688 = vunpack.c.l.b16 %v262
    %v2689 = vunpack.c.h.b16 %v262
    %v2690 = vunpack.c.l.b16 %v263
    %v2691 = vunpack.c.h.b16 %v263
    %v2692 = vunpack.c.l.b16 %v264
    %v2693 = vunpack.c.h.b16 %v264
    %v2694 = vunpack.c.l.b16 %v265
    %v2695 = vunpack.c.h.b16 %v265
    %v2696 = vunpack.c.l.b16 %v266
    %v2697 = vunpack.c.h.b16 %v266
    %v2698 = vunpack.c.l.b16 %v267
    %v2699 = vunpack.c.h.b16 %v267
    %v2700 = vunpack.c.l.b16 %v268
    %v2701 = vunpack.c.h.b16 %v268
    %v2702 = vunpack.c.l.b16 %v269
    %v2703 = vunpack.c.h.b16 %v269
    %v2704 = vunpack.c.l.b16 %v270
    %v2705 = vunpack.c.h.b16 %v270
    %v2706 = vunpack.c.l.b16 %v271
    %v2707 = vunpack.c.h.b16 %v271
    %v2708 = vunpack.c.l.b16 %v272
    %v2709 = vunpack.c.h.b16 %v272
    %v2710 = vunpack.c.l.b16 %v273
    %v2711 = vunpack.c.h.b16 %v273
    %v2712 = vunpack.c.l.b16 %v274
    %v2713 = vunpack.c.h.b16 %v274
    %v2714 = vunpack.c.l.b16 %v275
    %v2715 = vunpack.c.h.b16 %v275
    %v2716 = vunpack.c.l.b16 %v276
    %v2717 = vunpack.c.h.b16 %v276
    %v2718 = vunpack.c.l.b16 %v277
    %v2719 = vunpack.c.h.b16 %v277
    %v2720 = vunpack.c.l.b16 %v278
    %v2721 = vunpack.c.h.b16 %v278
    %v2722 = vunpack.c.l.b16 %v279
    %v2723 = vunpack.c.h.b16 %v279
    %v2724 = vunpack.c.l.b16 %v280
    %v2725 = vunpack.c.h.b16 %v280
    %v2726 = vunpack.c.l.b16 %v281
    %v2727 = vunpack.c.h.b16 %v281
    %v2728 = vunpack.c.l.b16 %v282
    %v2729 = vunpack.c.h.b16 %v282
    %v2730 = vunpack.c.l.b16 %v283
    %v2731 = vunpack.c.h.b16 %v283
    %v2732 = vunpack.c.l.b16 %v284
    %v2733 = vunpack.c.h.b16 %v284
    %v2734 = vunpack.c.l.b16 %v285
    %v2735 = vunpack.c.h.b16 %v285
    %v2736 = vunpack.c.l.b16 %v286
    %v2737 = vunpack.c.h.b16 %v286
    %v2738 = vunpack.c.l.b16 %v287
    %v2739 = vunpack.c.h.b16 %v287
    %v2740 = vunpack.c.l.b16 %v288
    %v2741 = vunpack.c.h.b16 %v288
    %v2742 = vunpack.c.l.b16 %v289
    %v2743 = vunpack.c.h.b16 %v289
    %v2744 = vunpack.c.l.b16 %v290
    %v2745 = vunpack.c.h.b16 %v290
    %v2746 = vunpack.c.l.b16 %v291
    %v2747 = vunpack.c.h.b16 %v291
    %v2748 = vunpack.c.l.b16 %v292
    %v2749 = vunpack.c.h.b16 %v292
    %v2750 = vunpack.c.l.b16 %v293
    %v2751 = vunpack.c.h.b16 %v293
    %v2752 = vunpack.c.l.b16 %v294
    %v2753 = vunpack.c.h.b16 %v294
    %v2754 = vunpack.c.l.b16 %v295
    %v2755 = vunpack.c.h.b16 %v295
    %v2756 = vunpack.c.l.b16 %v296
    %v2757 = vunpack.c.h.b16 %v296
    %v2758 = vunpack.c.l.b16 %v297
    %v2759 = vunpack.c.h.b16 %v297
    %v2760 = vunpack.c.l.b16 %v298
    %v2761 = vunpack.c.h.b16 %v298
    %v2762 = vunpack.c.l.b16 %v299
    %v2763 = vunpack.c.h.b16 %v299
    %v2764 = vunpack.c.l.b16 %v300
    %v2765 = vunpack.c.h.b16 %v300
    %v2766 = vunpack.c.l.b16 %v301
    %v2767 = vunpack.c.h.b16 %v301
    %v2768 = vunpack.c.l.b16 %v302
    %v2769 = vunpack.c.h.b16 %v302
    %v2770 = vunpack.c.l.b16 %v303
    %v2771 = vunpack.c.h.b16 %v303
    %v2772 = vunpack.c.l.b16 %v304
    %v2773 = vunpack.c.h.b16 %v304
    %v2774 = vunpack.c.l.b16 %v305
    %v2775 = vunpack.c.h.b16 %v305
    %v2776 = vunpack.c.l.b16 %v306
    %v2777 = vunpack.c.h.b16 %v306
    %v2778 = vunpack.c.l.b16 %v307
    %v2779 = vunpack.c.h.b16 %v307
    %v2780 = vunpack.c.l.b16 %v308
    %v2781 = vunpack.c.h.b16 %v308
    %v2782 = vunpack.c.l.b16 %v309
    %v2783 = vunpack.c.h.b16 %v309
    %v2784 = vunpack.c.l.b16 %v310
    %v2785 = vunpack.c.h.b16 %v310
    %v2786 = vunpack.c.l.b16 %v311
    %v2787 = vunpack.c.h.b16 %v311
    %v2788 = vunpack.c.l.b16 %v312
    %v2789 = vunpack.c.h.b16 %v312
    %v2790 = vunpack.c.l.b16 %v313
    %v2791 = vunpack.c.h.b16 %v313
    %v2792 = vunpack.c.l.b16 %v314
    %v2793 = vunpack.c.h.b16 %v314
    %v2794 = vunpack.c.l.b16 %v315
    %v2795 = vunpack.c.h.b16 %v315
    %v2796 = vunpack.c.l.b16 %v316
    %v2797 = vunpack.c.h.b16 %v316
    %v2798 = vunpack.c.l.b16 %v317
    %v2799 = vunpack.c.h.b16 %v317
    %v2800 = vunpack.c.l.b16 %v318
    %v2801 = vunpack.c.h.b16 %v318
    %v2802 = vunpack.c.l.b16 %v319
    %v2803 = vunpack.c.h.b16 %v319
    %v2804 = vunpack.c.l.b16 %v320
    %v2805 = vunpack.c.h.b16 %v320
    %v2806 = vunpack.c.l.b16 %v321
    %v2807 = vunpack.c.h.b16 %v321
    %v2808 = vunpack.c.l.b16 %v322
    %v2809 = vunpack.c.h.b16 %v322
    %v2810 = vunpack.c.l.b16 %v323
    %v2811 = vunpack.c.h.b16 %v323
    %v2812 = vunpack.c.l.b16 %v324
    %v2813 = vunpack.c.h.b16 %v324
    %v2814 = vunpack.c.l.b16 %v325
    %v2815 = vunpack.c.h.b16 %v325
    %v2816 = vunpack.c.l.b16 %v326
    %v2817 = vunpack.c.h.b16 %v326
    %v2818 = vunpack.c.l.b16 %v327
    %v2819 = vunpack.c.h.b16 %v327
    %v2820 = vunpack.c.l.b16 %v328
    %v2821 = vunpack.c.h.b16 %v328
    %v2822 = vunpack.c.l.b16 %v329
    %v2823 = vunpack.c.h.b16 %v329
    %v2824 = vunpack.c.l.b16 %v330
    %v2825 = vunpack.c.h.b16 %v330
    %v2826 = vunpack.c.l.b16 %v331
    %v2827 = vunpack.c.h.b16 %v331
    %v2828 = vunpack.c.l.b16 %v332
    %v2829 = vunpack.c.h.b16 %v332
    %v2830 = vunpack.c.l.b16 %v333
    %v2831 = vunpack.c.h.b16 %v333
    %v2832 = vunpack.c.l.b16 %v334
    %v2833 = vunpack.c.h.b16 %v334
    %v2834 = vunpack.c.l.b16 %v335
    %v2835 = vunpack.c.h.b16 %v335
    %v2836 = vunpack.c.l.b16 %v336
    %v2837 = vunpack.c.h.b16 %v336
    %v2838 = vunpack.c.l.b16 %v337
    %v2839 = vunpack.c.h.b16 %v337
    %v2840 = vunpack.c.l.b16 %v338
    %v2841 = vunpack.c.h.b16 %v338
    %v2842 = vunpack.c.l.b16 %v339
    %v2843 = vunpack.c.h.b16 %v339
    %v2844 = vunpack.c.l.b16 %v340
    %v2845 = vunpack.c.h.b16 %v340
    %v2846 = vunpack.c.l.b16 %v341
    %v2847 = vunpack.c.h.b16 %v341
    %v2848 = vunpack.c.l.b16 %v342
    %v2849 = vunpack.c.h.b16 %v342
    %v2850 = vunpack.c.l.b16 %v343
    %v2851 = vunpack.c.h.b16 %v343
    %v2852 = vunpack.c.l.b16 %v344
    %v2853 = vunpack.c.h.b16 %v344
    %v2854 = vunpack.c.l.b16 %v345
    %v2855 = vunpack.c.h.b16 %v345
    %v2856 = vunpack.c.l.b16 %v346
    %v2857 = vunpack.c.h.b16 %v346
    %v2858 = vunpack.c.l.b16 %v347
    %v2859 = vunpack.c.h.b16 %v347
    %v2860 = vunpack.c.l.b16 %v348
    %v2861 = vunpack.c.h.b16 %v348
    %v2862 = vunpack.c.l.b16 %v349
    %v2863 = vunpack.c.h.b16 %v349
    %v2864 = vunpack.c.l.b16 %v350
    %v2865 = vunpack.c.h.b16 %v350
    %v2866 = vunpack.c.l.b16 %v351
    %v2867 = vunpack.c.h.b16 %v351
    %v2868 = vunpack.c.l.b16 %v352
    %v2869 = vunpack.c.h.b16 %v352
    %v2870 = vunpack.c.l.b16 %v353
    %v2871 = vunpack.c.h.b16 %v353
    %v2872 = vunpack.c.l.b16 %v354
    %v2873 = vunpack.c.h.b16 %v354
    %v2874 = vunpack.c.l.b16 %v355
    %v2875 = vunpack.c.h.b16 %v355
    %v2876 = vunpack.c.l.b16 %v356
    %v2877 = vunpack.c.h.b16 %v356
    %v2878 = vunpack.c.l.b16 %v357
    %v2879 = vunpack.c.h.b16 %v357
    %v2880 = vunpack.c.l.b16 %v358
    %v2881 = vunpack.c.h.b16 %v358
    %v2882 = vunpack.c.l.b16 %v359
    %v2883 = vunpack.c.h.b16 %v359
    %v2884 = vunpack.c.l.b16 %v360
    %v2885 = vunpack.c.h.b16 %v360
    %v2886 = vunpack.c.l.b16 %v361
    %v2887 = vunpack.c.h.b16 %v361
    %v2888 = vunpack.c.l.b16 %v362
    %v2889 = vunpack.c.h.b16 %v362
    %v2890 = vunpack.c.l.b16 %v363
    %v2891 = vunpack.c.h.b16 %v363
    %v2892 = vunpack.c.l.b16 %v364
    %v2893 = vunpack.c.h.b16 %v364
    %v2894 = vunpack.c.l.b16 %v365
    %v2895 = vunpack.c.h.b16 %v365
    %v2896 = vunpack.c.l.b16 %v366
    %v2897 = vunpack.c.h.b16 %v366
    %v2898 = vunpack.c.l.b16 %v367
    %v2899 = vunpack.c.h.b16 %v367
    %v2900 = vunpack.c.l.b16 %v368
    %v2901 = vunpack.c.h.b16 %v368
    %v2902 = vunpack.c.l.b16 %v369
    %v2903 = vunpack.c.h.b16 %v369
    %v2904 = vunpack.c.l.b16 %v370
    %v2905 = vunpack.c.h.b16 %v370
    %v2906 = vunpack.c.l.b16 %v371
    %v2907 = vunpack.c.h.b16 %v371
    %v2908 = vunpack.c.l.b16 %v372
    %v2909 = vunpack.c.h.b16 %v372
    %v2910 = vunpack.c.l.b16 %v373
    %v2911 = vunpack.c.h.b16 %v373
    %v2912 = vunpack.c.l.b16 %v374
    %v2913 = vunpack.c.h.b16 %v374
    %v2914 = vunpack.c.l.b16 %v375
    %v2915 = vunpack.c.h.b16 %v375
    %v2916 = vunpack.c.l.b16 %v376
    %v2917 = vunpack.c.h.b16 %v376
    %v2918 = vunpack.c.l.b16 %v377
    %v2919 = vunpack.c.h.b16 %v377
    %v2920 = vunpack.c.l.b16 %v378
    %v2921 = vunpack.c.h.b16 %v378
    %v2922 = vunpack.c.l.b16 %v379
    %v2923 = vunpack.c.h.b16 %v379
    %v2924 = vunpack.c.l.b16 %v380
    %v2925 = vunpack.c.h.b16 %v380
    %v2926 = vunpack.c.l.b16 %v381
    %v2927 = vunpack.c.h.b16 %v381
    %v2928 = vunpack.c.l.b16 %v382
    %v2929 = vunpack.c.h.b16 %v382
    %v2930 = vunpack.c.l.b16 %v383
    %v2931 = vunpack.c.h.b16 %v383
    %v2932 = vunpack.c.l.b16 %v384
    %v2933 = vunpack.c.h.b16 %v384
    %v2934 = vunpack.c.l.b16 %v385
    %v2935 = vunpack.c.h.b16 %v385
    %v2936 = vunpack.c.l.b16 %v386
    %v2937 = vunpack.c.h.b16 %v386
    %v2938 = vunpack.c.l.b16 %v387
    %v2939 = vunpack.c.h.b16 %v387
    %v2940 = vunpack.c.l.b16 %v388
    %v2941 = vunpack.c.h.b16 %v388
    %v2942 = vunpack.c.l.b16 %v389
    %v2943 = vunpack.c.h.b16 %v389
    %v2944 = vunpack.c.l.b16 %v390
    %v2945 = vunpack.c.h.b16 %v390
    %v2946 = vunpack.c.l.b16 %v391
    %v2947 = vunpack.c.h.b16 %v391
    %v2948 = vunpack.c.l.b16 %v392
    %v2949 = vunpack.c.h.b16 %v392
    %v2950 = vunpack.c.l.b16 %v393
    %v2951 = vunpack.c.h.b16 %v393
    %v2952 = vunpack.c.l.b16 %v394
    %v2953 = vunpack.c.h.b16 %v394
    %v2954 = vunpack.c.l.b16 %v395
    %v2955 = vunpack.c.h.b16 %v395
    %v2956 = vunpack.c.l.b16 %v396
    %v2957 = vunpack.c.h.b16 %v396
    %v2958 = vunpack.c.l.b16 %v397
    %v2959 = vunpack.c.h.b16 %v397
    %v2960 = vunpack.c.l.b16 %v398
    %v2961 = vunpack.c.h.b16 %v398
    %v2962 = vunpack.c.l.b16 %v399
    %v2963 = vunpack.c.h.b16 %v399
    %v2964 = vunpack.c.l.b16 %v400
    %v2965 = vunpack.c.h.b16 %v400
    %v2966 = vunpack.c.l.b16 %v401
    %v2967 = vunpack.c.h.b16 %v401
    %v2968 = vunpack.c.l.b16 %v402
    %v2969 = vunpack.c.h.b16 %v402
    %v2970 = vunpack.c.l.b16 %v403
    %v2971 = vunpack.c.h.b16 %v403
    %v2972 = vunpack.c.l.b16 %v404
    %v2973 = vunpack.c.h.b16 %v404
    %v2974 = vunpack.c.l.b16 %v405
    %v2975 = vunpack.c.h.b16 %v405
    %v2976 = vunpack.c.l.b16 %v406
    %v2977 = vunpack.c.h.b16 %v406
    %v2978 = vunpack.c.l.b16 %v407
    %v2979 = vunpack.c.h.b16 %v407
    %v2980 = vunpack.c.l.b16 %v408
    %v2981 = vunpack.c.h.b16 %v408
    %v2982 = vunpack.c.l.b16 %v409
    %v2983 = vunpack.c.h.b16 %v409
    %v2984 = vunpack.c.l.b16 %v410
    %v2985 = vunpack.c.h.b16 %v410
    %v2986 = vunpack.c.l.b16 %v411
    %v2987 = vunpack.c.h.b16 %v411
    %v2988 = vunpack.c.l.b16 %v412
    %v2989 = vunpack.c.h.b16 %v412
    %v2990 = vunpack.c.l.b16 %v413
    %v2991 = vunpack.c.h.b16 %v413
    %v2992 = vunpack.c.l.b16 %v414
    %v2993 = vunpack.c.h.b16 %v414
    %v2994 = vunpack.c.l.b16 %v415
    %v2995 = vunpack.c.h.b16 %v415
    %v2996 = vunpack.c.l.b16 %v416
    %v2997 = vunpack.c.h.b16 %v416
    %v2998 = vunpack.c.l.b16 %v417
    %v2999 = vunpack.c.h.b16 %v417
    %v3000 = vunpack.c.l.b16 %v418
    %v3001 = vunpack.c.h.b16 %v418
    %v3002 = vunpack.c.l.b16 %v419
    %v3003 = vunpack.c.h.b16 %v419
    %v3004 = vunpack.c.l.b16 %v420
    %v3005 = vunpack.c.h.b16 %v420
    %v3006 = vunpack.c.l.b16 %v421
    %v3007 = vunpack.c.h.b16 %v421
    %v3008 = vunpack.c.l.b16 %v422
    %v3009 = vunpack.c.h.b16 %v422
    %v3010 = vunpack.c.l.b16 %v423
    %v3011 = vunpack.c.h.b16 %v423
    %v3012 = vunpack.c.l.b16 %v424
    %v3013 = vunpack.c.h.b16 %v424
    %v3014 = vunpack.c.l.b16 %v425
    %v3015 = vunpack.c.h.b16 %v425
    %v3016 = vunpack.c.l.b16 %v426
    %v3017 = vunpack.c.h.b16 %v426
    %v3018 = vunpack.c.l.b16 %v427
    %v3019 = vunpack.c.h.b16 %v427
    %v3020 = vunpack.c.l.b16 %v428
    %v3021 = vunpack.c.h.b16 %v428
    %v3022 = vunpack.c.l.b16 %v429
    %v3023 = vunpack.c.h.b16 %v429
    %v3024 = vunpack.c.l.b16 %v430
    %v3025 = vunpack.c.h.b16 %v430
    %v3026 = vunpack.c.l.b16 %v431
    %v3027 = vunpack.c.h.b16 %v431
    %v3028 = vunpack.c.l.b16 %v432
    %v3029 = vunpack.c.h.b16 %v432
    %v3030 = vunpack.c.l.b16 %v433
    %v3031 = vunpack.c.h.b16 %v433
    %v3032 = vunpack.c.l.b16 %v434
    %v3033 = vunpack.c.h.b16 %v434
    %v3034 = vunpack.c.l.b16 %v435
    %v3035 = vunpack.c.h.b16 %v435
    %v3036 = vunpack.c.l.b16 %v436
    %v3037 = vunpack.c.h.b16 %v436
    %v3038 = vunpack.c.l.b16 %v437
    %v3039 = vunpack.c.h.b16 %v437
    %v3040 = vunpack.c.l.b16 %v438
    %v3041 = vunpack.c.h.b16 %v438
    %v3042 = vunpack.c.l.b16 %v439
    %v3043 = vunpack.c.h.b16 %v439
    %v3044 = vunpack.c.l.b16 %v440
    %v3045 = vunpack.c.h.b16 %v440
    %v3046 = vunpack.c.l.b16 %v441
    %v3047 = vunpack.c.h.b16 %v441
    %v3048 = vunpack.c.l.b16 %v442
    %v3049 = vunpack.c.h.b16 %v442
    %v3050 = vunpack.c.l.b16 %v443
    %v3051 = vunpack.c.h.b16 %v443
    %v3052 = vunpack.c.l.b16 %v444
    %v3053 = vunpack.c.h.b16 %v444
    %v3054 = vunpack.c.l.b16 %v445
    %v3055 = vunpack.c.h.b16 %v445
    %v3056 = vunpack.c.l.b16 %v446
    %v3057 = vunpack.c.h.b16 %v446
    %v3058 = vunpack.c.l.b16 %v447
    %v3059 = vunpack.c.h.b16 %v447
    %v3060 = vunpack.c.l.b16 %v448
    %v3061 = vunpack.c.h.b16 %v448
    %v3062 = vunpack.c.l.b16 %v449
    %v3063 = vunpack.c.h.b16 %v449
    %v3064 = vunpack.c.l.b16 %v450
    %v3065 = vunpack.c.h.b16 %v450
    %v3066 = vunpack.c.l.b16 %v451
    %v3067 = vunpack.c.h.b16 %v451
    %v3068 = vunpack.c.l.b16 %v452
    %v3069 = vunpack.c.h.b16 %v452
    %v3070 = vunpack.c.l.b16 %v453
    %v3071 = vunpack.c.h.b16 %v453
    %v3072 = vunpack.c.l.b16 %v454
    %v3073 = vunpack.c.h.b16 %v454
    %v3074 = vunpack.c.l.b16 %v455
    %v3075 = vunpack.c.h.b16 %v455
    %v3076 = vunpack.c.l.b16 %v456
    %v3077 = vunpack.c.h.b16 %v456
    %v3078 = vunpack.c.l.b16 %v457
    %v3079 = vunpack.c.h.b16 %v457
    %v3080 = vunpack.c.l.b16 %v458
    %v3081 = vunpack.c.h.b16 %v458
    %v3082 = vunpack.c.l.b16 %v459
    %v3083 = vunpack.c.h.b16 %v459
    %v3084 = vunpack.c.l.b16 %v460
    %v3085 = vunpack.c.h.b16 %v460
    %v3086 = vunpack.c.l.b16 %v461
    %v3087 = vunpack.c.h.b16 %v461
    %v3088 = vunpack.c.l.b16 %v462
    %v3089 = vunpack.c.h.b16 %v462
    %v3090 = vunpack.c.l.b16 %v463
    %v3091 = vunpack.c.h.b16 %v463
    %v3092 = vunpack.c.l.b16 %v464
    %v3093 = vunpack.c.h.b16 %v464
    %v3094 = vunpack.c.l.b16 %v465
    %v3095 = vunpack.c.h.b16 %v465
    %v3096 = vunpack.c.l.b16 %v466
    %v3097 = vunpack.c.h.b16 %v466
    %v3098 = vunpack.c.l.b16 %v467
    %v3099 = vunpack.c.h.b16 %v467
    %v3100 = vunpack.c.l.b16 %v468
    %v3101 = vunpack.c.h.b16 %v468
    %v3102 = vunpack.c.l.b16 %v469
    %v3103 = vunpack.c.h.b16 %v469
    %v3104 = vunpack.c.l.b16 %v470
    %v3105 = vunpack.c.h.b16 %v470
    %v3106 = vunpack.c.l.b16 %v471
    %v3107 = vunpack.c.h.b16 %v471
    %v3108 = vunpack.c.l.b16 %v472
    %v3109 = vunpack.c.h.b16 %v472
    %v3110 = vunpack.c.l.b16 %v473
    %v3111 = vunpack.c.h.b16 %v473
    %v3112 = vunpack.c.l.b16 %v474
    %v3113 = vunpack.c.h.b16 %v474
    %v3114 = vunpack.c.l.b16 %v475
    %v3115 = vunpack.c.h.b16 %v475
    %v3116 = vunpack.c.l.b16 %v476
    %v3117 = vunpack.c.h.b16 %v476
    %v3118 = vunpack.c.l.b16 %v477
    %v3119 = vunpack.c.h.b16 %v477
    %v3120 = vunpack.c.l.b16 %v478
    %v3121 = vunpack.c.h.b16 %v478
    %v3122 = vunpack.c.l.b16 %v479
    %v3123 = vunpack.c.h.b16 %v479
    %v3124 = vunpack.c.l.b16 %v480
    %v3125 = vunpack.c.h.b16 %v480
    %v3126 = vunpack.c.l.b16 %v481
    %v3127 = vunpack.c.h.b16 %v481
    %v3128 = vunpack.c.l.b16 %v482
    %v3129 = vunpack.c.h.b16 %v482
    %v3130 = vunpack.c.l.b16 %v483
    %v3131 = vunpack.c.h.b16 %v483
    %v3132 = vunpack.c.l.b16 %v484
    %v3133 = vunpack.c.h.b16 %v484
    %v3134 = vunpack.c.l.b16 %v485
    %v3135 = vunpack.c.h.b16 %v485
    %v3136 = vunpack.c.l.b16 %v486
    %v3137 = vunpack.c.h.b16 %v486
    %v3138 = vunpack.c.l.b16 %v487
    %v3139 = vunpack.c.h.b16 %v487
    %v3140 = vunpack.c.l.b16 %v488
    %v3141 = vunpack.c.h.b16 %v488
    %v3142 = vunpack.c.l.b16 %v489
    %v3143 = vunpack.c.h.b16 %v489
    %v3144 = vunpack.c.l.b16 %v490
    %v3145 = vunpack.c.h.b16 %v490
    %v3146 = vunpack.c.l.b16 %v491
    %v3147 = vunpack.c.h.b16 %v491
    %v3148 = vunpack.c.l.b16 %v492
    %v3149 = vunpack.c.h.b16 %v492
    %v3150 = vunpack.c.l.b16 %v493
    %v3151 = vunpack.c.h.b16 %v493
    %v3152 = vunpack.c.l.b16 %v494
    %v3153 = vunpack.c.h.b16 %v494
    %v3154 = vunpack.c.l.b16 %v495
    %v3155 = vunpack.c.h.b16 %v495
    %v3156 = vunpack.c.l.b16 %v496
    %v3157 = vunpack.c.h.b16 %v496
    %v3158 = vunpack.c.l.b16 %v497
    %v3159 = vunpack.c.h.b16 %v497
    %v3160 = vunpack.c.l.b16 %v498
    %v3161 = vunpack.c.h.b16 %v498
    %v3162 = vunpack.c.l.b16 %v499
    %v3163 = vunpack.c.h.b16 %v499
    %v3164 = vunpack.c.l.b16 %v500
    %v3165 = vunpack.c.h.b16 %v500
    %v3166 = vunpack.c.l.b16 %v501
    %v3167 = vunpack.c.h.b16 %v501
    %v3168 = vunpack.c.l.b16 %v502
    %v3169 = vunpack.c.h.b16 %v502
    %v3170 = vunpack.c.l.b16 %v503
    %v3171 = vunpack.c.h.b16 %v503
    %v3172 = vunpack.c.l.b16 %v504
    %v3173 = vunpack.c.h.b16 %v504
    %v3174 = vunpack.c.l.b16 %v505
    %v3175 = vunpack.c.h.b16 %v505
    %v3176 = vunpack.c.l.b16 %v506
    %v3177 = vunpack.c.h.b16 %v506
    %v3178 = vunpack.c.l.b16 %v507
    %v3179 = vunpack.c.h.b16 %v507
    %v3180 = vunpack.c.l.b16 %v508
    %v3181 = vunpack.c.h.b16 %v508
    %v3182 = vunpack.c.l.b16 %v509
    %v3183 = vunpack.c.h.b16 %v509
    %v3184 = vunpack.c.l.b16 %v510
    %v3185 = vunpack.c.h.b16 %v510
    %v3186 = vunpack.c.l.b16 %v511
    %v3187 = vunpack.c.h.b16 %v511
    %v3188 = vunpack.c.l.b16 %v512
    %v3189 = vunpack.c.h.b16 %v512
    %v3190 = vunpack.c.l.b16 %v513
    %v3191 = vunpack.c.h.b16 %v513
    %v3192 = vunpack.c.l.b16 %v514
    %v3193 = vunpack.c.h.b16 %v514
    %v3194 = vunpack.c.l.b16 %v515
    %v3195 = vunpack.c.h.b16 %v515
    %v3196 = vunpack.c.l.b16 %v516
    %v3197 = vunpack.c.h.b16 %v516
    %v3198 = vunpack.c.l.b16 %v517
    %v3199 = vunpack.c.h.b16 %v517
    %v3200 = vunpack.c.l.b16 %v518
    %v3201 = vunpack.c.h.b16 %v518
    %v3202 = vunpack.c.l.b16 %v519
    %v3203 = vunpack.c.h.b16 %v519
    %v3204 = vunpack.c.l.b16 %v520
    %v3205 = vunpack.c.h.b16 %v520
    %v3206 = vunpack.c.l.b16 %v521
    %v3207 = vunpack.c.h.b16 %v521
    %v3208 = vunpack.c.l.b16 %v522
    %v3209 = vunpack.c.h.b16 %v522
    %v3210 = vunpack.c.l.b16 %v523
    %v3211 = vunpack.c.h.b16 %v523
    %v3212 = vunpack.c.l.b16 %v524
    %v3213 = vunpack.c.h.b16 %v524
    %v3214 = vunpack.c.l.b16 %v525
    %v3215 = vunpack.c.h.b16 %v525
    %v3216 = vunpack.c.l.b16 %v526
    %v3217 = vunpack.c.h.b16 %v526
    %v3218 = vunpack.c.l.b16 %v527
    %v3219 = vunpack.c.h.b16 %v527
    %v3220 = vunpack.c.l.b16 %v528
    %v3221 = vunpack.c.h.b16 %v528
    %v3222 = vunpack.c.l.b16 %v529
    %v3223 = vunpack.c.h.b16 %v529
    %v3224 = vunpack.c.l.b16 %v530
    %v3225 = vunpack.c.h.b16 %v530
    %v3226 = vunpack.c.l.b16 %v531
    %v3227 = vunpack.c.h.b16 %v531
    %v3228 = vunpack.c.l.b16 %v532
    %v3229 = vunpack.c.h.b16 %v532
    %v3230 = vunpack.c.l.b16 %v533
    %v3231 = vunpack.c.h.b16 %v533
    %v3232 = vunpack.c.l.b16 %v534
    %v3233 = vunpack.c.h.b16 %v534
    %v3234 = vunpack.c.l.b16 %v535
    %v3235 = vunpack.c.h.b16 %v535
    %v3236 = vunpack.c.l.b16 %v536
    %v3237 = vunpack.c.h.b16 %v536
    %v3238 = vunpack.c.l.b16 %v537
    %v3239 = vunpack.c.h.b16 %v537
    %v3240 = vunpack.c.l.b16 %v538
    %v3241 = vunpack.c.h.b16 %v538
    %v3242 = vunpack.c.l.b16 %v539
    %v3243 = vunpack.c.h.b16 %v539
    %v3244 = vunpack.c.l.b16 %v540
    %v3245 = vunpack.c.h.b16 %v540
    %v3246 = vunpack.c.l.b16 %v541
    %v3247 = vunpack.c.h.b16 %v541
    %v3248 = vunpack.c.l.b16 %v542
    %v3249 = vunpack.c.h.b16 %v542
    %v3250 = vunpack.c.l.b16 %v543
    %v3251 = vunpack.c.h.b16 %v543
    %v3252 = vunpack.c.l.b16 %v544
    %v3253 = vunpack.c.h.b16 %v544
    %v3254 = vunpack.c.l.b16 %v545
    %v3255 = vunpack.c.h.b16 %v545
    %v3256 = vunpack.c.l.b16 %v546
    %v3257 = vunpack.c.h.b16 %v546
    %v3258 = vunpack.c.l.b16 %v547
    %v3259 = vunpack.c.h.b16 %v547
    %v3260 = vunpack.c.l.b16 %v548
    %v3261 = vunpack.c.h.b16 %v548
    %v3262 = vunpack.c.l.b16 %v549
    %v3263 = vunpack.c.h.b16 %v549
    %v3264 = vunpack.c.l.b16 %v550
    %v3265 = vunpack.c.h.b16 %v550
    %v3266 = vunpack.c.l.b16 %v551
    %v3267 = vunpack.c.h.b16 %v551
    %v3268 = vunpack.c.l.b16 %v552
    %v3269 = vunpack.c.h.b16 %v552
    %v3270 = vunpack.c.l.b16 %v553
    %v3271 = vunpack.c.h.b16 %v553
    %v3272 = vunpack.c.l.b16 %v554
    %v3273 = vunpack.c.h.b16 %v554
    %v3274 = vunpack.c.l.b16 %v555
    %v3275 = vunpack.c.h.b16 %v555
    %v3276 = vunpack.c.l.b16 %v556
    %v3277 = vunpack.c.h.b16 %v556
    %v3278 = vunpack.c.l.b16 %v557
    %v3279 = vunpack.c.h.b16 %v557
    %v3280 = vunpack.c.l.b16 %v558
    %v3281 = vunpack.c.h.b16 %v558
    %v3282 = vunpack.c.l.b16 %v559
    %v3283 = vunpack.c.h.b16 %v559
    %v3284 = vunpack.c.l.b16 %v560
    %v3285 = vunpack.c.h.b16 %v560
    %v3286 = vunpack.c.l.b16 %v561
    %v3287 = vunpack.c.h.b16 %v561
    %v3288 = vunpack.c.l.b16 %v562
    %v3289 = vunpack.c.h.b16 %v562
    %v3290 = vunpack.c.l.b16 %v563
    %v3291 = vunpack.c.h.b16 %v563
    %v3292 = vunpack.c.l.b16 %v564
    %v3293 = vunpack.c.h.b16 %v564
    %v3294 = vunpack.c.l.b16 %v565
    %v3295 = vunpack.c.h.b16 %v565
    %v3296 = vunpack.c.l.b16 %v566
    %v3297 = vunpack.c.h.b16 %v566
    %v3298 = vunpack.c.l.b16 %v567
    %v3299 = vunpack.c.h.b16 %v567
    %v3300 = vunpack.c.l.b16 %v568
    %v3301 = vunpack.c.h.b16 %v568
    %v3302 = vunpack.c.l.b16 %v569
    %v3303 = vunpack.c.h.b16 %v569
    %v3304 = vunpack.c.l.b16 %v570
    %v3305 = vunpack.c.h.b16 %v570
    %v3306 = vunpack.c.l.b16 %v571
    %v3307 = vunpack.c.h.b16 %v571
    %v3308 = vunpack.c.l.b16 %v572
    %v3309 = vunpack.c.h.b16 %v572
    %v3310 = vunpack.c.l.b16 %v573
    %v3311 = vunpack.c.h.b16 %v573
    %v3312 = vunpack.c.l.b16 %v574
    %v3313 = vunpack.c.h.b16 %v574
    %v3314 = vunpack.c.l.b16 %v575
    %v3315 = vunpack.c.h.b16 %v575
    %v3316 = vunpack.c.l.b16 %v576
    %v3317 = vunpack.c.h.b16 %v576
    %v3318 = vunpack.c.l.b16 %v577
    %v3319 = vunpack.c.h.b16 %v577
    %v3320 = vunpack.c.l.b16 %v578
    %v3321 = vunpack.c.h.b16 %v578
    %v3322 = vunpack.c.l.b16 %v579
    %v3323 = vunpack.c.h.b16 %v579
    %v3324 = vunpack.c.l.b16 %v580
    %v3325 = vunpack.c.h.b16 %v580
    %v3326 = vunpack.c.l.b16 %v581
    %v3327 = vunpack.c.h.b16 %v581
    %v3328 = vunpack.c.l.b16 %v582
    %v3329 = vunpack.c.h.b16 %v582
    %v3330 = vunpack.c.l.b16 %v583
    %v3331 = vunpack.c.h.b16 %v583
    %v3332 = vunpack.c.l.b16 %v584
    %v3333 = vunpack.c.h.b16 %v584
    %v3334 = vunpack.c.l.b16 %v585
    %v3335 = vunpack.c.h.b16 %v585
    %v3336 = vunpack.c.l.b16 %v586
    %v3337 = vunpack.c.h.b16 %v586
    %v3338 = vunpack.c.l.b16 %v587
    %v3339 = vunpack.c.h.b16 %v587
    %v3340 = vunpack.c.l.b16 %v588
    %v3341 = vunpack.c.h.b16 %v588
    %v3342 = vunpack.c.l.b16 %v589
    %v3343 = vunpack.c.h.b16 %v589
    %v3344 = vunpack.c.l.b16 %v590
    %v3345 = vunpack.c.h.b16 %v590
    %v3346 = vunpack.c.l.b16 %v591
    %v3347 = vunpack.c.h.b16 %v591
    %v3348 = vunpack.c.l.b16 %v592
    %v3349 = vunpack.c.h.b16 %v592
    %v3350 = vunpack.c.l.b16 %v593
    %v3351 = vunpack.c.h.b16 %v593
    %v3352 = vunpack.c.l.b16 %v594
    %v3353 = vunpack.c.h.b16 %v594
    %v3354 = vunpack.c.l.b16 %v595
    %v3355 = vunpack.c.h.b16 %v595
    %v3356 = vunpack.c.l.b16 %v596
    %v3357 = vunpack.c.h.b16 %v596
    %v3358 = vunpack.c.l.b16 %v597
    %v3359 = vunpack.c.h.b16 %v597
    %v3360 = vunpack.c.l.b16 %v598
    %v3361 = vunpack.c.h.b16 %v598
    %v3362 = vunpack.c.l.b16 %v599
    %v3363 = vunpack.c.h.b16 %v599
    %v3364 = vunpack.c.l.b16 %v600
    %v3365 = vunpack.c.h.b16 %v600
    %v3366 = vunpack.c.l.b16 %v601
    %v3367 = vunpack.c.h.b16 %v601
    %v3368 = vunpack.c.l.b16 %v602
    %v3369 = vunpack.c.h.b16 %v602
    %v3370 = vunpack.c.l.b16 %v603
    %v3371 = vunpack.c.h.b16 %v603
    %v3372 = vunpack.c.l.b16 %v604
    %v3373 = vunpack.c.h.b16 %v604
    %v3374 = vunpack.c.l.b16 %v605
    %v3375 = vunpack.c.h.b16 %v605
    %v3376 = vunpack.c.l.b16 %v606
    %v3377 = vunpack.c.h.b16 %v606
    %v3378 = vunpack.c.l.b16 %v607
    %v3379 = vunpack.c.h.b16 %v607
    %v3380 = vunpack.c.l.b16 %v608
    %v3381 = vunpack.c.h.b16 %v608
    %v3382 = vunpack.c.l.b16 %v609
    %v3383 = vunpack.c.h.b16 %v609
    %v3384 = vunpack.c.l.b16 %v610
    %v3385 = vunpack.c.h.b16 %v610
    %v3386 = vunpack.c.l.b16 %v611
    %v3387 = vunpack.c.h.b16 %v611
    %v3388 = vunpack.c.l.b16 %v612
    %v3389 = vunpack.c.h.b16 %v612
    %v3390 = vunpack.c.l.b16 %v613
    %v3391 = vunpack.c.h.b16 %v613
    %v3392 = vunpack.c.l.b16 %v614
    %v3393 = vunpack.c.h.b16 %v614
    %v3394 = vunpack.c.l.b16 %v615
    %v3395 = vunpack.c.h.b16 %v615
    %v3396 = vunpack.c.l.b16 %v616
    %v3397 = vunpack.c.h.b16 %v616
    %v3398 = vunpack.c.l.b16 %v617
    %v3399 = vunpack.c.h.b16 %v617
    %v3400 = vunpack.c.l.b16 %v618
    %v3401 = vunpack.c.h.b16 %v618
    %v3402 = vunpack.c.l.b16 %v619
    %v3403 = vunpack.c.h.b16 %v619
    %v3404 = vunpack.c.l.b16 %v620
    %v3405 = vunpack.c.h.b16 %v620
    %v3406 = vunpack.c.l.b16 %v621
    %v3407 = vunpack.c.h.b16 %v621
    %v3408 = vunpack.c.l.b16 %v622
    %v3409 = vunpack.c.h.b16 %v622
    %v3410 = vunpack.c.l.b16 %v623
    %v3411 = vunpack.c.h.b16 %v623
    %v3412 = vunpack.c.l.b16 %v624
    %v3413 = vunpack.c.h.b16 %v624
    %v3414 = vunpack.c.l.b16 %v625
    %v3415 = vunpack.c.h.b16 %v625
    %v3416 = vunpack.c.l.b16 %v626
    %v3417 = vunpack.c.h.b16 %v626
    %v3418 = vunpack.c.l.b16 %v627
    %v3419 = vunpack.c.h.b16 %v627
    %v3420 = vunpack.c.l.b16 %v628
    %v3421 = vunpack.c.h.b16 %v628
    %v3422 = vunpack.c.l.b16 %v629
    %v3423 = vunpack.c.h.b16 %v629
    %v3424 = vunpack.c.l.b16 %v630
    %v3425 = vunpack.c.h.b16 %v630
    %v3426 = vunpack.c.l.b16 %v631
    %v3427 = vunpack.c.h.b16 %v631
    %v3428 = vunpack.c.l.b16 %v632
    %v3429 = vunpack.c.h.b16 %v632
    %v3430 = vunpack.c.l.b16 %v633
    %v3431 = vunpack.c.h.b16 %v633
    %v3432 = vunpack.c.l.b16 %v634
    %v3433 = vunpack.c.h.b16 %v634
    %v3434 = vunpack.c.l.b16 %v635
    %v3435 = vunpack.c.h.b16 %v635
    %v3436 = vunpack.c.l.b16 %v636
    %v3437 = vunpack.c.h.b16 %v636
    %v3438 = vunpack.c.l.b16 %v637
    %v3439 = vunpack.c.h.b16 %v637
    %v3440 = vunpack.c.l.b16 %v638
    %v3441 = vunpack.c.h.b16 %v638
    %v3442 = vunpack.c.l.b16 %v639
    %v3443 = vunpack.c.h.b16 %v639
    %v3444 = vunpack.c.l.b16 %v640
    %v3445 = vunpack.c.h.b16 %v640
    %v3446 = vunpack.c.l.b16 %v641
    %v3447 = vunpack.c.h.b16 %v641
    %v3448 = vunpack.c.l.b16 %v642
    %v3449 = vunpack.c.h.b16 %v642
    %v3450 = vunpack.c.l.b16 %v643
    %v3451 = vunpack.c.h.b16 %v643
    %v3452 = vunpack.c.l.b16 %v644
    %v3453 = vunpack.c.h.b16 %v644
    %v3454 = vunpack.c.l.b16 %v645
    %v3455 = vunpack.c.h.b16 %v645
    %v3456 = vunpack.c.l.b16 %v646
    %v3457 = vunpack.c.h.b16 %v646
    %v3458 = vunpack.c.l.b16 %v647
    %v3459 = vunpack.c.h.b16 %v647
    %v3460 = vunpack.c.l.b16 %v648
    %v3461 = vunpack.c.h.b16 %v648
    %v3462 = vunpack.c.l.b16 %v649
    %v3463 = vunpack.c.h.b16 %v649
    %v3464 = vunpack.c.l.b16 %v650
    %v3465 = vunpack.c.h.b16 %v650
    %v3466 = vunpack.c.l.b16 %v651
    %v3467 = vunpack.c.h.b16 %v651
    %v3468 = vunpack.c.l.b16 %v652
    %v3469 = vunpack.c.h.b16 %v652
    %v3470 = vunpack.c.l.b16 %v653
    %v3471 = vunpack.c.h.b16 %v653
    %v3472 = vunpack.c.l.b16 %v654
    %v3473 = vunpack.c.h.b16 %v654
    %v3474 = vunpack.c.l.b16 %v655
    %v3475 = vunpack.c.h.b16 %v655
    %v3476 = vunpack.c.l.b16 %v656
    %v3477 = vunpack.c.h.b16 %v656
    %v3478 = vunpack.c.l.b16 %v657
    %v3479 = vunpack.c.h.b16 %v657
    %v3480 = vunpack.c.l.b16 %v658
    %v3481 = vunpack.c.h.b16 %v658
    %v3482 = vunpack.c.l.b16 %v659
    %v3483 = vunpack.c.h.b16 %v659
    %v3484 = vunpack.c.l.b16 %v660
    %v3485 = vunpack.c.h.b16 %v660
    %v3486 = vunpack.c.l.b16 %v661
    %v3487 = vunpack.c.h.b16 %v661
    %v3488 = vunpack.c.l.b16 %v662
    %v3489 = vunpack.c.h.b16 %v662
    %v3490 = vunpack.c.l.b16 %v663
    %v3491 = vunpack.c.h.b16 %v663
    %v3492 = vunpack.c.l.b16 %v664
    %v3493 = vunpack.c.h.b16 %v664
    %v3494 = vunpack.c.l.b16 %v665
    %v3495 = vunpack.c.h.b16 %v665
    %v3496 = vunpack.c.l.b16 %v666
    %v3497 = vunpack.c.h.b16 %v666
    %v3498 = vunpack.c.l.b16 %v667
    %v3499 = vunpack.c.h.b16 %v667
    %v3500 = vunpack.c.l.b16 %v668
    %v3501 = vunpack.c.h.b16 %v668
    %v3502 = vunpack.c.l.b16 %v669
    %v3503 = vunpack.c.h.b16 %v669
    %v3504 = vunpack.c.l.b16 %v670
    %v3505 = vunpack.c.h.b16 %v670
    %v3506 = vunpack.c.l.b16 %v671
    %v3507 = vunpack.c.h.b16 %v671
    %v3508 = vunpack.c.l.b16 %v672
    %v3509 = vunpack.c.h.b16 %v672
    %v3510 = vunpack.c.l.b16 %v673
    %v3511 = vunpack.c.h.b16 %v673
    %v3512 = vunpack.c.l.b16 %v674
    %v3513 = vunpack.c.h.b16 %v674
    %v3514 = vunpack.c.l.b16 %v675
    %v3515 = vunpack.c.h.b16 %v675
    %v3516 = vunpack.c.l.b16 %v676
    %v3517 = vunpack.c.h.b16 %v676
    %v3518 = vunpack.c.l.b16 %v677
    %v3519 = vunpack.c.h.b16 %v677
    %v3520 = vunpack.c.l.b16 %v678
    %v3521 = vunpack.c.h.b16 %v678
    %v3522 = vunpack.c.l.b16 %v679
    %v3523 = vunpack.c.h.b16 %v679
    %v3524 = vunpack.c.l.b16 %v680
    %v3525 = vunpack.c.h.b16 %v680
    %v3526 = vunpack.c.l.b16 %v681
    %v3527 = vunpack.c.h.b16 %v681
    %v3528 = vunpack.c.l.b16 %v682
    %v3529 = vunpack.c.h.b16 %v682
    %v3530 = vunpack.c.l.b16 %v683
    %v3531 = vunpack.c.h.b16 %v683
    %v3532 = vunpack.c.l.b16 %v684
    %v3533 = vunpack.c.h.b16 %v684
    %v3534 = vunpack.c.l.b16 %v685
    %v3535 = vunpack.c.h.b16 %v685
    %v3536 = vunpack.c.l.b16 %v686
    %v3537 = vunpack.c.h.b16 %v686
    %v3538 = vunpack.c.l.b16 %v687
    %v3539 = vunpack.c.h.b16 %v687
    %v3540 = vunpack.c.l.b16 %v688
    %v3541 = vunpack.c.h.b16 %v688
    %v3542 = vunpack.c.l.b16 %v689
    %v3543 = vunpack.c.h.b16 %v689
    %v3544 = vunpack.c.l.b16 %v690
    %v3545 = vunpack.c.h.b16 %v690
    %v3546 = vunpack.c.l.b16 %v691
    %v3547 = vunpack.c.h.b16 %v691
    %v3548 = vunpack.c.l.b16 %v692
    %v3549 = vunpack.c.h.b16 %v692
    %v3550 = vunpack.c.l.b16 %v693
    %v3551 = vunpack.c.h.b16 %v693
    %v3552 = vunpack.c.l.b16 %v694
    %v3553 = vunpack.c.h.b16 %v694
    %v3554 = vunpack.c.l.b16 %v695
    %v3555 = vunpack.c.h.b16 %v695
    %v3556 = vunpack.c.l.b16 %v696
    %v3557 = vunpack.c.h.b16 %v696
    %v3558 = vunpack.c.l.b16 %v697
    %v3559 = vunpack.c.h.b16 %v697
    %v3560 = vunpack.c.l.b16 %v698
    %v3561 = vunpack.c.h.b16 %v698
    %v3562 = vunpack.c.l.b16 %v699
    %v3563 = vunpack.c.h.b16 %v699
    %v3564 = vunpack.c.l.b16 %v700
    %v3565 = vunpack.c.h.b16 %v700
    %v3566 = vunpack.c.l.b16 %v701
    %v3567 = vunpack.c.h.b16 %v701
    %v3568 = vunpack.c.l.b16 %v702
    %v3569 = vunpack.c.h.b16 %v702
    %v3570 = vunpack.c.l.b16 %v703
    %v3571 = vunpack.c.h.b16 %v703
    %v3572 = vunpack.c.l.b16 %v704
    %v3573 = vunpack.c.h.b16 %v704
    %v3574 = vunpack.c.l.b16 %v705
    %v3575 = vunpack.c.h.b16 %v705
    %v3576 = vunpack.c.l.b16 %v706
    %v3577 = vunpack.c.h.b16 %v706
    %v3578 = vunpack.c.l.b16 %v707
    %v3579 = vunpack.c.h.b16 %v707
    %v3580 = vunpack.c.l.b16 %v708
    %v3581 = vunpack.c.h.b16 %v708
    %v3582 = vunpack.c.l.b16 %v709
    %v3583 = vunpack.c.h.b16 %v709
    %v3584 = vunpack.c.l.b16 %v710
    %v3585 = vunpack.c.h.b16 %v710
    %v3586 = vunpack.c.l.b16 %v711
    %v3587 = vunpack.c.h.b16 %v711
    %v3588 = vunpack.c.l.b16 %v712
    %v3589 = vunpack.c.h.b16 %v712
    %v3590 = vunpack.c.l.b16 %v713
    %v3591 = vunpack.c.h.b16 %v713
    %v3592 = vunpack.c.l.b16 %v714
    %v3593 = vunpack.c.h.b16 %v714
    %v3594 = vunpack.c.l.b16 %v715
    %v3595 = vunpack.c.h.b16 %v715
    %v3596 = vunpack.c.l.b16 %v716
    %v3597 = vunpack.c.h.b16 %v716
    %v3598 = vunpack.c.l.b16 %v717
    %v3599 = vunpack.c.h.b16 %v717
    %v3600 = vunpack.c.l.b16 %v718
    %v3601 = vunpack.c.h.b16 %v718
    %v3602 = vunpack.c.l.b16 %v719
    %v3603 = vunpack.c.h.b16 %v719
    %v3604 = vunpack.c.l.b16 %v720
    %v3605 = vunpack.c.h.b16 %v720
    %v3606 = vunpack.c.l.b16 %v721
    %v3607 = vunpack.c.h.b16 %v721
    %v3608 = vunpack.c.l.b16 %v722
    %v3609 = vunpack.c.h.b16 %v722
    %v3610 = vunpack.c.l.b16 %v723
    %v3611 = vunpack.c.h.b16 %v723
    %v3612 = vunpack.c.l.b16 %v724
    %v3613 = vunpack.c.h.b16 %v724
    %v3614 = vunpack.c.l.b16 %v725
    %v3615 = vunpack.c.h.b16 %v725
    %v3616 = vunpack.c.l.b16 %v726
    %v3617 = vunpack.c.h.b16 %v726
    %v3618 = vunpack.c.l.b16 %v727
    %v3619 = vunpack.c.h.b16 %v727
    %v3620 = vunpack.c.l.b16 %v728
    %v3621 = vunpack.c.h.b16 %v728
    %v3622 = vunpack.c.l.b16 %v729
    %v3623 = vunpack.c.h.b16 %v729
    %v3624 = vunpack.c.l.b16 %v730
    %v3625 = vunpack.c.h.b16 %v730
    %v3626 = vunpack.c.l.b16 %v731
    %v3627 = vunpack.c.h.b16 %v731
    %v3628 = vunpack.c.l.b16 %v732
    %v3629 = vunpack.c.h.b16 %v732
    %v3630 = vunpack.c.l.b16 %v733
    %v3631 = vunpack.c.h.b16 %v733
    %v3632 = vunpack.c.l.b16 %v734
    %v3633 = vunpack.c.h.b16 %v734
    %v3634 = vunpack.c.l.b16 %v735
    %v3635 = vunpack.c.h.b16 %v735
    %v3636 = vunpack.c.l.b16 %v736
    %v3637 = vunpack.c.h.b16 %v736
    %v3638 = vunpack.c.l.b16 %v737
    %v3639 = vunpack.c.h.b16 %v737
    %v3640 = vunpack.c.l.b16 %v738
    %v3641 = vunpack.c.h.b16 %v738
    %v3642 = vunpack.c.l.b16 %v739
    %v3643 = vunpack.c.h.b16 %v739
    %v3644 = vunpack.c.l.b16 %v740
    %v3645 = vunpack.c.h.b16 %v740
    %v3646 = vunpack.c.l.b16 %v741
    %v3647 = vunpack.c.h.b16 %v741
    %v3648 = vunpack.c.l.b16 %v742
    %v3649 = vunpack.c.h.b16 %v742
    %v3650 = vunpack.c.l.b16 %v743
    %v3651 = vunpack.c.h.b16 %v743
    %v3652 = vunpack.c.l.b16 %v744
    %v3653 = vunpack.c.h.b16 %v744
    %v3654 = vunpack.c.l.b16 %v745
    %v3655 = vunpack.c.h.b16 %v745
    %v3656 = vunpack.c.l.b16 %v746
    %v3657 = vunpack.c.h.b16 %v746
    %v3658 = vunpack.c.l.b16 %v747
    %v3659 = vunpack.c.h.b16 %v747
    %v3660 = vunpack.c.l.b16 %v748
    %v3661 = vunpack.c.h.b16 %v748
    %v3662 = vunpack.c.l.b16 %v749
    %v3663 = vunpack.c.h.b16 %v749
    %v3664 = vunpack.c.l.b16 %v750
    %v3665 = vunpack.c.h.b16 %v750
    %v3666 = vunpack.c.l.b16 %v751
    %v3667 = vunpack.c.h.b16 %v751
    %v3668 = vunpack.c.l.b16 %v752
    %v3669 = vunpack.c.h.b16 %v752
    %v3670 = vunpack.c.l.b16 %v753
    %v3671 = vunpack.c.h.b16 %v753
    %v3672 = vunpack.c.l.b16 %v754
    %v3673 = vunpack.c.h.b16 %v754
    %v3674 = vunpack.c.l.b16 %v755
    %v3675 = vunpack.c.h.b16 %v755
    %v3676 = vunpack.c.l.b16 %v756
    %v3677 = vunpack.c.h.b16 %v756
    %v3678 = vunpack.c.l.b16 %v757
    %v3679 = vunpack.c.h.b16 %v757
    %v3680 = vunpack.c.l.b16 %v758
    %v3681 = vunpack.c.h.b16 %v758
    %v3682 = vunpack.c.l.b16 %v759
    %v3683 = vunpack.c.h.b16 %v759
    %v3684 = vunpack.c.l.b16 %v760
    %v3685 = vunpack.c.h.b16 %v760
    %v3686 = vunpack.c.l.b16 %v761
    %v3687 = vunpack.c.h.b16 %v761
    %v3688 = vunpack.c.l.b16 %v762
    %v3689 = vunpack.c.h.b16 %v762
    %v3690 = vunpack.c.l.b16 %v763
    %v3691 = vunpack.c.h.b16 %v763
    %v3692 = vunpack.c.l.b16 %v764
    %v3693 = vunpack.c.h.b16 %v764
    %v3694 = vunpack.c.l.b16 %v765
    %v3695 = vunpack.c.h.b16 %v765
    %v3696 = vunpack.c.l.b16 %v766
    %v3697 = vunpack.c.h.b16 %v766
    %v3698 = vunpack.c.l.b16 %v767
    %v3699 = vunpack.c.h.b16 %v767
    %v3700 = vunpack.c.l.b16 %v768
    %v3701 = vunpack.c.h.b16 %v768
    %v3702 = vunpack.c.l.b16 %v769
    %v3703 = vunpack.c.h.b16 %v769
    %v3704 = vunpack.c.l.b16 %v770
    %v3705 = vunpack.c.h.b16 %v770
    %v3706 = vunpack.c.l.b16 %v771
    %v3707 = vunpack.c.h.b16 %v771
    %v3708 = vunpack.c.l.b16 %v772
    %v3709 = vunpack.c.h.b16 %v772
    %v3710 = vunpack.c.l.b16 %v773
    %v3711 = vunpack.c.h.b16 %v773
    %v3712 = vunpack.c.l.b16 %v774
    %v3713 = vunpack.c.h.b16 %v774
    %v3714 = vunpack.c.l.b16 %v775
    %v3715 = vunpack.c.h.b16 %v775
    %v3716 = vunpack.c.l.b16 %v776
    %v3717 = vunpack.c.h.b16 %v776
    %v3718 = vunpack.c.l.b16 %v777
    %v3719 = vunpack.c.h.b16 %v777
    %v3720 = vunpack.c.l.b16 %v778
    %v3721 = vunpack.c.h.b16 %v778
    %v3722 = vunpack.c.l.b16 %v779
    %v3723 = vunpack.c.h.b16 %v779
    %v3724 = vunpack.c.l.b16 %v780
    %v3725 = vunpack.c.h.b16 %v780
    %v3726 = vunpack.c.l.b16 %v781
    %v3727 = vunpack.c.h.b16 %v781
    %v3728 = vunpack.c.l.b16 %v782
    %v3729 = vunpack.c.h.b16 %v782
    %v3730 = vunpack.c.l.b16 %v783
    %v3731 = vunpack.c.h.b16 %v783
    %v3732 = vunpack.c.l.b16 %v784
    %v3733 = vunpack.c.h.b16 %v784
    %v3734 = vunpack.c.l.b16 %v785
    %v3735 = vunpack.c.h.b16 %v785
    %v3736 = vunpack.c.l.b16 %v786
    %v3737 = vunpack.c.h.b16 %v786
    %v3738 = vunpack.c.l.b16 %v787
    %v3739 = vunpack.c.h.b16 %v787
    %v3740 = vunpack.c.l.b16 %v788
    %v3741 = vunpack.c.h.b16 %v788
    %v3742 = vunpack.c.l.b16 %v789
    %v3743 = vunpack.c.h.b16 %v789
    %v3744 = vunpack.c.l.b16 %v790
    %v3745 = vunpack.c.h.b16 %v790
    %v3746 = vunpack.c.l.b16 %v791
    %v3747 = vunpack.c.h.b16 %v791
    %v3748 = vunpack.c.l.b16 %v792
    %v3749 = vunpack.c.h.b16 %v792
    %v3750 = vunpack.c.l.b16 %v793
    %v3751 = vunpack.c.h.b16 %v793
    %v3752 = vunpack.c.l.b16 %v794
    %v3753 = vunpack.c.h.b16 %v794
    %v3754 = vunpack.c.l.b16 %v795
    %v3755 = vunpack.c.h.b16 %v795
    %v3756 = vunpack.c.l.b16 %v796
    %v3757 = vunpack.c.h.b16 %v796
    %v3758 = vunpack.c.l.b16 %v797
    %v3759 = vunpack.c.h.b16 %v797
    %v3760 = vunpack.c.l.b16 %v798
    %v3761 = vunpack.c.h.b16 %v798
    %v3762 = vunpack.c.l.b16 %v799
    %v3763 = vunpack.c.h.b16 %v799
    %v3764 = vunpack.c.l.b16 %v800
    %v3765 = vunpack.c.h.b16 %v800
    %v3766 = vunpack.c.l.b16 %v801
    %v3767 = vunpack.c.h.b16 %v801
    %v3768 = vunpack.c.l.b16 %v802
    %v3769 = vunpack.c.h.b16 %v802
    %v3770 = vunpack.c.l.b16 %v803
    %v3771 = vunpack.c.h.b16 %v803
    %v3772 = vunpack.c.l.b16 %v804
    %v3773 = vunpack.c.h.b16 %v804
    %v3774 = vunpack.c.l.b16 %v805
    %v3775 = vunpack.c.h.b16 %v805
    %v3776 = vunpack.c.l.b16 %v806
    %v3777 = vunpack.c.h.b16 %v806
    %v3778 = vunpack.c.l.b16 %v807
    %v3779 = vunpack.c.h.b16 %v807
    %v3780 = vunpack.c.l.b16 %v808
    %v3781 = vunpack.c.h.b16 %v808
    %v3782 = vunpack.c.l.b16 %v809
    %v3783 = vunpack.c.h.b16 %v809
    %v3784 = vunpack.c.l.b16 %v810
    %v3785 = vunpack.c.h.b16 %v810
    %v3786 = vunpack.c.l.b16 %v811
    %v3787 = vunpack.c.h.b16 %v811
    %v3788 = vunpack.c.l.b16 %v812
    %v3789 = vunpack.c.h.b16 %v812
    %v3790 = vunpack.c.l.b16 %v813
    %v3791 = vunpack.c.h.b16 %v813
    %v3792 = vunpack.c.l.b16 %v814
    %v3793 = vunpack.c.h.b16 %v814
    %v3794 = vunpack.c.l.b16 %v815
    %v3795 = vunpack.c.h.b16 %v815
    %v3796 = vunpack.c.l.b16 %v816
    %v3797 = vunpack.c.h.b16 %v816
    %v3798 = vunpack.c.l.b16 %v817
    %v3799 = vunpack.c.h.b16 %v817
    %v3800 = vunpack.c.l.b16 %v818
    %v3801 = vunpack.c.h.b16 %v818
    %v3802 = vunpack.c.l.b16 %v819
    %v3803 = vunpack.c.h.b16 %v819
    %v3804 = vunpack.c.l.b16 %v820
    %v3805 = vunpack.c.h.b16 %v820
    %v3806 = vunpack.c.l.b16 %v821
    %v3807 = vunpack.c.h.b16 %v821
    %v3808 = vunpack.c.l.b16 %v822
    %v3809 = vunpack.c.h.b16 %v822
    %v3810 = vunpack.c.l.b16 %v823
    %v3811 = vunpack.c.h.b16 %v823
    %v3812 = vunpack.c.l.b16 %v824
    %v3813 = vunpack.c.h.b16 %v824
    %v3814 = vunpack.c.l.b16 %v825
    %v3815 = vunpack.c.h.b16 %v825
    %v3816 = vunpack.c.l.b16 %v826
    %v3817 = vunpack.c.h.b16 %v826
    %v3818 = vunpack.c.l.b16 %v827
    %v3819 = vunpack.c.h.b16 %v827
    %v3820 = vunpack.c.l.b16 %v828
    %v3821 = vunpack.c.h.b16 %v828
    %v3822 = vunpack.c.l.b16 %v829
    %v3823 = vunpack.c.h.b16 %v829
    %v3824 = vunpack.c.l.b16 %v830
    %v3825 = vunpack.c.h.b16 %v830
    %v3826 = vunpack.c.l.b16 %v831
    %v3827 = vunpack.c.h.b16 %v831
    %v3828 = vunpack.c.l.b16 %v832
    %v3829 = vunpack.c.h.b16 %v832
    %v3830 = vunpack.c.l.b16 %v833
    %v3831 = vunpack.c.h.b16 %v833
    %v3832 = vunpack.c.l.b16 %v834
    %v3833 = vunpack.c.h.b16 %v834
    %v3834 = vunpack.c.l.b16 %v835
    %v3835 = vunpack.c.h.b16 %v835
    %v3836 = vunpack.c.l.b16 %v836
    %v3837 = vunpack.c.h.b16 %v836
    %v3838 = vunpack.c.l.b16 %v837
    %v3839 = vunpack.c.h.b16 %v837
    %v3840 = vunpack.c.l.b16 %v838
    %v3841 = vunpack.c.h.b16 %v838
    %v3842 = vunpack.c.l.b16 %v839
    %v3843 = vunpack.c.h.b16 %v839
    %v3844 = vunpack.c.l.b16 %v840
    %v3845 = vunpack.c.h.b16 %v840
    %v3846 = vunpack.c.l.b16 %v841
    %v3847 = vunpack.c.h.b16 %v841
    %v3848 = vunpack.c.l.b16 %v842
    %v3849 = vunpack.c.h.b16 %v842
    %v3850 = vunpack.c.l.b16 %v843
    %v3851 = vunpack.c.h.b16 %v843
    %v3852 = vunpack.c.l.b16 %v844
    %v3853 = vunpack.c.h.b16 %v844
    %v3854 = vunpack.c.l.b16 %v845
    %v3855 = vunpack.c.h.b16 %v845
    %v3856 = vunpack.c.l.b16 %v846
    %v3857 = vunpack.c.h.b16 %v846
    %v3858 = vunpack.c.l.b16 %v847
    %v3859 = vunpack.c.h.b16 %v847
    %v3860 = vunpack.c.l.b16 %v848
    %v3861 = vunpack.c.h.b16 %v848
    %v3862 = vunpack.c.l.b16 %v849
    %v3863 = vunpack.c.h.b16 %v849
    %v3864 = vunpack.c.l.b16 %v850
    %v3865 = vunpack.c.h.b16 %v850
    %v3866 = vunpack.c.l.b16 %v851
    %v3867 = vunpack.c.h.b16 %v851
    %v3868 = vunpack.c.l.b16 %v852
    %v3869 = vunpack.c.h.b16 %v852
    %v3870 = vunpack.c.l.b16 %v853
    %v3871 = vunpack.c.h.b16 %v853
    %v3872 = vunpack.c.l.b16 %v854
    %v3873 = vunpack.c.h.b16 %v854
    %v3874 = vunpack.c.l.b16 %v855
    %v3875 = vunpack.c.h.b16 %v855
    %v3876 = vunpack.c.l.b16 %v856
    %v3877 = vunpack.c.h.b16 %v856
    %v3878 = vunpack.c.l.b16 %v857
    %v3879 = vunpack.c.h.b16 %v857
    %v3880 = vunpack.c.l.b16 %v858
    %v3881 = vunpack.c.h.b16 %v858
    %v3882 = vunpack.c.l.b16 %v859
    %v3883 = vunpack.c.h.b16 %v859
    %v3884 = vunpack.c.l.b16 %v860
    %v3885 = vunpack.c.h.b16 %v860
    %v3886 = vunpack.c.l.b16 %v861
    %v3887 = vunpack.c.h.b16 %v861
    %v3888 = vunpack.c.l.b16 %v862
    %v3889 = vunpack.c.h.b16 %v862
    %v3890 = vunpack.c.l.b16 %v863
    %v3891 = vunpack.c.h.b16 %v863
    %v3892 = vunpack.c.l.b16 %v864
    %v3893 = vunpack.c.h.b16 %v864
    %v3894 = vunpack.c.l.b16 %v865
    %v3895 = vunpack.c.h.b16 %v865
    %v3896 = vunpack.c.l.b16 %v866
    %v3897 = vunpack.c.h.b16 %v866
    %v3898 = vunpack.c.l.b16 %v867
    %v3899 = vunpack.c.h.b16 %v867
    %v3900 = vunpack.c.l.b16 %v868
    %v3901 = vunpack.c.h.b16 %v868
    %v3902 = vunpack.c.l.b16 %v869
    %v3903 = vunpack.c.h.b16 %v869
    %v3904 = vunpack.c.l.b16 %v870
    %v3905 = vunpack.c.h.b16 %v870
    %v3906 = vunpack.c.l.b16 %v871
    %v3907 = vunpack.c.h.b16 %v871
    %v3908 = vunpack.c.l.b16 %v872
    %v3909 = vunpack.c.h.b16 %v872
    %v3910 = vunpack.c.l.b16 %v873
    %v3911 = vunpack.c.h.b16 %v873
    %v3912 = vunpack.c.l.b16 %v874
    %v3913 = vunpack.c.h.b16 %v874
    %v3914 = vunpack.c.l.b16 %v875
    %v3915 = vunpack.c.h.b16 %v875
    %v3916 = vunpack.c.l.b16 %v876
    %v3917 = vunpack.c.h.b16 %v876
    %v3918 = vunpack.c.l.b16 %v877
    %v3919 = vunpack.c.h.b16 %v877
    %v3920 = vunpack.c.l.b16 %v878
    %v3921 = vunpack.c.h.b16 %v878
    %v3922 = vunpack.c.l.b16 %v879
    %v3923 = vunpack.c.h.b16 %v879
    %v3924 = vunpack.c.l.b16 %v880
    %v3925 = vunpack.c.h.b16 %v880
    %v3926 = vunpack.c.l.b16 %v881
    %v3927 = vunpack.c.h.b16 %v881
    %v3928 = vunpack.c.l.b16 %v882
    %v3929 = vunpack.c.h.b16 %v882
    %v3930 = vunpack.c.l.b16 %v883
    %v3931 = vunpack.c.h.b16 %v883
    %v3932 = vunpack.c.l.b16 %v884
    %v3933 = vunpack.c.h.b16 %v884
    %v3934 = vunpack.c.l.b16 %v885
    %v3935 = vunpack.c.h.b16 %v885
    %v3936 = vunpack.c.l.b16 %v886
    %v3937 = vunpack.c.h.b16 %v886
    %v3938 = vunpack.c.l.b16 %v887
    %v3939 = vunpack.c.h.b16 %v887
    %v3940 = vunpack.c.l.b16 %v888
    %v3941 = vunpack.c.h.b16 %v888
    %v3942 = vunpack.c.l.b16 %v889
    %v3943 = vunpack.c.h.b16 %v889
    %v3944 = vunpack.c.l.b16 %v890
    %v3945 = vunpack.c.h.b16 %v890
    %v3946 = vunpack.c.l.b16 %v891
    %v3947 = vunpack.c.h.b16 %v891
    %v3948 = vunpack.c.l.b16 %v892
    %v3949 = vunpack.c.h.b16 %v892
    %v3950 = vunpack.c.l.b16 %v893
    %v3951 = vunpack.c.h.b16 %v893
    %v3952 = vunpack.c.l.b16 %v894
    %v3953 = vunpack.c.h.b16 %v894
    %v3954 = vunpack.c.l.b16 %v895
    %v3955 = vunpack.c.h.b16 %v895
    %v3956 = vunpack.c.l.b16 %v896
    %v3957 = vunpack.c.h.b16 %v896
    %v3958 = vunpack.c.l.b16 %v897
    %v3959 = vunpack.c.h.b16 %v897
    %v3960 = vunpack.c.l.b16 %v898
    %v3961 = vunpack.c.h.b16 %v898
    %v3962 = vunpack.c.l.b16 %v899
    %v3963 = vunpack.c.h.b16 %v899
    %v3964 = vunpack.c.l.b16 %v900
    %v3965 = vunpack.c.h.b16 %v900
    %v3966 = vunpack.c.l.b16 %v901
    %v3967 = vunpack.c.h.b16 %v901
    %v3968 = vunpack.c.l.b16 %v902
    %v3969 = vunpack.c.h.b16 %v902
    %v3970 = vunpack.c.l.b16 %v903
    %v3971 = vunpack.c.h.b16 %v903
    %v3972 = vunpack.c.l.b16 %v904
    %v3973 = vunpack.c.h.b16 %v904
    %v3974 = vunpack.c.l.b16 %v905
    %v3975 = vunpack.c.h.b16 %v905
    %v3976 = vunpack.c.l.b16 %v906
    %v3977 = vunpack.c.h.b16 %v906
    %v3978 = vunpack.c.l.b16 %v907
    %v3979 = vunpack.c.h.b16 %v907
    %v3980 = vunpack.c.l.b16 %v908
    %v3981 = vunpack.c.h.b16 %v908
    %v3982 = vunpack.c.l.b16 %v909
    %v3983 = vunpack.c.h.b16 %v909
    %v3984 = vunpack.c.l.b16 %v910
    %v3985 = vunpack.c.h.b16 %v910
    %v3986 = vunpack.c.l.b16 %v911
    %v3987 = vunpack.c.h.b16 %v911
    %v3988 = vunpack.c.l.b16 %v912
    %v3989 = vunpack.c.h.b16 %v912
    %v3990 = vunpack.c.l.b16 %v913
    %v3991 = vunpack.c.h.b16 %v913
    %v3992 = vunpack.c.l.b16 %v914
    %v3993 = vunpack.c.h.b16 %v914
    %v3994 = vunpack.c.l.b16 %v915
    %v3995 = vunpack.c.h.b16 %v915
    %v3996 = vunpack.c.l.b16 %v916
    %v3997 = vunpack.c.h.b16 %v916
    %v3998 = vunpack.c.l.b16 %v917
    %v3999 = vunpack.c.h.b16 %v917
    %v4000 = vunpack.c.l.b16 %v918
    %v4001 = vunpack.c.h.b16 %v918
    %v4002 = vunpack.c.l.b16 %v919
    %v4003 = vunpack.c.h.b16 %v919
    %v4004 = vunpack.c.l.b16 %v920
    %v4005 = vunpack.c.h.b16 %v920
    %v4006 = vunpack.c.l.b16 %v921
    %v4007 = vunpack.c.h.b16 %v921
    %v4008 = vunpack.c.l.b16 %v922
    %v4009 = vunpack.c.h.b16 %v922
    %v4010 = vunpack.c.l.b16 %v923
    %v4011 = vunpack.c.h.b16 %v923
    %v4012 = vunpack.c.l.b16 %v924
    %v4013 = vunpack.c.h.b16 %v924
    %v4014 = vunpack.c.l.b16 %v925
    %v4015 = vunpack.c.h.b16 %v925
    %v4016 = vunpack.c.l.b16 %v926
    %v4017 = vunpack.c.h.b16 %v926
    %v4018 = vunpack.c.l.b16 %v927
    %v4019 = vunpack.c.h.b16 %v927
    %v4020 = vunpack.c.l.b16 %v928
    %v4021 = vunpack.c.h.b16 %v928
    %v4022 = vunpack.c.l.b16 %v929
    %v4023 = vunpack.c.h.b16 %v929
    %v4024 = vunpack.c.l.b16 %v930
    %v4025 = vunpack.c.h.b16 %v930
    %v4026 = vunpack.c.l.b16 %v931
    %v4027 = vunpack.c.h.b16 %v931
    %v4028 = vunpack.c.l.b16 %v932
    %v4029 = vunpack.c.h.b16 %v932
    %v4030 = vunpack.c.l.b16 %v933
    %v4031 = vunpack.c.h.b16 %v933
    %v4032 = vunpack.c.l.b16 %v934
    %v4033 = vunpack.c.h.b16 %v934
    %v4034 = vunpack.c.l.b16 %v935
    %v4035 = vunpack.c.h.b16 %v935
    %v4036 = vunpack.c.l.b16 %v936
    %v4037 = vunpack.c.h.b16 %v936
    %v4038 = vunpack.c.l.b16 %v937
    %v4039 = vunpack.c.h.b16 %v937
    %v4040 = vunpack.c.l.b16 %v938
    %v4041 = vunpack.c.h.b16 %v938
    %v4042 = vunpack.c.l.b16 %v939
    %v4043 = vunpack.c.h.b16 %v939
    %v4044 = vunpack.c.l.b16 %v940
    %v4045 = vunpack.c.h.b16 %v940
    %v4046 = vunpack.c.l.b16 %v941
    %v4047 = vunpack.c.h.b16 %v941
    %v4048 = vunpack.c.l.b16 %v942
    %v4049 = vunpack.c.h.b16 %v942
    %v4050 = vunpack.c.l.b16 %v943
    %v4051 = vunpack.c.h.b16 %v943
    %v4052 = vunpack.c.l.b16 %v944
    %v4053 = vunpack.c.h.b16 %v944
    %v4054 = vunpack.c.l.b16 %v945
    %v4055 = vunpack.c.h.b16 %v945
    %v4056 = vunpack.c.l.b16 %v946
    %v4057 = vunpack.c.h.b16 %v946
    %v4058 = vunpack.c.l.b16 %v947
    %v4059 = vunpack.c.h.b16 %v947
    %v4060 = vunpack.c.l.b16 %v948
    %v4061 = vunpack.c.h.b16 %v948
    %v4062 = vunpack.c.l.b16 %v949
    %v4063 = vunpack.c.h.b16 %v949
    %v4064 = vunpack.c.l.b16 %v950
    %v4065 = vunpack.c.h.b16 %v950
    %v4066 = vunpack.c.l.b16 %v951
    %v4067 = vunpack.c.h.b16 %v951
    %v4068 = vunpack.c.l.b16 %v952
    %v4069 = vunpack.c.h.b16 %v952
    %v4070 = vunpack.c.l.b16 %v953
    %v4071 = vunpack.c.h.b16 %v953
    %v4072 = vunpack.c.l.b16 %v954
    %v4073 = vunpack.c.h.b16 %v954
    %v4074 = vunpack.c.l.b16 %v955
    %v4075 = vunpack.c.h.b16 %v955
    %v4076 = vunpack.c.l.b16 %v956
    %v4077 = vunpack.c.h.b16 %v956
    %v4078 = vunpack.c.l.b16 %v957
    %v4079 = vunpack.c.h.b16 %v957
    %v4080 = vunpack.c.l.b16 %v958
    %v4081 = vunpack.c.h.b16 %v958
    %v4082 = vunpack.c.l.b16 %v959
    %v4083 = vunpack.c.h.b16 %v959
    %v4084 = vunpack.c.l.b16 %v960
    %v4085 = vunpack.c.h.b16 %v960
    %v4086 = vunpack.c.l.b16 %v961
    %v4087 = vunpack.c.h.b16 %v961
    %v4088 = vunpack.c.l.b16 %v962
    %v4089 = vunpack.c.h.b16 %v962
    %v4090 = vunpack.c.l.b16 %v963
    %v4091 = vunpack.c.h.b16 %v963
    %v4092 = vunpack.c.l.b16 %v964
    %v4093 = vunpack.c.h.b16 %v964
    %v4094 = vunpack.c.l.b16 %v965
    %v4095 = vunpack.c.h.b16 %v965
    %v4096 = vunpack.c.l.b16 %v966
    %v4097 = vunpack.c.h.b16 %v966
    %v4098 = vunpack.c.l.b16 %v967
    %v4099 = vunpack.c.h.b16 %v967
    %v4100 = vunpack.c.l.b16 %v968
    %v4101 = vunpack.c.h.b16 %v968
    %v4102 = vunpack.c.l.b16 %v969
    %v4103 = vunpack.c.h.b16 %v969
    %v4104 = vunpack.c.l.b16 %v970
    %v4105 = vunpack.c.h.b16 %v970
    %v4106 = vunpack.c.l.b16 %v971
    %v4107 = vunpack.c.h.b16 %v971
    %v4108 = vunpack.c.l.b16 %v972
    %v4109 = vunpack.c.h.b16 %v972
    %v4110 = vunpack.c.l.b16 %v973
    %v4111 = vunpack.c.h.b16 %v973
    %v4112 = vunpack.c.l.b16 %v974
    %v4113 = vunpack.c.h.b16 %v974
    %v4114 = vunpack.c.l.b16 %v975
    %v4115 = vunpack.c.h.b16 %v975
    %v4116 = vunpack.c.l.b16 %v976
    %v4117 = vunpack.c.h.b16 %v976
    %v4118 = vunpack.c.l.b16 %v977
    %v4119 = vunpack.c.h.b16 %v977
    %v4120 = vunpack.c.l.b16 %v978
    %v4121 = vunpack.c.h.b16 %v978
    %v4122 = vunpack.c.l.b16 %v979
    %v4123 = vunpack.c.h.b16 %v979
    %v4124 = vunpack.c.l.b16 %v980
    %v4125 = vunpack.c.h.b16 %v980
    %v4126 = vunpack.c.l.b16 %v981
    %v4127 = vunpack.c.h.b16 %v981
    %v4128 = vunpack.c.l.b16 %v982
    %v4129 = vunpack.c.h.b16 %v982
    %v4130 = vunpack.c.l.b16 %v983
    %v4131 = vunpack.c.h.b16 %v983
    %v4132 = vunpack.c.l.b16 %v984
    %v4133 = vunpack.c.h.b16 %v984
    %v4134 = vunpack.c.l.b16 %v985
    %v4135 = vunpack.c.h.b16 %v985
    %v4136 = vunpack.c.l.b16 %v986
    %v4137 = vunpack.c.h.b16 %v986
    %v4138 = vunpack.c.l.b16 %v987
    %v4139 = vunpack.c.h.b16 %v987
    %v4140 = vunpack.c.l.b16 %v988
    %v4141 = vunpack.c.h.b16 %v988
    %v4142 = vunpack.c.l.b16 %v989
    %v4143 = vunpack.c.h.b16 %v989
    %v4144 = vunpack.c.l.b16 %v990
    %v4145 = vunpack.c.h.b16 %v990
    %v4146 = vunpack.c.l.b16 %v991
    %v4147 = vunpack.c.h.b16 %v991
    %v4148 = vunpack.c.l.b16 %v992
    %v4149 = vunpack.c.h.b16 %v992
    %v4150 = vunpack.c.l.b16 %v993
    %v4151 = vunpack.c.h.b16 %v993
    %v4152 = vunpack.c.l.b16 %v994
    %v4153 = vunpack.c.h.b16 %v994
    %v4154 = vunpack.c.l.b16 %v995
    %v4155 = vunpack.c.h.b16 %v995
    %v4156 = vunpack.c.l.b16 %v996
    %v4157 = vunpack.c.h.b16 %v996
    %v4158 = vunpack.c.l.b16 %v997
    %v4159 = vunpack.c.h.b16 %v997
    %v4160 = vunpack.c.l.b16 %v998
    %v4161 = vunpack.c.h.b16 %v998
    %v4162 = vunpack.c.l.b16 %v999
    %v4163 = vunpack.c.h.b16 %v999
    %v4164 = vunpack.c.l.b16 %v1000
    %v4165 = vunpack.c.h.b16 %v1000
    %v4166 = vunpack.c.l.b16 %v1001
    %v4167 = vunpack.c.h.b16 %v1001
    %v4168 = vunpack.c.l.b16 %v1002
    %v4169 = vunpack.c.h.b16 %v1002
    %v4170 = vunpack.c.l.b16 %v1003
    %v4171 = vunpack.c.h.b16 %v1003
    %v4172 = vunpack.c.l.b16 %v1004
    %v4173 = vunpack.c.h.b16 %v1004
    %v4174 = vunpack.c.l.b16 %v1005
    %v4175 = vunpack.c.h.b16 %v1005
    %v4176 = vunpack.c.l.b16 %v1006
    %v4177 = vunpack.c.h.b16 %v1006
    %v4178 = vunpack.c.l.b16 %v1007
    %v4179 = vunpack.c.h.b16 %v1007
    %v4180 = vunpack.c.l.b16 %v1008
    %v4181 = vunpack.c.h.b16 %v1008
    %v4182 = vunpack.c.l.b16 %v1009
    %v4183 = vunpack.c.h.b16 %v1009
    %v4184 = vunpack.c.l.b16 %v1010
    %v4185 = vunpack.c.h.b16 %v1010
    %v4186 = vunpack.c.l.b16 %v1011
    %v4187 = vunpack.c.h.b16 %v1011
    %v4188 = vunpack.c.l.b16 %v1012
    %v4189 = vunpack.c.h.b16 %v1012
    %v4190 = vunpack.c.l.b16 %v1013
    %v4191 = vunpack.c.h.b16 %v1013
    %v4192 = vunpack.c.l.b16 %v1014
    %v4193 = vunpack.c.h.b16 %v1014
    %v4194 = vunpack.c.l.b16 %v1015
    %v4195 = vunpack.c.h.b16 %v1015
    %v4196 = vunpack.c.l.b16 %v1016
    %v4197 = vunpack.c.h.b16 %v1016
    %v4198 = vunpack.c.l.b16 %v1017
    %v4199 = vunpack.c.h.b16 %v1017
    %v4200 = vunpack.c.l.b16 %v1018
    %v4201 = vunpack.c.h.b16 %v1018
    %v4202 = vunpack.c.l.b16 %v1019
    %v4203 = vunpack.c.h.b16 %v1019
    %v4204 = vunpack.c.l.b16 %v1020
    %v4205 = vunpack.c.h.b16 %v1020
    %v4206 = vunpack.c.l.b16 %v1021
    %v4207 = vunpack.c.h.b16 %v1021
    %v4208 = vunpack.c.l.b16 %v1022
    %v4209 = vunpack.c.h.b16 %v1022
    %v4210 = vunpack.c.l.b16 %v1023
    %v4211 = vunpack.c.h.b16 %v1023
    %v4212 = vunpack.c.l.b16 %v1024
    %v4213 = vunpack.c.h.b16 %v1024
    %v4214 = vunpack.c.l.b16 %v1025
    %v4215 = vunpack.c.h.b16 %v1025
    %v4216 = vunpack.c.l.b16 %v1026
    %v4217 = vunpack.c.h.b16 %v1026
    %v4218 = vunpack.c.l.b16 %v1027
    %v4219 = vunpack.c.h.b16 %v1027
    %v4220 = vunpack.c.l.b16 %v1028
    %v4221 = vunpack.c.h.b16 %v1028
    %v4222 = vunpack.c.l.b16 %v1029
    %v4223 = vunpack.c.h.b16 %v1029
    %v4224 = vunpack.c.l.b16 %v1030
    %v4225 = vunpack.c.h.b16 %v1030
    %v4226 = vunpack.c.l.b16 %v1031
    %v4227 = vunpack.c.h.b16 %v1031
    %v4228 = vunpack.c.l.b16 %v1032
    %v4229 = vunpack.c.h.b16 %v1032
    %v4230 = vunpack.c.l.b16 %v1033
    %v4231 = vunpack.c.h.b16 %v1033
    %v4232 = vunpack.c.l.b16 %v1034
    %v4233 = vunpack.c.h.b16 %v1034
    %v4234 = vunpack.c.l.b16 %v1035
    %v4235 = vunpack.c.h.b16 %v1035
    %v4236 = vunpack.c.l.b16 %v1036
    %v4237 = vunpack.c.h.b16 %v1036
    %v4238 = vunpack.c.l.b16 %v1037
    %v4239 = vunpack.c.h.b16 %v1037
    %v4240 = vunpack.c.l.b16 %v1038
    %v4241 = vunpack.c.h.b16 %v1038
    %v4242 = vunpack.c.l.b16 %v1039
    %v4243 = vunpack.c.h.b16 %v1039
    %v4244 = vunpack.c.l.b16 %v1040
    %v4245 = vunpack.c.h.b16 %v1040
    %v4246 = vunpack.c.l.b16 %v1041
    %v4247 = vunpack.c.h.b16 %v1041
    %v4248 = vunpack.c.l.b16 %v1042
    %v4249 = vunpack.c.h.b16 %v1042
    %v4250 = vunpack.c.l.b16 %v1043
    %v4251 = vunpack.c.h.b16 %v1043
    %v4252 = vunpack.c.l.b16 %v1044
    %v4253 = vunpack.c.h.b16 %v1044
    %v4254 = vunpack.c.l.b16 %v1045
    %v4255 = vunpack.c.h.b16 %v1045
    %v4256 = vunpack.c.l.b16 %v1046
    %v4257 = vunpack.c.h.b16 %v1046
    %v4258 = vunpack.c.l.b16 %v1047
    %v4259 = vunpack.c.h.b16 %v1047
    %v4260 = vunpack.c.l.b16 %v1048
    %v4261 = vunpack.c.h.b16 %v1048
    %v4262 = vunpack.c.l.b16 %v1049
    %v4263 = vunpack.c.h.b16 %v1049
    %v4264 = vunpack.c.l.b16 %v1050
    %v4265 = vunpack.c.h.b16 %v1050
    %v4266 = vunpack.c.l.b16 %v1051
    %v4267 = vunpack.c.h.b16 %v1051
    %v4268 = vunpack.c.l.b16 %v1052
    %v4269 = vunpack.c.h.b16 %v1052
    %v4270 = vunpack.c.l.b16 %v1053
    %v4271 = vunpack.c.h.b16 %v1053
    %v4272 = vunpack.c.l.b16 %v1054
    %v4273 = vunpack.c.h.b16 %v1054
    %v4274 = vunpack.c.l.b16 %v1055
    %v4275 = vunpack.c.h.b16 %v1055
    %v4276 = vunpack.c.l.b16 %v1056
    %v4277 = vunpack.c.h.b16 %v1056
    %v4278 = vunpack.c.l.b16 %v1057
    %v4279 = vunpack.c.h.b16 %v1057
    %v4280 = vunpack.c.l.b16 %v1058
    %v4281 = vunpack.c.h.b16 %v1058
    %v4282 = vunpack.c.l.b16 %v1059
    %v4283 = vunpack.c.h.b16 %v1059
    %v4284 = vunpack.c.l.b16 %v1060
    %v4285 = vunpack.c.h.b16 %v1060
    %v4286 = vunpack.c.l.b16 %v1061
    %v4287 = vunpack.c.h.b16 %v1061
    %v4288 = vunpack.c.l.b16 %v1062
    %v4289 = vunpack.c.h.b16 %v1062
    %v4290 = vunpack.c.l.b16 %v1063
    %v4291 = vunpack.c.h.b16 %v1063
    %v4292 = vunpack.c.l.b16 %v1064
    %v4293 = vunpack.c.h.b16 %v1064
    %v4294 = vunpack.c.l.b16 %v1065
    %v4295 = vunpack.c.h.b16 %v1065
    %v4296 = vunpack.c.l.b16 %v1066
    %v4297 = vunpack.c.h.b16 %v1066
    %v4298 = vunpack.c.l.b16 %v1067
    %v4299 = vunpack.c.h.b16 %v1067
    %v4300 = vunpack.c.l.b16 %v1068
    %v4301 = vunpack.c.h.b16 %v1068
    %v4302 = vunpack.c.l.b16 %v1069
    %v4303 = vunpack.c.h.b16 %v1069
    %v4304 = vunpack.c.l.b16 %v1070
    %v4305 = vunpack.c.h.b16 %v1070
    %v4306 = vunpack.c.l.b16 %v1071
    %v4307 = vunpack.c.h.b16 %v1071
    %v4308 = vunpack.c.l.b16 %v1072
    %v4309 = vunpack.c.h.b16 %v1072
    %v4310 = vunpack.c.l.b16 %v1073
    %v4311 = vunpack.c.h.b16 %v1073
    %v4312 = vunpack.c.l.b16 %v1074
    %v4313 = vunpack.c.h.b16 %v1074
    %v4314 = vunpack.c.l.b16 %v1075
    %v4315 = vunpack.c.h.b16 %v1075
    %v4316 = vunpack.c.l.b16 %v1076
    %v4317 = vunpack.c.h.b16 %v1076
    %v4318 = vunpack.c.l.b16 %v1077
    %v4319 = vunpack.c.h.b16 %v1077
    %v4320 = vunpack.c.l.b16 %v1078
    %v4321 = vunpack.c.h.b16 %v1078
    %v4322 = vunpack.c.l.b16 %v1079
    %v4323 = vunpack.c.h.b16 %v1079
    %v4324 = vunpack.c.l.b16 %v1080
    %v4325 = vunpack.c.h.b16 %v1080
    %v4326 = vunpack.c.l.b16 %v1081
    %v4327 = vunpack.c.h.b16 %v1081
    %v4328 = vunpack.c.l.b16 %v1082
    %v4329 = vunpack.c.h.b16 %v1082
    %v4330 = vunpack.c.l.b16 %v1083
    %v4331 = vunpack.c.h.b16 %v1083
    %v4332 = vunpack.c.l.b16 %v1084
    %v4333 = vunpack.c.h.b16 %v1084
    %v4334 = vunpack.c.l.b16 %v1085
    %v4335 = vunpack.c.h.b16 %v1085
    %v4336 = vunpack.c.l.b16 %v1086
    %v4337 = vunpack.c.h.b16 %v1086
    %v4338 = vunpack.c.l.b16 %v1087
    %v4339 = vunpack.c.h.b16 %v1087
    %v4340 = vunpack.c.l.b16 %v1088
    %v4341 = vunpack.c.h.b16 %v1088
    %v4342 = vunpack.c.l.b16 %v1089
    %v4343 = vunpack.c.h.b16 %v1089
    %v4344 = vunpack.c.l.b16 %v1090
    %v4345 = vunpack.c.h.b16 %v1090
    %v4346 = vunpack.c.l.b16 %v1091
    %v4347 = vunpack.c.h.b16 %v1091
    %v4348 = vunpack.c.l.b16 %v1092
    %v4349 = vunpack.c.h.b16 %v1092
    %v4350 = vunpack.c.l.b16 %v1093
    %v4351 = vunpack.c.h.b16 %v1093
    %v4352 = vunpack.c.l.b16 %v1094
    %v4353 = vunpack.c.h.b16 %v1094
    %v4354 = vunpack.c.l.b16 %v1095
    %v4355 = vunpack.c.h.b16 %v1095
    %v4356 = vunpack.c.l.b16 %v1096
    %v4357 = vunpack.c.h.b16 %v1096
    %v4358 = vunpack.c.l.b16 %v1097
    %v4359 = vunpack.c.h.b16 %v1097
    %v4360 = vunpack.c.l.b16 %v1098
    %v4361 = vunpack.c.h.b16 %v1098
    %v4362 = vunpack.c.l.b16 %v1099
    %v4363 = vunpack.c.h.b16 %v1099
    %v4364 = vunpack.c.l.b16 %v1100
    %v4365 = vunpack.c.h.b16 %v1100
    %v4366 = vunpack.c.l.b16 %v1101
    %v4367 = vunpack.c.h.b16 %v1101
    %v4368 = vunpack.c.l.b16 %v1102
    %v4369 = vunpack.c.h.b16 %v1102
    %v4370 = vunpack.c.l.b16 %v1103
    %v4371 = vunpack.c.h.b16 %v1103
    %v4372 = vunpack.c.l.b16 %v1104
    %v4373 = vunpack.c.h.b16 %v1104
    %v4374 = vunpack.c.l.b16 %v1105
    %v4375 = vunpack.c.h.b16 %v1105
    %v4376 = vunpack.c.l.b16 %v1106
    %v4377 = vunpack.c.h.b16 %v1106
    %v4378 = vunpack.c.l.b16 %v1107
    %v4379 = vunpack.c.h.b16 %v1107
    %v4380 = vunpack.c.l.b16 %v1108
    %v4381 = vunpack.c.h.b16 %v1108
    %v4382 = vunpack.c.l.b16 %v1109
    %v4383 = vunpack.c.h.b16 %v1109
    %v4384 = vunpack.c.l.b16 %v1110
    %v4385 = vunpack.c.h.b16 %v1110
    %v4386 = vunpack.c.l.b16 %v1111
    %v4387 = vunpack.c.h.b16 %v1111
    %v4388 = vunpack.c.l.b16 %v1112
    %v4389 = vunpack.c.h.b16 %v1112
    %v4390 = vunpack.c.l.b16 %v1113
    %v4391 = vunpack.c.h.b16 %v1113
    %v4392 = vunpack.c.l.b16 %v1114
    %v4393 = vunpack.c.h.b16 %v1114
    %v4394 = vunpack.c.l.b16 %v1115
    %v4395 = vunpack.c.h.b16 %v1115
    %v4396 = vunpack.c.l.b16 %v1116
    %v4397 = vunpack.c.h.b16 %v1116
    %v4398 = vunpack.c.l.b16 %v1117
    %v4399 = vunpack.c.h.b16 %v1117
    %v4400 = vunpack.c.l.b16 %v1118
    %v4401 = vunpack.c.h.b16 %v1118
    %v4402 = vunpack.c.l.b16 %v1119
    %v4403 = vunpack.c.h.b16 %v1119
    %v4404 = vunpack.c.l.b16 %v1120
    %v4405 = vunpack.c.h.b16 %v1120
    %v4406 = vunpack.c.l.b16 %v1121
    %v4407 = vunpack.c.h.b16 %v1121
    %v4408 = vunpack.c.l.b16 %v1122
    %v4409 = vunpack.c.h.b16 %v1122
    %v4410 = vunpack.c.l.b16 %v1123
    %v4411 = vunpack.c.h.b16 %v1123
    %v4412 = vunpack.c.l.b16 %v1124
    %v4413 = vunpack.c.h.b16 %v1124
    %v4414 = vunpack.c.l.b16 %v1125
    %v4415 = vunpack.c.h.b16 %v1125
    %v4416 = vunpack.c.l.b16 %v1126
    %v4417 = vunpack.c.h.b16 %v1126
    %v4418 = vunpack.c.l.b16 %v1127
    %v4419 = vunpack.c.h.b16 %v1127
    %v4420 = vunpack.c.l.b16 %v1128
    %v4421 = vunpack.c.h.b16 %v1128
    %v4422 = vunpack.c.l.b16 %v1129
    %v4423 = vunpack.c.h.b16 %v1129
    %v4424 = vunpack.c.l.b16 %v1130
    %v4425 = vunpack.c.h.b16 %v1130
    %v4426 = vunpack.c.l.b16 %v1131
    %v4427 = vunpack.c.h.b16 %v1131
    %v4428 = vunpack.c.l.b16 %v1132
    %v4429 = vunpack.c.h.b16 %v1132
    %v4430 = vunpack.c.l.b16 %v1133
    %v4431 = vunpack.c.h.b16 %v1133
    %v4432 = vunpack.c.l.b16 %v1134
    %v4433 = vunpack.c.h.b16 %v1134
    %v4434 = vunpack.c.l.b16 %v1135
    %v4435 = vunpack.c.h.b16 %v1135
    %v4436 = vunpack.c.l.b16 %v1136
    %v4437 = vunpack.c.h.b16 %v1136
    %v4438 = vunpack.c.l.b16 %v1137
    %v4439 = vunpack.c.h.b16 %v1137
    %v4440 = vunpack.c.l.b16 %v1138
    %v4441 = vunpack.c.h.b16 %v1138
    %v4442 = vunpack.c.l.b16 %v1139
    %v4443 = vunpack.c.h.b16 %v1139
    %v4444 = vunpack.c.l.b16 %v1140
    %v4445 = vunpack.c.h.b16 %v1140
    %v4446 = vunpack.c.l.b16 %v1141
    %v4447 = vunpack.c.h.b16 %v1141
    %v4448 = vunpack.c.l.b16 %v1142
    %v4449 = vunpack.c.h.b16 %v1142
    %v4450 = vunpack.c.l.b16 %v1143
    %v4451 = vunpack.c.h.b16 %v1143
    %v4452 = vunpack.c.l.b16 %v1144
    %v4453 = vunpack.c.h.b16 %v1144
    %v4454 = vunpack.c.l.b16 %v1145
    %v4455 = vunpack.c.h.b16 %v1145
    %v4456 = vunpack.c.l.b16 %v1146
    %v4457 = vunpack.c.h.b16 %v1146
    %v4458 = vunpack.c.l.b16 %v1147
    %v4459 = vunpack.c.h.b16 %v1147
    %v4460 = vunpack.c.l.b16 %v1148
    %v4461 = vunpack.c.h.b16 %v1148
    %v4462 = vunpack.c.l.b16 %v1149
    %v4463 = vunpack.c.h.b16 %v1149
    %v4464 = vunpack.c.l.b16 %v1150
    %v4465 = vunpack.c.h.b16 %v1150
    %v4466 = vunpack.c.l.b16 %v1151
    %v4467 = vunpack.c.h.b16 %v1151
    %v4468 = vunpack.c.l.b16 %v1152
    %v4469 = vunpack.c.h.b16 %v1152
    %v4470 = vunpack.c.l.b16 %v1153
    %v4471 = vunpack.c.h.b16 %v1153
    %v4472 = vunpack.c.l.b16 %v1154
    %v4473 = vunpack.c.h.b16 %v1154
    %v4474 = vunpack.c.l.b16 %v1155
    %v4475 = vunpack.c.h.b16 %v1155
    %v4476 = vunpack.c.l.b16 %v1156
    %v4477 = vunpack.c.h.b16 %v1156
    %v4478 = vunpack.c.l.b16 %v1157
    %v4479 = vunpack.c.h.b16 %v1157
    %v4480 = vunpack.c.l.b16 %v1158
    %v4481 = vunpack.c.h.b16 %v1158
    %v4482 = vunpack.c.l.b16 %v1159
    %v4483 = vunpack.c.h.b16 %v1159
    %v4484 = vunpack.c.l.b16 %v1160
    %v4485 = vunpack.c.h.b16 %v1160
    %v4486 = vunpack.c.l.b16 %v1161
    %v4487 = vunpack.c.h.b16 %v1161
    %v4488 = vunpack.c.l.b16 %v1162
    %v4489 = vunpack.c.h.b16 %v1162
    %v4490 = vunpack.c.l.b16 %v1163
    %v4491 = vunpack.c.h.b16 %v1163
    %v4492 = vunpack.c.l.b16 %v1164
    %v4493 = vunpack.c.h.b16 %v1164
    %v4494 = vunpack.c.l.b16 %v1165
    %v4495 = vunpack.c.h.b16 %v1165
    %v4496 = vunpack.c.l.b16 %v1166
    %v4497 = vunpack.c.h.b16 %v1166
    %v4498 = vunpack.c.l.b16 %v1167
    %v4499 = vunpack.c.h.b16 %v1167
    %v4500 = vunpack.c.l.b16 %v1168
    %v4501 = vunpack.c.h.b16 %v1168
    %v4502 = vunpack.c.l.b16 %v1169
    %v4503 = vunpack.c.h.b16 %v1169
    %v4504 = vunpack.c.l.b16 %v1170
    %v4505 = vunpack.c.h.b16 %v1170
    %v4506 = vunpack.c.l.b16 %v1171
    %v4507 = vunpack.c.h.b16 %v1171
    %v4508 = vunpack.c.l.b16 %v1172
    %v4509 = vunpack.c.h.b16 %v1172
    %v4510 = vunpack.c.l.b16 %v1173
    %v4511 = vunpack.c.h.b16 %v1173
    %v4512 = vunpack.c.l.b16 %v1174
    %v4513 = vunpack.c.h.b16 %v1174
    %v4514 = vunpack.c.l.b16 %v1175
    %v4515 = vunpack.c.h.b16 %v1175
    %v4516 = vunpack.c.l.b16 %v1176
    %v4517 = vunpack.c.h.b16 %v1176
    %v4518 = vunpack.c.l.b16 %v1177
    %v4519 = vunpack.c.h.b16 %v1177
    %v4520 = vunpack.c.l.b16 %v1178
    %v4521 = vunpack.c.h.b16 %v1178
    %v4522 = vunpack.c.l.b16 %v1179
    %v4523 = vunpack.c.h.b16 %v1179
    %v4524 = vunpack.c.l.b16 %v1180
    %v4525 = vunpack.c.h.b16 %v1180
    %v4526 = vunpack.c.l.b16 %v1181
    %v4527 = vunpack.c.h.b16 %v1181
    %v4528 = vunpack.c.l.b16 %v1182
    %v4529 = vunpack.c.h.b16 %v1182
    %v4530 = vunpack.c.l.b16 %v1183
    %v4531 = vunpack.c.h.b16 %v1183
    %v4532 = vunpack.c.l.b16 %v1184
    %v4533 = vunpack.c.h.b16 %v1184
    %v4534 = vunpack.c.l.b16 %v1185
    %v4535 = vunpack.c.h.b16 %v1185
    %v4536 = vunpack.c.l.b16 %v1186
    %v4537 = vunpack.c.h.b16 %v1186
    %v4538 = vunpack.c.l.b16 %v1187
    %v4539 = vunpack.c.h.b16 %v1187
    %v4540 = vunpack.c.l.b16 %v1188
    %v4541 = vunpack.c.h.b16 %v1188
    %v4542 = vunpack.c.l.b16 %v1189
    %v4543 = vunpack.c.h.b16 %v1189
    %v4544 = vunpack.c.l.b16 %v1190
    %v4545 = vunpack.c.h.b16 %v1190
    %v4546 = vunpack.c.l.b16 %v1191
    %v4547 = vunpack.c.h.b16 %v1191
    %v4548 = vunpack.c.l.b16 %v1192
    %v4549 = vunpack.c.h.b16 %v1192
    %v4550 = vunpack.c.l.b16 %v1193
    %v4551 = vunpack.c.h.b16 %v1193
    %v4552 = vunpack.c.l.b16 %v1194
    %v4553 = vunpack.c.h.b16 %v1194
    %v4554 = vunpack.c.l.b16 %v1195
    %v4555 = vunpack.c.h.b16 %v1195
    %v4556 = vunpack.c.l.b16 %v1196
    %v4557 = vunpack.c.h.b16 %v1196
    %v4558 = vunpack.c.l.b16 %v1197
    %v4559 = vunpack.c.h.b16 %v1197
    %v4560 = vunpack.c.l.b16 %v1198
    %v4561 = vunpack.c.h.b16 %v1198
    %v4562 = vunpack.c.l.b16 %v1199
    %v4563 = vunpack.c.h.b16 %v1199
    %v4564 = vunpack.c.l.b16 %v1200
    %v4565 = vunpack.c.h.b16 %v1200
    %v4566 = vunpack.c.l.b16 %v1201
    %v4567 = vunpack.c.h.b16 %v1201
    %v4568 = vunpack.c.l.b16 %v1202
    %v4569 = vunpack.c.h.b16 %v1202
    %v4570 = vunpack.c.l.b16 %v1203
    %v4571 = vunpack.c.h.b16 %v1203
    %v4572 = vunpack.c.l.b16 %v1204
    %v4573 = vunpack.c.h.b16 %v1204
    %v4574 = vunpack.c.l.b16 %v1205
    %v4575 = vunpack.c.h.b16 %v1205
    %v4576 = vunpack.c.l.b16 %v1206
    %v4577 = vunpack.c.h.b16 %v1206
    %v4578 = vunpack.c.l.b16 %v1207
    %v4579 = vunpack.c.h.b16 %v1207
    %v4580 = vunpack.c.l.b16 %v1208
    %v4581 = vunpack.c.h.b16 %v1208
    %v4582 = vunpack.c.l.b16 %v1209
    %v4583 = vunpack.c.h.b16 %v1209
    %v4584 = vunpack.c.l.b16 %v1210
    %v4585 = vunpack.c.h.b16 %v1210
    %v4586 = vunpack.c.l.b16 %v1211
    %v4587 = vunpack.c.h.b16 %v1211
    %v4588 = vunpack.c.l.b16 %v1212
    %v4589 = vunpack.c.h.b16 %v1212
    %v4590 = vunpack.c.l.b16 %v1213
    %v4591 = vunpack.c.h.b16 %v1213
    %v4592 = vunpack.c.l.b16 %v1214
    %v4593 = vunpack.c.h.b16 %v1214
    %v4594 = vunpack.c.l.b16 %v1215
    %v4595 = vunpack.c.h.b16 %v1215
    %v4596 = vunpack.c.l.b16 %v1216
    %v4597 = vunpack.c.h.b16 %v1216
    %v4598 = vunpack.c.l.b16 %v1217
    %v4599 = vunpack.c.h.b16 %v1217
    %v4600 = vunpack.c.l.b16 %v1218
    %v4601 = vunpack.c.h.b16 %v1218
    %v4602 = vunpack.c.l.b16 %v1219
    %v4603 = vunpack.c.h.b16 %v1219
    %v4604 = vunpack.c.l.b16 %v1220
    %v4605 = vunpack.c.h.b16 %v1220
    %v4606 = vunpack.c.l.b16 %v1221
    %v4607 = vunpack.c.h.b16 %v1221
    %v4608 = vunpack.c.l.b16 %v1222
    %v4609 = vunpack.c.h.b16 %v1222
    %v4610 = vunpack.c.l.b16 %v1223
    %v4611 = vunpack.c.h.b16 %v1223
    %v4612 = vunpack.c.l.b16 %v1224
    %v4613 = vunpack.c.h.b16 %v1224
    %v4614 = vunpack.c.l.b16 %v1225
    %v4615 = vunpack.c.h.b16 %v1225
    %v4616 = vunpack.c.l.b16 %v1226
    %v4617 = vunpack.c.h.b16 %v1226
    %v4618 = vunpack.c.l.b16 %v1227
    %v4619 = vunpack.c.h.b16 %v1227
    %v4620 = vunpack.c.l.b16 %v1228
    %v4621 = vunpack.c.h.b16 %v1228
    %v4622 = vunpack.c.l.b16 %v1229
    %v4623 = vunpack.c.h.b16 %v1229
    %v4624 = vunpack.c.l.b16 %v1230
    %v4625 = vunpack.c.h.b16 %v1230
    %v4626 = vunpack.c.l.b16 %v1231
    %v4627 = vunpack.c.h.b16 %v1231
    %v4628 = vunpack.c.l.b16 %v1232
    %v4629 = vunpack.c.h.b16 %v1232
    %v4630 = vunpack.c.l.b16 %v1233
    %v4631 = vunpack.c.h.b16 %v1233
    %v4632 = vunpack.c.l.b16 %v1234
    %v4633 = vunpack.c.h.b16 %v1234
    %v4634 = vunpack.c.l.b16 %v1235
    %v4635 = vunpack.c.h.b16 %v1235
    %v4636 = vunpack.c.l.b16 %v1236
    %v4637 = vunpack.c.h.b16 %v1236
    %v4638 = vunpack.c.l.b16 %v1237
    %v4639 = vunpack.c.h.b16 %v1237
    %v4640 = vunpack.c.l.b16 %v1238
    %v4641 = vunpack.c.h.b16 %v1238
    %v4642 = vunpack.c.l.b16 %v1239
    %v4643 = vunpack.c.h.b16 %v1239
    %v4644 = vunpack.c.l.b16 %v1240
    %v4645 = vunpack.c.h.b16 %v1240
    %v4646 = vunpack.c.l.b16 %v1241
    %v4647 = vunpack.c.h.b16 %v1241
    %v4648 = vunpack.c.l.b16 %v1242
    %v4649 = vunpack.c.h.b16 %v1242
    %v4650 = vunpack.c.l.b16 %v1243
    %v4651 = vunpack.c.h.b16 %v1243
    %v4652 = vunpack.c.l.b16 %v1244
    %v4653 = vunpack.c.h.b16 %v1244
    %v4654 = vunpack.c.l.b16 %v1245
    %v4655 = vunpack.c.h.b16 %v1245
    %v4656 = vunpack.c.l.b16 %v1246
    %v4657 = vunpack.c.h.b16 %v1246
    %v4658 = vunpack.c.l.b16 %v1247
    %v4659 = vunpack.c.h.b16 %v1247
    %v4660 = vunpack.c.l.b16 %v1248
    %v4661 = vunpack.c.h.b16 %v1248
    %v4662 = vunpack.c.l.b16 %v1249
    %v4663 = vunpack.c.h.b16 %v1249
    %v4664 = vunpack.c.l.b16 %v1250
    %v4665 = vunpack.c.h.b16 %v1250
    %v4666 = vunpack.c.l.b16 %v1251
    %v4667 = vunpack.c.h.b16 %v1251
    %v4668 = vunpack.c.l.b16 %v1252
    %v4669 = vunpack.c.h.b16 %v1252
    %v4670 = vunpack.c.l.b16 %v1253
    %v4671 = vunpack.c.h.b16 %v1253
    %v4672 = vunpack.c.l.b16 %v1254
    %v4673 = vunpack.c.h.b16 %v1254
    %v4674 = vunpack.c.l.b16 %v1255
    %v4675 = vunpack.c.h.b16 %v1255
    %v4676 = vunpack.c.l.b16 %v1256
    %v4677 = vunpack.c.h.b16 %v1256
    %v4678 = vunpack.c.l.b16 %v1257
    %v4679 = vunpack.c.h.b16 %v1257
    %v4680 = vunpack.c.l.b16 %v1258
    %v4681 = vunpack.c.h.b16 %v1258
    %v4682 = vunpack.c.l.b16 %v1259
    %v4683 = vunpack.c.h.b16 %v1259
    %v4684 = vunpack.c.l.b16 %v1260
    %v4685 = vunpack.c.h.b16 %v1260
    %v4686 = vunpack.c.l.b16 %v1261
    %v4687 = vunpack.c.h.b16 %v1261
    %v4688 = vunpack.c.l.b16 %v1262
    %v4689 = vunpack.c.h.b16 %v1262
    %v4690 = vunpack.c.l.b16 %v1263
    %v4691 = vunpack.c.h.b16 %v1263
    %v4692 = vunpack.c.l.b16 %v1264
    %v4693 = vunpack.c.h.b16 %v1264
    %v4694 = vunpack.c.l.b16 %v1265
    %v4695 = vunpack.c.h.b16 %v1265
    %v4696 = vunpack.c.l.b16 %v1266
    %v4697 = vunpack.c.h.b16 %v1266
    %v4698 = vunpack.c.l.b16 %v1267
    %v4699 = vunpack.c.h.b16 %v1267
    %v4700 = vunpack.c.l.b16 %v1268
    %v4701 = vunpack.c.h.b16 %v1268
    %v4702 = vunpack.c.l.b16 %v1269
    %v4703 = vunpack.c.h.b16 %v1269
    %v4704 = vunpack.c.l.b16 %v1270
    %v4705 = vunpack.c.h.b16 %v1270
    %v4706 = vunpack.c.l.b16 %v1271
    %v4707 = vunpack.c.h.b16 %v1271
    %v4708 = vunpack.c.l.b16 %v1272
    %v4709 = vunpack.c.h.b16 %v1272
    %v4710 = vunpack.c.l.b16 %v1273
    %v4711 = vunpack.c.h.b16 %v1273
    %v4712 = vunpack.c.l.b16 %v1274
    %v4713 = vunpack.c.h.b16 %v1274
    %v4714 = vunpack.c.l.b16 %v1275
    %v4715 = vunpack.c.h.b16 %v1275
    %v4716 = vunpack.c.l.b16 %v1276
    %v4717 = vunpack.c.h.b16 %v1276
    %v4718 = vunpack.c.l.b16 %v1277
    %v4719 = vunpack.c.h.b16 %v1277
    %v4720 = vunpack.c.l.b16 %v1278
    %v4721 = vunpack.c.h.b16 %v1278
    %v4722 = vunpack.c.l.b16 %v1279
    %v4723 = vunpack.c.h.b16 %v1279
    %v4724 = vunpack.c.l.b16 %v1280
    %v4725 = vunpack.c.h.b16 %v1280
    %v4726 = vunpack.c.l.b16 %v1281
    %v4727 = vunpack.c.h.b16 %v1281
    %v4728 = vunpack.c.l.b16 %v1282
    %v4729 = vunpack.c.h.b16 %v1282
    %v4730 = vunpack.c.l.b16 %v1283
    %v4731 = vunpack.c.h.b16 %v1283
    %v4732 = vunpack.c.l.b16 %v1284
    %v4733 = vunpack.c.h.b16 %v1284
    %v4734 = vunpack.c.l.b16 %v1285
    %v4735 = vunpack.c.h.b16 %v1285
    %v4736 = vunpack.c.l.b16 %v1286
    %v4737 = vunpack.c.h.b16 %v1286
    %v4738 = vunpack.c.l.b16 %v1287
    %v4739 = vunpack.c.h.b16 %v1287
    %v4740 = vunpack.c.l.b16 %v1288
    %v4741 = vunpack.c.h.b16 %v1288
    %v4742 = vunpack.c.l.b16 %v1289
    %v4743 = vunpack.c.h.b16 %v1289
    %v4744 = vunpack.c.l.b16 %v1290
    %v4745 = vunpack.c.h.b16 %v1290
    %v4746 = vunpack.c.l.b16 %v1291
    %v4747 = vunpack.c.h.b16 %v1291
    %v4748 = vunpack.c.l.b16 %v1292
    %v4749 = vunpack.c.h.b16 %v1292
    %v4750 = vunpack.c.l.b16 %v1293
    %v4751 = vunpack.c.h.b16 %v1293
    %v4752 = vunpack.c.l.b16 %v1294
    %v4753 = vunpack.c.h.b16 %v1294
    %v4754 = vunpack.c.l.b16 %v1295
    %v4755 = vunpack.c.h.b16 %v1295
    %v4756 = vunpack.c.l.b16 %v1296
    %v4757 = vunpack.c.h.b16 %v1296
    %v4758 = vunpack.c.l.b16 %v1297
    %v4759 = vunpack.c.h.b16 %v1297
    %v4760 = vunpack.c.l.b16 %v1298
    %v4761 = vunpack.c.h.b16 %v1298
    %v4762 = vunpack.c.l.b16 %v1299
    %v4763 = vunpack.c.h.b16 %v1299
    %v4764 = vunpack.c.l.b16 %v1300
    %v4765 = vunpack.c.h.b16 %v1300
    %v4766 = vunpack.c.l.b16 %v1301
    %v4767 = vunpack.c.h.b16 %v1301
    %v4768 = vunpack.c.l.b16 %v1302
    %v4769 = vunpack.c.h.b16 %v1302
    %v4770 = vunpack.c.l.b16 %v1303
    %v4771 = vunpack.c.h.b16 %v1303
    %v4772 = vunpack.c.l.b16 %v1304
    %v4773 = vunpack.c.h.b16 %v1304
    %v4774 = vunpack.c.l.b16 %v1305
    %v4775 = vunpack.c.h.b16 %v1305
    %v4776 = vunpack.c.l.b16 %v1306
    %v4777 = vunpack.c.h.b16 %v1306
    %v4778 = vunpack.c.l.b16 %v1307
    %v4779 = vunpack.c.h.b16 %v1307
    %v4780 = vunpack.c.l.b16 %v1308
    %v4781 = vunpack.c.h.b16 %v1308
    %v4782 = vunpack.c.l.b16 %v1309
    %v4783 = vunpack.c.h.b16 %v1309
    %v4784 = vunpack.c.l.b16 %v1310
    %v4785 = vunpack.c.h.b16 %v1310
    %v4786 = vunpack.c.l.b16 %v1311
    %v4787 = vunpack.c.h.b16 %v1311
    %v4788 = vunpack.c.l.b16 %v1312
    %v4789 = vunpack.c.h.b16 %v1312
    %v4790 = vunpack.c.l.b16 %v1313
    %v4791 = vunpack.c.h.b16 %v1313
    %v4792 = vunpack.c.l.b16 %v1314
    %v4793 = vunpack.c.h.b16 %v1314
    %v4794 = vunpack.c.l.b16 %v1315
    %v4795 = vunpack.c.h.b16 %v1315
    %v4796 = vunpack.c.l.b16 %v1316
    %v4797 = vunpack.c.h.b16 %v1316
    %v4798 = vunpack.c.l.b16 %v1317
    %v4799 = vunpack.c.h.b16 %v1317
    %v4800 = vunpack.c.l.b16 %v1318
    %v4801 = vunpack.c.h.b16 %v1318
    %v4802 = vunpack.c.l.b16 %v1319
    %v4803 = vunpack.c.h.b16 %v1319
    %v4804 = vunpack.c.l.b16 %v1320
    %v4805 = vunpack.c.h.b16 %v1320
    %v4806 = vunpack.c.l.b16 %v1321
    %v4807 = vunpack.c.h.b16 %v1321
    %v4808 = vunpack.c.l.b16 %v1322
    %v4809 = vunpack.c.h.b16 %v1322
    %v4810 = vunpack.c.l.b16 %v1323
    %v4811 = vunpack.c.h.b16 %v1323
    %v4812 = vpack.c.b16 %v2514, %v2508
    %v4813 = vpack.c.b16 %v2515, %v2509
    %v4814 = vpack.c.b16 %v2516, %v2510
    %v4815 = vpack.c.b16 %v2517, %v2511
    %v4816 = vpack.c.b16 %v2518, %v2512
    %v4817 = vpack.c.b16 %v2519, %v2513
    %v4818 = vpack.c.b16 %v2526, %v2520
    %v4819 = vpack.c.b16 %v2527, %v2521
    %v4820 = vpack.c.b16 %v2528, %v2522
    %v4821 = vpack.c.b16 %v2529, %v2523
    %v4822 = vpack.c.b16 %v2530, %v2524
    %v4823 = vpack.c.b16 %v2531, %v2525
    %v4824 = vpack.c.b16 %v2538, %v2532
    %v4825 = vpack.c.b16 %v2539, %v2533
    %v4826 = vpack.c.b16 %v2540, %v2534
    %v4827 = vpack.c.b16 %v2541, %v2535
    %v4828 = vpack.c.b16 %v2542, %v2536
    %v4829 = vpack.c.b16 %v2543, %v2537
    %v4830 = vpack.c.b16 %v2550, %v2544
    %v4831 = vpack.c.b16 %v2551, %v2545
    %v4832 = vpack.c.b16 %v2552, %v2546
    %v4833 = vpack.c.b16 %v2553, %v2547
    %v4834 = vpack.c.b16 %v2554, %v2548
    %v4835 = vpack.c.b16 %v2555, %v2549
    %v4836 = vpack.c.b16 %v2562, %v2556
    %v4837 = vpack.c.b16 %v2563, %v2557
    %v4838 = vpack.c.b16 %v2564, %v2558
    %v4839 = vpack.c.b16 %v2565, %v2559
    %v4840 = vpack.c.b16 %v2566, %v2560
    %v4841 = vpack.c.b16 %v2567, %v2561
    %v4842 = vpack.c.b16 %v2574, %v2568
    %v4843 = vpack.c.b16 %v2575, %v2569
    %v4844 = vpack.c.b16 %v2576, %v2570
    %v4845 = vpack.c.b16 %v2577, %v2571
    %v4846 = vpack.c.b16 %v2578, %v2572
    %v4847 = vpack.c.b16 %v2579, %v2573
    %v4848 = vpack.c.b16 %v2586, %v2580
    %v4849 = vpack.c.b16 %v2587, %v2581
    %v4850 = vpack.c.b16 %v2588, %v2582
    %v4851 = vpack.c.b16 %v2589, %v2583
    %v4852 = vpack.c.b16 %v2590, %v2584
    %v4853 = vpack.c.b16 %v2591, %v2585
    %v4854 = vpack.c.b16 %v2598, %v2592
    %v4855 = vpack.c.b16 %v2599, %v2593
    %v4856 = vpack.c.b16 %v2600, %v2594
    %v4857 = vpack.c.b16 %v2601, %v2595
    %v4858 = vpack.c.b16 %v2602, %v2596
    %v4859 = vpack.c.b16 %v2603, %v2597
    %v4860 = vpack.c.b16 %v2610, %v2604
    %v4861 = vpack.c.b16 %v2611, %v2605
    %v4862 = vpack.c.b16 %v2612, %v2606
    %v4863 = vpack.c.b16 %v2613, %v2607
    %v4864 = vpack.c.b16 %v2614, %v2608
    %v4865 = vpack.c.b16 %v2615, %v2609
    %v4866 = vpack.c.b16 %v2622, %v2616
    %v4867 = vpack.c.b16 %v2623, %v2617
    %v4868 = vpack.c.b16 %v2624, %v2618
    %v4869 = vpack.c.b16 %v2625, %v2619
    %v4870 = vpack.c.b16 %v2626, %v2620
    %v4871 = vpack.c.b16 %v2627, %v2621
    %v4872 = vpack.c.b16 %v2634, %v2628
    %v4873 = vpack.c.b16 %v2635, %v2629
    %v4874 = vpack.c.b16 %v2636, %v2630
    %v4875 = vpack.c.b16 %v2637, %v2631
    %v4876 = vpack.c.b16 %v2638, %v2632
    %v4877 = vpack.c.b16 %v2639, %v2633
    %v4878 = vpack.c.b16 %v2646, %v2640
    %v4879 = vpack.c.b16 %v2647, %v2641
    %v4880 = vpack.c.b16 %v2648, %v2642
    %v4881 = vpack.c.b16 %v2649, %v2643
    %v4882 = vpack.c.b16 %v2650, %v2644
    %v4883 = vpack.c.b16 %v2651, %v2645
    %v4884 = vpack.c.b16 %v2658, %v2652
    %v4885 = vpack.c.b16 %v2659, %v2653
    %v4886 = vpack.c.b16 %v2660, %v2654
    %v4887 = vpack.c.b16 %v2661, %v2655
    %v4888 = vpack.c.b16 %v2662, %v2656
    %v4889 = vpack.c.b16 %v2663, %v2657
    %v4890 = vpack.c.b16 %v2670, %v2664
    %v4891 = vpack.c.b16 %v2671, %v2665
    %v4892 = vpack.c.b16 %v2672, %v2666
    %v4893 = vpack.c.b16 %v2673, %v2667
    %v4894 = vpack.c.b16 %v2674, %v2668
    %v4895 = vpack.c.b16 %v2675, %v2669
    %v4896 = vpack.c.b16 %v2682, %v2676
    %v4897 = vpack.c.b16 %v2683, %v2677
    %v4898 = vpack.c.b16 %v2684, %v2678
    %v4899 = vpack.c.b16 %v2685, %v2679
    %v4900 = vpack.c.b16 %v2686, %v2680
    %v4901 = vpack.c.b16 %v2687, %v2681
    %v4902 = vpack.c.b16 %v2694, %v2688
    %v4903 = vpack.c.b16 %v2695, %v2689
    %v4904 = vpack.c.b16 %v2696, %v2690
    %v4905 = vpack.c.b16 %v2697, %v2691
    %v4906 = vpack.c.b16 %v2698, %v2692
    %v4907 = vpack.c.b16 %v2699, %v2693
    %v4908 = vpack.c.b16 %v2706, %v2700
    %v4909 = vpack.c.b16 %v2707, %v2701
    %v4910 = vpack.c.b16 %v2708, %v2702
    %v4911 = vpack.c.b16 %v2709, %v2703
    %v4912 = vpack.c.b16 %v2710, %v2704
    %v4913 = vpack.c.b16 %v2711, %v2705
    %v4914 = vpack.c.b16 %v2718, %v2712
    %v4915 = vpack.c.b16 %v2719, %v2713
    %v4916 = vpack.c.b16 %v2720, %v2714
    %v4917 = vpack.c.b16 %v2721, %v2715
    %v4918 = vpack.c.b16 %v2722, %v2716
    %v4919 = vpack.c.b16 %v2723, %v2717
    %v4920 = vpack.c.b16 %v2730, %v2724
    %v4921 = vpack.c.b16 %v2731, %v2725
    %v4922 = vpack.c.b16 %v2732, %v2726
    %v4923 = vpack.c.b16 %v2733, %v2727
    %v4924 = vpack.c.b16 %v2734, %v2728
    %v4925 = vpack.c.b16 %v2735, %v2729
    %v4926 = vpack.c.b16 %v2742, %v2736
    %v4927 = vpack.c.b16 %v2743, %v2737
    %v4928 = vpack.c.b16 %v2744, %v2738
    %v4929 = vpack.c.b16 %v2745, %v2739
    %v4930 = vpack.c.b16 %v2746, %v2740
    %v4931 = vpack.c.b16 %v2747, %v2741
    %v4932 = vpack.c.b16 %v2754, %v2748
    %v4933 = vpack.c.b16 %v2755, %v2749
    %v4934 = vpack.c.b16 %v2756, %v2750
    %v4935 = vpack.c.b16 %v2757, %v2751
    %v4936 = vpack.c.b16 %v2758, %v2752
    %v4937 = vpack.c.b16 %v2759, %v2753
    %v4938 = vpack.c.b16 %v2766, %v2760
    %v4939 = vpack.c.b16 %v2767, %v2761
    %v4940 = vpack.c.b16 %v2768, %v2762
    %v4941 = vpack.c.b16 %v2769, %v2763
    %v4942 = vpack.c.b16 %v2770, %v2764
    %v4943 = vpack.c.b16 %v2771, %v2765
    %v4944 = vpack.c.b16 %v2778, %v2772
    %v4945 = vpack.c.b16 %v2779, %v2773
    %v4946 = vpack.c.b16 %v2780, %v2774
    %v4947 = vpack.c.b16 %v2781, %v2775
    %v4948 = vpack.c.b16 %v2782, %v2776
    %v4949 = vpack.c.b16 %v2783, %v2777
    %v4950 = vpack.c.b16 %v2790, %v2784
    %v4951 = vpack.c.b16 %v2791, %v2785
    %v4952 = vpack.c.b16 %v2792, %v2786
    %v4953 = vpack.c.b16 %v2793, %v2787
    %v4954 = vpack.c.b16 %v2794, %v2788
    %v4955 = vpack.c.b16 %v2795, %v2789
    %v4956 = vpack.c.b16 %v2802, %v2796
    %v4957 = vpack.c.b16 %v2803, %v2797
    %v4958 = vpack.c.b16 %v2804, %v2798
    %v4959 = vpack.c.b16 %v2805, %v2799
    %v4960 = vpack.c.b16 %v2806, %v2800
    %v4961 = vpack.c.b16 %v2807, %v2801
    %v4962 = vpack.c.b16 %v2814, %v2808
    %v4963 = vpack.c.b16 %v2815, %v2809
    %v4964 = vpack.c.b16 %v2816, %v2810
    %v4965 = vpack.c.b16 %v2817, %v2811
    %v4966 = vpack.c.b16 %v2818, %v2812
    %v4967 = vpack.c.b16 %v2819, %v2813
    %v4968 = vpack.c.b16 %v2826, %v2820
    %v4969 = vpack.c.b16 %v2827, %v2821
    %v4970 = vpack.c.b16 %v2828, %v2822
    %v4971 = vpack.c.b16 %v2829, %v2823
    %v4972 = vpack.c.b16 %v2830, %v2824
    %v4973 = vpack.c.b16 %v2831, %v2825
    %v4974 = vpack.c.b16 %v2838, %v2832
    %v4975 = vpack.c.b16 %v2839, %v2833
    %v4976 = vpack.c.b16 %v2840, %v2834
    %v4977 = vpack.c.b16 %v2841, %v2835
    %v4978 = vpack.c.b16 %v2842, %v2836
    %v4979 = vpack.c.b16 %v2843, %v2837
    %v4980 = vpack.c.b16 %v2850, %v2844
    %v4981 = vpack.c.b16 %v2851, %v2845
    %v4982 = vpack.c.b16 %v2852, %v2846
    %v4983 = vpack.c.b16 %v2853, %v2847
    %v4984 = vpack.c.b16 %v2854, %v2848
    %v4985 = vpack.c.b16 %v2855, %v2849
    %v4986 = vpack.c.b16 %v2862, %v2856
    %v4987 = vpack.c.b16 %v2863, %v2857
    %v4988 = vpack.c.b16 %v2864, %v2858
    %v4989 = vpack.c.b16 %v2865, %v2859
    %v4990 = vpack.c.b16 %v2866, %v2860
    %v4991 = vpack.c.b16 %v2867, %v2861
    %v4992 = vpack.c.b16 %v2874, %v2868
    %v4993 = vpack.c.b16 %v2875, %v2869
    %v4994 = vpack.c.b16 %v2876, %v2870
    %v4995 = vpack.c.b16 %v2877, %v2871
    %v4996 = vpack.c.b16 %v2878, %v2872
    %v4997 = vpack.c.b16 %v2879, %v2873
    %v4998 = vpack.c.b16 %v2886, %v2880
    %v4999 = vpack.c.b16 %v2887, %v2881
    %v5000 = vpack.c.b16 %v2888, %v2882
    %v5001 = vpack.c.b16 %v2889, %v2883
    %v5002 = vpack.c.b16 %v2890, %v2884
    %v5003 = vpack.c.b16 %v2891, %v2885
    %v5004 = vpack.c.b16 %v2898, %v2892
    %v5005 = vpack.c.b16 %v2899, %v2893
    %v5006 = vpack.c.b16 %v2900, %v2894
    %v5007 = vpack.c.b16 %v2901, %v2895
    %v5008 = vpack.c.b16 %v2902, %v2896
    %v5009 = vpack.c.b16 %v2903, %v2897
    %v5010 = vpack.c.b16 %v2910, %v2904
    %v5011 = vpack.c.b16 %v2911, %v2905
    %v5012 = vpack.c.b16 %v2912, %v2906
    %v5013 = vpack.c.b16 %v2913, %v2907
    %v5014 = vpack.c.b16 %v2914, %v2908
    %v5015 = vpack.c.b16 %v2915, %v2909
    %v5016 = vpack.c.b16 %v2922, %v2916
    %v5017 = vpack.c.b16 %v2923, %v2917
    %v5018 = vpack.c.b16 %v2924, %v2918
    %v5019 = vpack.c.b16 %v2925, %v2919
    %v5020 = vpack.c.b16 %v2926, %v2920
    %v5021 = vpack.c.b16 %v2927, %v2921
    %v5022 = vpack.c.b16 %v2934, %v2928
    %v5023 = vpack.c.b16 %v2935, %v2929
    %v5024 = vpack.c.b16 %v2936, %v2930
    %v5025 = vpack.c.b16 %v2937, %v2931
    %v5026 = vpack.c.b16 %v2938, %v2932
    %v5027 = vpack.c.b16 %v2939, %v2933
    %v5028 = vpack.c.b16 %v2946, %v2940
    %v5029 = vpack.c.b16 %v2947, %v2941
    %v5030 = vpack.c.b16 %v2948, %v2942
    %v5031 = vpack.c.b16 %v2949, %v2943
    %v5032 = vpack.c.b16 %v2950, %v2944
    %v5033 = vpack.c.b16 %v2951, %v2945
    %v5034 = vpack.c.b16 %v2958, %v2952
    %v5035 = vpack.c.b16 %v2959, %v2953
    %v5036 = vpack.c.b16 %v2960, %v2954
    %v5037 = vpack.c.b16 %v2961, %v2955
    %v5038 = vpack.c.b16 %v2962, %v2956
    %v5039 = vpack.c.b16 %v2963, %v2957
    %v5040 = vpack.c.b16 %v2970, %v2964
    %v5041 = vpack.c.b16 %v2971, %v2965
    %v5042 = vpack.c.b16 %v2972, %v2966
    %v5043 = vpack.c.b16 %v2973, %v2967
    %v5044 = vpack.c.b16 %v2974, %v2968
    %v5045 = vpack.c.b16 %v2975, %v2969
    %v5046 = vpack.c.b16 %v2982, %v2976
    %v5047 = vpack.c.b16 %v2983, %v2977
    %v5048 = vpack.c.b16 %v2984, %v2978
    %v5049 = vpack.c.b16 %v2985, %v2979
    %v5050 = vpack.c.b16 %v2986, %v2980
    %v5051 = vpack.c.b16 %v2987, %v2981
    %v5052 = vpack.c.b16 %v2994, %v2988
    %v5053 = vpack.c.b16 %v2995, %v2989
    %v5054 = vpack.c.b16 %v2996, %v2990
    %v5055 = vpack.c.b16 %v2997, %v2991
    %v5056 = vpack.c.b16 %v2998, %v2992
    %v5057 = vpack.c.b16 %v2999, %v2993
    %v5058 = vpack.c.b16 %v3006, %v3000
    %v5059 = vpack.c.b16 %v3007, %v3001
    %v5060 = vpack.c.b16 %v3008, %v3002
    %v5061 = vpack.c.b16 %v3009, %v3003
    %v5062 = vpack.c.b16 %v3010, %v3004
    %v5063 = vpack.c.b16 %v3011, %v3005
    %v5064 = vpack.c.b16 %v3018, %v3012
    %v5065 = vpack.c.b16 %v3019, %v3013
    %v5066 = vpack.c.b16 %v3020, %v3014
    %v5067 = vpack.c.b16 %v3021, %v3015
    %v5068 = vpack.c.b16 %v3022, %v3016
    %v5069 = vpack.c.b16 %v3023, %v3017
    %v5070 = vpack.c.b16 %v3030, %v3024
    %v5071 = vpack.c.b16 %v3031, %v3025
    %v5072 = vpack.c.b16 %v3032, %v3026
    %v5073 = vpack.c.b16 %v3033, %v3027
    %v5074 = vpack.c.b16 %v3034, %v3028
    %v5075 = vpack.c.b16 %v3035, %v3029
    %v5076 = vpack.c.b16 %v3042, %v3036
    %v5077 = vpack.c.b16 %v3043, %v3037
    %v5078 = vpack.c.b16 %v3044, %v3038
    %v5079 = vpack.c.b16 %v3045, %v3039
    %v5080 = vpack.c.b16 %v3046, %v3040
    %v5081 = vpack.c.b16 %v3047, %v3041
    %v5082 = vpack.c.b16 %v3054, %v3048
    %v5083 = vpack.c.b16 %v3055, %v3049
    %v5084 = vpack.c.b16 %v3056, %v3050
    %v5085 = vpack.c.b16 %v3057, %v3051
    %v5086 = vpack.c.b16 %v3058, %v3052
    %v5087 = vpack.c.b16 %v3059, %v3053
    %v5088 = vpack.c.b16 %v3066, %v3060
    %v5089 = vpack.c.b16 %v3067, %v3061
    %v5090 = vpack.c.b16 %v3068, %v3062
    %v5091 = vpack.c.b16 %v3069, %v3063
    %v5092 = vpack.c.b16 %v3070, %v3064
    %v5093 = vpack.c.b16 %v3071, %v3065
    %v5094 = vpack.c.b16 %v3078, %v3072
    %v5095 = vpack.c.b16 %v3079, %v3073
    %v5096 = vpack.c.b16 %v3080, %v3074
    %v5097 = vpack.c.b16 %v3081, %v3075
    %v5098 = vpack.c.b16 %v3082, %v3076
    %v5099 = vpack.c.b16 %v3083, %v3077
    %v5100 = vpack.c.b16 %v3090, %v3084
    %v5101 = vpack.c.b16 %v3091, %v3085
    %v5102 = vpack.c.b16 %v3092, %v3086
    %v5103 = vpack.c.b16 %v3093, %v3087
    %v5104 = vpack.c.b16 %v3094, %v3088
    %v5105 = vpack.c.b16 %v3095, %v3089
    %v5106 = vpack.c.b16 %v3102, %v3096
    %v5107 = vpack.c.b16 %v3103, %v3097
    %v5108 = vpack.c.b16 %v3104, %v3098
    %v5109 = vpack.c.b16 %v3105, %v3099
    %v5110 = vpack.c.b16 %v3106, %v3100
    %v5111 = vpack.c.b16 %v3107, %v3101
    %v5112 = vpack.c.b16 %v3114, %v3108
    %v5113 = vpack.c.b16 %v3115, %v3109
    %v5114 = vpack.c.b16 %v3116, %v3110
    %v5115 = vpack.c.b16 %v3117, %v3111
    %v5116 = vpack.c.b16 %v3118, %v3112
    %v5117 = vpack.c.b16 %v3119, %v3113
    %v5118 = vpack.c.b16 %v3126, %v3120
    %v5119 = vpack.c.b16 %v3127, %v3121
    %v5120 = vpack.c.b16 %v3128, %v3122
    %v5121 = vpack.c.b16 %v3129, %v3123
    %v5122 = vpack.c.b16 %v3130, %v3124
    %v5123 = vpack.c.b16 %v3131, %v3125
    %v5124 = vpack.c.b16 %v3138, %v3132
    %v5125 = vpack.c.b16 %v3139, %v3133
    %v5126 = vpack.c.b16 %v3140, %v3134
    %v5127 = vpack.c.b16 %v3141, %v3135
    %v5128 = vpack.c.b16 %v3142, %v3136
    %v5129 = vpack.c.b16 %v3143, %v3137
    %v5130 = vpack.c.b16 %v3150, %v3144
    %v5131 = vpack.c.b16 %v3151, %v3145
    %v5132 = vpack.c.b16 %v3152, %v3146
    %v5133 = vpack.c.b16 %v3153, %v3147
    %v5134 = vpack.c.b16 %v3154, %v3148
    %v5135 = vpack.c.b16 %v3155, %v3149
    %v5136 = vpack.c.b16 %v3162, %v3156
    %v5137 = vpack.c.b16 %v3163, %v3157
    %v5138 = vpack.c.b16 %v3164, %v3158
    %v5139 = vpack.c.b16 %v3165, %v3159
    %v5140 = vpack.c.b16 %v3166, %v3160
    %v5141 = vpack.c.b16 %v3167, %v3161
    %v5142 = vpack.c.b16 %v3174, %v3168
    %v5143 = vpack.c.b16 %v3175, %v3169
    %v5144 = vpack.c.b16 %v3176, %v3170
    %v5145 = vpack.c.b16 %v3177, %v3171
    %v5146 = vpack.c.b16 %v3178, %v3172
    %v5147 = vpack.c.b16 %v3179, %v3173
    %v5148 = vpack.c.b16 %v3186, %v3180
    %v5149 = vpack.c.b16 %v3187, %v3181
    %v5150 = vpack.c.b16 %v3188, %v3182
    %v5151 = vpack.c.b16 %v3189, %v3183
    %v5152 = vpack.c.b16 %v3190, %v3184
    %v5153 = vpack.c.b16 %v3191, %v3185
    %v5154 = vpack.c.b16 %v3198, %v3192
    %v5155 = vpack.c.b16 %v3199, %v3193
    %v5156 = vpack.c.b16 %v3200, %v3194
    %v5157 = vpack.c.b16 %v3201, %v3195
    %v5158 = vpack.c.b16 %v3202, %v3196
    %v5159 = vpack.c.b16 %v3203, %v3197
    %v5160 = vpack.c.b16 %v3210, %v3204
    %v5161 = vpack.c.b16 %v3211, %v3205
    %v5162 = vpack.c.b16 %v3212, %v3206
    %v5163 = vpack.c.b16 %v3213, %v3207
    %v5164 = vpack.c.b16 %v3214, %v3208
    %v5165 = vpack.c.b16 %v3215, %v3209
    %v5166 = vpack.c.b16 %v3222, %v3216
    %v5167 = vpack.c.b16 %v3223, %v3217
    %v5168 = vpack.c.b16 %v3224, %v3218
    %v5169 = vpack.c.b16 %v3225, %v3219
    %v5170 = vpack.c.b16 %v3226, %v3220
    %v5171 = vpack.c.b16 %v3227, %v3221
    %v5172 = vpack.c.b16 %v3234, %v3228
    %v5173 = vpack.c.b16 %v3235, %v3229
    %v5174 = vpack.c.b16 %v3236, %v3230
    %v5175 = vpack.c.b16 %v3237, %v3231
    %v5176 = vpack.c.b16 %v3238, %v3232
    %v5177 = vpack.c.b16 %v3239, %v3233
    %v5178 = vpack.c.b16 %v3246, %v3240
    %v5179 = vpack.c.b16 %v3247, %v3241
    %v5180 = vpack.c.b16 %v3248, %v3242
    %v5181 = vpack.c.b16 %v3249, %v3243
    %v5182 = vpack.c.b16 %v3250, %v3244
    %v5183 = vpack.c.b16 %v3251, %v3245
    %v5184 = vpack.c.b16 %v3258, %v3252
    %v5185 = vpack.c.b16 %v3259, %v3253
    %v5186 = vpack.c.b16 %v3260, %v3254
    %v5187 = vpack.c.b16 %v3261, %v3255
    %v5188 = vpack.c.b16 %v3262, %v3256
    %v5189 = vpack.c.b16 %v3263, %v3257
    %v5190 = vpack.c.b16 %v3270, %v3264
    %v5191 = vpack.c.b16 %v3271, %v3265
    %v5192 = vpack.c.b16 %v3272, %v3266
    %v5193 = vpack.c.b16 %v3273, %v3267
    %v5194 = vpack.c.b16 %v3274, %v3268
    %v5195 = vpack.c.b16 %v3275, %v3269
    %v5196 = vpack.c.b16 %v3282, %v3276
    %v5197 = vpack.c.b16 %v3283, %v3277
    %v5198 = vpack.c.b16 %v3284, %v3278
    %v5199 = vpack.c.b16 %v3285, %v3279
    %v5200 = vpack.c.b16 %v3286, %v3280
    %v5201 = vpack.c.b16 %v3287, %v3281
    %v5202 = vpack.c.b16 %v3294, %v3288
    %v5203 = vpack.c.b16 %v3295, %v3289
    %v5204 = vpack.c.b16 %v3296, %v3290
    %v5205 = vpack.c.b16 %v3297, %v3291
    %v5206 = vpack.c.b16 %v3298, %v3292
    %v5207 = vpack.c.b16 %v3299, %v3293
    %v5208 = vpack.c.b16 %v3306, %v3300
    %v5209 = vpack.c.b16 %v3307, %v3301
    %v5210 = vpack.c.b16 %v3308, %v3302
    %v5211 = vpack.c.b16 %v3309, %v3303
    %v5212 = vpack.c.b16 %v3310, %v3304
    %v5213 = vpack.c.b16 %v3311, %v3305
    %v5214 = vpack.c.b16 %v3318, %v3312
    %v5215 = vpack.c.b16 %v3319, %v3313
    %v5216 = vpack.c.b16 %v3320, %v3314
    %v5217 = vpack.c.b16 %v3321, %v3315
    %v5218 = vpack.c.b16 %v3322, %v3316
    %v5219 = vpack.c.b16 %v3323, %v3317
    %v5220 = vpack.c.b16 %v3330, %v3324
    %v5221 = vpack.c.b16 %v3331, %v3325
    %v5222 = vpack.c.b16 %v3332, %v3326
    %v5223 = vpack.c.b16 %v3333, %v3327
    %v5224 = vpack.c.b16 %v3334, %v3328
    %v5225 = vpack.c.b16 %v3335, %v3329
    %v5226 = vpack.c.b16 %v3342, %v3336
    %v5227 = vpack.c.b16 %v3343, %v3337
    %v5228 = vpack.c.b16 %v3344, %v3338
    %v5229 = vpack.c.b16 %v3345, %v3339
    %v5230 = vpack.c.b16 %v3346, %v3340
    %v5231 = vpack.c.b16 %v3347, %v3341
    %v5232 = vpack.c.b16 %v3354, %v3348
    %v5233 = vpack.c.b16 %v3355, %v3349
    %v5234 = vpack.c.b16 %v3356, %v3350
    %v5235 = vpack.c.b16 %v3357, %v3351
    %v5236 = vpack.c.b16 %v3358, %v3352
    %v5237 = vpack.c.b16 %v3359, %v3353
    %v5238 = vpack.c.b16 %v3366, %v3360
    %v5239 = vpack.c.b16 %v3367, %v3361
    %v5240 = vpack.c.b16 %v3368, %v3362
    %v5241 = vpack.c.b16 %v3369, %v3363
    %v5242 = vpack.c.b16 %v3370, %v3364
    %v5243 = vpack.c.b16 %v3371, %v3365
    %v5244 = vpack.c.b16 %v3378, %v3372
    %v5245 = vpack.c.b16 %v3379, %v3373
    %v5246 = vpack.c.b16 %v3380, %v3374
    %v5247 = vpack.c.b16 %v3381, %v3375
    %v5248 = vpack.c.b16 %v3382, %v3376
    %v5249 = vpack.c.b16 %v3383, %v3377
    %v5250 = vpack.c.b16 %v3390, %v3384
    %v5251 = vpack.c.b16 %v3391, %v3385
    %v5252 = vpack.c.b16 %v3392, %v3386
    %v5253 = vpack.c.b16 %v3393, %v3387
    %v5254 = vpack.c.b16 %v3394, %v3388
    %v5255 = vpack.c.b16 %v3395, %v3389
    %v5256 = vpack.c.b16 %v3402, %v3396
    %v5257 = vpack.c.b16 %v3403, %v3397
    %v5258 = vpack.c.b16 %v3404, %v3398
    %v5259 = vpack.c.b16 %v3405, %v3399
    %v5260 = vpack.c.b16 %v3406, %v3400
    %v5261 = vpack.c.b16 %v3407, %v3401
    %v5262 = vpack.c.b16 %v3414, %v3408
    %v5263 = vpack.c.b16 %v3415, %v3409
    %v5264 = vpack.c.b16 %v3416, %v3410
    %v5265 = vpack.c.b16 %v3417, %v3411
    %v5266 = vpack.c.b16 %v3418, %v3412
    %v5267 = vpack.c.b16 %v3419, %v3413
    %v5268 = vpack.c.b16 %v3426, %v3420
    %v5269 = vpack.c.b16 %v3427, %v3421
    %v5270 = vpack.c.b16 %v3428, %v3422
    %v5271 = vpack.c.b16 %v3429, %v3423
    %v5272 = vpack.c.b16 %v3430, %v3424
    %v5273 = vpack.c.b16 %v3431, %v3425
    %v5274 = vpack.c.b16 %v3438, %v3432
    %v5275 = vpack.c.b16 %v3439, %v3433
    %v5276 = vpack.c.b16 %v3440, %v3434
    %v5277 = vpack.c.b16 %v3441, %v3435
    %v5278 = vpack.c.b16 %v3442, %v3436
    %v5279 = vpack.c.b16 %v3443, %v3437
    %v5280 = vpack.c.b16 %v3450, %v3444
    %v5281 = vpack.c.b16 %v3451, %v3445
    %v5282 = vpack.c.b16 %v3452, %v3446
    %v5283 = vpack.c.b16 %v3453, %v3447
    %v5284 = vpack.c.b16 %v3454, %v3448
    %v5285 = vpack.c.b16 %v3455, %v3449
    %v5286 = vpack.c.b16 %v3462, %v3456
    %v5287 = vpack.c.b16 %v3463, %v3457
    %v5288 = vpack.c.b16 %v3464, %v3458
    %v5289 = vpack.c.b16 %v3465, %v3459
    %v5290 = vpack.c.b16 %v3466, %v3460
    %v5291 = vpack.c.b16 %v3467, %v3461
    %v5292 = vpack.c.b16 %v3474, %v3468
    %v5293 = vpack.c.b16 %v3475, %v3469
    %v5294 = vpack.c.b16 %v3476, %v3470
    %v5295 = vpack.c.b16 %v3477, %v3471
    %v5296 = vpack.c.b16 %v3478, %v3472
    %v5297 = vpack.c.b16 %v3479, %v3473
    %v5298 = vpack.c.b16 %v3486, %v3480
    %v5299 = vpack.c.b16 %v3487, %v3481
    %v5300 = vpack.c.b16 %v3488, %v3482
    %v5301 = vpack.c.b16 %v3489, %v3483
    %v5302 = vpack.c.b16 %v3490, %v3484
    %v5303 = vpack.c.b16 %v3491, %v3485
    %v5304 = vpack.c.b16 %v3498, %v3492
    %v5305 = vpack.c.b16 %v3499, %v3493
    %v5306 = vpack.c.b16 %v3500, %v3494
    %v5307 = vpack.c.b16 %v3501, %v3495
    %v5308 = vpack.c.b16 %v3502, %v3496
    %v5309 = vpack.c.b16 %v3503, %v3497
    %v5310 = vpack.c.b16 %v3510, %v3504
    %v5311 = vpack.c.b16 %v3511, %v3505
    %v5312 = vpack.c.b16 %v3512, %v3506
    %v5313 = vpack.c.b16 %v3513, %v3507
    %v5314 = vpack.c.b16 %v3514, %v3508
    %v5315 = vpack.c.b16 %v3515, %v3509
    %v5316 = vpack.c.b16 %v3522, %v3516
    %v5317 = vpack.c.b16 %v3523, %v3517
    %v5318 = vpack.c.b16 %v3524, %v3518
    %v5319 = vpack.c.b16 %v3525, %v3519
    %v5320 = vpack.c.b16 %v3526, %v3520
    %v5321 = vpack.c.b16 %v3527, %v3521
    %v5322 = vpack.c.b16 %v3534, %v3528
    %v5323 = vpack.c.b16 %v3535, %v3529
    %v5324 = vpack.c.b16 %v3536, %v3530
    %v5325 = vpack.c.b16 %v3537, %v3531
    %v5326 = vpack.c.b16 %v3538, %v3532
    %v5327 = vpack.c.b16 %v3539, %v3533
    %v5328 = vpack.c.b16 %v3546, %v3540
    %v5329 = vpack.c.b16 %v3547, %v3541
    %v5330 = vpack.c.b16 %v3548, %v3542
    %v5331 = vpack.c.b16 %v3549, %v3543
    %v5332 = vpack.c.b16 %v3550, %v3544
    %v5333 = vpack.c.b16 %v3551, %v3545
    %v5334 = vpack.c.b16 %v3558, %v3552
    %v5335 = vpack.c.b16 %v3559, %v3553
    %v5336 = vpack.c.b16 %v3560, %v3554
    %v5337 = vpack.c.b16 %v3561, %v3555
    %v5338 = vpack.c.b16 %v3562, %v3556
    %v5339 = vpack.c.b16 %v3563, %v3557
    %v5340 = vpack.c.b16 %v3570, %v3564
    %v5341 = vpack.c.b16 %v3571, %v3565
    %v5342 = vpack.c.b16 %v3572, %v3566
    %v5343 = vpack.c.b16 %v3573, %v3567
    %v5344 = vpack.c.b16 %v3574, %v3568
    %v5345 = vpack.c.b16 %v3575, %v3569
    %v5346 = vpack.c.b16 %v3582, %v3576
    %v5347 = vpack.c.b16 %v3583, %v3577
    %v5348 = vpack.c.b16 %v3584, %v3578
    %v5349 = vpack.c.b16 %v3585, %v3579
    %v5350 = vpack.c.b16 %v3586, %v3580
    %v5351 = vpack.c.b16 %v3587, %v3581
    %v5352 = vpack.c.b16 %v3594, %v3588
    %v5353 = vpack.c.b16 %v3595, %v3589
    %v5354 = vpack.c.b16 %v3596, %v3590
    %v5355 = vpack.c.b16 %v3597, %v3591
    %v5356 = vpack.c.b16 %v3598, %v3592
    %v5357 = vpack.c.b16 %v3599, %v3593
    %v5358 = vpack.c.b16 %v3606, %v3600
    %v5359 = vpack.c.b16 %v3607, %v3601
    %v5360 = vpack.c.b16 %v3608, %v3602
    %v5361 = vpack.c.b16 %v3609, %v3603
    %v5362 = vpack.c.b16 %v3610, %v3604
    %v5363 = vpack.c.b16 %v3611, %v3605
    %v5364 = vpack.c.b16 %v3618, %v3612
    %v5365 = vpack.c.b16 %v3619, %v3613
    %v5366 = vpack.c.b16 %v3620, %v3614
    %v5367 = vpack.c.b16 %v3621, %v3615
    %v5368 = vpack.c.b16 %v3622, %v3616
    %v5369 = vpack.c.b16 %v3623, %v3617
    %v5370 = vpack.c.b16 %v3630, %v3624
    %v5371 = vpack.c.b16 %v3631, %v3625
    %v5372 = vpack.c.b16 %v3632, %v3626
    %v5373 = vpack.c.b16 %v3633, %v3627
    %v5374 = vpack.c.b16 %v3634, %v3628
    %v5375 = vpack.c.b16 %v3635, %v3629
    %v5376 = vpack.c.b16 %v3642, %v3636
    %v5377 = vpack.c.b16 %v3643, %v3637
    %v5378 = vpack.c.b16 %v3644, %v3638
    %v5379 = vpack.c.b16 %v3645, %v3639
    %v5380 = vpack.c.b16 %v3646, %v3640
    %v5381 = vpack.c.b16 %v3647, %v3641
    %v5382 = vpack.c.b16 %v3654, %v3648
    %v5383 = vpack.c.b16 %v3655, %v3649
    %v5384 = vpack.c.b16 %v3656, %v3650
    %v5385 = vpack.c.b16 %v3657, %v3651
    %v5386 = vpack.c.b16 %v3658, %v3652
    %v5387 = vpack.c.b16 %v3659, %v3653
    %v5388 = vpack.c.b16 %v3666, %v3660
    %v5389 = vpack.c.b16 %v3667, %v3661
    %v5390 = vpack.c.b16 %v3668, %v3662
    %v5391 = vpack.c.b16 %v3669, %v3663
    %v5392 = vpack.c.b16 %v3670, %v3664
    %v5393 = vpack.c.b16 %v3671, %v3665
    %v5394 = vpack.c.b16 %v3678, %v3672
    %v5395 = vpack.c.b16 %v3679, %v3673
    %v5396 = vpack.c.b16 %v3680, %v3674
    %v5397 = vpack.c.b16 %v3681, %v3675
    %v5398 = vpack.c.b16 %v3682, %v3676
    %v5399 = vpack.c.b16 %v3683, %v3677
    %v5400 = vpack.c.b16 %v3690, %v3684
    %v5401 = vpack.c.b16 %v3691, %v3685
    %v5402 = vpack.c.b16 %v3692, %v3686
    %v5403 = vpack.c.b16 %v3693, %v3687
    %v5404 = vpack.c.b16 %v3694, %v3688
    %v5405 = vpack.c.b16 %v3695, %v3689
    %v5406 = vpack.c.b16 %v3702, %v3696
    %v5407 = vpack.c.b16 %v3703, %v3697
    %v5408 = vpack.c.b16 %v3704, %v3698
    %v5409 = vpack.c.b16 %v3705, %v3699
    %v5410 = vpack.c.b16 %v3706, %v3700
    %v5411 = vpack.c.b16 %v3707, %v3701
    %v5412 = vpack.c.b16 %v3714, %v3708
    %v5413 = vpack.c.b16 %v3715, %v3709
    %v5414 = vpack.c.b16 %v3716, %v3710
    %v5415 = vpack.c.b16 %v3717, %v3711
    %v5416 = vpack.c.b16 %v3718, %v3712
    %v5417 = vpack.c.b16 %v3719, %v3713
    %v5418 = vpack.c.b16 %v3726, %v3720
    %v5419 = vpack.c.b16 %v3727, %v3721
    %v5420 = vpack.c.b16 %v3728, %v3722
    %v5421 = vpack.c.b16 %v3729, %v3723
    %v5422 = vpack.c.b16 %v3730, %v3724
    %v5423 = vpack.c.b16 %v3731, %v3725
    %v5424 = vpack.c.b16 %v3738, %v3732
    %v5425 = vpack.c.b16 %v3739, %v3733
    %v5426 = vpack.c.b16 %v3740, %v3734
    %v5427 = vpack.c.b16 %v3741, %v3735
    %v5428 = vpack.c.b16 %v3742, %v3736
    %v5429 = vpack.c.b16 %v3743, %v3737
    %v5430 = vpack.c.b16 %v3750, %v3744
    %v5431 = vpack.c.b16 %v3751, %v3745
    %v5432 = vpack.c.b16 %v3752, %v3746
    %v5433 = vpack.c.b16 %v3753, %v3747
    %v5434 = vpack.c.b16 %v3754, %v3748
    %v5435 = vpack.c.b16 %v3755, %v3749
    %v5436 = vpack.c.b16 %v3762, %v3756
    %v5437 = vpack.c.b16 %v3763, %v3757
    %v5438 = vpack.c.b16 %v3764, %v3758
    %v5439 = vpack.c.b16 %v3765, %v3759
    %v5440 = vpack.c.b16 %v3766, %v3760
    %v5441 = vpack.c.b16 %v3767, %v3761
    %v5442 = vpack.c.b16 %v3774, %v3768
    %v5443 = vpack.c.b16 %v3775, %v3769
    %v5444 = vpack.c.b16 %v3776, %v3770
    %v5445 = vpack.c.b16 %v3777, %v3771
    %v5446 = vpack.c.b16 %v3778, %v3772
    %v5447 = vpack.c.b16 %v3779, %v3773
    %v5448 = vpack.c.b16 %v3786, %v3780
    %v5449 = vpack.c.b16 %v3787, %v3781
    %v5450 = vpack.c.b16 %v3788, %v3782
    %v5451 = vpack.c.b16 %v3789, %v3783
    %v5452 = vpack.c.b16 %v3790, %v3784
    %v5453 = vpack.c.b16 %v3791, %v3785
    %v5454 = vpack.c.b16 %v3798, %v3792
    %v5455 = vpack.c.b16 %v3799, %v3793
    %v5456 = vpack.c.b16 %v3800, %v3794
    %v5457 = vpack.c.b16 %v3801, %v3795
    %v5458 = vpack.c.b16 %v3802, %v3796
    %v5459 = vpack.c.b16 %v3803, %v3797
    %v5460 = vpack.c.b16 %v3810, %v3804
    %v5461 = vpack.c.b16 %v3811, %v3805
    %v5462 = vpack.c.b16 %v3812, %v3806
    %v5463 = vpack.c.b16 %v3813, %v3807
    %v5464 = vpack.c.b16 %v3814, %v3808
    %v5465 = vpack.c.b16 %v3815, %v3809
    %v5466 = vpack.c.b16 %v3822, %v3816
    %v5467 = vpack.c.b16 %v3823, %v3817
    %v5468 = vpack.c.b16 %v3824, %v3818
    %v5469 = vpack.c.b16 %v3825, %v3819
    %v5470 = vpack.c.b16 %v3826, %v3820
    %v5471 = vpack.c.b16 %v3827, %v3821
    %v5472 = vpack.c.b16 %v3834, %v3828
    %v5473 = vpack.c.b16 %v3835, %v3829
    %v5474 = vpack.c.b16 %v3836, %v3830
    %v5475 = vpack.c.b16 %v3837, %v3831
    %v5476 = vpack.c.b16 %v3838, %v3832
    %v5477 = vpack.c.b16 %v3839, %v3833
    %v5478 = vpack.c.b16 %v3846, %v3840
    %v5479 = vpack.c.b16 %v3847, %v3841
    %v5480 = vpack.c.b16 %v3848, %v3842
    %v5481 = vpack.c.b16 %v3849, %v3843
    %v5482 = vpack.c.b16 %v3850, %v3844
    %v5483 = vpack.c.b16 %v3851, %v3845
    %v5484 = vpack.c.b16 %v3858, %v3852
    %v5485 = vpack.c.b16 %v3859, %v3853
    %v5486 = vpack.c.b16 %v3860, %v3854
    %v5487 = vpack.c.b16 %v3861, %v3855
    %v5488 = vpack.c.b16 %v3862, %v3856
    %v5489 = vpack.c.b16 %v3863, %v3857
    %v5490 = vpack.c.b16 %v3870, %v3864
    %v5491 = vpack.c.b16 %v3871, %v3865
    %v5492 = vpack.c.b16 %v3872, %v3866
    %v5493 = vpack.c.b16 %v3873, %v3867
    %v5494 = vpack.c.b16 %v3874, %v3868
    %v5495 = vpack.c.b16 %v3875, %v3869
    %v5496 = vpack.c.b16 %v3882, %v3876
    %v5497 = vpack.c.b16 %v3883, %v3877
    %v5498 = vpack.c.b16 %v3884, %v3878
    %v5499 = vpack.c.b16 %v3885, %v3879
    %v5500 = vpack.c.b16 %v3886, %v3880
    %v5501 = vpack.c.b16 %v3887, %v3881
    %v5502 = vpack.c.b16 %v3894, %v3888
    %v5503 = vpack.c.b16 %v3895, %v3889
    %v5504 = vpack.c.b16 %v3896, %v3890
    %v5505 = vpack.c.b16 %v3897, %v3891
    %v5506 = vpack.c.b16 %v3898, %v3892
    %v5507 = vpack.c.b16 %v3899, %v3893
    %v5508 = vpack.c.b16 %v3906, %v3900
    %v5509 = vpack.c.b16 %v3907, %v3901
    %v5510 = vpack.c.b16 %v3908, %v3902
    %v5511 = vpack.c.b16 %v3909, %v3903
    %v5512 = vpack.c.b16 %v3910, %v3904
    %v5513 = vpack.c.b16 %v3911, %v3905
    %v5514 = vpack.c.b16 %v3918, %v3912
    %v5515 = vpack.c.b16 %v3919, %v3913
    %v5516 = vpack.c.b16 %v3920, %v3914
    %v5517 = vpack.c.b16 %v3921, %v3915
    %v5518 = vpack.c.b16 %v3922, %v3916
    %v5519 = vpack.c.b16 %v3923, %v3917
    %v5520 = vpack.c.b16 %v3930, %v3924
    %v5521 = vpack.c.b16 %v3931, %v3925
    %v5522 = vpack.c.b16 %v3932, %v3926
    %v5523 = vpack.c.b16 %v3933, %v3927
    %v5524 = vpack.c.b16 %v3934, %v3928
    %v5525 = vpack.c.b16 %v3935, %v3929
    %v5526 = vpack.c.b16 %v3942, %v3936
    %v5527 = vpack.c.b16 %v3943, %v3937
    %v5528 = vpack.c.b16 %v3944, %v3938
    %v5529 = vpack.c.b16 %v3945, %v3939
    %v5530 = vpack.c.b16 %v3946, %v3940
    %v5531 = vpack.c.b16 %v3947, %v3941
    %v5532 = vpack.c.b16 %v3954, %v3948
    %v5533 = vpack.c.b16 %v3955, %v3949
    %v5534 = vpack.c.b16 %v3956, %v3950
    %v5535 = vpack.c.b16 %v3957, %v3951
    %v5536 = vpack.c.b16 %v3958, %v3952
    %v5537 = vpack.c.b16 %v3959, %v3953
    %v5538 = vpack.c.b16 %v3966, %v3960
    %v5539 = vpack.c.b16 %v3967, %v3961
    %v5540 = vpack.c.b16 %v3968, %v3962
    %v5541 = vpack.c.b16 %v3969, %v3963
    %v5542 = vpack.c.b16 %v3970, %v3964
    %v5543 = vpack.c.b16 %v3971, %v3965
    %v5544 = vpack.c.b16 %v3978, %v3972
    %v5545 = vpack.c.b16 %v3979, %v3973
    %v5546 = vpack.c.b16 %v3980, %v3974
    %v5547 = vpack.c.b16 %v3981, %v3975
    %v5548 = vpack.c.b16 %v3982, %v3976
    %v5549 = vpack.c.b16 %v3983, %v3977
    %v5550 = vpack.c.b16 %v3990, %v3984
    %v5551 = vpack.c.b16 %v3991, %v3985
    %v5552 = vpack.c.b16 %v3992, %v3986
    %v5553 = vpack.c.b16 %v3993, %v3987
    %v5554 = vpack.c.b16 %v3994, %v3988
    %v5555 = vpack.c.b16 %v3995, %v3989
    %v5556 = vpack.c.b16 %v4002, %v3996
    %v5557 = vpack.c.b16 %v4003, %v3997
    %v5558 = vpack.c.b16 %v4004, %v3998
    %v5559 = vpack.c.b16 %v4005, %v3999
    %v5560 = vpack.c.b16 %v4006, %v4000
    %v5561 = vpack.c.b16 %v4007, %v4001
    %v5562 = vpack.c.b16 %v4014, %v4008
    %v5563 = vpack.c.b16 %v4015, %v4009
    %v5564 = vpack.c.b16 %v4016, %v4010
    %v5565 = vpack.c.b16 %v4017, %v4011
    %v5566 = vpack.c.b16 %v4018, %v4012
    %v5567 = vpack.c.b16 %v4019, %v4013
    %v5568 = vpack.c.b16 %v4026, %v4020
    %v5569 = vpack.c.b16 %v4027, %v4021
    %v5570 = vpack.c.b16 %v4028, %v4022
    %v5571 = vpack.c.b16 %v4029, %v4023
    %v5572 = vpack.c.b16 %v4030, %v4024
    %v5573 = vpack.c.b16 %v4031, %v4025
    %v5574 = vpack.c.b16 %v4038, %v4032
    %v5575 = vpack.c.b16 %v4039, %v4033
    %v5576 = vpack.c.b16 %v4040, %v4034
    %v5577 = vpack.c.b16 %v4041, %v4035
    %v5578 = vpack.c.b16 %v4042, %v4036
    %v5579 = vpack.c.b16 %v4043, %v4037
    %v5580 = vpack.c.b16 %v4050, %v4044
    %v5581 = vpack.c.b16 %v4051, %v4045
    %v5582 = vpack.c.b16 %v4052, %v4046
    %v5583 = vpack.c.b16 %v4053, %v4047
    %v5584 = vpack.c.b16 %v4054, %v4048
    %v5585 = vpack.c.b16 %v4055, %v4049
    %v5586 = vpack.c.b16 %v4062, %v4056
    %v5587 = vpack.c.b16 %v4063, %v4057
    %v5588 = vpack.c.b16 %v4064, %v4058
    %v5589 = vpack.c.b16 %v4065, %v4059
    %v5590 = vpack.c.b16 %v4066, %v4060
    %v5591 = vpack.c.b16 %v4067, %v4061
    %v5592 = vpack.c.b16 %v4074, %v4068
    %v5593 = vpack.c.b16 %v4075, %v4069
    %v5594 = vpack.c.b16 %v4076, %v4070
    %v5595 = vpack.c.b16 %v4077, %v4071
    %v5596 = vpack.c.b16 %v4078, %v4072
    %v5597 = vpack.c.b16 %v4079, %v4073
    %v5598 = vpack.c.b16 %v4086, %v4080
    %v5599 = vpack.c.b16 %v4087, %v4081
    %v5600 = vpack.c.b16 %v4088, %v4082
    %v5601 = vpack.c.b16 %v4089, %v4083
    %v5602 = vpack.c.b16 %v4090, %v4084
    %v5603 = vpack.c.b16 %v4091, %v4085
    %v5604 = vpack.c.b16 %v4098, %v4092
    %v5605 = vpack.c.b16 %v4099, %v4093
    %v5606 = vpack.c.b16 %v4100, %v4094
    %v5607 = vpack.c.b16 %v4101, %v4095
    %v5608 = vpack.c.b16 %v4102, %v4096
    %v5609 = vpack.c.b16 %v4103, %v4097
    %v5610 = vpack.c.b16 %v4110, %v4104
    %v5611 = vpack.c.b16 %v4111, %v4105
    %v5612 = vpack.c.b16 %v4112, %v4106
    %v5613 = vpack.c.b16 %v4113, %v4107
    %v5614 = vpack.c.b16 %v4114, %v4108
    %v5615 = vpack.c.b16 %v4115, %v4109
    %v5616 = vpack.c.b16 %v4122, %v4116
    %v5617 = vpack.c.b16 %v4123, %v4117
    %v5618 = vpack.c.b16 %v4124, %v4118
    %v5619 = vpack.c.b16 %v4125, %v4119
    %v5620 = vpack.c.b16 %v4126, %v4120
    %v5621 = vpack.c.b16 %v4127, %v4121
    %v5622 = vpack.c.b16 %v4134, %v4128
    %v5623 = vpack.c.b16 %v4135, %v4129
    %v5624 = vpack.c.b16 %v4136, %v4130
    %v5625 = vpack.c.b16 %v4137, %v4131
    %v5626 = vpack.c.b16 %v4138, %v4132
    %v5627 = vpack.c.b16 %v4139, %v4133
    %v5628 = vpack.c.b16 %v4146, %v4140
    %v5629 = vpack.c.b16 %v4147, %v4141
    %v5630 = vpack.c.b16 %v4148, %v4142
    %v5631 = vpack.c.b16 %v4149, %v4143
    %v5632 = vpack.c.b16 %v4150, %v4144
    %v5633 = vpack.c.b16 %v4151, %v4145
    %v5634 = vpack.c.b16 %v4158, %v4152
    %v5635 = vpack.c.b16 %v4159, %v4153
    %v5636 = vpack.c.b16 %v4160, %v4154
    %v5637 = vpack.c.b16 %v4161, %v4155
    %v5638 = vpack.c.b16 %v4162, %v4156
    %v5639 = vpack.c.b16 %v4163, %v4157
    %v5640 = vpack.c.b16 %v4170, %v4164
    %v5641 = vpack.c.b16 %v4171, %v4165
    %v5642 = vpack.c.b16 %v4172, %v4166
    %v5643 = vpack.c.b16 %v4173, %v4167
    %v5644 = vpack.c.b16 %v4174, %v4168
    %v5645 = vpack.c.b16 %v4175, %v4169
    %v5646 = vpack.c.b16 %v4182, %v4176
    %v5647 = vpack.c.b16 %v4183, %v4177
    %v5648 = vpack.c.b16 %v4184, %v4178
    %v5649 = vpack.c.b16 %v4185, %v4179
    %v5650 = vpack.c.b16 %v4186, %v4180
    %v5651 = vpack.c.b16 %v4187, %v4181
    %v5652 = vpack.c.b16 %v4194, %v4188
    %v5653 = vpack.c.b16 %v4195, %v4189
    %v5654 = vpack.c.b16 %v4196, %v4190
    %v5655 = vpack.c.b16 %v4197, %v4191
    %v5656 = vpack.c.b16 %v4198, %v4192
    %v5657 = vpack.c.b16 %v4199, %v4193
    %v5658 = vpack.c.b16 %v4206, %v4200
    %v5659 = vpack.c.b16 %v4207, %v4201
    %v5660 = vpack.c.b16 %v4208, %v4202
    %v5661 = vpack.c.b16 %v4209, %v4203
    %v5662 = vpack.c.b16 %v4210, %v4204
    %v5663 = vpack.c.b16 %v4211, %v4205
    %v5664 = vpack.c.b16 %v4218, %v4212
    %v5665 = vpack.c.b16 %v4219, %v4213
    %v5666 = vpack.c.b16 %v4220, %v4214
    %v5667 = vpack.c.b16 %v4221, %v4215
    %v5668 = vpack.c.b16 %v4222, %v4216
    %v5669 = vpack.c.b16 %v4223, %v4217
    %v5670 = vpack.c.b16 %v4230, %v4224
    %v5671 = vpack.c.b16 %v4231, %v4225
    %v5672 = vpack.c.b16 %v4232, %v4226
    %v5673 = vpack.c.b16 %v4233, %v4227
    %v5674 = vpack.c.b16 %v4234, %v4228
    %v5675 = vpack.c.b16 %v4235, %v4229
    %v5676 = vpack.c.b16 %v4242, %v4236
    %v5677 = vpack.c.b16 %v4243, %v4237
    %v5678 = vpack.c.b16 %v4244, %v4238
    %v5679 = vpack.c.b16 %v4245, %v4239
    %v5680 = vpack.c.b16 %v4246, %v4240
    %v5681 = vpack.c.b16 %v4247, %v4241
    %v5682 = vpack.c.b16 %v4254, %v4248
    %v5683 = vpack.c.b16 %v4255, %v4249
    %v5684 = vpack.c.b16 %v4256, %v4250
    %v5685 = vpack.c.b16 %v4257, %v4251
    %v5686 = vpack.c.b16 %v4258, %v4252
    %v5687 = vpack.c.b16 %v4259, %v4253
    %v5688 = vpack.c.b16 %v4266, %v4260
    %v5689 = vpack.c.b16 %v4267, %v4261
    %v5690 = vpack.c.b16 %v4268, %v4262
    %v5691 = vpack.c.b16 %v4269, %v4263
    %v5692 = vpack.c.b16 %v4270, %v4264
    %v5693 = vpack.c.b16 %v4271, %v4265
    %v5694 = vpack.c.b16 %v4278, %v4272
    %v5695 = vpack.c.b16 %v4279, %v4273
    %v5696 = vpack.c.b16 %v4280, %v4274
    %v5697 = vpack.c.b16 %v4281, %v4275
    %v5698 = vpack.c.b16 %v4282, %v4276
    %v5699 = vpack.c.b16 %v4283, %v4277
    %v5700 = vpack.c.b16 %v4290, %v4284
    %v5701 = vpack.c.b16 %v4291, %v4285
    %v5702 = vpack.c.b16 %v4292, %v4286
    %v5703 = vpack.c.b16 %v4293, %v4287
    %v5704 = vpack.c.b16 %v4294, %v4288
    %v5705 = vpack.c.b16 %v4295, %v4289
    %v5706 = vpack.c.b16 %v4302, %v4296
    %v5707 = vpack.c.b16 %v4303, %v4297
    %v5708 = vpack.c.b16 %v4304, %v4298
    %v5709 = vpack.c.b16 %v4305, %v4299
    %v5710 = vpack.c.b16 %v4306, %v4300
    %v5711 = vpack.c.b16 %v4307, %v4301
    %v5712 = vpack.c.b16 %v4314, %v4308
    %v5713 = vpack.c.b16 %v4315, %v4309
    %v5714 = vpack.c.b16 %v4316, %v4310
    %v5715 = vpack.c.b16 %v4317, %v4311
    %v5716 = vpack.c.b16 %v4318, %v4312
    %v5717 = vpack.c.b16 %v4319, %v4313
    %v5718 = vpack.c.b16 %v4326, %v4320
    %v5719 = vpack.c.b16 %v4327, %v4321
    %v5720 = vpack.c.b16 %v4328, %v4322
    %v5721 = vpack.c.b16 %v4329, %v4323
    %v5722 = vpack.c.b16 %v4330, %v4324
    %v5723 = vpack.c.b16 %v4331, %v4325
    %v5724 = vpack.c.b16 %v4338, %v4332
    %v5725 = vpack.c.b16 %v4339, %v4333
    %v5726 = vpack.c.b16 %v4340, %v4334
    %v5727 = vpack.c.b16 %v4341, %v4335
    %v5728 = vpack.c.b16 %v4342, %v4336
    %v5729 = vpack.c.b16 %v4343, %v4337
    %v5730 = vpack.c.b16 %v4350, %v4344
    %v5731 = vpack.c.b16 %v4351, %v4345
    %v5732 = vpack.c.b16 %v4352, %v4346
    %v5733 = vpack.c.b16 %v4353, %v4347
    %v5734 = vpack.c.b16 %v4354, %v4348
    %v5735 = vpack.c.b16 %v4355, %v4349
    %v5736 = vpack.c.b16 %v4362, %v4356
    %v5737 = vpack.c.b16 %v4363, %v4357
    %v5738 = vpack.c.b16 %v4364, %v4358
    %v5739 = vpack.c.b16 %v4365, %v4359
    %v5740 = vpack.c.b16 %v4366, %v4360
    %v5741 = vpack.c.b16 %v4367, %v4361
    %v5742 = vpack.c.b16 %v4374, %v4368
    %v5743 = vpack.c.b16 %v4375, %v4369
    %v5744 = vpack.c.b16 %v4376, %v4370
    %v5745 = vpack.c.b16 %v4377, %v4371
    %v5746 = vpack.c.b16 %v4378, %v4372
    %v5747 = vpack.c.b16 %v4379, %v4373
    %v5748 = vpack.c.b16 %v4386, %v4380
    %v5749 = vpack.c.b16 %v4387, %v4381
    %v5750 = vpack.c.b16 %v4388, %v4382
    %v5751 = vpack.c.b16 %v4389, %v4383
    %v5752 = vpack.c.b16 %v4390, %v4384
    %v5753 = vpack.c.b16 %v4391, %v4385
    %v5754 = vpack.c.b16 %v4398, %v4392
    %v5755 = vpack.c.b16 %v4399, %v4393
    %v5756 = vpack.c.b16 %v4400, %v4394
    %v5757 = vpack.c.b16 %v4401, %v4395
    %v5758 = vpack.c.b16 %v4402, %v4396
    %v5759 = vpack.c.b16 %v4403, %v4397
    %v5760 = vpack.c.b16 %v4410, %v4404
    %v5761 = vpack.c.b16 %v4411, %v4405
    %v5762 = vpack.c.b16 %v4412, %v4406
    %v5763 = vpack.c.b16 %v4413, %v4407
    %v5764 = vpack.c.b16 %v4414, %v4408
    %v5765 = vpack.c.b16 %v4415, %v4409
    %v5766 = vpack.c.b16 %v4422, %v4416
    %v5767 = vpack.c.b16 %v4423, %v4417
    %v5768 = vpack.c.b16 %v4424, %v4418
    %v5769 = vpack.c.b16 %v4425, %v4419
    %v5770 = vpack.c.b16 %v4426, %v4420
    %v5771 = vpack.c.b16 %v4427, %v4421
    %v5772 = vpack.c.b16 %v4434, %v4428
    %v5773 = vpack.c.b16 %v4435, %v4429
    %v5774 = vpack.c.b16 %v4436, %v4430
    %v5775 = vpack.c.b16 %v4437, %v4431
    %v5776 = vpack.c.b16 %v4438, %v4432
    %v5777 = vpack.c.b16 %v4439, %v4433
    %v5778 = vpack.c.b16 %v4446, %v4440
    %v5779 = vpack.c.b16 %v4447, %v4441
    %v5780 = vpack.c.b16 %v4448, %v4442
    %v5781 = vpack.c.b16 %v4449, %v4443
    %v5782 = vpack.c.b16 %v4450, %v4444
    %v5783 = vpack.c.b16 %v4451, %v4445
    %v5784 = vpack.c.b16 %v4458, %v4452
    %v5785 = vpack.c.b16 %v4459, %v4453
    %v5786 = vpack.c.b16 %v4460, %v4454
    %v5787 = vpack.c.b16 %v4461, %v4455
    %v5788 = vpack.c.b16 %v4462, %v4456
    %v5789 = vpack.c.b16 %v4463, %v4457
    %v5790 = vpack.c.b16 %v4470, %v4464
    %v5791 = vpack.c.b16 %v4471, %v4465
    %v5792 = vpack.c.b16 %v4472, %v4466
    %v5793 = vpack.c.b16 %v4473, %v4467
    %v5794 = vpack.c.b16 %v4474, %v4468
    %v5795 = vpack.c.b16 %v4475, %v4469
    %v5796 = vpack.c.b16 %v4482, %v4476
    %v5797 = vpack.c.b16 %v4483, %v4477
    %v5798 = vpack.c.b16 %v4484, %v4478
    %v5799 = vpack.c.b16 %v4485, %v4479
    %v5800 = vpack.c.b16 %v4486, %v4480
    %v5801 = vpack.c.b16 %v4487, %v4481
    %v5802 = vpack.c.b16 %v4494, %v4488
    %v5803 = vpack.c.b16 %v4495, %v4489
    %v5804 = vpack.c.b16 %v4496, %v4490
    %v5805 = vpack.c.b16 %v4497, %v4491
    %v5806 = vpack.c.b16 %v4498, %v4492
    %v5807 = vpack.c.b16 %v4499, %v4493
    %v5808 = vpack.c.b16 %v4506, %v4500
    %v5809 = vpack.c.b16 %v4507, %v4501
    %v5810 = vpack.c.b16 %v4508, %v4502
    %v5811 = vpack.c.b16 %v4509, %v4503
    %v5812 = vpack.c.b16 %v4510, %v4504
    %v5813 = vpack.c.b16 %v4511, %v4505
    %v5814 = vpack.c.b16 %v4518, %v4512
    %v5815 = vpack.c.b16 %v4519, %v4513
    %v5816 = vpack.c.b16 %v4520, %v4514
    %v5817 = vpack.c.b16 %v4521, %v4515
    %v5818 = vpack.c.b16 %v4522, %v4516
    %v5819 = vpack.c.b16 %v4523, %v4517
    %v5820 = vpack.c.b16 %v4530, %v4524
    %v5821 = vpack.c.b16 %v4531, %v4525
    %v5822 = vpack.c.b16 %v4532, %v4526
    %v5823 = vpack.c.b16 %v4533, %v4527
    %v5824 = vpack.c.b16 %v4534, %v4528
    %v5825 = vpack.c.b16 %v4535, %v4529
    %v5826 = vpack.c.b16 %v4542, %v4536
    %v5827 = vpack.c.b16 %v4543, %v4537
    %v5828 = vpack.c.b16 %v4544, %v4538
    %v5829 = vpack.c.b16 %v4545, %v4539
    %v5830 = vpack.c.b16 %v4546, %v4540
    %v5831 = vpack.c.b16 %v4547, %v4541
    %v5832 = vpack.c.b16 %v4554, %v4548
    %v5833 = vpack.c.b16 %v4555, %v4549
    %v5834 = vpack.c.b16 %v4556, %v4550
    %v5835 = vpack.c.b16 %v4557, %v4551
    %v5836 = vpack.c.b16 %v4558, %v4552
    %v5837 = vpack.c.b16 %v4559, %v4553
    %v5838 = vpack.c.b16 %v4566, %v4560
    %v5839 = vpack.c.b16 %v4567, %v4561
    %v5840 = vpack.c.b16 %v4568, %v4562
    %v5841 = vpack.c.b16 %v4569, %v4563
    %v5842 = vpack.c.b16 %v4570, %v4564
    %v5843 = vpack.c.b16 %v4571, %v4565
    %v5844 = vpack.c.b16 %v4578, %v4572
    %v5845 = vpack.c.b16 %v4579, %v4573
    %v5846 = vpack.c.b16 %v4580, %v4574
    %v5847 = vpack.c.b16 %v4581, %v4575
    %v5848 = vpack.c.b16 %v4582, %v4576
    %v5849 = vpack.c.b16 %v4583, %v4577
    %v5850 = vpack.c.b16 %v4590, %v4584
    %v5851 = vpack.c.b16 %v4591, %v4585
    %v5852 = vpack.c.b16 %v4592, %v4586
    %v5853 = vpack.c.b16 %v4593, %v4587
    %v5854 = vpack.c.b16 %v4594, %v4588
    %v5855 = vpack.c.b16 %v4595, %v4589
    %v5856 = vpack.c.b16 %v4602, %v4596
    %v5857 = vpack.c.b16 %v4603, %v4597
    %v5858 = vpack.c.b16 %v4604, %v4598
    %v5859 = vpack.c.b16 %v4605, %v4599
    %v5860 = vpack.c.b16 %v4606, %v4600
    %v5861 = vpack.c.b16 %v4607, %v4601
    %v5862 = vpack.c.b16 %v4614, %v4608
    %v5863 = vpack.c.b16 %v4615, %v4609
    %v5864 = vpack.c.b16 %v4616, %v4610
    %v5865 = vpack.c.b16 %v4617, %v4611
    %v5866 = vpack.c.b16 %v4618, %v4612
    %v5867 = vpack.c.b16 %v4619, %v4613
    %v5868 = vpack.c.b16 %v4626, %v4620
    %v5869 = vpack.c.b16 %v4627, %v4621
    %v5870 = vpack.c.b16 %v4628, %v4622
    %v5871 = vpack.c.b16 %v4629, %v4623
    %v5872 = vpack.c.b16 %v4630, %v4624
    %v5873 = vpack.c.b16 %v4631, %v4625
    %v5874 = vpack.c.b16 %v4638, %v4632
    %v5875 = vpack.c.b16 %v4639, %v4633
    %v5876 = vpack.c.b16 %v4640, %v4634
    %v5877 = vpack.c.b16 %v4641, %v4635
    %v5878 = vpack.c.b16 %v4642, %v4636
    %v5879 = vpack.c.b16 %v4643, %v4637
    %v5880 = vpack.c.b16 %v4650, %v4644
    %v5881 = vpack.c.b16 %v4651, %v4645
    %v5882 = vpack.c.b16 %v4652, %v4646
    %v5883 = vpack.c.b16 %v4653, %v4647
    %v5884 = vpack.c.b16 %v4654, %v4648
    %v5885 = vpack.c.b16 %v4655, %v4649
    %v5886 = vpack.c.b16 %v4662, %v4656
    %v5887 = vpack.c.b16 %v4663, %v4657
    %v5888 = vpack.c.b16 %v4664, %v4658
    %v5889 = vpack.c.b16 %v4665, %v4659
    %v5890 = vpack.c.b16 %v4666, %v4660
    %v5891 = vpack.c.b16 %v4667, %v4661
    %v5892 = vpack.c.b16 %v4674, %v4668
    %v5893 = vpack.c.b16 %v4675, %v4669
    %v5894 = vpack.c.b16 %v4676, %v4670
    %v5895 = vpack.c.b16 %v4677, %v4671
    %v5896 = vpack.c.b16 %v4678, %v4672
    %v5897 = vpack.c.b16 %v4679, %v4673
    %v5898 = vpack.c.b16 %v4686, %v4680
    %v5899 = vpack.c.b16 %v4687, %v4681
    %v5900 = vpack.c.b16 %v4688, %v4682
    %v5901 = vpack.c.b16 %v4689, %v4683
    %v5902 = vpack.c.b16 %v4690, %v4684
    %v5903 = vpack.c.b16 %v4691, %v4685
    %v5904 = vpack.c.b16 %v4698, %v4692
    %v5905 = vpack.c.b16 %v4699, %v4693
    %v5906 = vpack.c.b16 %v4700, %v4694
    %v5907 = vpack.c.b16 %v4701, %v4695
    %v5908 = vpack.c.b16 %v4702, %v4696
    %v5909 = vpack.c.b16 %v4703, %v4697
    %v5910 = vpack.c.b16 %v4710, %v4704
    %v5911 = vpack.c.b16 %v4711, %v4705
    %v5912 = vpack.c.b16 %v4712, %v4706
    %v5913 = vpack.c.b16 %v4713, %v4707
    %v5914 = vpack.c.b16 %v4714, %v4708
    %v5915 = vpack.c.b16 %v4715, %v4709
    %v5916 = vpack.c.b16 %v4722, %v4716
    %v5917 = vpack.c.b16 %v4723, %v4717
    %v5918 = vpack.c.b16 %v4724, %v4718
    %v5919 = vpack.c.b16 %v4725, %v4719
    %v5920 = vpack.c.b16 %v4726, %v4720
    %v5921 = vpack.c.b16 %v4727, %v4721
    %v5922 = vpack.c.b16 %v4734, %v4728
    %v5923 = vpack.c.b16 %v4735, %v4729
    %v5924 = vpack.c.b16 %v4736, %v4730
    %v5925 = vpack.c.b16 %v4737, %v4731
    %v5926 = vpack.c.b16 %v4738, %v4732
    %v5927 = vpack.c.b16 %v4739, %v4733
    %v5928 = vpack.c.b16 %v4746, %v4740
    %v5929 = vpack.c.b16 %v4747, %v4741
    %v5930 = vpack.c.b16 %v4748, %v4742
    %v5931 = vpack.c.b16 %v4749, %v4743
    %v5932 = vpack.c.b16 %v4750, %v4744
    %v5933 = vpack.c.b16 %v4751, %v4745
    %v5934 = vpack.c.b16 %v4758, %v4752
    %v5935 = vpack.c.b16 %v4759, %v4753
    %v5936 = vpack.c.b16 %v4760, %v4754
    %v5937 = vpack.c.b16 %v4761, %v4755
    %v5938 = vpack.c.b16 %v4762, %v4756
    %v5939 = vpack.c.b16 %v4763, %v4757
    %v5940 = vpack.c.b16 %v4770, %v4764
    %v5941 = vpack.c.b16 %v4771, %v4765
    %v5942 = vpack.c.b16 %v4772, %v4766
    %v5943 = vpack.c.b16 %v4773, %v4767
    %v5944 = vpack.c.b16 %v4774, %v4768
    %v5945 = vpack.c.b16 %v4775, %v4769
    %v5946 = vpack.c.b16 %v4782, %v4776
    %v5947 = vpack.c.b16 %v4783, %v4777
    %v5948 = vpack.c.b16 %v4784, %v4778
    %v5949 = vpack.c.b16 %v4785, %v4779
    %v5950 = vpack.c.b16 %v4786, %v4780
    %v5951 = vpack.c.b16 %v4787, %v4781
    %v5952 = vpack.c.b16 %v4794, %v4788
    %v5953 = vpack.c.b16 %v4795, %v4789
    %v5954 = vpack.c.b16 %v4796, %v4790
    %v5955 = vpack.c.b16 %v4797, %v4791
    %v5956 = vpack.c.b16 %v4798, %v4792
    %v5957 = vpack.c.b16 %v4799, %v4793
    %v5958 = vpack.c.b16 %v4806, %v4800
    %v5959 = vpack.c.b16 %v4807, %v4801
    %v5960 = vpack.c.b16 %v4808, %v4802
    %v5961 = vpack.c.b16 %v4809, %v4803
    %v5962 = vpack.c.b16 %v4810, %v4804
    %v5963 = vpack.c.b16 %v4811, %v4805
    %7116 = vmatprep.subr.bf16.mxu0 %v4813
    %7117 = vmatpush1.bf16.msra.mxu0 %v4812
    %7118 = vmatprep.subr.bf16.mxu0 %v4819
    %7119 = vmatpush1.bf16.msra.mxu0 %v4818
    %7120 = vmatprep.subr.bf16.mxu0 %v4825
    %7121 = vmatpush1.bf16.msra.mxu0 %v4824
    %7122 = vmatprep.subr.bf16.mxu0 %v4831
    %7123 = vmatpush1.bf16.msra.mxu0 %v4830
    %7124 = vmatprep.subr.bf16.mxu0 %v4837
    %7125 = vmatpush1.bf16.msra.mxu0 %v4836
    %7126 = vmatprep.subr.bf16.mxu0 %v4843
    %7127 = vmatpush1.bf16.msra.mxu0 %v4842
    %7128 = vmatprep.subr.bf16.mxu0 %v4849
    %7129 = vmatpush1.bf16.msra.mxu0 %v4848
    %7130 = vmatprep.subr.bf16.mxu0 %v4855
    %7131 = vmatpush1.bf16.msra.mxu0 %v4854
    %7132 = vmatprep.subr.bf16.mxu0 %v4861
    %7133 = vmatpush1.bf16.msra.mxu0 %v4860
    %7134 = vmatprep.subr.bf16.mxu0 %v4867
    %7135 = vmatpush1.bf16.msra.mxu0 %v4866
    %7136 = vmatprep.subr.bf16.mxu0 %v4873
    %7137 = vmatpush1.bf16.msra.mxu0 %v4872
    %7138 = vmatprep.subr.bf16.mxu0 %v4879
    %7139 = vmatpush1.bf16.msra.mxu0 %v4878
    %7140 = vmatprep.subr.bf16.mxu0 %v4885
    %7141 = vmatpush1.bf16.msra.mxu0 %v4884
    %7142 = vmatprep.subr.bf16.mxu0 %v4891
    %7143 = vmatpush1.bf16.msra.mxu0 %v4890
    %7144 = vmatprep.subr.bf16.mxu0 %v4897
    %7145 = vmatpush1.bf16.msra.mxu0 %v4896
    %7146 = vmatprep.subr.bf16.mxu0 %v4903
    %7147 = vmatpush1.bf16.msra.mxu0 %v4902
    %7148 = vmatprep.mubr.bf16.mxu0 %v149
    %7149 = vmatmul.mubr.bf16.gmra.mrb[0].mxu0 %v148
    %v7150 = vpop.f32.mrb[0].mxu0
    %v7151 = vadd.f32 %v1329, %v7150
    %v7152 = vpop.f32.mrb[0].mxu0
    %v7153 = vadd.f32 %v1333, %v7152
    %v7154 = vpop.f32.mrb[0].mxu0
    %v7155 = vadd.f32 %v1329, %v7154
    %v7156 = vpop.f32.mrb[0].mxu0
    %v7157 = vadd.f32 %v1333, %v7156
    %7158 = vdwg.mxu0
    %7159 = vmatprep.subr.bf16.mxu0 %v4909
    %7160 = vmatpush1.bf16.msra.mxu0 %v4908
    %7161 = vmatprep.subr.bf16.mxu0 %v4915
    %7162 = vmatpush1.bf16.msra.mxu0 %v4914
    %7163 = vmatprep.subr.bf16.mxu0 %v4921
    %7164 = vmatpush1.bf16.msra.mxu0 %v4920
    %7165 = vmatprep.subr.bf16.mxu0 %v4927
    %7166 = vmatpush1.bf16.msra.mxu0 %v4926
    %7167 = vmatprep.subr.bf16.mxu0 %v4933
    %7168 = vmatpush1.bf16.msra.mxu0 %v4932
    %7169 = vmatprep.subr.bf16.mxu0 %v4939
    %7170 = vmatpush1.bf16.msra.mxu0 %v4938
    %7171 = vmatprep.subr.bf16.mxu0 %v4945
    %7172 = vmatpush1.bf16.msra.mxu0 %v4944
    %7173 = vmatprep.subr.bf16.mxu0 %v4951
    %7174 = vmatpush1.bf16.msra.mxu0 %v4950
    %7175 = vmatprep.subr.bf16.mxu0 %v4957
    %7176 = vmatpush1.bf16.msra.mxu0 %v4956
    %7177 = vmatprep.subr.bf16.mxu0 %v4963
    %7178 = vmatpush1.bf16.msra.mxu0 %v4962
    %7179 = vmatprep.subr.bf16.mxu0 %v4969
    %7180 = vmatpush1.bf16.msra.mxu0 %v4968
    %7181 = vmatprep.subr.bf16.mxu0 %v4975
    %7182 = vmatpush1.bf16.msra.mxu0 %v4974
    %7183 = vmatprep.subr.bf16.mxu0 %v4981
    %7184 = vmatpush1.bf16.msra.mxu0 %v4980
    %7185 = vmatprep.subr.bf16.mxu0 %v4987
    %7186 = vmatpush1.bf16.msra.mxu0 %v4986
    %7187 = vmatprep.subr.bf16.mxu0 %v4993
    %7188 = vmatpush1.bf16.msra.mxu0 %v4992
    %7189 = vmatprep.subr.bf16.mxu0 %v4999
    %7190 = vmatpush1.bf16.msra.mxu0 %v4998
    %7191 = vmatprep.mubr.bf16.mxu0 %v151
    %7192 = vmatmul.mubr.bf16.gmra.mrb[0].mxu0 %v150
    %v7193 = vpop.f32.mrb[0].mxu0
    %v7194 = vadd.f32 %v7151, %v7193
    %v7195 = vpop.f32.mrb[0].mxu0
    %v7196 = vadd.f32 %v7153, %v7195
    %v7197 = vpop.f32.mrb[0].mxu0
    %v7198 = vadd.f32 %v7155, %v7197
    %v7199 = vpop.f32.mrb[0].mxu0
    %v7200 = vadd.f32 %v7157, %v7199
    %7201 = vdwg.mxu0
    %7202 = vmatprep.subr.bf16.mxu0 %v5005
    %7203 = vmatpush1.bf16.msra.mxu0 %v5004
    %7204 = vmatprep.subr.bf16.mxu0 %v5011
    %7205 = vmatpush1.bf16.msra.mxu0 %v5010
    %7206 = vmatprep.subr.bf16.mxu0 %v5017
    %7207 = vmatpush1.bf16.msra.mxu0 %v5016
    %7208 = vmatprep.subr.bf16.mxu0 %v5023
    %7209 = vmatpush1.bf16.msra.mxu0 %v5022
    %7210 = vmatprep.subr.bf16.mxu0 %v5029
    %7211 = vmatpush1.bf16.msra.mxu0 %v5028
    %7212 = vmatprep.subr.bf16.mxu0 %v5035
    %7213 = vmatpush1.bf16.msra.mxu0 %v5034
    %7214 = vmatprep.subr.bf16.mxu0 %v5041
    %7215 = vmatpush1.bf16.msra.mxu0 %v5040
    %7216 = vmatprep.subr.bf16.mxu0 %v5047
    %7217 = vmatpush1.bf16.msra.mxu0 %v5046
    %7218 = vmatprep.subr.bf16.mxu0 %v5053
    %7219 = vmatpush1.bf16.msra.mxu0 %v5052
    %7220 = vmatprep.subr.bf16.mxu0 %v5059
    %7221 = vmatpush1.bf16.msra.mxu0 %v5058
    %7222 = vmatprep.subr.bf16.mxu0 %v5065
    %7223 = vmatpush1.bf16.msra.mxu0 %v5064
    %7224 = vmatprep.subr.bf16.mxu0 %v5071
    %7225 = vmatpush1.bf16.msra.mxu0 %v5070
    %7226 = vmatprep.subr.bf16.mxu0 %v5077
    %7227 = vmatpush1.bf16.msra.mxu0 %v5076
    %7228 = vmatprep.subr.bf16.mxu0 %v5083
    %7229 = vmatpush1.bf16.msra.mxu0 %v5082
    %7230 = vmatprep.subr.bf16.mxu0 %v5089
    %7231 = vmatpush1.bf16.msra.mxu0 %v5088
    %7232 = vmatprep.subr.bf16.mxu0 %v5095
    %7233 = vmatpush1.bf16.msra.mxu0 %v5094
    %7234 = vmatprep.mubr.bf16.mxu0 %v153
    %7235 = vmatmul.mubr.bf16.gmra.mrb[0].mxu0 %v152
    %v7236 = vpop.f32.mrb[0].mxu0
    %v7237 = vadd.f32 %v7194, %v7236
    %v7238 = vpop.f32.mrb[0].mxu0
    %v7239 = vadd.f32 %v7196, %v7238
    %v7240 = vpop.f32.mrb[0].mxu0
    %v7241 = vadd.f32 %v7198, %v7240
    %v7242 = vpop.f32.mrb[0].mxu0
    %v7243 = vadd.f32 %v7200, %v7242
    %7244 = vdwg.mxu0
    %7245 = vmatprep.subr.bf16.mxu0 %v5101
    %7246 = vmatpush1.bf16.msra.mxu0 %v5100
    %7247 = vmatprep.subr.bf16.mxu0 %v5107
    %7248 = vmatpush1.bf16.msra.mxu0 %v5106
    %7249 = vmatprep.subr.bf16.mxu0 %v5113
    %7250 = vmatpush1.bf16.msra.mxu0 %v5112
    %7251 = vmatprep.subr.bf16.mxu0 %v5119
    %7252 = vmatpush1.bf16.msra.mxu0 %v5118
    %7253 = vmatprep.subr.bf16.mxu0 %v5125
    %7254 = vmatpush1.bf16.msra.mxu0 %v5124
    %7255 = vmatprep.subr.bf16.mxu0 %v5131
    %7256 = vmatpush1.bf16.msra.mxu0 %v5130
    %7257 = vmatprep.subr.bf16.mxu0 %v5137
    %7258 = vmatpush1.bf16.msra.mxu0 %v5136
    %7259 = vmatprep.subr.bf16.mxu0 %v5143
    %7260 = vmatpush1.bf16.msra.mxu0 %v5142
    %7261 = vmatprep.subr.bf16.mxu0 %v5149
    %7262 = vmatpush1.bf16.msra.mxu0 %v5148
    %7263 = vmatprep.subr.bf16.mxu0 %v5155
    %7264 = vmatpush1.bf16.msra.mxu0 %v5154
    %7265 = vmatprep.subr.bf16.mxu0 %v5161
    %7266 = vmatpush1.bf16.msra.mxu0 %v5160
    %7267 = vmatprep.subr.bf16.mxu0 %v5167
    %7268 = vmatpush1.bf16.msra.mxu0 %v5166
    %7269 = vmatprep.subr.bf16.mxu0 %v5173
    %7270 = vmatpush1.bf16.msra.mxu0 %v5172
    %7271 = vmatprep.subr.bf16.mxu0 %v5179
    %7272 = vmatpush1.bf16.msra.mxu0 %v5178
    %7273 = vmatprep.subr.bf16.mxu0 %v5185
    %7274 = vmatpush1.bf16.msra.mxu0 %v5184
    %7275 = vmatprep.subr.bf16.mxu0 %v5191
    %7276 = vmatpush1.bf16.msra.mxu0 %v5190
    %7277 = vmatprep.mubr.bf16.mxu0 %v155
    %7278 = vmatmul.mubr.bf16.gmra.mrb[0].mxu0 %v154
    %v7279 = vpop.f32.mrb[0].mxu0
    %v7280 = vadd.f32 %v7237, %v7279
    %v7281 = vpop.f32.mrb[0].mxu0
    %v7282 = vadd.f32 %v7239, %v7281
    %v7283 = vpop.f32.mrb[0].mxu0
    %v7284 = vadd.f32 %v7241, %v7283
    %v7285 = vpop.f32.mrb[0].mxu0
    %v7286 = vadd.f32 %v7243, %v7285
    %7287 = vdwg.mxu0
    %7288 = vmatprep.subr.bf16.mxu0 %v5197
    %7289 = vmatpush1.bf16.msra.mxu0 %v5196
    %7290 = vmatprep.subr.bf16.mxu0 %v5203
    %7291 = vmatpush1.bf16.msra.mxu0 %v5202
    %7292 = vmatprep.subr.bf16.mxu0 %v5209
    %7293 = vmatpush1.bf16.msra.mxu0 %v5208
    %7294 = vmatprep.subr.bf16.mxu0 %v5215
    %7295 = vmatpush1.bf16.msra.mxu0 %v5214
    %7296 = vmatprep.subr.bf16.mxu0 %v5221
    %7297 = vmatpush1.bf16.msra.mxu0 %v5220
    %7298 = vmatprep.subr.bf16.mxu0 %v5227
    %7299 = vmatpush1.bf16.msra.mxu0 %v5226
    %7300 = vmatprep.subr.bf16.mxu0 %v5233
    %7301 = vmatpush1.bf16.msra.mxu0 %v5232
    %7302 = vmatprep.subr.bf16.mxu0 %v5239
    %7303 = vmatpush1.bf16.msra.mxu0 %v5238
    %7304 = vmatprep.subr.bf16.mxu0 %v5245
    %7305 = vmatpush1.bf16.msra.mxu0 %v5244
    %7306 = vmatprep.subr.bf16.mxu0 %v5251
    %7307 = vmatpush1.bf16.msra.mxu0 %v5250
    %7308 = vmatprep.subr.bf16.mxu0 %v5257
    %7309 = vmatpush1.bf16.msra.mxu0 %v5256
    %7310 = vmatprep.subr.bf16.mxu0 %v5263
    %7311 = vmatpush1.bf16.msra.mxu0 %v5262
    %7312 = vmatprep.subr.bf16.mxu0 %v5269
    %7313 = vmatpush1.bf16.msra.mxu0 %v5268
    %7314 = vmatprep.subr.bf16.mxu0 %v5275
    %7315 = vmatpush1.bf16.msra.mxu0 %v5274
    %7316 = vmatprep.subr.bf16.mxu0 %v5281
    %7317 = vmatpush1.bf16.msra.mxu0 %v5280
    %7318 = vmatprep.subr.bf16.mxu0 %v5287
    %7319 = vmatpush1.bf16.msra.mxu0 %v5286
    %7320 = vmatprep.mubr.bf16.mxu0 %v157
    %7321 = vmatmul.mubr.bf16.gmra.mrb[0].mxu0 %v156
    %v7322 = vpop.f32.mrb[0].mxu0
    %v7323 = vadd.f32 %v7280, %v7322
    %v7324 = vpop.f32.mrb[0].mxu0
    %v7325 = vadd.f32 %v7282, %v7324
    %v7326 = vpop.f32.mrb[0].mxu0
    %v7327 = vadd.f32 %v7284, %v7326
    %v7328 = vpop.f32.mrb[0].mxu0
    %v7329 = vadd.f32 %v7286, %v7328
    %7330 = vdwg.mxu0
    %7331 = vmatprep.subr.bf16.mxu0 %v5293
    %7332 = vmatpush1.bf16.msra.mxu0 %v5292
    %7333 = vmatprep.subr.bf16.mxu0 %v5299
    %7334 = vmatpush1.bf16.msra.mxu0 %v5298
    %7335 = vmatprep.subr.bf16.mxu0 %v5305
    %7336 = vmatpush1.bf16.msra.mxu0 %v5304
    %7337 = vmatprep.subr.bf16.mxu0 %v5311
    %7338 = vmatpush1.bf16.msra.mxu0 %v5310
    %7339 = vmatprep.subr.bf16.mxu0 %v5317
    %7340 = vmatpush1.bf16.msra.mxu0 %v5316
    %7341 = vmatprep.subr.bf16.mxu0 %v5323
    %7342 = vmatpush1.bf16.msra.mxu0 %v5322
    %7343 = vmatprep.subr.bf16.mxu0 %v5329
    %7344 = vmatpush1.bf16.msra.mxu0 %v5328
    %7345 = vmatprep.subr.bf16.mxu0 %v5335
    %7346 = vmatpush1.bf16.msra.mxu0 %v5334
    %7347 = vmatprep.subr.bf16.mxu0 %v5341
    %7348 = vmatpush1.bf16.msra.mxu0 %v5340
    %7349 = vmatprep.subr.bf16.mxu0 %v5347
    %7350 = vmatpush1.bf16.msra.mxu0 %v5346
    %7351 = vmatprep.subr.bf16.mxu0 %v5353
    %7352 = vmatpush1.bf16.msra.mxu0 %v5352
    %7353 = vmatprep.subr.bf16.mxu0 %v5359
    %7354 = vmatpush1.bf16.msra.mxu0 %v5358
    %7355 = vmatprep.subr.bf16.mxu0 %v5365
    %7356 = vmatpush1.bf16.msra.mxu0 %v5364
    %7357 = vmatprep.subr.bf16.mxu0 %v5371
    %7358 = vmatpush1.bf16.msra.mxu0 %v5370
    %7359 = vmatprep.subr.bf16.mxu0 %v5377
    %7360 = vmatpush1.bf16.msra.mxu0 %v5376
    %7361 = vmatprep.subr.bf16.mxu0 %v5383
    %7362 = vmatpush1.bf16.msra.mxu0 %v5382
    %7363 = vmatprep.mubr.bf16.mxu0 %v159
    %7364 = vmatmul.mubr.bf16.gmra.mrb[0].mxu0 %v158
    %v7365 = vpop.f32.mrb[0].mxu0
    %v7366 = vadd.f32 %v7323, %v7365
    %v7367 = vpop.f32.mrb[0].mxu0
    %v7368 = vadd.f32 %v7325, %v7367
    %v7369 = vpop.f32.mrb[0].mxu0
    %v7370 = vadd.f32 %v7327, %v7369
    %v7371 = vpop.f32.mrb[0].mxu0
    %v7372 = vadd.f32 %v7329, %v7371
    %7373 = vdwg.mxu0
    %7374 = vmatprep.subr.bf16.mxu0 %v5389
    %7375 = vmatpush1.bf16.msra.mxu0 %v5388
    %7376 = vmatprep.subr.bf16.mxu0 %v5395
    %7377 = vmatpush1.bf16.msra.mxu0 %v5394
    %7378 = vmatprep.subr.bf16.mxu0 %v5401
    %7379 = vmatpush1.bf16.msra.mxu0 %v5400
    %7380 = vmatprep.subr.bf16.mxu0 %v5407
    %7381 = vmatpush1.bf16.msra.mxu0 %v5406
    %7382 = vmatprep.subr.bf16.mxu0 %v5413
    %7383 = vmatpush1.bf16.msra.mxu0 %v5412
    %7384 = vmatprep.subr.bf16.mxu0 %v5419
    %7385 = vmatpush1.bf16.msra.mxu0 %v5418
    %7386 = vmatprep.subr.bf16.mxu0 %v5425
    %7387 = vmatpush1.bf16.msra.mxu0 %v5424
    %7388 = vmatprep.subr.bf16.mxu0 %v5431
    %7389 = vmatpush1.bf16.msra.mxu0 %v5430
    %7390 = vmatprep.subr.bf16.mxu0 %v5437
    %7391 = vmatpush1.bf16.msra.mxu0 %v5436
    %7392 = vmatprep.subr.bf16.mxu0 %v5443
    %7393 = vmatpush1.bf16.msra.mxu0 %v5442
    %7394 = vmatprep.subr.bf16.mxu0 %v5449
    %7395 = vmatpush1.bf16.msra.mxu0 %v5448
    %7396 = vmatprep.subr.bf16.mxu0 %v5455
    %7397 = vmatpush1.bf16.msra.mxu0 %v5454
    %7398 = vmatprep.subr.bf16.mxu0 %v5461
    %7399 = vmatpush1.bf16.msra.mxu0 %v5460
    %7400 = vmatprep.subr.bf16.mxu0 %v5467
    %7401 = vmatpush1.bf16.msra.mxu0 %v5466
    %7402 = vmatprep.subr.bf16.mxu0 %v5473
    %7403 = vmatpush1.bf16.msra.mxu0 %v5472
    %7404 = vmatprep.subr.bf16.mxu0 %v5479
    %7405 = vmatpush1.bf16.msra.mxu0 %v5478
    %7406 = vmatprep.mubr.bf16.mxu0 %v161
    %7407 = vmatmul.mubr.bf16.gmra.mrb[0].mxu0 %v160
    %v7408 = vpop.f32.mrb[0].mxu0
    %v7409 = vadd.f32 %v7366, %v7408
    %v7410 = vpop.f32.mrb[0].mxu0
    %v7411 = vadd.f32 %v7368, %v7410
    %v7412 = vpop.f32.mrb[0].mxu0
    %v7413 = vadd.f32 %v7370, %v7412
    %v7414 = vpop.f32.mrb[0].mxu0
    %v7415 = vadd.f32 %v7372, %v7414
    %7416 = vdwg.mxu0
    %7417 = vmatprep.subr.bf16.mxu0 %v5485
    %7418 = vmatpush1.bf16.msra.mxu0 %v5484
    %7419 = vmatprep.subr.bf16.mxu0 %v5491
    %7420 = vmatpush1.bf16.msra.mxu0 %v5490
    %7421 = vmatprep.subr.bf16.mxu0 %v5497
    %7422 = vmatpush1.bf16.msra.mxu0 %v5496
    %7423 = vmatprep.subr.bf16.mxu0 %v5503
    %7424 = vmatpush1.bf16.msra.mxu0 %v5502
    %7425 = vmatprep.subr.bf16.mxu0 %v5509
    %7426 = vmatpush1.bf16.msra.mxu0 %v5508
    %7427 = vmatprep.subr.bf16.mxu0 %v5515
    %7428 = vmatpush1.bf16.msra.mxu0 %v5514
    %7429 = vmatprep.subr.bf16.mxu0 %v5521
    %7430 = vmatpush1.bf16.msra.mxu0 %v5520
    %7431 = vmatprep.subr.bf16.mxu0 %v5527
    %7432 = vmatpush1.bf16.msra.mxu0 %v5526
    %7433 = vmatprep.subr.bf16.mxu0 %v5533
    %7434 = vmatpush1.bf16.msra.mxu0 %v5532
    %7435 = vmatprep.subr.bf16.mxu0 %v5539
    %7436 = vmatpush1.bf16.msra.mxu0 %v5538
    %7437 = vmatprep.subr.bf16.mxu0 %v5545
    %7438 = vmatpush1.bf16.msra.mxu0 %v5544
    %7439 = vmatprep.subr.bf16.mxu0 %v5551
    %7440 = vmatpush1.bf16.msra.mxu0 %v5550
    %7441 = vmatprep.subr.bf16.mxu0 %v5557
    %7442 = vmatpush1.bf16.msra.mxu0 %v5556
    %7443 = vmatprep.subr.bf16.mxu0 %v5563
    %7444 = vmatpush1.bf16.msra.mxu0 %v5562
    %7445 = vmatprep.subr.bf16.mxu0 %v5569
    %7446 = vmatpush1.bf16.msra.mxu0 %v5568
    %7447 = vmatprep.subr.bf16.mxu0 %v5575
    %7448 = vmatpush1.bf16.msra.mxu0 %v5574
    %7449 = vmatprep.mubr.bf16.mxu0 %v163
    %7450 = vmatmul.mubr.bf16.gmra.mrb[0].mxu0 %v162
    %v7451 = vpop.f32.mrb[0].mxu0
    %v7452 = vadd.f32 %v7409, %v7451
    %v7453 = vpop.f32.mrb[0].mxu0
    %v7454 = vadd.f32 %v7411, %v7453
    %v7455 = vpop.f32.mrb[0].mxu0
    %v7456 = vadd.f32 %v7413, %v7455
    %v7457 = vpop.f32.mrb[0].mxu0
    %v7458 = vadd.f32 %v7415, %v7457
    %7459 = vdwg.mxu0
    %7460 = vmatprep.subr.bf16.mxu0 %v5581
    %7461 = vmatpush1.bf16.msra.mxu0 %v5580
    %7462 = vmatprep.subr.bf16.mxu0 %v5587
    %7463 = vmatpush1.bf16.msra.mxu0 %v5586
    %7464 = vmatprep.subr.bf16.mxu0 %v5593
    %7465 = vmatpush1.bf16.msra.mxu0 %v5592
    %7466 = vmatprep.subr.bf16.mxu0 %v5599
    %7467 = vmatpush1.bf16.msra.mxu0 %v5598
    %7468 = vmatprep.subr.bf16.mxu0 %v5605
    %7469 = vmatpush1.bf16.msra.mxu0 %v5604
    %7470 = vmatprep.subr.bf16.mxu0 %v5611
    %7471 = vmatpush1.bf16.msra.mxu0 %v5610
    %7472 = vmatprep.subr.bf16.mxu0 %v5617
    %7473 = vmatpush1.bf16.msra.mxu0 %v5616
    %7474 = vmatprep.subr.bf16.mxu0 %v5623
    %7475 = vmatpush1.bf16.msra.mxu0 %v5622
    %7476 = vmatprep.subr.bf16.mxu0 %v5629
    %7477 = vmatpush1.bf16.msra.mxu0 %v5628
    %7478 = vmatprep.subr.bf16.mxu0 %v5635
    %7479 = vmatpush1.bf16.msra.mxu0 %v5634
    %7480 = vmatprep.subr.bf16.mxu0 %v5641
    %7481 = vmatpush1.bf16.msra.mxu0 %v5640
    %7482 = vmatprep.subr.bf16.mxu0 %v5647
    %7483 = vmatpush1.bf16.msra.mxu0 %v5646
    %7484 = vmatprep.subr.bf16.mxu0 %v5653
    %7485 = vmatpush1.bf16.msra.mxu0 %v5652
    %7486 = vmatprep.subr.bf16.mxu0 %v5659
    %7487 = vmatpush1.bf16.msra.mxu0 %v5658
    %7488 = vmatprep.subr.bf16.mxu0 %v5665
    %7489 = vmatpush1.bf16.msra.mxu0 %v5664
    %7490 = vmatprep.subr.bf16.mxu0 %v5671
    %7491 = vmatpush1.bf16.msra.mxu0 %v5670
    %7492 = vmatprep.mubr.bf16.mxu0 %v165
    %7493 = vmatmul.mubr.bf16.gmra.mrb[0].mxu0 %v164
    %v7494 = vpop.f32.mrb[0].mxu0
    %v7495 = vadd.f32 %v7452, %v7494
    %v7496 = vpop.f32.mrb[0].mxu0
    %v7497 = vadd.f32 %v7454, %v7496
    %v7498 = vpop.f32.mrb[0].mxu0
    %v7499 = vadd.f32 %v7456, %v7498
    %v7500 = vpop.f32.mrb[0].mxu0
    %v7501 = vadd.f32 %v7458, %v7500
    %7502 = vdwg.mxu0
    %7503 = vmatprep.subr.bf16.mxu0 %v5677
    %7504 = vmatpush1.bf16.msra.mxu0 %v5676
    %7505 = vmatprep.subr.bf16.mxu0 %v5683
    %7506 = vmatpush1.bf16.msra.mxu0 %v5682
    %7507 = vmatprep.subr.bf16.mxu0 %v5689
    %7508 = vmatpush1.bf16.msra.mxu0 %v5688
    %7509 = vmatprep.subr.bf16.mxu0 %v5695
    %7510 = vmatpush1.bf16.msra.mxu0 %v5694
    %7511 = vmatprep.subr.bf16.mxu0 %v5701
    %7512 = vmatpush1.bf16.msra.mxu0 %v5700
    %7513 = vmatprep.subr.bf16.mxu0 %v5707
    %7514 = vmatpush1.bf16.msra.mxu0 %v5706
    %7515 = vmatprep.subr.bf16.mxu0 %v5713
    %7516 = vmatpush1.bf16.msra.mxu0 %v5712
    %7517 = vmatprep.subr.bf16.mxu0 %v5719
    %7518 = vmatpush1.bf16.msra.mxu0 %v5718
    %7519 = vmatprep.subr.bf16.mxu0 %v5725
    %7520 = vmatpush1.bf16.msra.mxu0 %v5724
    %7521 = vmatprep.subr.bf16.mxu0 %v5731
    %7522 = vmatpush1.bf16.msra.mxu0 %v5730
    %7523 = vmatprep.subr.bf16.mxu0 %v5737
    %7524 = vmatpush1.bf16.msra.mxu0 %v5736
    %7525 = vmatprep.subr.bf16.mxu0 %v5743
    %7526 = vmatpush1.bf16.msra.mxu0 %v5742
    %7527 = vmatprep.subr.bf16.mxu0 %v5749
    %7528 = vmatpush1.bf16.msra.mxu0 %v5748
    %7529 = vmatprep.subr.bf16.mxu0 %v5755
    %7530 = vmatpush1.bf16.msra.mxu0 %v5754
    %7531 = vmatprep.subr.bf16.mxu0 %v5761
    %7532 = vmatpush1.bf16.msra.mxu0 %v5760
    %7533 = vmatprep.subr.bf16.mxu0 %v5767
    %7534 = vmatpush1.bf16.msra.mxu0 %v5766
    %7535 = vmatprep.mubr.bf16.mxu0 %v167
    %7536 = vmatmul.mubr.bf16.gmra.mrb[0].mxu0 %v166
    %v7537 = vpop.f32.mrb[0].mxu0
    %v7538 = vadd.f32 %v7495, %v7537
    %v7539 = vpop.f32.mrb[0].mxu0
    %v7540 = vadd.f32 %v7497, %v7539
    %v7541 = vpop.f32.mrb[0].mxu0
    %v7542 = vadd.f32 %v7499, %v7541
    %v7543 = vpop.f32.mrb[0].mxu0
    %v7544 = vadd.f32 %v7501, %v7543
    %7545 = vdwg.mxu0
    %7546 = vmatprep.subr.bf16.mxu0 %v5773
    %7547 = vmatpush1.bf16.msra.mxu0 %v5772
    %7548 = vmatprep.subr.bf16.mxu0 %v5779
    %7549 = vmatpush1.bf16.msra.mxu0 %v5778
    %7550 = vmatprep.subr.bf16.mxu0 %v5785
    %7551 = vmatpush1.bf16.msra.mxu0 %v5784
    %7552 = vmatprep.subr.bf16.mxu0 %v5791
    %7553 = vmatpush1.bf16.msra.mxu0 %v5790
    %7554 = vmatprep.subr.bf16.mxu0 %v5797
    %7555 = vmatpush1.bf16.msra.mxu0 %v5796
    %7556 = vmatprep.subr.bf16.mxu0 %v5803
    %7557 = vmatpush1.bf16.msra.mxu0 %v5802
    %7558 = vmatprep.subr.bf16.mxu0 %v5809
    %7559 = vmatpush1.bf16.msra.mxu0 %v5808
    %7560 = vmatprep.subr.bf16.mxu0 %v5815
    %7561 = vmatpush1.bf16.msra.mxu0 %v5814
    %7562 = vmatprep.subr.bf16.mxu0 %v5821
    %7563 = vmatpush1.bf16.msra.mxu0 %v5820
    %7564 = vmatprep.subr.bf16.mxu0 %v5827
    %7565 = vmatpush1.bf16.msra.mxu0 %v5826
    %7566 = vmatprep.subr.bf16.mxu0 %v5833
    %7567 = vmatpush1.bf16.msra.mxu0 %v5832
    %7568 = vmatprep.subr.bf16.mxu0 %v5839
    %7569 = vmatpush1.bf16.msra.mxu0 %v5838
    %7570 = vmatprep.subr.bf16.mxu0 %v5845
    %7571 = vmatpush1.bf16.msra.mxu0 %v5844
    %7572 = vmatprep.subr.bf16.mxu0 %v5851
    %7573 = vmatpush1.bf16.msra.mxu0 %v5850
    %7574 = vmatprep.subr.bf16.mxu0 %v5857
    %7575 = vmatpush1.bf16.msra.mxu0 %v5856
    %7576 = vmatprep.subr.bf16.mxu0 %v5863
    %7577 = vmatpush1.bf16.msra.mxu0 %v5862
    %7578 = vmatprep.mubr.bf16.mxu0 %v169
    %7579 = vmatmul.mubr.bf16.gmra.mrb[0].mxu0 %v168
    %v7580 = vpop.f32.mrb[0].mxu0
    %v7581 = vadd.f32 %v7538, %v7580
    %v7582 = vpop.f32.mrb[0].mxu0
    %v7583 = vadd.f32 %v7540, %v7582
    %v7584 = vpop.f32.mrb[0].mxu0
    %v7585 = vadd.f32 %v7542, %v7584
    %v7586 = vpop.f32.mrb[0].mxu0
    %v7587 = vadd.f32 %v7544, %v7586
    %7588 = vdwg.mxu0
    %7589 = vmatprep.subr.bf16.mxu0 %v5869
    %7590 = vmatpush1.bf16.msra.mxu0 %v5868
    %7591 = vmatprep.subr.bf16.mxu0 %v5875
    %7592 = vmatpush1.bf16.msra.mxu0 %v5874
    %7593 = vmatprep.subr.bf16.mxu0 %v5881
    %7594 = vmatpush1.bf16.msra.mxu0 %v5880
    %7595 = vmatprep.subr.bf16.mxu0 %v5887
    %7596 = vmatpush1.bf16.msra.mxu0 %v5886
    %7597 = vmatprep.subr.bf16.mxu0 %v5893
    %7598 = vmatpush1.bf16.msra.mxu0 %v5892
    %7599 = vmatprep.subr.bf16.mxu0 %v5899
    %7600 = vmatpush1.bf16.msra.mxu0 %v5898
    %7601 = vmatprep.subr.bf16.mxu0 %v5905
    %7602 = vmatpush1.bf16.msra.mxu0 %v5904
    %7603 = vmatprep.subr.bf16.mxu0 %v5911
    %7604 = vmatpush1.bf16.msra.mxu0 %v5910
    %7605 = vmatprep.subr.bf16.mxu0 %v5917
    %7606 = vmatpush1.bf16.msra.mxu0 %v5916
    %7607 = vmatprep.subr.bf16.mxu0 %v5923
    %7608 = vmatpush1.bf16.msra.mxu0 %v5922
    %7609 = vmatprep.subr.bf16.mxu0 %v5929
    %7610 = vmatpush1.bf16.msra.mxu0 %v5928
    %7611 = vmatprep.subr.bf16.mxu0 %v5935
    %7612 = vmatpush1.bf16.msra.mxu0 %v5934
    %7613 = vmatprep.subr.bf16.mxu0 %v5941
    %7614 = vmatpush1.bf16.msra.mxu0 %v5940
    %7615 = vmatprep.subr.bf16.mxu0 %v5947
    %7616 = vmatpush1.bf16.msra.mxu0 %v5946
    %7617 = vmatprep.subr.bf16.mxu0 %v5953
    %7618 = vmatpush1.bf16.msra.mxu0 %v5952
    %7619 = vmatprep.subr.bf16.mxu0 %v5959
    %7620 = vmatpush1.bf16.msra.mxu0 %v5958
    %7621 = vmatprep.mubr.bf16.mxu0 %v171
    %7622 = vmatmul.mubr.bf16.gmra.mrb[0].mxu0 %v170
    %v7623 = vpop.f32.mrb[0].mxu0
    %v7624 = vadd.f32 %v7581, %v7623
    %v7625 = vpop.f32.mrb[0].mxu0
    %v7626 = vadd.f32 %v7583, %v7625
    %v7627 = vpop.f32.mrb[0].mxu0
    %v7628 = vadd.f32 %v7585, %v7627
    %v7629 = vpop.f32.mrb[0].mxu0
    %v7630 = vadd.f32 %v7587, %v7629
    %7631 = vdwg.mxu0
    %7632 = vmatprep.subr.bf16.mxu0 %v4815
    %7633 = vmatpush1.bf16.msra.mxu0 %v4814
    %7634 = vmatprep.subr.bf16.mxu0 %v4821
    %7635 = vmatpush1.bf16.msra.mxu0 %v4820
    %7636 = vmatprep.subr.bf16.mxu0 %v4827
    %7637 = vmatpush1.bf16.msra.mxu0 %v4826
    %7638 = vmatprep.subr.bf16.mxu0 %v4833
    %7639 = vmatpush1.bf16.msra.mxu0 %v4832
    %7640 = vmatprep.subr.bf16.mxu0 %v4839
    %7641 = vmatpush1.bf16.msra.mxu0 %v4838
    %7642 = vmatprep.subr.bf16.mxu0 %v4845
    %7643 = vmatpush1.bf16.msra.mxu0 %v4844
    %7644 = vmatprep.subr.bf16.mxu0 %v4851
    %7645 = vmatpush1.bf16.msra.mxu0 %v4850
    %7646 = vmatprep.subr.bf16.mxu0 %v4857
    %7647 = vmatpush1.bf16.msra.mxu0 %v4856
    %7648 = vmatprep.subr.bf16.mxu0 %v4863
    %7649 = vmatpush1.bf16.msra.mxu0 %v4862
    %7650 = vmatprep.subr.bf16.mxu0 %v4869
    %7651 = vmatpush1.bf16.msra.mxu0 %v4868
    %7652 = vmatprep.subr.bf16.mxu0 %v4875
    %7653 = vmatpush1.bf16.msra.mxu0 %v4874
    %7654 = vmatprep.subr.bf16.mxu0 %v4881
    %7655 = vmatpush1.bf16.msra.mxu0 %v4880
    %7656 = vmatprep.subr.bf16.mxu0 %v4887
    %7657 = vmatpush1.bf16.msra.mxu0 %v4886
    %7658 = vmatprep.subr.bf16.mxu0 %v4893
    %7659 = vmatpush1.bf16.msra.mxu0 %v4892
    %7660 = vmatprep.subr.bf16.mxu0 %v4899
    %7661 = vmatpush1.bf16.msra.mxu0 %v4898
    %7662 = vmatprep.subr.bf16.mxu0 %v4905
    %7663 = vmatpush1.bf16.msra.mxu0 %v4904
    %7664 = vmatprep.mubr.bf16.mxu0 %v149
    %7665 = vmatmul.mubr.bf16.gmra.mrb[0].mxu0 %v148
    %v7666 = vpop.f32.mrb[0].mxu0
    %v7667 = vadd.f32 %v1337, %v7666
    %v7668 = vpop.f32.mrb[0].mxu0
    %v7669 = vadd.f32 %v1341, %v7668
    %v7670 = vpop.f32.mrb[0].mxu0
    %v7671 = vadd.f32 %v1337, %v7670
    %v7672 = vpop.f32.mrb[0].mxu0
    %v7673 = vadd.f32 %v1341, %v7672
    %7674 = vdwg.mxu0
    %7675 = vmatprep.subr.bf16.mxu0 %v4911
    %7676 = vmatpush1.bf16.msra.mxu0 %v4910
    %7677 = vmatprep.subr.bf16.mxu0 %v4917
    %7678 = vmatpush1.bf16.msra.mxu0 %v4916
    %7679 = vmatprep.subr.bf16.mxu0 %v4923
    %7680 = vmatpush1.bf16.msra.mxu0 %v4922
    %7681 = vmatprep.subr.bf16.mxu0 %v4929
    %7682 = vmatpush1.bf16.msra.mxu0 %v4928
    %7683 = vmatprep.subr.bf16.mxu0 %v4935
    %7684 = vmatpush1.bf16.msra.mxu0 %v4934
    %7685 = vmatprep.subr.bf16.mxu0 %v4941
    %7686 = vmatpush1.bf16.msra.mxu0 %v4940
    %7687 = vmatprep.subr.bf16.mxu0 %v4947
    %7688 = vmatpush1.bf16.msra.mxu0 %v4946
    %7689 = vmatprep.subr.bf16.mxu0 %v4953
    %7690 = vmatpush1.bf16.msra.mxu0 %v4952
    %7691 = vmatprep.subr.bf16.mxu0 %v4959
    %7692 = vmatpush1.bf16.msra.mxu0 %v4958
    %7693 = vmatprep.subr.bf16.mxu0 %v4965
    %7694 = vmatpush1.bf16.msra.mxu0 %v4964
    %7695 = vmatprep.subr.bf16.mxu0 %v4971
    %7696 = vmatpush1.bf16.msra.mxu0 %v4970
    %7697 = vmatprep.subr.bf16.mxu0 %v4977
    %7698 = vmatpush1.bf16.msra.mxu0 %v4976
    %7699 = vmatprep.subr.bf16.mxu0 %v4983
    %7700 = vmatpush1.bf16.msra.mxu0 %v4982
    %7701 = vmatprep.subr.bf16.mxu0 %v4989
    %7702 = vmatpush1.bf16.msra.mxu0 %v4988
    %7703 = vmatprep.subr.bf16.mxu0 %v4995
    %7704 = vmatpush1.bf16.msra.mxu0 %v4994
    %7705 = vmatprep.subr.bf16.mxu0 %v5001
    %7706 = vmatpush1.bf16.msra.mxu0 %v5000
    %7707 = vmatprep.mubr.bf16.mxu0 %v151
    %7708 = vmatmul.mubr.bf16.gmra.mrb[0].mxu0 %v150
    %v7709 = vpop.f32.mrb[0].mxu0
    %v7710 = vadd.f32 %v7667, %v7709
    %v7711 = vpop.f32.mrb[0].mxu0
    %v7712 = vadd.f32 %v7669, %v7711
    %v7713 = vpop.f32.mrb[0].mxu0
    %v7714 = vadd.f32 %v7671, %v7713
    %v7715 = vpop.f32.mrb[0].mxu0
    %v7716 = vadd.f32 %v7673, %v7715
    %7717 = vdwg.mxu0
    %7718 = vmatprep.subr.bf16.mxu0 %v5007
    %7719 = vmatpush1.bf16.msra.mxu0 %v5006
    %7720 = vmatprep.subr.bf16.mxu0 %v5013
    %7721 = vmatpush1.bf16.msra.mxu0 %v5012
    %7722 = vmatprep.subr.bf16.mxu0 %v5019
    %7723 = vmatpush1.bf16.msra.mxu0 %v5018
    %7724 = vmatprep.subr.bf16.mxu0 %v5025
    %7725 = vmatpush1.bf16.msra.mxu0 %v5024
    %7726 = vmatprep.subr.bf16.mxu0 %v5031
    %7727 = vmatpush1.bf16.msra.mxu0 %v5030
    %7728 = vmatprep.subr.bf16.mxu0 %v5037
    %7729 = vmatpush1.bf16.msra.mxu0 %v5036
    %7730 = vmatprep.subr.bf16.mxu0 %v5043
    %7731 = vmatpush1.bf16.msra.mxu0 %v5042
    %7732 = vmatprep.subr.bf16.mxu0 %v5049
    %7733 = vmatpush1.bf16.msra.mxu0 %v5048
    %7734 = vmatprep.subr.bf16.mxu0 %v5055
    %7735 = vmatpush1.bf16.msra.mxu0 %v5054
    %7736 = vmatprep.subr.bf16.mxu0 %v5061
    %7737 = vmatpush1.bf16.msra.mxu0 %v5060
    %7738 = vmatprep.subr.bf16.mxu0 %v5067
    %7739 = vmatpush1.bf16.msra.mxu0 %v5066
    %7740 = vmatprep.subr.bf16.mxu0 %v5073
    %7741 = vmatpush1.bf16.msra.mxu0 %v5072
    %7742 = vmatprep.subr.bf16.mxu0 %v5079
    %7743 = vmatpush1.bf16.msra.mxu0 %v5078
    %7744 = vmatprep.subr.bf16.mxu0 %v5085
    %7745 = vmatpush1.bf16.msra.mxu0 %v5084
    %7746 = vmatprep.subr.bf16.mxu0 %v5091
    %7747 = vmatpush1.bf16.msra.mxu0 %v5090
    %7748 = vmatprep.subr.bf16.mxu0 %v5097
    %7749 = vmatpush1.bf16.msra.mxu0 %v5096
    %7750 = vmatprep.mubr.bf16.mxu0 %v153
    %7751 = vmatmul.mubr.bf16.gmra.mrb[0].mxu0 %v152
    %v7752 = vpop.f32.mrb[0].mxu0
    %v7753 = vadd.f32 %v7710, %v7752
    %v7754 = vpop.f32.mrb[0].mxu0
    %v7755 = vadd.f32 %v7712, %v7754
    %v7756 = vpop.f32.mrb[0].mxu0
    %v7757 = vadd.f32 %v7714, %v7756
    %v7758 = vpop.f32.mrb[0].mxu0
    %v7759 = vadd.f32 %v7716, %v7758
    %7760 = vdwg.mxu0
    %7761 = vmatprep.subr.bf16.mxu0 %v5103
    %7762 = vmatpush1.bf16.msra.mxu0 %v5102
    %7763 = vmatprep.subr.bf16.mxu0 %v5109
    %7764 = vmatpush1.bf16.msra.mxu0 %v5108
    %7765 = vmatprep.subr.bf16.mxu0 %v5115
    %7766 = vmatpush1.bf16.msra.mxu0 %v5114
    %7767 = vmatprep.subr.bf16.mxu0 %v5121
    %7768 = vmatpush1.bf16.msra.mxu0 %v5120
    %7769 = vmatprep.subr.bf16.mxu0 %v5127
    %7770 = vmatpush1.bf16.msra.mxu0 %v5126
    %7771 = vmatprep.subr.bf16.mxu0 %v5133
    %7772 = vmatpush1.bf16.msra.mxu0 %v5132
    %7773 = vmatprep.subr.bf16.mxu0 %v5139
    %7774 = vmatpush1.bf16.msra.mxu0 %v5138
    %7775 = vmatprep.subr.bf16.mxu0 %v5145
    %7776 = vmatpush1.bf16.msra.mxu0 %v5144
    %7777 = vmatprep.subr.bf16.mxu0 %v5151
    %7778 = vmatpush1.bf16.msra.mxu0 %v5150
    %7779 = vmatprep.subr.bf16.mxu0 %v5157
    %7780 = vmatpush1.bf16.msra.mxu0 %v5156
    %7781 = vmatprep.subr.bf16.mxu0 %v5163
    %7782 = vmatpush1.bf16.msra.mxu0 %v5162
    %7783 = vmatprep.subr.bf16.mxu0 %v5169
    %7784 = vmatpush1.bf16.msra.mxu0 %v5168
    %7785 = vmatprep.subr.bf16.mxu0 %v5175
    %7786 = vmatpush1.bf16.msra.mxu0 %v5174
    %7787 = vmatprep.subr.bf16.mxu0 %v5181
    %7788 = vmatpush1.bf16.msra.mxu0 %v5180
    %7789 = vmatprep.subr.bf16.mxu0 %v5187
    %7790 = vmatpush1.bf16.msra.mxu0 %v5186
    %7791 = vmatprep.subr.bf16.mxu0 %v5193
    %7792 = vmatpush1.bf16.msra.mxu0 %v5192
    %7793 = vmatprep.mubr.bf16.mxu0 %v155
    %7794 = vmatmul.mubr.bf16.gmra.mrb[0].mxu0 %v154
    %v7795 = vpop.f32.mrb[0].mxu0
    %v7796 = vadd.f32 %v7753, %v7795
    %v7797 = vpop.f32.mrb[0].mxu0
    %v7798 = vadd.f32 %v7755, %v7797
    %v7799 = vpop.f32.mrb[0].mxu0
    %v7800 = vadd.f32 %v7757, %v7799
    %v7801 = vpop.f32.mrb[0].mxu0
    %v7802 = vadd.f32 %v7759, %v7801
    %7803 = vdwg.mxu0
    %7804 = vmatprep.subr.bf16.mxu0 %v5199
    %7805 = vmatpush1.bf16.msra.mxu0 %v5198
    %7806 = vmatprep.subr.bf16.mxu0 %v5205
    %7807 = vmatpush1.bf16.msra.mxu0 %v5204
    %7808 = vmatprep.subr.bf16.mxu0 %v5211
    %7809 = vmatpush1.bf16.msra.mxu0 %v5210
    %7810 = vmatprep.subr.bf16.mxu0 %v5217
    %7811 = vmatpush1.bf16.msra.mxu0 %v5216
    %7812 = vmatprep.subr.bf16.mxu0 %v5223
    %7813 = vmatpush1.bf16.msra.mxu0 %v5222
    %7814 = vmatprep.subr.bf16.mxu0 %v5229
    %7815 = vmatpush1.bf16.msra.mxu0 %v5228
    %7816 = vmatprep.subr.bf16.mxu0 %v5235
    %7817 = vmatpush1.bf16.msra.mxu0 %v5234
    %7818 = vmatprep.subr.bf16.mxu0 %v5241
    %7819 = vmatpush1.bf16.msra.mxu0 %v5240
    %7820 = vmatprep.subr.bf16.mxu0 %v5247
    %7821 = vmatpush1.bf16.msra.mxu0 %v5246
    %7822 = vmatprep.subr.bf16.mxu0 %v5253
    %7823 = vmatpush1.bf16.msra.mxu0 %v5252
    %7824 = vmatprep.subr.bf16.mxu0 %v5259
    %7825 = vmatpush1.bf16.msra.mxu0 %v5258
    %7826 = vmatprep.subr.bf16.mxu0 %v5265
    %7827 = vmatpush1.bf16.msra.mxu0 %v5264
    %7828 = vmatprep.subr.bf16.mxu0 %v5271
    %7829 = vmatpush1.bf16.msra.mxu0 %v5270
    %7830 = vmatprep.subr.bf16.mxu0 %v5277
    %7831 = vmatpush1.bf16.msra.mxu0 %v5276
    %7832 = vmatprep.subr.bf16.mxu0 %v5283
    %7833 = vmatpush1.bf16.msra.mxu0 %v5282
    %7834 = vmatprep.subr.bf16.mxu0 %v5289
    %7835 = vmatpush1.bf16.msra.mxu0 %v5288
    %7836 = vmatprep.mubr.bf16.mxu0 %v157
    %7837 = vmatmul.mubr.bf16.gmra.mrb[0].mxu0 %v156
    %v7838 = vpop.f32.mrb[0].mxu0
    %v7839 = vadd.f32 %v7796, %v7838
    %v7840 = vpop.f32.mrb[0].mxu0
    %v7841 = vadd.f32 %v7798, %v7840
    %v7842 = vpop.f32.mrb[0].mxu0
    %v7843 = vadd.f32 %v7800, %v7842
    %v7844 = vpop.f32.mrb[0].mxu0
    %v7845 = vadd.f32 %v7802, %v7844
    %7846 = vdwg.mxu0
    %7847 = vmatprep.subr.bf16.mxu0 %v5295
    %7848 = vmatpush1.bf16.msra.mxu0 %v5294
    %7849 = vmatprep.subr.bf16.mxu0 %v5301
    %7850 = vmatpush1.bf16.msra.mxu0 %v5300
    %7851 = vmatprep.subr.bf16.mxu0 %v5307
    %7852 = vmatpush1.bf16.msra.mxu0 %v5306
    %7853 = vmatprep.subr.bf16.mxu0 %v5313
    %7854 = vmatpush1.bf16.msra.mxu0 %v5312
    %7855 = vmatprep.subr.bf16.mxu0 %v5319
    %7856 = vmatpush1.bf16.msra.mxu0 %v5318
    %7857 = vmatprep.subr.bf16.mxu0 %v5325
    %7858 = vmatpush1.bf16.msra.mxu0 %v5324
    %7859 = vmatprep.subr.bf16.mxu0 %v5331
    %7860 = vmatpush1.bf16.msra.mxu0 %v5330
    %7861 = vmatprep.subr.bf16.mxu0 %v5337
    %7862 = vmatpush1.bf16.msra.mxu0 %v5336
    %7863 = vmatprep.subr.bf16.mxu0 %v5343
    %7864 = vmatpush1.bf16.msra.mxu0 %v5342
    %7865 = vmatprep.subr.bf16.mxu0 %v5349
    %7866 = vmatpush1.bf16.msra.mxu0 %v5348
    %7867 = vmatprep.subr.bf16.mxu0 %v5355
    %7868 = vmatpush1.bf16.msra.mxu0 %v5354
    %7869 = vmatprep.subr.bf16.mxu0 %v5361
    %7870 = vmatpush1.bf16.msra.mxu0 %v5360
    %7871 = vmatprep.subr.bf16.mxu0 %v5367
    %7872 = vmatpush1.bf16.msra.mxu0 %v5366
    %7873 = vmatprep.subr.bf16.mxu0 %v5373
    %7874 = vmatpush1.bf16.msra.mxu0 %v5372
    %7875 = vmatprep.subr.bf16.mxu0 %v5379
    %7876 = vmatpush1.bf16.msra.mxu0 %v5378
    %7877 = vmatprep.subr.bf16.mxu0 %v5385
    %7878 = vmatpush1.bf16.msra.mxu0 %v5384
    %7879 = vmatprep.mubr.bf16.mxu0 %v159
    %7880 = vmatmul.mubr.bf16.gmra.mrb[0].mxu0 %v158
    %v7881 = vpop.f32.mrb[0].mxu0
    %v7882 = vadd.f32 %v7839, %v7881
    %v7883 = vpop.f32.mrb[0].mxu0
    %v7884 = vadd.f32 %v7841, %v7883
    %v7885 = vpop.f32.mrb[0].mxu0
    %v7886 = vadd.f32 %v7843, %v7885
    %v7887 = vpop.f32.mrb[0].mxu0
    %v7888 = vadd.f32 %v7845, %v7887
    %7889 = vdwg.mxu0
    %7890 = vmatprep.subr.bf16.mxu0 %v5391
    %7891 = vmatpush1.bf16.msra.mxu0 %v5390
    %7892 = vmatprep.subr.bf16.mxu0 %v5397
    %7893 = vmatpush1.bf16.msra.mxu0 %v5396
    %7894 = vmatprep.subr.bf16.mxu0 %v5403
    %7895 = vmatpush1.bf16.msra.mxu0 %v5402
    %7896 = vmatprep.subr.bf16.mxu0 %v5409
    %7897 = vmatpush1.bf16.msra.mxu0 %v5408
    %7898 = vmatprep.subr.bf16.mxu0 %v5415
    %7899 = vmatpush1.bf16.msra.mxu0 %v5414
    %7900 = vmatprep.subr.bf16.mxu0 %v5421
    %7901 = vmatpush1.bf16.msra.mxu0 %v5420
    %7902 = vmatprep.subr.bf16.mxu0 %v5427
    %7903 = vmatpush1.bf16.msra.mxu0 %v5426
    %7904 = vmatprep.subr.bf16.mxu0 %v5433
    %7905 = vmatpush1.bf16.msra.mxu0 %v5432
    %7906 = vmatprep.subr.bf16.mxu0 %v5439
    %7907 = vmatpush1.bf16.msra.mxu0 %v5438
    %7908 = vmatprep.subr.bf16.mxu0 %v5445
    %7909 = vmatpush1.bf16.msra.mxu0 %v5444
    %7910 = vmatprep.subr.bf16.mxu0 %v5451
    %7911 = vmatpush1.bf16.msra.mxu0 %v5450
    %7912 = vmatprep.subr.bf16.mxu0 %v5457
    %7913 = vmatpush1.bf16.msra.mxu0 %v5456
    %7914 = vmatprep.subr.bf16.mxu0 %v5463
    %7915 = vmatpush1.bf16.msra.mxu0 %v5462
    %7916 = vmatprep.subr.bf16.mxu0 %v5469
    %7917 = vmatpush1.bf16.msra.mxu0 %v5468
    %7918 = vmatprep.subr.bf16.mxu0 %v5475
    %7919 = vmatpush1.bf16.msra.mxu0 %v5474
    %7920 = vmatprep.subr.bf16.mxu0 %v5481
    %7921 = vmatpush1.bf16.msra.mxu0 %v5480
    %7922 = vmatprep.mubr.bf16.mxu0 %v161
    %7923 = vmatmul.mubr.bf16.gmra.mrb[0].mxu0 %v160
    %v7924 = vpop.f32.mrb[0].mxu0
    %v7925 = vadd.f32 %v7882, %v7924
    %v7926 = vpop.f32.mrb[0].mxu0
    %v7927 = vadd.f32 %v7884, %v7926
    %v7928 = vpop.f32.mrb[0].mxu0
    %v7929 = vadd.f32 %v7886, %v7928
    %v7930 = vpop.f32.mrb[0].mxu0
    %v7931 = vadd.f32 %v7888, %v7930
    %7932 = vdwg.mxu0
    %7933 = vmatprep.subr.bf16.mxu0 %v5487
    %7934 = vmatpush1.bf16.msra.mxu0 %v5486
    %7935 = vmatprep.subr.bf16.mxu0 %v5493
    %7936 = vmatpush1.bf16.msra.mxu0 %v5492
    %7937 = vmatprep.subr.bf16.mxu0 %v5499
    %7938 = vmatpush1.bf16.msra.mxu0 %v5498
    %7939 = vmatprep.subr.bf16.mxu0 %v5505
    %7940 = vmatpush1.bf16.msra.mxu0 %v5504
    %7941 = vmatprep.subr.bf16.mxu0 %v5511
    %7942 = vmatpush1.bf16.msra.mxu0 %v5510
    %7943 = vmatprep.subr.bf16.mxu0 %v5517
    %7944 = vmatpush1.bf16.msra.mxu0 %v5516
    %7945 = vmatprep.subr.bf16.mxu0 %v5523
    %7946 = vmatpush1.bf16.msra.mxu0 %v5522
    %7947 = vmatprep.subr.bf16.mxu0 %v5529
    %7948 = vmatpush1.bf16.msra.mxu0 %v5528
    %7949 = vmatprep.subr.bf16.mxu0 %v5535
    %7950 = vmatpush1.bf16.msra.mxu0 %v5534
    %7951 = vmatprep.subr.bf16.mxu0 %v5541
    %7952 = vmatpush1.bf16.msra.mxu0 %v5540
    %7953 = vmatprep.subr.bf16.mxu0 %v5547
    %7954 = vmatpush1.bf16.msra.mxu0 %v5546
    %7955 = vmatprep.subr.bf16.mxu0 %v5553
    %7956 = vmatpush1.bf16.msra.mxu0 %v5552
    %7957 = vmatprep.subr.bf16.mxu0 %v5559
    %7958 = vmatpush1.bf16.msra.mxu0 %v5558
    %7959 = vmatprep.subr.bf16.mxu0 %v5565
    %7960 = vmatpush1.bf16.msra.mxu0 %v5564
    %7961 = vmatprep.subr.bf16.mxu0 %v5571
    %7962 = vmatpush1.bf16.msra.mxu0 %v5570
    %7963 = vmatprep.subr.bf16.mxu0 %v5577
    %7964 = vmatpush1.bf16.msra.mxu0 %v5576
    %7965 = vmatprep.mubr.bf16.mxu0 %v163
    %7966 = vmatmul.mubr.bf16.gmra.mrb[0].mxu0 %v162
    %v7967 = vpop.f32.mrb[0].mxu0
    %v7968 = vadd.f32 %v7925, %v7967
    %v7969 = vpop.f32.mrb[0].mxu0
    %v7970 = vadd.f32 %v7927, %v7969
    %v7971 = vpop.f32.mrb[0].mxu0
    %v7972 = vadd.f32 %v7929, %v7971
    %v7973 = vpop.f32.mrb[0].mxu0
    %v7974 = vadd.f32 %v7931, %v7973
    %7975 = vdwg.mxu0
    %7976 = vmatprep.subr.bf16.mxu0 %v5583
    %7977 = vmatpush1.bf16.msra.mxu0 %v5582
    %7978 = vmatprep.subr.bf16.mxu0 %v5589
    %7979 = vmatpush1.bf16.msra.mxu0 %v5588
    %7980 = vmatprep.subr.bf16.mxu0 %v5595
    %7981 = vmatpush1.bf16.msra.mxu0 %v5594
    %7982 = vmatprep.subr.bf16.mxu0 %v5601
    %7983 = vmatpush1.bf16.msra.mxu0 %v5600
    %7984 = vmatprep.subr.bf16.mxu0 %v5607
    %7985 = vmatpush1.bf16.msra.mxu0 %v5606
    %7986 = vmatprep.subr.bf16.mxu0 %v5613
    %7987 = vmatpush1.bf16.msra.mxu0 %v5612
    %7988 = vmatprep.subr.bf16.mxu0 %v5619
    %7989 = vmatpush1.bf16.msra.mxu0 %v5618
    %7990 = vmatprep.subr.bf16.mxu0 %v5625
    %7991 = vmatpush1.bf16.msra.mxu0 %v5624
    %7992 = vmatprep.subr.bf16.mxu0 %v5631
    %7993 = vmatpush1.bf16.msra.mxu0 %v5630
    %7994 = vmatprep.subr.bf16.mxu0 %v5637
    %7995 = vmatpush1.bf16.msra.mxu0 %v5636
    %7996 = vmatprep.subr.bf16.mxu0 %v5643
    %7997 = vmatpush1.bf16.msra.mxu0 %v5642
    %7998 = vmatprep.subr.bf16.mxu0 %v5649
    %7999 = vmatpush1.bf16.msra.mxu0 %v5648
    %8000 = vmatprep.subr.bf16.mxu0 %v5655
    %8001 = vmatpush1.bf16.msra.mxu0 %v5654
    %8002 = vmatprep.subr.bf16.mxu0 %v5661
    %8003 = vmatpush1.bf16.msra.mxu0 %v5660
    %8004 = vmatprep.subr.bf16.mxu0 %v5667
    %8005 = vmatpush1.bf16.msra.mxu0 %v5666
    %8006 = vmatprep.subr.bf16.mxu0 %v5673
    %8007 = vmatpush1.bf16.msra.mxu0 %v5672
    %8008 = vmatprep.mubr.bf16.mxu0 %v165
    %8009 = vmatmul.mubr.bf16.gmra.mrb[0].mxu0 %v164
    %v8010 = vpop.f32.mrb[0].mxu0
    %v8011 = vadd.f32 %v7968, %v8010
    %v8012 = vpop.f32.mrb[0].mxu0
    %v8013 = vadd.f32 %v7970, %v8012
    %v8014 = vpop.f32.mrb[0].mxu0
    %v8015 = vadd.f32 %v7972, %v8014
    %v8016 = vpop.f32.mrb[0].mxu0
    %v8017 = vadd.f32 %v7974, %v8016
    %8018 = vdwg.mxu0
    %8019 = vmatprep.subr.bf16.mxu0 %v5679
    %8020 = vmatpush1.bf16.msra.mxu0 %v5678
    %8021 = vmatprep.subr.bf16.mxu0 %v5685
    %8022 = vmatpush1.bf16.msra.mxu0 %v5684
    %8023 = vmatprep.subr.bf16.mxu0 %v5691
    %8024 = vmatpush1.bf16.msra.mxu0 %v5690
    %8025 = vmatprep.subr.bf16.mxu0 %v5697
    %8026 = vmatpush1.bf16.msra.mxu0 %v5696
    %8027 = vmatprep.subr.bf16.mxu0 %v5703
    %8028 = vmatpush1.bf16.msra.mxu0 %v5702
    %8029 = vmatprep.subr.bf16.mxu0 %v5709
    %8030 = vmatpush1.bf16.msra.mxu0 %v5708
    %8031 = vmatprep.subr.bf16.mxu0 %v5715
    %8032 = vmatpush1.bf16.msra.mxu0 %v5714
    %8033 = vmatprep.subr.bf16.mxu0 %v5721
    %8034 = vmatpush1.bf16.msra.mxu0 %v5720
    %8035 = vmatprep.subr.bf16.mxu0 %v5727
    %8036 = vmatpush1.bf16.msra.mxu0 %v5726
    %8037 = vmatprep.subr.bf16.mxu0 %v5733
    %8038 = vmatpush1.bf16.msra.mxu0 %v5732
    %8039 = vmatprep.subr.bf16.mxu0 %v5739
    %8040 = vmatpush1.bf16.msra.mxu0 %v5738
    %8041 = vmatprep.subr.bf16.mxu0 %v5745
    %8042 = vmatpush1.bf16.msra.mxu0 %v5744
    %8043 = vmatprep.subr.bf16.mxu0 %v5751
    %8044 = vmatpush1.bf16.msra.mxu0 %v5750
    %8045 = vmatprep.subr.bf16.mxu0 %v5757
    %8046 = vmatpush1.bf16.msra.mxu0 %v5756
    %8047 = vmatprep.subr.bf16.mxu0 %v5763
    %8048 = vmatpush1.bf16.msra.mxu0 %v5762
    %8049 = vmatprep.subr.bf16.mxu0 %v5769
    %8050 = vmatpush1.bf16.msra.mxu0 %v5768
    %8051 = vmatprep.mubr.bf16.mxu0 %v167
    %8052 = vmatmul.mubr.bf16.gmra.mrb[0].mxu0 %v166
    %v8053 = vpop.f32.mrb[0].mxu0
    %v8054 = vadd.f32 %v8011, %v8053
    %v8055 = vpop.f32.mrb[0].mxu0
    %v8056 = vadd.f32 %v8013, %v8055
    %v8057 = vpop.f32.mrb[0].mxu0
    %v8058 = vadd.f32 %v8015, %v8057
    %v8059 = vpop.f32.mrb[0].mxu0
    %v8060 = vadd.f32 %v8017, %v8059
    %8061 = vdwg.mxu0
    %8062 = vmatprep.subr.bf16.mxu0 %v5775
    %8063 = vmatpush1.bf16.msra.mxu0 %v5774
    %8064 = vmatprep.subr.bf16.mxu0 %v5781
    %8065 = vmatpush1.bf16.msra.mxu0 %v5780
    %8066 = vmatprep.subr.bf16.mxu0 %v5787
    %8067 = vmatpush1.bf16.msra.mxu0 %v5786
    %8068 = vmatprep.subr.bf16.mxu0 %v5793
    %8069 = vmatpush1.bf16.msra.mxu0 %v5792
    %8070 = vmatprep.subr.bf16.mxu0 %v5799
    %8071 = vmatpush1.bf16.msra.mxu0 %v5798
    %8072 = vmatprep.subr.bf16.mxu0 %v5805
    %8073 = vmatpush1.bf16.msra.mxu0 %v5804
    %8074 = vmatprep.subr.bf16.mxu0 %v5811
    %8075 = vmatpush1.bf16.msra.mxu0 %v5810
    %8076 = vmatprep.subr.bf16.mxu0 %v5817
    %8077 = vmatpush1.bf16.msra.mxu0 %v5816
    %8078 = vmatprep.subr.bf16.mxu0 %v5823
    %8079 = vmatpush1.bf16.msra.mxu0 %v5822
    %8080 = vmatprep.subr.bf16.mxu0 %v5829
    %8081 = vmatpush1.bf16.msra.mxu0 %v5828
    %8082 = vmatprep.subr.bf16.mxu0 %v5835
    %8083 = vmatpush1.bf16.msra.mxu0 %v5834
    %8084 = vmatprep.subr.bf16.mxu0 %v5841
    %8085 = vmatpush1.bf16.msra.mxu0 %v5840
    %8086 = vmatprep.subr.bf16.mxu0 %v5847
    %8087 = vmatpush1.bf16.msra.mxu0 %v5846
    %8088 = vmatprep.subr.bf16.mxu0 %v5853
    %8089 = vmatpush1.bf16.msra.mxu0 %v5852
    %8090 = vmatprep.subr.bf16.mxu0 %v5859
    %8091 = vmatpush1.bf16.msra.mxu0 %v5858
    %8092 = vmatprep.subr.bf16.mxu0 %v5865
    %8093 = vmatpush1.bf16.msra.mxu0 %v5864
    %8094 = vmatprep.mubr.bf16.mxu0 %v169
    %8095 = vmatmul.mubr.bf16.gmra.mrb[0].mxu0 %v168
    %v8096 = vpop.f32.mrb[0].mxu0
    %v8097 = vadd.f32 %v8054, %v8096
    %v8098 = vpop.f32.mrb[0].mxu0
    %v8099 = vadd.f32 %v8056, %v8098
    %v8100 = vpop.f32.mrb[0].mxu0
    %v8101 = vadd.f32 %v8058, %v8100
    %v8102 = vpop.f32.mrb[0].mxu0
    %v8103 = vadd.f32 %v8060, %v8102
    %8104 = vdwg.mxu0
    %8105 = vmatprep.subr.bf16.mxu0 %v5871
    %8106 = vmatpush1.bf16.msra.mxu0 %v5870
    %8107 = vmatprep.subr.bf16.mxu0 %v5877
    %8108 = vmatpush1.bf16.msra.mxu0 %v5876
    %8109 = vmatprep.subr.bf16.mxu0 %v5883
    %8110 = vmatpush1.bf16.msra.mxu0 %v5882
    %8111 = vmatprep.subr.bf16.mxu0 %v5889
    %8112 = vmatpush1.bf16.msra.mxu0 %v5888
    %8113 = vmatprep.subr.bf16.mxu0 %v5895
    %8114 = vmatpush1.bf16.msra.mxu0 %v5894
    %8115 = vmatprep.subr.bf16.mxu0 %v5901
    %8116 = vmatpush1.bf16.msra.mxu0 %v5900
    %8117 = vmatprep.subr.bf16.mxu0 %v5907
    %8118 = vmatpush1.bf16.msra.mxu0 %v5906
    %8119 = vmatprep.subr.bf16.mxu0 %v5913
    %8120 = vmatpush1.bf16.msra.mxu0 %v5912
    %8121 = vmatprep.subr.bf16.mxu0 %v5919
    %8122 = vmatpush1.bf16.msra.mxu0 %v5918
    %8123 = vmatprep.subr.bf16.mxu0 %v5925
    %8124 = vmatpush1.bf16.msra.mxu0 %v5924
    %8125 = vmatprep.subr.bf16.mxu0 %v5931
    %8126 = vmatpush1.bf16.msra.mxu0 %v5930
    %8127 = vmatprep.subr.bf16.mxu0 %v5937
    %8128 = vmatpush1.bf16.msra.mxu0 %v5936
    %8129 = vmatprep.subr.bf16.mxu0 %v5943
    %8130 = vmatpush1.bf16.msra.mxu0 %v5942
    %8131 = vmatprep.subr.bf16.mxu0 %v5949
    %8132 = vmatpush1.bf16.msra.mxu0 %v5948
    %8133 = vmatprep.subr.bf16.mxu0 %v5955
    %8134 = vmatpush1.bf16.msra.mxu0 %v5954
    %8135 = vmatprep.subr.bf16.mxu0 %v5961
    %8136 = vmatpush1.bf16.msra.mxu0 %v5960
    %8137 = vmatprep.mubr.bf16.mxu0 %v171
    %8138 = vmatmul.mubr.bf16.gmra.mrb[0].mxu0 %v170
    %v8139 = vpop.f32.mrb[0].mxu0
    %v8140 = vadd.f32 %v8097, %v8139
    %v8141 = vpop.f32.mrb[0].mxu0
    %v8142 = vadd.f32 %v8099, %v8141
    %v8143 = vpop.f32.mrb[0].mxu0
    %v8144 = vadd.f32 %v8101, %v8143
    %v8145 = vpop.f32.mrb[0].mxu0
    %v8146 = vadd.f32 %v8103, %v8145
    %8147 = vdwg.mxu0
    %8148 = vmatprep.subr.bf16.mxu0 %v4817
    %8149 = vmatpush1.bf16.msra.mxu0 %v4816
    %8150 = vmatprep.subr.bf16.mxu0 %v4823
    %8151 = vmatpush1.bf16.msra.mxu0 %v4822
    %8152 = vmatprep.subr.bf16.mxu0 %v4829
    %8153 = vmatpush1.bf16.msra.mxu0 %v4828
    %8154 = vmatprep.subr.bf16.mxu0 %v4835
    %8155 = vmatpush1.bf16.msra.mxu0 %v4834
    %8156 = vmatprep.subr.bf16.mxu0 %v4841
    %8157 = vmatpush1.bf16.msra.mxu0 %v4840
    %8158 = vmatprep.subr.bf16.mxu0 %v4847
    %8159 = vmatpush1.bf16.msra.mxu0 %v4846
    %8160 = vmatprep.subr.bf16.mxu0 %v4853
    %8161 = vmatpush1.bf16.msra.mxu0 %v4852
    %8162 = vmatprep.subr.bf16.mxu0 %v4859
    %8163 = vmatpush1.bf16.msra.mxu0 %v4858
    %8164 = vmatprep.subr.bf16.mxu0 %v4865
    %8165 = vmatpush1.bf16.msra.mxu0 %v4864
    %8166 = vmatprep.subr.bf16.mxu0 %v4871
    %8167 = vmatpush1.bf16.msra.mxu0 %v4870
    %8168 = vmatprep.subr.bf16.mxu0 %v4877
    %8169 = vmatpush1.bf16.msra.mxu0 %v4876
    %8170 = vmatprep.subr.bf16.mxu0 %v4883
    %8171 = vmatpush1.bf16.msra.mxu0 %v4882
    %8172 = vmatprep.subr.bf16.mxu0 %v4889
    %8173 = vmatpush1.bf16.msra.mxu0 %v4888
    %8174 = vmatprep.subr.bf16.mxu0 %v4895
    %8175 = vmatpush1.bf16.msra.mxu0 %v4894
    %8176 = vmatprep.subr.bf16.mxu0 %v4901
    %8177 = vmatpush1.bf16.msra.mxu0 %v4900
    %8178 = vmatprep.subr.bf16.mxu0 %v4907
    %8179 = vmatpush1.bf16.msra.mxu0 %v4906
    %8180 = vmatprep.mubr.bf16.mxu0 %v149
    %8181 = vmatmul.mubr.bf16.gmra.mrb[0].mxu0 %v148
    %v8182 = vpop.f32.mrb[0].mxu0
    %v8183 = vadd.f32 %v1345, %v8182
    %v8184 = vpop.f32.mrb[0].mxu0
    %v8185 = vadd.f32 %v1349, %v8184
    %v8186 = vpop.f32.mrb[0].mxu0
    %v8187 = vadd.f32 %v1345, %v8186
    %v8188 = vpop.f32.mrb[0].mxu0
    %v8189 = vadd.f32 %v1349, %v8188
    %8190 = vdwg.mxu0
    %8191 = vmatprep.subr.bf16.mxu0 %v4913
    %8192 = vmatpush1.bf16.msra.mxu0 %v4912
    %8193 = vmatprep.subr.bf16.mxu0 %v4919
    %8194 = vmatpush1.bf16.msra.mxu0 %v4918
    %8195 = vmatprep.subr.bf16.mxu0 %v4925
    %8196 = vmatpush1.bf16.msra.mxu0 %v4924
    %8197 = vmatprep.subr.bf16.mxu0 %v4931
    %8198 = vmatpush1.bf16.msra.mxu0 %v4930
    %8199 = vmatprep.subr.bf16.mxu0 %v4937
    %8200 = vmatpush1.bf16.msra.mxu0 %v4936
    %8201 = vmatprep.subr.bf16.mxu0 %v4943
    %8202 = vmatpush1.bf16.msra.mxu0 %v4942
    %8203 = vmatprep.subr.bf16.mxu0 %v4949
    %8204 = vmatpush1.bf16.msra.mxu0 %v4948
    %8205 = vmatprep.subr.bf16.mxu0 %v4955
    %8206 = vmatpush1.bf16.msra.mxu0 %v4954
    %8207 = vmatprep.subr.bf16.mxu0 %v4961
    %8208 = vmatpush1.bf16.msra.mxu0 %v4960
    %8209 = vmatprep.subr.bf16.mxu0 %v4967
    %8210 = vmatpush1.bf16.msra.mxu0 %v4966
    %8211 = vmatprep.subr.bf16.mxu0 %v4973
    %8212 = vmatpush1.bf16.msra.mxu0 %v4972
    %8213 = vmatprep.subr.bf16.mxu0 %v4979
    %8214 = vmatpush1.bf16.msra.mxu0 %v4978
    %8215 = vmatprep.subr.bf16.mxu0 %v4985
    %8216 = vmatpush1.bf16.msra.mxu0 %v4984
    %8217 = vmatprep.subr.bf16.mxu0 %v4991
    %8218 = vmatpush1.bf16.msra.mxu0 %v4990
    %8219 = vmatprep.subr.bf16.mxu0 %v4997
    %8220 = vmatpush1.bf16.msra.mxu0 %v4996
    %8221 = vmatprep.subr.bf16.mxu0 %v5003
    %8222 = vmatpush1.bf16.msra.mxu0 %v5002
    %8223 = vmatprep.mubr.bf16.mxu0 %v151
    %8224 = vmatmul.mubr.bf16.gmra.mrb[0].mxu0 %v150
    %v8225 = vpop.f32.mrb[0].mxu0
    %v8226 = vadd.f32 %v8183, %v8225
    %v8227 = vpop.f32.mrb[0].mxu0
    %v8228 = vadd.f32 %v8185, %v8227
    %v8229 = vpop.f32.mrb[0].mxu0
    %v8230 = vadd.f32 %v8187, %v8229
    %v8231 = vpop.f32.mrb[0].mxu0
    %v8232 = vadd.f32 %v8189, %v8231
    %8233 = vdwg.mxu0
    %8234 = vmatprep.subr.bf16.mxu0 %v5009
    %8235 = vmatpush1.bf16.msra.mxu0 %v5008
    %8236 = vmatprep.subr.bf16.mxu0 %v5015
    %8237 = vmatpush1.bf16.msra.mxu0 %v5014
    %8238 = vmatprep.subr.bf16.mxu0 %v5021
    %8239 = vmatpush1.bf16.msra.mxu0 %v5020
    %8240 = vmatprep.subr.bf16.mxu0 %v5027
    %8241 = vmatpush1.bf16.msra.mxu0 %v5026
    %8242 = vmatprep.subr.bf16.mxu0 %v5033
    %8243 = vmatpush1.bf16.msra.mxu0 %v5032
    %8244 = vmatprep.subr.bf16.mxu0 %v5039
    %8245 = vmatpush1.bf16.msra.mxu0 %v5038
    %8246 = vmatprep.subr.bf16.mxu0 %v5045
    %8247 = vmatpush1.bf16.msra.mxu0 %v5044
    %8248 = vmatprep.subr.bf16.mxu0 %v5051
    %8249 = vmatpush1.bf16.msra.mxu0 %v5050
    %8250 = vmatprep.subr.bf16.mxu0 %v5057
    %8251 = vmatpush1.bf16.msra.mxu0 %v5056
    %8252 = vmatprep.subr.bf16.mxu0 %v5063
    %8253 = vmatpush1.bf16.msra.mxu0 %v5062
    %8254 = vmatprep.subr.bf16.mxu0 %v5069
    %8255 = vmatpush1.bf16.msra.mxu0 %v5068
    %8256 = vmatprep.subr.bf16.mxu0 %v5075
    %8257 = vmatpush1.bf16.msra.mxu0 %v5074
    %8258 = vmatprep.subr.bf16.mxu0 %v5081
    %8259 = vmatpush1.bf16.msra.mxu0 %v5080
    %8260 = vmatprep.subr.bf16.mxu0 %v5087
    %8261 = vmatpush1.bf16.msra.mxu0 %v5086
    %8262 = vmatprep.subr.bf16.mxu0 %v5093
    %8263 = vmatpush1.bf16.msra.mxu0 %v5092
    %8264 = vmatprep.subr.bf16.mxu0 %v5099
    %8265 = vmatpush1.bf16.msra.mxu0 %v5098
    %8266 = vmatprep.mubr.bf16.mxu0 %v153
    %8267 = vmatmul.mubr.bf16.gmra.mrb[0].mxu0 %v152
    %v8268 = vpop.f32.mrb[0].mxu0
    %v8269 = vadd.f32 %v8226, %v8268
    %v8270 = vpop.f32.mrb[0].mxu0
    %v8271 = vadd.f32 %v8228, %v8270
    %v8272 = vpop.f32.mrb[0].mxu0
    %v8273 = vadd.f32 %v8230, %v8272
    %v8274 = vpop.f32.mrb[0].mxu0
    %v8275 = vadd.f32 %v8232, %v8274
    %8276 = vdwg.mxu0
    %8277 = vmatprep.subr.bf16.mxu0 %v5105
    %8278 = vmatpush1.bf16.msra.mxu0 %v5104
    %8279 = vmatprep.subr.bf16.mxu0 %v5111
    %8280 = vmatpush1.bf16.msra.mxu0 %v5110
    %8281 = vmatprep.subr.bf16.mxu0 %v5117
    %8282 = vmatpush1.bf16.msra.mxu0 %v5116
    %8283 = vmatprep.subr.bf16.mxu0 %v5123
    %8284 = vmatpush1.bf16.msra.mxu0 %v5122
    %8285 = vmatprep.subr.bf16.mxu0 %v5129
    %8286 = vmatpush1.bf16.msra.mxu0 %v5128
    %8287 = vmatprep.subr.bf16.mxu0 %v5135
    %8288 = vmatpush1.bf16.msra.mxu0 %v5134
    %8289 = vmatprep.subr.bf16.mxu0 %v5141
    %8290 = vmatpush1.bf16.msra.mxu0 %v5140
    %8291 = vmatprep.subr.bf16.mxu0 %v5147
    %8292 = vmatpush1.bf16.msra.mxu0 %v5146
    %8293 = vmatprep.subr.bf16.mxu0 %v5153
    %8294 = vmatpush1.bf16.msra.mxu0 %v5152
    %8295 = vmatprep.subr.bf16.mxu0 %v5159
    %8296 = vmatpush1.bf16.msra.mxu0 %v5158
    %8297 = vmatprep.subr.bf16.mxu0 %v5165
    %8298 = vmatpush1.bf16.msra.mxu0 %v5164
    %8299 = vmatprep.subr.bf16.mxu0 %v5171
    %8300 = vmatpush1.bf16.msra.mxu0 %v5170
    %8301 = vmatprep.subr.bf16.mxu0 %v5177
    %8302 = vmatpush1.bf16.msra.mxu0 %v5176
    %8303 = vmatprep.subr.bf16.mxu0 %v5183
    %8304 = vmatpush1.bf16.msra.mxu0 %v5182
    %8305 = vmatprep.subr.bf16.mxu0 %v5189
    %8306 = vmatpush1.bf16.msra.mxu0 %v5188
    %8307 = vmatprep.subr.bf16.mxu0 %v5195
    %8308 = vmatpush1.bf16.msra.mxu0 %v5194
    %8309 = vmatprep.mubr.bf16.mxu0 %v155
    %8310 = vmatmul.mubr.bf16.gmra.mrb[0].mxu0 %v154
    %v8311 = vpop.f32.mrb[0].mxu0
    %v8312 = vadd.f32 %v8269, %v8311
    %v8313 = vpop.f32.mrb[0].mxu0
    %v8314 = vadd.f32 %v8271, %v8313
    %v8315 = vpop.f32.mrb[0].mxu0
    %v8316 = vadd.f32 %v8273, %v8315
    %v8317 = vpop.f32.mrb[0].mxu0
    %v8318 = vadd.f32 %v8275, %v8317
    %8319 = vdwg.mxu0
    %8320 = vmatprep.subr.bf16.mxu0 %v5201
    %8321 = vmatpush1.bf16.msra.mxu0 %v5200
    %8322 = vmatprep.subr.bf16.mxu0 %v5207
    %8323 = vmatpush1.bf16.msra.mxu0 %v5206
    %8324 = vmatprep.subr.bf16.mxu0 %v5213
    %8325 = vmatpush1.bf16.msra.mxu0 %v5212
    %8326 = vmatprep.subr.bf16.mxu0 %v5219
    %8327 = vmatpush1.bf16.msra.mxu0 %v5218
    %8328 = vmatprep.subr.bf16.mxu0 %v5225
    %8329 = vmatpush1.bf16.msra.mxu0 %v5224
    %8330 = vmatprep.subr.bf16.mxu0 %v5231
    %8331 = vmatpush1.bf16.msra.mxu0 %v5230
    %8332 = vmatprep.subr.bf16.mxu0 %v5237
    %8333 = vmatpush1.bf16.msra.mxu0 %v5236
    %8334 = vmatprep.subr.bf16.mxu0 %v5243
    %8335 = vmatpush1.bf16.msra.mxu0 %v5242
    %8336 = vmatprep.subr.bf16.mxu0 %v5249
    %8337 = vmatpush1.bf16.msra.mxu0 %v5248
    %8338 = vmatprep.subr.bf16.mxu0 %v5255
    %8339 = vmatpush1.bf16.msra.mxu0 %v5254
    %8340 = vmatprep.subr.bf16.mxu0 %v5261
    %8341 = vmatpush1.bf16.msra.mxu0 %v5260
    %8342 = vmatprep.subr.bf16.mxu0 %v5267
    %8343 = vmatpush1.bf16.msra.mxu0 %v5266
    %8344 = vmatprep.subr.bf16.mxu0 %v5273
    %8345 = vmatpush1.bf16.msra.mxu0 %v5272
    %8346 = vmatprep.subr.bf16.mxu0 %v5279
    %8347 = vmatpush1.bf16.msra.mxu0 %v5278
    %8348 = vmatprep.subr.bf16.mxu0 %v5285
    %8349 = vmatpush1.bf16.msra.mxu0 %v5284
    %8350 = vmatprep.subr.bf16.mxu0 %v5291
    %8351 = vmatpush1.bf16.msra.mxu0 %v5290
    %8352 = vmatprep.mubr.bf16.mxu0 %v157
    %8353 = vmatmul.mubr.bf16.gmra.mrb[0].mxu0 %v156
    %v8354 = vpop.f32.mrb[0].mxu0
    %v8355 = vadd.f32 %v8312, %v8354
    %v8356 = vpop.f32.mrb[0].mxu0
    %v8357 = vadd.f32 %v8314, %v8356
    %v8358 = vpop.f32.mrb[0].mxu0
    %v8359 = vadd.f32 %v8316, %v8358
    %v8360 = vpop.f32.mrb[0].mxu0
    %v8361 = vadd.f32 %v8318, %v8360
    %8362 = vdwg.mxu0
    %8363 = vmatprep.subr.bf16.mxu0 %v5297
    %8364 = vmatpush1.bf16.msra.mxu0 %v5296
    %8365 = vmatprep.subr.bf16.mxu0 %v5303
    %8366 = vmatpush1.bf16.msra.mxu0 %v5302
    %8367 = vmatprep.subr.bf16.mxu0 %v5309
    %8368 = vmatpush1.bf16.msra.mxu0 %v5308
    %8369 = vmatprep.subr.bf16.mxu0 %v5315
    %8370 = vmatpush1.bf16.msra.mxu0 %v5314
    %8371 = vmatprep.subr.bf16.mxu0 %v5321
    %8372 = vmatpush1.bf16.msra.mxu0 %v5320
    %8373 = vmatprep.subr.bf16.mxu0 %v5327
    %8374 = vmatpush1.bf16.msra.mxu0 %v5326
    %8375 = vmatprep.subr.bf16.mxu0 %v5333
    %8376 = vmatpush1.bf16.msra.mxu0 %v5332
    %8377 = vmatprep.subr.bf16.mxu0 %v5339
    %8378 = vmatpush1.bf16.msra.mxu0 %v5338
    %8379 = vmatprep.subr.bf16.mxu0 %v5345
    %8380 = vmatpush1.bf16.msra.mxu0 %v5344
    %8381 = vmatprep.subr.bf16.mxu0 %v5351
    %8382 = vmatpush1.bf16.msra.mxu0 %v5350
    %8383 = vmatprep.subr.bf16.mxu0 %v5357
    %8384 = vmatpush1.bf16.msra.mxu0 %v5356
    %8385 = vmatprep.subr.bf16.mxu0 %v5363
    %8386 = vmatpush1.bf16.msra.mxu0 %v5362
    %8387 = vmatprep.subr.bf16.mxu0 %v5369
    %8388 = vmatpush1.bf16.msra.mxu0 %v5368
    %8389 = vmatprep.subr.bf16.mxu0 %v5375
    %8390 = vmatpush1.bf16.msra.mxu0 %v5374
    %8391 = vmatprep.subr.bf16.mxu0 %v5381
    %8392 = vmatpush1.bf16.msra.mxu0 %v5380
    %8393 = vmatprep.subr.bf16.mxu0 %v5387
    %8394 = vmatpush1.bf16.msra.mxu0 %v5386
    %8395 = vmatprep.mubr.bf16.mxu0 %v159
    %8396 = vmatmul.mubr.bf16.gmra.mrb[0].mxu0 %v158
    %v8397 = vpop.f32.mrb[0].mxu0
    %v8398 = vadd.f32 %v8355, %v8397
    %v8399 = vpop.f32.mrb[0].mxu0
    %v8400 = vadd.f32 %v8357, %v8399
    %v8401 = vpop.f32.mrb[0].mxu0
    %v8402 = vadd.f32 %v8359, %v8401
    %v8403 = vpop.f32.mrb[0].mxu0
    %v8404 = vadd.f32 %v8361, %v8403
    %8405 = vdwg.mxu0
    %8406 = vmatprep.subr.bf16.mxu0 %v5393
    %8407 = vmatpush1.bf16.msra.mxu0 %v5392
    %8408 = vmatprep.subr.bf16.mxu0 %v5399
    %8409 = vmatpush1.bf16.msra.mxu0 %v5398
    %8410 = vmatprep.subr.bf16.mxu0 %v5405
    %8411 = vmatpush1.bf16.msra.mxu0 %v5404
    %8412 = vmatprep.subr.bf16.mxu0 %v5411
    %8413 = vmatpush1.bf16.msra.mxu0 %v5410
    %8414 = vmatprep.subr.bf16.mxu0 %v5417
    %8415 = vmatpush1.bf16.msra.mxu0 %v5416
    %8416 = vmatprep.subr.bf16.mxu0 %v5423
    %8417 = vmatpush1.bf16.msra.mxu0 %v5422
    %8418 = vmatprep.subr.bf16.mxu0 %v5429
    %8419 = vmatpush1.bf16.msra.mxu0 %v5428
    %8420 = vmatprep.subr.bf16.mxu0 %v5435
    %8421 = vmatpush1.bf16.msra.mxu0 %v5434
    %8422 = vmatprep.subr.bf16.mxu0 %v5441
    %8423 = vmatpush1.bf16.msra.mxu0 %v5440
    %8424 = vmatprep.subr.bf16.mxu0 %v5447
    %8425 = vmatpush1.bf16.msra.mxu0 %v5446
    %8426 = vmatprep.subr.bf16.mxu0 %v5453
    %8427 = vmatpush1.bf16.msra.mxu0 %v5452
    %8428 = vmatprep.subr.bf16.mxu0 %v5459
    %8429 = vmatpush1.bf16.msra.mxu0 %v5458
    %8430 = vmatprep.subr.bf16.mxu0 %v5465
    %8431 = vmatpush1.bf16.msra.mxu0 %v5464
    %8432 = vmatprep.subr.bf16.mxu0 %v5471
    %8433 = vmatpush1.bf16.msra.mxu0 %v5470
    %8434 = vmatprep.subr.bf16.mxu0 %v5477
    %8435 = vmatpush1.bf16.msra.mxu0 %v5476
    %8436 = vmatprep.subr.bf16.mxu0 %v5483
    %8437 = vmatpush1.bf16.msra.mxu0 %v5482
    %8438 = vmatprep.mubr.bf16.mxu0 %v161
    %8439 = vmatmul.mubr.bf16.gmra.mrb[0].mxu0 %v160
    %v8440 = vpop.f32.mrb[0].mxu0
    %v8441 = vadd.f32 %v8398, %v8440
    %v8442 = vpop.f32.mrb[0].mxu0
    %v8443 = vadd.f32 %v8400, %v8442
    %v8444 = vpop.f32.mrb[0].mxu0
    %v8445 = vadd.f32 %v8402, %v8444
    %v8446 = vpop.f32.mrb[0].mxu0
    %v8447 = vadd.f32 %v8404, %v8446
    %8448 = vdwg.mxu0
    %8449 = vmatprep.subr.bf16.mxu0 %v5489
    %8450 = vmatpush1.bf16.msra.mxu0 %v5488
    %8451 = vmatprep.subr.bf16.mxu0 %v5495
    %8452 = vmatpush1.bf16.msra.mxu0 %v5494
    %8453 = vmatprep.subr.bf16.mxu0 %v5501
    %8454 = vmatpush1.bf16.msra.mxu0 %v5500
    %8455 = vmatprep.subr.bf16.mxu0 %v5507
    %8456 = vmatpush1.bf16.msra.mxu0 %v5506
    %8457 = vmatprep.subr.bf16.mxu0 %v5513
    %8458 = vmatpush1.bf16.msra.mxu0 %v5512
    %8459 = vmatprep.subr.bf16.mxu0 %v5519
    %8460 = vmatpush1.bf16.msra.mxu0 %v5518
    %8461 = vmatprep.subr.bf16.mxu0 %v5525
    %8462 = vmatpush1.bf16.msra.mxu0 %v5524
    %8463 = vmatprep.subr.bf16.mxu0 %v5531
    %8464 = vmatpush1.bf16.msra.mxu0 %v5530
    %8465 = vmatprep.subr.bf16.mxu0 %v5537
    %8466 = vmatpush1.bf16.msra.mxu0 %v5536
    %8467 = vmatprep.subr.bf16.mxu0 %v5543
    %8468 = vmatpush1.bf16.msra.mxu0 %v5542
    %8469 = vmatprep.subr.bf16.mxu0 %v5549
    %8470 = vmatpush1.bf16.msra.mxu0 %v5548
    %8471 = vmatprep.subr.bf16.mxu0 %v5555
    %8472 = vmatpush1.bf16.msra.mxu0 %v5554
    %8473 = vmatprep.subr.bf16.mxu0 %v5561
    %8474 = vmatpush1.bf16.msra.mxu0 %v5560
    %8475 = vmatprep.subr.bf16.mxu0 %v5567
    %8476 = vmatpush1.bf16.msra.mxu0 %v5566
    %8477 = vmatprep.subr.bf16.mxu0 %v5573
    %8478 = vmatpush1.bf16.msra.mxu0 %v5572
    %8479 = vmatprep.subr.bf16.mxu0 %v5579
    %8480 = vmatpush1.bf16.msra.mxu0 %v5578
    %8481 = vmatprep.mubr.bf16.mxu0 %v163
    %8482 = vmatmul.mubr.bf16.gmra.mrb[0].mxu0 %v162
    %v8483 = vpop.f32.mrb[0].mxu0
    %v8484 = vadd.f32 %v8441, %v8483
    %v8485 = vpop.f32.mrb[0].mxu0
    %v8486 = vadd.f32 %v8443, %v8485
    %v8487 = vpop.f32.mrb[0].mxu0
    %v8488 = vadd.f32 %v8445, %v8487
    %v8489 = vpop.f32.mrb[0].mxu0
    %v8490 = vadd.f32 %v8447, %v8489
    %8491 = vdwg.mxu0
    %8492 = vmatprep.subr.bf16.mxu0 %v5585
    %8493 = vmatpush1.bf16.msra.mxu0 %v5584
    %8494 = vmatprep.subr.bf16.mxu0 %v5591
    %8495 = vmatpush1.bf16.msra.mxu0 %v5590
    %8496 = vmatprep.subr.bf16.mxu0 %v5597
    %8497 = vmatpush1.bf16.msra.mxu0 %v5596
    %8498 = vmatprep.subr.bf16.mxu0 %v5603
    %8499 = vmatpush1.bf16.msra.mxu0 %v5602
    %8500 = vmatprep.subr.bf16.mxu0 %v5609
    %8501 = vmatpush1.bf16.msra.mxu0 %v5608
    %8502 = vmatprep.subr.bf16.mxu0 %v5615
    %8503 = vmatpush1.bf16.msra.mxu0 %v5614
    %8504 = vmatprep.subr.bf16.mxu0 %v5621
    %8505 = vmatpush1.bf16.msra.mxu0 %v5620
    %8506 = vmatprep.subr.bf16.mxu0 %v5627
    %8507 = vmatpush1.bf16.msra.mxu0 %v5626
    %8508 = vmatprep.subr.bf16.mxu0 %v5633
    %8509 = vmatpush1.bf16.msra.mxu0 %v5632
    %8510 = vmatprep.subr.bf16.mxu0 %v5639
    %8511 = vmatpush1.bf16.msra.mxu0 %v5638
    %8512 = vmatprep.subr.bf16.mxu0 %v5645
    %8513 = vmatpush1.bf16.msra.mxu0 %v5644
    %8514 = vmatprep.subr.bf16.mxu0 %v5651
    %8515 = vmatpush1.bf16.msra.mxu0 %v5650
    %8516 = vmatprep.subr.bf16.mxu0 %v5657
    %8517 = vmatpush1.bf16.msra.mxu0 %v5656
    %8518 = vmatprep.subr.bf16.mxu0 %v5663
    %8519 = vmatpush1.bf16.msra.mxu0 %v5662
    %8520 = vmatprep.subr.bf16.mxu0 %v5669
    %8521 = vmatpush1.bf16.msra.mxu0 %v5668
    %8522 = vmatprep.subr.bf16.mxu0 %v5675
    %8523 = vmatpush1.bf16.msra.mxu0 %v5674
    %8524 = vmatprep.mubr.bf16.mxu0 %v165
    %8525 = vmatmul.mubr.bf16.gmra.mrb[0].mxu0 %v164
    %v8526 = vpop.f32.mrb[0].mxu0
    %v8527 = vadd.f32 %v8484, %v8526
    %v8528 = vpop.f32.mrb[0].mxu0
    %v8529 = vadd.f32 %v8486, %v8528
    %v8530 = vpop.f32.mrb[0].mxu0
    %v8531 = vadd.f32 %v8488, %v8530
    %v8532 = vpop.f32.mrb[0].mxu0
    %v8533 = vadd.f32 %v8490, %v8532
    %8534 = vdwg.mxu0
    %8535 = vmatprep.subr.bf16.mxu0 %v5681
    %8536 = vmatpush1.bf16.msra.mxu0 %v5680
    %8537 = vmatprep.subr.bf16.mxu0 %v5687
    %8538 = vmatpush1.bf16.msra.mxu0 %v5686
    %8539 = vmatprep.subr.bf16.mxu0 %v5693
    %8540 = vmatpush1.bf16.msra.mxu0 %v5692
    %8541 = vmatprep.subr.bf16.mxu0 %v5699
    %8542 = vmatpush1.bf16.msra.mxu0 %v5698
    %8543 = vmatprep.subr.bf16.mxu0 %v5705
    %8544 = vmatpush1.bf16.msra.mxu0 %v5704
    %8545 = vmatprep.subr.bf16.mxu0 %v5711
    %8546 = vmatpush1.bf16.msra.mxu0 %v5710
    %8547 = vmatprep.subr.bf16.mxu0 %v5717
    %8548 = vmatpush1.bf16.msra.mxu0 %v5716
    %8549 = vmatprep.subr.bf16.mxu0 %v5723
    %8550 = vmatpush1.bf16.msra.mxu0 %v5722
    %8551 = vmatprep.subr.bf16.mxu0 %v5729
    %8552 = vmatpush1.bf16.msra.mxu0 %v5728
    %8553 = vmatprep.subr.bf16.mxu0 %v5735
    %8554 = vmatpush1.bf16.msra.mxu0 %v5734
    %8555 = vmatprep.subr.bf16.mxu0 %v5741
    %8556 = vmatpush1.bf16.msra.mxu0 %v5740
    %8557 = vmatprep.subr.bf16.mxu0 %v5747
    %8558 = vmatpush1.bf16.msra.mxu0 %v5746
    %8559 = vmatprep.subr.bf16.mxu0 %v5753
    %8560 = vmatpush1.bf16.msra.mxu0 %v5752
    %8561 = vmatprep.subr.bf16.mxu0 %v5759
    %8562 = vmatpush1.bf16.msra.mxu0 %v5758
    %8563 = vmatprep.subr.bf16.mxu0 %v5765
    %8564 = vmatpush1.bf16.msra.mxu0 %v5764
    %8565 = vmatprep.subr.bf16.mxu0 %v5771
    %8566 = vmatpush1.bf16.msra.mxu0 %v5770
    %8567 = vmatprep.mubr.bf16.mxu0 %v167
    %8568 = vmatmul.mubr.bf16.gmra.mrb[0].mxu0 %v166
    %v8569 = vpop.f32.mrb[0].mxu0
    %v8570 = vadd.f32 %v8527, %v8569
    %v8571 = vpop.f32.mrb[0].mxu0
    %v8572 = vadd.f32 %v8529, %v8571
    %v8573 = vpop.f32.mrb[0].mxu0
    %v8574 = vadd.f32 %v8531, %v8573
    %v8575 = vpop.f32.mrb[0].mxu0
    %v8576 = vadd.f32 %v8533, %v8575
    %8577 = vdwg.mxu0
    %8578 = vmatprep.subr.bf16.mxu0 %v5777
    %8579 = vmatpush1.bf16.msra.mxu0 %v5776
    %8580 = vmatprep.subr.bf16.mxu0 %v5783
    %8581 = vmatpush1.bf16.msra.mxu0 %v5782
    %8582 = vmatprep.subr.bf16.mxu0 %v5789
    %8583 = vmatpush1.bf16.msra.mxu0 %v5788
    %8584 = vmatprep.subr.bf16.mxu0 %v5795
    %8585 = vmatpush1.bf16.msra.mxu0 %v5794
    %8586 = vmatprep.subr.bf16.mxu0 %v5801
    %8587 = vmatpush1.bf16.msra.mxu0 %v5800
    %8588 = vmatprep.subr.bf16.mxu0 %v5807
    %8589 = vmatpush1.bf16.msra.mxu0 %v5806
    %8590 = vmatprep.subr.bf16.mxu0 %v5813
    %8591 = vmatpush1.bf16.msra.mxu0 %v5812
    %8592 = vmatprep.subr.bf16.mxu0 %v5819
    %8593 = vmatpush1.bf16.msra.mxu0 %v5818
    %8594 = vmatprep.subr.bf16.mxu0 %v5825
    %8595 = vmatpush1.bf16.msra.mxu0 %v5824
    %8596 = vmatprep.subr.bf16.mxu0 %v5831
    %8597 = vmatpush1.bf16.msra.mxu0 %v5830
    %8598 = vmatprep.subr.bf16.mxu0 %v5837
    %8599 = vmatpush1.bf16.msra.mxu0 %v5836
    %8600 = vmatprep.subr.bf16.mxu0 %v5843
    %8601 = vmatpush1.bf16.msra.mxu0 %v5842
    %8602 = vmatprep.subr.bf16.mxu0 %v5849
    %8603 = vmatpush1.bf16.msra.mxu0 %v5848
    %8604 = vmatprep.subr.bf16.mxu0 %v5855
    %8605 = vmatpush1.bf16.msra.mxu0 %v5854
    %8606 = vmatprep.subr.bf16.mxu0 %v5861
    %8607 = vmatpush1.bf16.msra.mxu0 %v5860
    %8608 = vmatprep.subr.bf16.mxu0 %v5867
    %8609 = vmatpush1.bf16.msra.mxu0 %v5866
    %8610 = vmatprep.mubr.bf16.mxu0 %v169
    %8611 = vmatmul.mubr.bf16.gmra.mrb[0].mxu0 %v168
    %v8612 = vpop.f32.mrb[0].mxu0
    %v8613 = vadd.f32 %v8570, %v8612
    %v8614 = vpop.f32.mrb[0].mxu0
    %v8615 = vadd.f32 %v8572, %v8614
    %v8616 = vpop.f32.mrb[0].mxu0
    %v8617 = vadd.f32 %v8574, %v8616
    %v8618 = vpop.f32.mrb[0].mxu0
    %v8619 = vadd.f32 %v8576, %v8618
    %8620 = vdwg.mxu0
    %8621 = vmatprep.subr.bf16.mxu0 %v5873
    %8622 = vmatpush1.bf16.msra.mxu0 %v5872
    %8623 = vmatprep.subr.bf16.mxu0 %v5879
    %8624 = vmatpush1.bf16.msra.mxu0 %v5878
    %8625 = vmatprep.subr.bf16.mxu0 %v5885
    %8626 = vmatpush1.bf16.msra.mxu0 %v5884
    %8627 = vmatprep.subr.bf16.mxu0 %v5891
    %8628 = vmatpush1.bf16.msra.mxu0 %v5890
    %8629 = vmatprep.subr.bf16.mxu0 %v5897
    %8630 = vmatpush1.bf16.msra.mxu0 %v5896
    %8631 = vmatprep.subr.bf16.mxu0 %v5903
    %8632 = vmatpush1.bf16.msra.mxu0 %v5902
    %8633 = vmatprep.subr.bf16.mxu0 %v5909
    %8634 = vmatpush1.bf16.msra.mxu0 %v5908
    %8635 = vmatprep.subr.bf16.mxu0 %v5915
    %8636 = vmatpush1.bf16.msra.mxu0 %v5914
    %8637 = vmatprep.subr.bf16.mxu0 %v5921
    %8638 = vmatpush1.bf16.msra.mxu0 %v5920
    %8639 = vmatprep.subr.bf16.mxu0 %v5927
    %8640 = vmatpush1.bf16.msra.mxu0 %v5926
    %8641 = vmatprep.subr.bf16.mxu0 %v5933
    %8642 = vmatpush1.bf16.msra.mxu0 %v5932
    %8643 = vmatprep.subr.bf16.mxu0 %v5939
    %8644 = vmatpush1.bf16.msra.mxu0 %v5938
    %8645 = vmatprep.subr.bf16.mxu0 %v5945
    %8646 = vmatpush1.bf16.msra.mxu0 %v5944
    %8647 = vmatprep.subr.bf16.mxu0 %v5951
    %8648 = vmatpush1.bf16.msra.mxu0 %v5950
    %8649 = vmatprep.subr.bf16.mxu0 %v5957
    %8650 = vmatpush1.bf16.msra.mxu0 %v5956
    %8651 = vmatprep.subr.bf16.mxu0 %v5963
    %8652 = vmatpush1.bf16.msra.mxu0 %v5962
    %8653 = vmatprep.mubr.bf16.mxu0 %v171
    %8654 = vmatmul.mubr.bf16.gmra.mrb[0].mxu0 %v170
    %v8655 = vpop.f32.mrb[0].mxu0
    %v8656 = vadd.f32 %v8613, %v8655
    %v8657 = vpop.f32.mrb[0].mxu0
    %v8658 = vadd.f32 %v8615, %v8657
    %v8659 = vpop.f32.mrb[0].mxu0
    %v8660 = vadd.f32 %v8617, %v8659
    %v8661 = vpop.f32.mrb[0].mxu0
    %v8662 = vadd.f32 %v8619, %v8661
    %8663 = vdwg.mxu0
    %v8664 = vld [vmem:[#allocation8] sm:$0xff]
    %v8665 = vld [vmem:[#allocation8 + $0x8] sm:$0xff]
    %v8666 = vld [vmem:[#allocation8 + $0x10] sm:$0xff]
    %v8667 = vld [vmem:[#allocation8 + $0x18] sm:$0xff]
    %v8668 = vld [vmem:[#allocation8 + $0x20] sm:$0xff]
    %v8669 = vld [vmem:[#allocation8 + $0x28] sm:$0xff]
    %v8670 = vld [vmem:[#allocation8 + $0x30] sm:$0xff]
    %v8671 = vld [vmem:[#allocation8 + $0x38] sm:$0xff]
    %v8672 = vld [vmem:[#allocation8 + $0x40] sm:$0xff]
    %v8673 = vld [vmem:[#allocation8 + $0x48] sm:$0xff]
    %v8674 = vld [vmem:[#allocation8 + $0x50] sm:$0xff]
    %v8675 = vld [vmem:[#allocation8 + $0x58] sm:$0xff]
    %v8676 = vadd.f32 %v7624, %v8664
    %v8677 = vadd.f32 %v7626, %v8665
    %v8678 = vadd.f32 %v8140, %v8666
    %v8679 = vadd.f32 %v8142, %v8667
    %v8680 = vadd.f32 %v8656, %v8668
    %v8681 = vadd.f32 %v8658, %v8669
    %v8682 = vadd.f32 %v7628, %v8670
    %v8683 = vadd.f32 %v7630, %v8671
    %v8684 = vadd.f32 %v8144, %v8672
    %v8685 = vadd.f32 %v8146, %v8673
    %v8686 = vadd.f32 %v8660, %v8674
    %v8687 = vadd.f32 %v8662, %v8675
    %v8688 = vadd.f32 %v8676, %v8677
    %v8689 = vadd.f32 %v8688, %v8678
    %v8690 = vadd.f32 %v8689, %v8679
    %v8691 = vadd.f32 %v8690, %v8680
    %v8692 = vadd.f32 %v8691, %v8681
    %8693 = vadd.xlane.f32.xlu0 %v8692
    %v8694 = vpop.xlane.xlu0 %8693
    %v8695 = vadd.f32 %v8682, %v8683
    %v8696 = vadd.f32 %v8695, %v8684
    %v8697 = vadd.f32 %v8696, %v8685
    %v8698 = vadd.f32 %v8697, %v8686
    %v8699 = vadd.f32 %v8698, %v8687
    %8700 = vadd.xlane.f32.xlu0 %v8699
    %v8701 = vpop.xlane.xlu0 %8700
    %v8702 = vrcp.pop 768.0
    %v8703 = vmul.f32 %v8694, %v8702
    %v8704 = vmul.f32 %v8701, %v8702
    %v8705 = vsub.f32 %v8676, %v8703
    %v8706 = vsub.f32 %v8677, %v8703
    %v8707 = vsub.f32 %v8678, %v8703
    %v8708 = vsub.f32 %v8679, %v8703
    %v8709 = vsub.f32 %v8680, %v8703
    %v8710 = vsub.f32 %v8681, %v8703
    %v8711 = vsub.f32 %v8682, %v8704
    %v8712 = vsub.f32 %v8683, %v8704
    %v8713 = vsub.f32 %v8684, %v8704
    %v8714 = vsub.f32 %v8685, %v8704
    %v8715 = vsub.f32 %v8686, %v8704
    %v8716 = vsub.f32 %v8687, %v8704
    %v8717 = vmul.f32 %v8705, %v8705
    %v8718 = vmul.f32 %v8706, %v8706
    %v8719 = vmul.f32 %v8707, %v8707
    %v8720 = vmul.f32 %v8708, %v8708
    %v8721 = vmul.f32 %v8709, %v8709
    %v8722 = vmul.f32 %v8710, %v8710
    %v8723 = vmul.f32 %v8711, %v8711
    %v8724 = vmul.f32 %v8712, %v8712
    %v8725 = vmul.f32 %v8713, %v8713
    %v8726 = vmul.f32 %v8714, %v8714
    %v8727 = vmul.f32 %v8715, %v8715
    %v8728 = vmul.f32 %v8716, %v8716
    %v8729 = vadd.f32 %v8717, %v8718
    %v8730 = vadd.f32 %v8729, %v8719
    %v8731 = vadd.f32 %v8730, %v8720
    %v8732 = vadd.f32 %v8731, %v8721
    %v8733 = vadd.f32 %v8732, %v8722
    %8734 = vadd.xlane.f32.xlu0 %v8733
    %v8735 = vpop.xlane.xlu0 %8734
    %v8736 = vadd.f32 %v8723, %v8724
    %v8737 = vadd.f32 %v8736, %v8725
    %v8738 = vadd.f32 %v8737, %v8726
    %v8739 = vadd.f32 %v8738, %v8727
    %v8740 = vadd.f32 %v8739, %v8728
    %8741 = vadd.xlane.f32.xlu0 %v8740
    %v8742 = vpop.xlane.xlu0 %8741
    %v8743 = vmul.f32 %v8735, %v8702
    %v8744 = vmul.f32 %v8742, %v8702
    %v8745 = vadd.f32 %v8743, 1e-12
    %v8746 = vadd.f32 %v8744, 1e-12
    %v8747 = vrsqrt.pop %v8745
    %v8748 = vrsqrt.pop %v8746
    %v8749 = vld [vmem:[#allocation10] sm:$0x3f]
    %v8750 = vmul.f32 %v8705, %v8747
    %v8751 = vmul.f32 %v8706, %v8747
    %v8752 = vmul.f32 %v8707, %v8747
    %v8753 = vmul.f32 %v8708, %v8747
    %v8754 = vmul.f32 %v8709, %v8747
    %v8755 = vmul.f32 %v8710, %v8747
    %v8756 = vmul.f32 %v8711, %v8748
    %v8757 = vmul.f32 %v8712, %v8748
    %v8758 = vmul.f32 %v8713, %v8748
    %v8759 = vmul.f32 %v8714, %v8748
    %v8760 = vmul.f32 %v8715, %v8748
    %v8761 = vmul.f32 %v8716, %v8748
    %v8763 = vlaneseq
    %v8764 = vshrl.u32 %v8763, 7
    %v8765 = vsub.s32 0, %v8764
    %v8766 = vrot.slane %v8749, %v8765
    %v8767 = vlaneseq
    %v8768 = vshrl.u32 %v8767, 7
    %v8769 = vsub.s32 1, %v8768
    %v8770 = vrot.slane %v8749, %v8769
    %v8771 = vlaneseq
    %v8772 = vshrl.u32 %v8771, 7
    %v8773 = vsub.s32 2, %v8772
    %v8774 = vrot.slane %v8749, %v8773
    %v8775 = vlaneseq
    %v8776 = vshrl.u32 %v8775, 7
    %v8777 = vsub.s32 3, %v8776
    %v8778 = vrot.slane %v8749, %v8777
    %v8779 = vlaneseq
    %v8780 = vshrl.u32 %v8779, 7
    %v8781 = vsub.s32 4, %v8780
    %v8782 = vrot.slane %v8749, %v8781
    %v8783 = vlaneseq
    %v8784 = vshrl.u32 %v8783, 7
    %v8785 = vsub.s32 5, %v8784
    %v8786 = vrot.slane %v8749, %v8785
    %v8793 = vmul.f32 %v8766, %v8750
    %v8794 = vmul.f32 %v8770, %v8751
    %v8795 = vmul.f32 %v8774, %v8752
    %v8796 = vmul.f32 %v8778, %v8753
    %v8797 = vmul.f32 %v8782, %v8754
    %v8798 = vmul.f32 %v8786, %v8755
    %v8799 = vmul.f32 %v8766, %v8756
    %v8800 = vmul.f32 %v8770, %v8757
    %v8801 = vmul.f32 %v8774, %v8758
    %v8802 = vmul.f32 %v8778, %v8759
    %v8803 = vmul.f32 %v8782, %v8760
    %v8804 = vmul.f32 %v8786, %v8761
    %v8805 = vld [vmem:[#allocation11] sm:$0x3f]
    %v8807 = vlaneseq
    %v8808 = vshrl.u32 %v8807, 7
    %v8809 = vsub.s32 0, %v8808
    %v8810 = vrot.slane %v8805, %v8809
    %v8811 = vlaneseq
    %v8812 = vshrl.u32 %v8811, 7
    %v8813 = vsub.s32 1, %v8812
    %v8814 = vrot.slane %v8805, %v8813
    %v8815 = vlaneseq
    %v8816 = vshrl.u32 %v8815, 7
    %v8817 = vsub.s32 2, %v8816
    %v8818 = vrot.slane %v8805, %v8817
    %v8819 = vlaneseq
    %v8820 = vshrl.u32 %v8819, 7
    %v8821 = vsub.s32 3, %v8820
    %v8822 = vrot.slane %v8805, %v8821
    %v8823 = vlaneseq
    %v8824 = vshrl.u32 %v8823, 7
    %v8825 = vsub.s32 4, %v8824
    %v8826 = vrot.slane %v8805, %v8825
    %v8827 = vlaneseq
    %v8828 = vshrl.u32 %v8827, 7
    %v8829 = vsub.s32 5, %v8828
    %v8830 = vrot.slane %v8805, %v8829
    %v8837 = vadd.f32 %v8793, %v8810
    %v8838 = vadd.f32 %v8794, %v8814
    %v8839 = vadd.f32 %v8795, %v8818
    %v8840 = vadd.f32 %v8796, %v8822
    %v8841 = vadd.f32 %v8797, %v8826
    %v8842 = vadd.f32 %v8798, %v8830
    %v8843 = vadd.f32 %v8799, %v8810
    %v8844 = vadd.f32 %v8800, %v8814
    %v8845 = vadd.f32 %v8801, %v8818
    %v8846 = vadd.f32 %v8802, %v8822
    %v8847 = vadd.f32 %v8803, %v8826
    %v8848 = vadd.f32 %v8804, %v8830
    %8849 = vst [vmem:[#allocation13] sm:$0xff] %v8837
    %8850 = vst [vmem:[#allocation13 + $0x8] sm:$0xff] %v8838
    %8851 = vst [vmem:[#allocation13 + $0x10] sm:$0xff] %v8839
    %8852 = vst [vmem:[#allocation13 + $0x18] sm:$0xff] %v8840
    %8853 = vst [vmem:[#allocation13 + $0x20] sm:$0xff] %v8841
    %8854 = vst [vmem:[#allocation13 + $0x28] sm:$0xff] %v8842
    %8855 = vst [vmem:[#allocation13 + $0x30] sm:$0xff] %v8843
    %8856 = vst [vmem:[#allocation13 + $0x38] sm:$0xff] %v8844
    %8857 = vst [vmem:[#allocation13 + $0x40] sm:$0xff] %v8845
    %8858 = vst [vmem:[#allocation13 + $0x48] sm:$0xff] %v8846
    %8859 = vst [vmem:[#allocation13 + $0x50] sm:$0xff] %v8847
    %8860 = vst [vmem:[#allocation13 + $0x58] sm:$0xff] %v8848
    // Predicated region
    $region50: #{tpu_custom_call.1} parent=1 // pred_check
      _
    $region51: #{tpu_custom_call.1} parent=1 // pred_check_branch
      %8862 = sbr.rel (0) target = $region53
    $region52: #{tpu_custom_call.1} parent=1 // pred_region
      %s8864 = ssub.s32 1536, 1536
      %8865 = vsyncadd [#allocation4], %s8864
      %s8866 = sshll.u32 [#allocation13], 4
      %s8867 = int_to_ptr.vmem [resolvable:$true] %s8866
      %8872 = dma.vmem_to_hbm [thread:$0]  %s8867, 1536, %s6, [#allocation4], 768, 768, 48
    $region53: #{tpu_custom_call.1} parent=1 // pred_fallthru
      _
    // Predicated region
    $region54: #{tpu_custom_call.1} parent=1 // pred_check
      _
    $region55: #{tpu_custom_call.1} parent=1 // pred_check_branch
      %8874 = sbr.rel (0) target = $region57
    $region56: #{tpu_custom_call.1} parent=1 // pred_region
      %8875 = dma.done [#allocation4], 1536
    $region57: #{tpu_custom_call.1} parent=1 // pred_fallthru
      _
    %8876 = vsyncpa [#allocation3], 1
    %8877 = vsyncpa [#allocation6], 1
    %8878 = vsyncpa [#allocation9], 1
    %8879 = vsyncpa [#allocation12], 1
    %8880 = vsyncpa [#allocation4], 1

</llo_original>
